<compile_context>
chip_gen: v7x
topology: tpu7x:2x2x1
jax: 0.10.0
libtpu: 0.0.40
codegen_flags: <defaults>
</compile_context>

<pallas_src>
import jax
import jax.numpy as jnp
import numpy as np
from jax.experimental import pallas as pl
from jax.experimental.pallas import tpu as pltpu

EPS = 1e-5


def _ibasic_block_kernel(x_ref, w1_ref, w2_ref,
                         s1_ref, b1_ref, b2_ref, alpha_ref, b3_ref,
                         o_ref, pad_ref):
    """One batch-block per grid step.

    x_ref   : (Nb, H, W, Cp)  f32 input tile (NHWC, channels padded to Cp)
    w1/w2   : (9*Cp, Cp)      im2col conv weights (compute_dtype); bn2/bn3
                              scales pre-folded into the output columns
    s1/b1   : (1, Cp)         bn1 folded scale / bias (applied in-kernel, f32)
    b2/b3   : (1, Cp)         bn2 / bn3 folded biases (f32)
    alpha   : (1, Cp)         PReLU slope (f32)
    pad_ref : VMEM scratch (Nb, H+2, W+2, Cp) in compute_dtype, reused by both convs
    """
    Nb, H, W, Cp = x_ref.shape
    pad_dtype = pad_ref.dtype

    # ---- zero only the 1-pixel halo (interior is always fully overwritten).
    # Rows cover the full width (incl. corners); columns only rows 1..H.
    # NOTE: do NOT gate this on program_id==0 - each megacore has its own
    # scratch instance and would see an uninitialised halo.
    zrow = jnp.zeros((Nb, 1, W + 2, Cp), pad_dtype)
    zcol = jnp.zeros((Nb, H, 1, Cp), pad_dtype)
    pad_ref[:, 0:1, :, :] = zrow
    pad_ref[:, H + 1:H + 2, :, :] = zrow
    pad_ref[:, 1:H + 1, 0:1, :] = zcol
    pad_ref[:, 1:H + 1, W + 1:W + 2, :] = zcol

    def conv3x3(w_ref):
        # dx-hoisted im2col: 3 W-shifted views (only dx=1,2 are misaligned
        # sublane slices) and 3 accumulated K=3*Cp matmuls; never materialises
        # a (H, W, 9*Cp) buffer.  K order must stay (dy-major, dx-minor, Cin)
        # to match the host-side weight reshape.
        sh = [pad_ref[:, :, dx:dx + W, :] for dx in range(3)]   # (Nb, H+2, W, Cp)
        acc = None
        for dy in range(3):
            col = jnp.concatenate([s[:, dy:dy + H] for s in sh], axis=-1)
            col = col.reshape(Nb * H * W, 3 * Cp)
            part = jnp.dot(col, w_ref[dy * 3 * Cp:(dy + 1) * 3 * Cp, :],
                           preferred_element_type=jnp.float32)
            acc = part if acc is None else acc + part
        return acc                                              # (Nb*H*W, Cp) f32

    # ---- bn1 (exact, f32; cannot be folded into conv1 because the zero
    #      padding is applied AFTER bn1) ----
    pad_ref[:, 1:H + 1, 1:W + 1, :] = (
        x_ref[...].astype(jnp.float32) * s1_ref[...] + b1_ref[...]
    ).astype(pad_dtype)

    # ---- conv1 (bn2 scale folded into w1) + bn2 bias + PReLU (f32) ----
    h = conv3x3(w1_ref) + b2_ref[...]
    h = jnp.where(h >= 0.0, h, alpha_ref[...] * h)
    pad_ref[:, 1:H + 1, 1:W + 1, :] = h.reshape(Nb, H, W, Cp).astype(pad_dtype)

    # ---- conv2 (bn3 scale folded into w2) + bn3 bias + residual.
    #      x_ref is re-read here (not kept live across both matmuls). ----
    out = conv3x3(w2_ref) + b3_ref[...]
    out = out.reshape(Nb, H, W, Cp) + x_ref[...].astype(jnp.float32)
    o_ref[...] = out.astype(o_ref.dtype)


def _fold_bn(gamma, beta, mean, var):
    scale = gamma * jax.lax.rsqrt(var + EPS)
    return scale, beta - mean * scale


def _pad_vec(v, Cp):
    """Pad a per-channel vector with zeros to Cp (benign padded lanes)."""
    return jnp.pad(v, (0, Cp - v.shape[0])).reshape(1, Cp).astype(jnp.float32)


def _prep_conv_weight(conv_w, out_scale, Cp, compute_dtype):
    """(Cout, Cin, 3, 3) -> (9*Cp, Cp) im2col weight with following-BN scale
    folded into the output columns and Cin/Cout zero-padded to Cp."""
    w = jnp.transpose(conv_w, (2, 3, 1, 0)) * out_scale[None, None, None, :]
    kh, kw, cin, cout = w.shape
    w = jnp.pad(w, ((0, 0), (0, 0), (0, Cp - cin), (0, Cp - cout)))
    return w.reshape(kh * kw * Cp, Cp).astype(compute_dtype)


def _pick_vmem_limit_bytes():
    """Per-generation scoped-VMEM limit: headroom on 64 MiB parts (v7x),
    use the room on 128 MiB parts (v5e/v6e)."""
    cap = 128 * 1024 * 1024
    try:
        info = pltpu.get_tpu_info()
        cap = int(getattr(info, "vmem_capacity_bytes", cap))
    except Exception:
        pass
    return int(min(96 * 1024 * 1024, (cap * 3) // 4))


def ibasic_block(x_in, params, *, compute_dtype=jnp.bfloat16, images_per_step=1,
                 data_format="NCHW"):
    """Pallas forward for IBasicBlock (stride=1, downsample=None, inplanes==planes)."""
    if data_format == "NCHW":
        x = jnp.transpose(x_in, (0, 2, 3, 1))
    elif data_format == "NHWC":
        x = x_in
    else:
        raise ValueError(f"unsupported data_format {data_format!r}")

    x = x.astype(jnp.float32)
    N, H, W, C = x.shape
    Cp = ((C + 127) // 128) * 128          # lane-dense channel padding
    Nb = images_per_step
    assert N % Nb == 0, "images_per_step must divide the batch size"

    s1, b1 = _fold_bn(params["bn1_g"], params["bn1_b"], params["bn1_m"], params["bn1_v"])
    s2, b2 = _fold_bn(params["bn2_g"], params["bn2_b"], params["bn2_m"], params["bn2_v"])
    s3, b3 = _fold_bn(params["bn3_g"], params["bn3_b"], params["bn3_m"], params["bn3_v"])

    w1 = _prep_conv_weight(params["conv1_w"], s2, Cp, compute_dtype)
    w2 = _prep_conv_weight(params["conv2_w"], s3, Cp, compute_dtype)

    s1 = _pad_vec(s1, Cp)
    b1 = _pad_vec(b1, Cp)
    b2 = _pad_vec(b2, Cp)
    b3 = _pad_vec(b3, Cp)
    alpha = _pad_vec(params["prelu_a"], Cp)

    xp = jnp.pad(x, ((0, 0), (0, 0), (0, 0), (0, Cp - C)))

    wt_bytes = int(jnp.dtype(compute_dtype).itemsize)
    cost = pl.CostEstimate(
        flops=4 * N * H * W * (9 * Cp) * Cp,          # two convs, 2*M*K*N each
        transcendentals=0,
        bytes_accessed=(2 * N * H * W * Cp * 4
                        + 2 * 9 * Cp * Cp * wt_bytes + 5 * Cp * 4),
    )
    vmem_limit = _pick_vmem_limit_bytes()

    def launch(single_buffer_consts):
        const_kw = {"pipeline_mode": pl.Buffered(1)} if single_buffer_consts else {}
        img_spec = pl.BlockSpec((Nb, H, W, Cp), lambda n: (n, 0, 0, 0))
        w_spec = pl.BlockSpec((9 * Cp, Cp), lambda n: (0, 0), **const_kw)
        vec_spec = pl.BlockSpec((1, Cp), lambda n: (0, 0), **const_kw)
        return pl.pallas_call(
            _ibasic_block_kernel,
            out_shape=jax.ShapeDtypeStruct((N, H, W, Cp), x_in.dtype),
            grid_spec=pltpu.PrefetchScalarGridSpec(
                num_scalar_prefetch=0,
                grid=(N // Nb,),
                in_specs=[img_spec, w_spec, w_spec,
                          vec_spec, vec_spec, vec_spec, vec_spec, vec_spec],
                out_specs=img_spec,
                scratch_shapes=[pltpu.VMEM((Nb, H + 2, W + 2, Cp), compute_dtype)],
            ),
            compiler_params=pltpu.CompilerParams(
                dimension_semantics=("parallel",),
                vmem_limit_bytes=vmem_limit,
            ),
            cost_estimate=cost,
        )(xp, w1, w2, s1, b1, b2, alpha, b3)

    try:
        out_nhwc = launch(True)
    except Exception:
        # pl.Buffered / pipeline_mode not supported in this JAX build;
        # fall back to default double-buffered constant blocks.
        out_nhwc = launch(False)

    out_nhwc = out_nhwc[..., :C]                      # drop padded channels
    if data_format == "NCHW":
        return jnp.transpose(out_nhwc, (0, 3, 1, 2))
    return out_nhwc


# ----------------------------- pure-JAX reference -----------------------------
def _reference(x, p):
    def bn(t, g, b, m, v):
        g, b, m, v = (a[None, :, None, None] for a in (g, b, m, v))
        return (t - m) * jax.lax.rsqrt(v + EPS) * g + b

    def conv(t, w):
        return jax.lax.conv_general_dilated(
            t, w, window_strides=(1, 1), padding=((1, 1), (1, 1)),
            dimension_numbers=("NCHW", "OIHW", "NCHW"))

    out = bn(x, p["bn1_g"], p["bn1_b"], p["bn1_m"], p["bn1_v"])
    out = conv(out, p["conv1_w"])
    out = bn(out, p["bn2_g"], p["bn2_b"], p["bn2_m"], p["bn2_v"])
    a = p["prelu_a"][None, :, None, None]
    out = jnp.where(out >= 0.0, out, a * out)
    out = conv(out, p["conv2_w"])
    out = bn(out, p["bn3_g"], p["bn3_b"], p["bn3_m"], p["bn3_v"])
    return out + x


# ------------------------------------ main ------------------------------------
if __name__ == "__main__":
    key = jax.random.PRNGKey(0)
    N, C, H, W = 2, 4, 16, 16  # inplanes == planes == 4, stride == 1

    ks = jax.random.split(key, 16)
    params = {
        "conv1_w": 0.1 * jax.random.normal(ks[0], (C, C, 3, 3), jnp.float32),
        "conv2_w": 0.1 * jax.random.normal(ks[1], (C, C, 3, 3), jnp.float32),
        "bn1_g": jax.random.uniform(ks[2], (C,), jnp.float32, 0.8, 1.2),
        "bn1_b": 0.1 * jax.random.normal(ks[3], (C,), jnp.float32),
        "bn1_m": 0.1 * jax.random.normal(ks[4], (C,), jnp.float32),
        "bn1_v": jax.random.uniform(ks[5], (C,), jnp.float32, 0.5, 1.5),
        "bn2_g": jax.random.uniform(ks[6], (C,), jnp.float32, 0.8, 1.2),
        "bn2_b": 0.1 * jax.random.normal(ks[7], (C,), jnp.float32),
        "bn2_m": 0.1 * jax.random.normal(ks[8], (C,), jnp.float32),
        "bn2_v": jax.random.uniform(ks[9], (C,), jnp.float32, 0.5, 1.5),
        "bn3_g": jax.random.uniform(ks[10], (C,), jnp.float32, 0.8, 1.2),
        "bn3_b": 0.1 * jax.random.normal(ks[11], (C,), jnp.float32),
        "bn3_m": 0.1 * jax.random.normal(ks[12], (C,), jnp.float32),
        "bn3_v": jax.random.uniform(ks[13], (C,), jnp.float32, 0.5, 1.5),
        "prelu_a": 0.25 * jnp.ones((C,), jnp.float32),  # PyTorch PReLU default init
    }

    x = jax.random.normal(ks[14], (N, C, H, W), jnp.float32)

    ref = jax.block_until_ready(_reference(x, params))

    # f32 matmul operands / f32 scratch: tight tolerance, one image per step.
    out_f32 = jax.block_until_ready(
        ibasic_block(x, params, compute_dtype=jnp.float32, images_per_step=1))
    np.testing.assert_allclose(np.asarray(out_f32), np.asarray(ref), rtol=1e-4, atol=1e-4)

    # bf16 matmul operands + bf16 pad scratch (f32 accumulation / elementwise),
    # two images per step (M = 2*H*W): looser tolerance.
    out_bf16 = jax.block_until_ready(
        ibasic_block(x, params, compute_dtype=jnp.bfloat16, images_per_step=2))
    np.testing.assert_allclose(np.asarray(out_bf16), np.asarray(ref), rtol=5e-2, atol=5e-2)

    print("KERNEL_OK")
</pallas_src>

<mosaic_0001>
module attributes {stable_mosaic.version = 11 : i64} {
  func.func @_ibasic_block_kernel(%arg0: i32, %arg1: memref<1x16x16x128xf32, #tpu.memory_space<vmem>>, %arg2: memref<1152x128xf32, #tpu.memory_space<vmem>>, %arg3: memref<1152x128xf32, #tpu.memory_space<vmem>>, %arg4: memref<1x128xf32, #tpu.memory_space<vmem>>, %arg5: memref<1x128xf32, #tpu.memory_space<vmem>>, %arg6: memref<1x128xf32, #tpu.memory_space<vmem>>, %arg7: memref<1x128xf32, #tpu.memory_space<vmem>>, %arg8: memref<1x128xf32, #tpu.memory_space<vmem>>, %arg9: memref<1x16x16x128xf32, #tpu.memory_space<vmem>>, %arg10: memref<1x18x18x128xf32, #tpu.memory_space<vmem>>) attributes {dimension_semantics = [#tpu.dimension_semantics<parallel>], iteration_bounds = array<i64: 2>, scalar_prefetch = 0 : i64, scratch_operands = 1 : i64, tpu.core_type = #tpu.core_type<tc>, window_params = [{transform_indices = @transform_0, window_bounds = array<i64: 1, 16, 16, 128>}, {pipeline_mode = #tpu.pipeline_mode<synchronous>, transform_indices = @transform_1, window_bounds = array<i64: 1152, 128>}, {pipeline_mode = #tpu.pipeline_mode<synchronous>, transform_indices = @transform_2, window_bounds = array<i64: 1152, 128>}, {pipeline_mode = #tpu.pipeline_mode<synchronous>, transform_indices = @transform_3, window_bounds = array<i64: 1, 128>}, {pipeline_mode = #tpu.pipeline_mode<synchronous>, transform_indices = @transform_4, window_bounds = array<i64: 1, 128>}, {pipeline_mode = #tpu.pipeline_mode<synchronous>, transform_indices = @transform_5, window_bounds = array<i64: 1, 128>}, {pipeline_mode = #tpu.pipeline_mode<synchronous>, transform_indices = @transform_6, window_bounds = array<i64: 1, 128>}, {pipeline_mode = #tpu.pipeline_mode<synchronous>, transform_indices = @transform_7, window_bounds = array<i64: 1, 128>}, {transform_indices = @transform_8, window_bounds = array<i64: 1, 16, 16, 128>}]} {
    %cst = arith.constant 0.000000e+00 : f32
    %0 = vector.broadcast %cst : f32 to vector<1x1x18x128xf32>
    %cst_0 = arith.constant 0.000000e+00 : f32
    %1 = vector.broadcast %cst_0 : f32 to vector<1x16x1x128xf32>
    %c0 = arith.constant 0 : index
    %c0_1 = arith.constant 0 : index
    %c0_2 = arith.constant 0 : index
    %c0_3 = arith.constant 0 : index
    %2 = vector.load %arg10[%c0, %c0_1, %c0_2, %c0_3] : memref<1x18x18x128xf32, #tpu.memory_space<vmem>>, vector<1x1x18x128xf32>
    tpu.vector_store %arg10[%c0, %c0_1, %c0_2, %c0_3], %0 {strides = array<i32>} : memref<1x18x18x128xf32, #tpu.memory_space<vmem>>, vector<1x1x18x128xf32>,
    %c0_4 = arith.constant 0 : index
    %c17 = arith.constant 17 : index
    %c0_5 = arith.constant 0 : index
    %c0_6 = arith.constant 0 : index
    %3 = vector.load %arg10[%c0_4, %c17, %c0_5, %c0_6] : memref<1x18x18x128xf32, #tpu.memory_space<vmem>>, vector<1x1x18x128xf32>
    tpu.vector_store %arg10[%c0_4, %c17, %c0_5, %c0_6], %0 {strides = array<i32>} : memref<1x18x18x128xf32, #tpu.memory_space<vmem>>, vector<1x1x18x128xf32>,
    %c0_7 = arith.constant 0 : index
    %c1 = arith.constant 1 : index
    %c0_8 = arith.constant 0 : index
    %c0_9 = arith.constant 0 : index
    %4 = vector.load %arg10[%c0_7, %c1, %c0_8, %c0_9] : memref<1x18x18x128xf32, #tpu.memory_space<vmem>>, vector<1x16x1x128xf32>
    tpu.vector_store %arg10[%c0_7, %c1, %c0_8, %c0_9], %1 {strides = array<i32>} : memref<1x18x18x128xf32, #tpu.memory_space<vmem>>, vector<1x16x1x128xf32>,
    %c0_10 = arith.constant 0 : index
    %c1_11 = arith.constant 1 : index
    %c17_12 = arith.constant 17 : index
    %c0_13 = arith.constant 0 : index
    %5 = vector.load %arg10[%c0_10, %c1_11, %c17_12, %c0_13] : memref<1x18x18x128xf32, #tpu.memory_space<vmem>>, vector<1x16x1x128xf32>
    tpu.vector_store %arg10[%c0_10, %c1_11, %c17_12, %c0_13], %1 {strides = array<i32>} : memref<1x18x18x128xf32, #tpu.memory_space<vmem>>, vector<1x16x1x128xf32>,
    %c0_14 = arith.constant 0 : index
    %c0_15 = arith.constant 0 : index
    %c0_16 = arith.constant 0 : index
    %c0_17 = arith.constant 0 : index
    %6 = vector.load %arg1[%c0_14, %c0_15, %c0_16, %c0_17] : memref<1x16x16x128xf32, #tpu.memory_space<vmem>>, vector<1x16x16x128xf32>
    %c0_18 = arith.constant 0 : index
    %c0_19 = arith.constant 0 : index
    %7 = vector.load %arg4[%c0_18, %c0_19] : memref<1x128xf32, #tpu.memory_space<vmem>>, vector<1x128xf32>
    %8 = vector.shape_cast %7 : vector<1x128xf32> to vector<1x1x1x128xf32>
    %9 = vector.broadcast %8 : vector<1x1x1x128xf32> to vector<1x16x16x128xf32>
    %10 = arith.mulf %6, %9 : vector<1x16x16x128xf32>
    %c0_20 = arith.constant 0 : index
    %c0_21 = arith.constant 0 : index
    %11 = vector.load %arg5[%c0_20, %c0_21] : memref<1x128xf32, #tpu.memory_space<vmem>>, vector<1x128xf32>
    %12 = vector.shape_cast %11 : vector<1x128xf32> to vector<1x1x1x128xf32>
    %13 = vector.broadcast %12 : vector<1x1x1x128xf32> to vector<1x16x16x128xf32>
    %14 = arith.addf %10, %13 : vector<1x16x16x128xf32>
    %c0_22 = arith.constant 0 : index
    %c1_23 = arith.constant 1 : index
    %c1_24 = arith.constant 1 : index
    %c0_25 = arith.constant 0 : index
    %15 = vector.load %arg10[%c0_22, %c1_23, %c1_24, %c0_25] : memref<1x18x18x128xf32, #tpu.memory_space<vmem>>, vector<1x16x16x128xf32>
    tpu.vector_store %arg10[%c0_22, %c1_23, %c1_24, %c0_25], %14 {strides = array<i32>} : memref<1x18x18x128xf32, #tpu.memory_space<vmem>>, vector<1x16x16x128xf32>,
    %c0_26 = arith.constant 0 : index
    %c0_27 = arith.constant 0 : index
    %c0_28 = arith.constant 0 : index
    %c0_29 = arith.constant 0 : index
    %16 = vector.load %arg10[%c0_26, %c0_27, %c0_28, %c0_29] : memref<1x18x18x128xf32, #tpu.memory_space<vmem>>, vector<1x18x16x128xf32>
    %c0_30 = arith.constant 0 : index
    %c0_31 = arith.constant 0 : index
    %c1_32 = arith.constant 1 : index
    %c0_33 = arith.constant 0 : index
    %17 = vector.load %arg10[%c0_30, %c0_31, %c1_32, %c0_33] : memref<1x18x18x128xf32, #tpu.memory_space<vmem>>, vector<1x18x16x128xf32>
    %c0_34 = arith.constant 0 : index
    %c0_35 = arith.constant 0 : index
    %c2 = arith.constant 2 : index
    %c0_36 = arith.constant 0 : index
    %18 = vector.load %arg10[%c0_34, %c0_35, %c2, %c0_36] : memref<1x18x18x128xf32, #tpu.memory_space<vmem>>, vector<1x18x16x128xf32>
    %19 = vector.extract_strided_slice %16 {offsets = [0, 0, 0, 0], sizes = [1, 16, 16, 128], strides = [1, 1, 1, 1]} : vector<1x18x16x128xf32> to vector<1x16x16x128xf32>
    %20 = vector.extract_strided_slice %17 {offsets = [0, 0, 0, 0], sizes = [1, 16, 16, 128], strides = [1, 1, 1, 1]} : vector<1x18x16x128xf32> to vector<1x16x16x128xf32>
    %21 = vector.extract_strided_slice %18 {offsets = [0, 0, 0, 0], sizes = [1, 16, 16, 128], strides = [1, 1, 1, 1]} : vector<1x18x16x128xf32> to vector<1x16x16x128xf32>
    %22 = tpu.concatenate %19, %20, %21 in 3 : vector<1x16x16x128xf32>, vector<1x16x16x128xf32>, vector<1x16x16x128xf32> -> vector<1x16x16x384xf32>
    %23 = vector.shape_cast %22 : vector<1x16x16x384xf32> to vector<256x384xf32>
    %c0_37 = arith.constant 0 : index
    %c0_38 = arith.constant 0 : index
    %24 = vector.load %arg2[%c0_37, %c0_38] : memref<1152x128xf32, #tpu.memory_space<vmem>>, vector<384x128xf32>
    %cst_39 = arith.constant dense<0.000000e+00> : vector<256x128xf32>
    %25 = tpu.matmul %23, %24, %cst_39 {dimension_numbers = #tpu.dot_dimension_numbers<[1], [0], [0], [1], [0, 0, 1, 1], [], []>} : vector<256x384xf32>, vector<384x128xf32>, vector<256x128xf32> -> vector<256x128xf32>
    %26 = vector.extract_strided_slice %16 {offsets = [0, 1, 0, 0], sizes = [1, 16, 16, 128], strides = [1, 1, 1, 1]} : vector<1x18x16x128xf32> to vector<1x16x16x128xf32>
    %27 = vector.extract_strided_slice %17 {offsets = [0, 1, 0, 0], sizes = [1, 16, 16, 128], strides = [1, 1, 1, 1]} : vector<1x18x16x128xf32> to vector<1x16x16x128xf32>
    %28 = vector.extract_strided_slice %18 {offsets = [0, 1, 0, 0], sizes = [1, 16, 16, 128], strides = [1, 1, 1, 1]} : vector<1x18x16x128xf32> to vector<1x16x16x128xf32>
    %29 = tpu.concatenate %26, %27, %28 in 3 : vector<1x16x16x128xf32>, vector<1x16x16x128xf32>, vector<1x16x16x128xf32> -> vector<1x16x16x384xf32>
    %30 = vector.shape_cast %29 : vector<1x16x16x384xf32> to vector<256x384xf32>
    %c384 = arith.constant 384 : index
    %c0_40 = arith.constant 0 : index
    %31 = vector.load %arg2[%c384, %c0_40] : memref<1152x128xf32, #tpu.memory_space<vmem>>, vector<384x128xf32>
    %cst_41 = arith.constant dense<0.000000e+00> : vector<256x128xf32>
    %32 = tpu.matmul %30, %31, %cst_41 {dimension_numbers = #tpu.dot_dimension_numbers<[1], [0], [0], [1], [0, 0, 1, 1], [], []>} : vector<256x384xf32>, vector<384x128xf32>, vector<256x128xf32> -> vector<256x128xf32>
    %33 = arith.addf %25, %32 : vector<256x128xf32>
    %34 = vector.extract_strided_slice %16 {offsets = [0, 2, 0, 0], sizes = [1, 16, 16, 128], strides = [1, 1, 1, 1]} : vector<1x18x16x128xf32> to vector<1x16x16x128xf32>
    %35 = vector.extract_strided_slice %17 {offsets = [0, 2, 0, 0], sizes = [1, 16, 16, 128], strides = [1, 1, 1, 1]} : vector<1x18x16x128xf32> to vector<1x16x16x128xf32>
    %36 = vector.extract_strided_slice %18 {offsets = [0, 2, 0, 0], sizes = [1, 16, 16, 128], strides = [1, 1, 1, 1]} : vector<1x18x16x128xf32> to vector<1x16x16x128xf32>
    %37 = tpu.concatenate %34, %35, %36 in 3 : vector<1x16x16x128xf32>, vector<1x16x16x128xf32>, vector<1x16x16x128xf32> -> vector<1x16x16x384xf32>
    %38 = vector.shape_cast %37 : vector<1x16x16x384xf32> to vector<256x384xf32>
    %c768 = arith.constant 768 : index
    %c0_42 = arith.constant 0 : index
    %39 = vector.load %arg2[%c768, %c0_42] : memref<1152x128xf32, #tpu.memory_space<vmem>>, vector<384x128xf32>
    %cst_43 = arith.constant dense<0.000000e+00> : vector<256x128xf32>
    %40 = tpu.matmul %38, %39, %cst_43 {dimension_numbers = #tpu.dot_dimension_numbers<[1], [0], [0], [1], [0, 0, 1, 1], [], []>} : vector<256x384xf32>, vector<384x128xf32>, vector<256x128xf32> -> vector<256x128xf32>
    %41 = arith.addf %33, %40 : vector<256x128xf32>
    %c0_44 = arith.constant 0 : index
    %c0_45 = arith.constant 0 : index
    %42 = vector.load %arg6[%c0_44, %c0_45] : memref<1x128xf32, #tpu.memory_space<vmem>>, vector<1x128xf32>
    %43 = vector.broadcast %42 : vector<1x128xf32> to vector<256x128xf32>
    %44 = arith.addf %41, %43 : vector<256x128xf32>
    %cst_46 = arith.constant 0.000000e+00 : f32
    %45 = vector.broadcast %cst_46 : f32 to vector<256x128xf32>
    %46 = arith.cmpf oge, %44, %45 : vector<256x128xf32>
    %c0_47 = arith.constant 0 : index
    %c0_48 = arith.constant 0 : index
    %47 = vector.load %arg7[%c0_47, %c0_48] : memref<1x128xf32, #tpu.memory_space<vmem>>, vector<1x128xf32>
    %48 = vector.broadcast %47 : vector<1x128xf32> to vector<256x128xf32>
    %49 = arith.mulf %48, %44 : vector<256x128xf32>
    %50 = arith.select %46, %44, %49 : vector<256x128xi1>, vector<256x128xf32>
    %51 = vector.shape_cast %50 : vector<256x128xf32> to vector<1x16x16x128xf32>
    %c0_49 = arith.constant 0 : index
    %c1_50 = arith.constant 1 : index
    %c1_51 = arith.constant 1 : index
    %c0_52 = arith.constant 0 : index
    %52 = vector.load %arg10[%c0_49, %c1_50, %c1_51, %c0_52] : memref<1x18x18x128xf32, #tpu.memory_space<vmem>>, vector<1x16x16x128xf32>
    tpu.vector_store %arg10[%c0_49, %c1_50, %c1_51, %c0_52], %51 {strides = array<i32>} : memref<1x18x18x128xf32, #tpu.memory_space<vmem>>, vector<1x16x16x128xf32>,
    %c0_53 = arith.constant 0 : index
    %c0_54 = arith.constant 0 : index
    %c0_55 = arith.constant 0 : index
    %c0_56 = arith.constant 0 : index
    %53 = vector.load %arg10[%c0_53, %c0_54, %c0_55, %c0_56] : memref<1x18x18x128xf32, #tpu.memory_space<vmem>>, vector<1x18x16x128xf32>
    %c0_57 = arith.constant 0 : index
    %c0_58 = arith.constant 0 : index
    %c1_59 = arith.constant 1 : index
    %c0_60 = arith.constant 0 : index
    %54 = vector.load %arg10[%c0_57, %c0_58, %c1_59, %c0_60] : memref<1x18x18x128xf32, #tpu.memory_space<vmem>>, vector<1x18x16x128xf32>
    %c0_61 = arith.constant 0 : index
    %c0_62 = arith.constant 0 : index
    %c2_63 = arith.constant 2 : index
    %c0_64 = arith.constant 0 : index
    %55 = vector.load %arg10[%c0_61, %c0_62, %c2_63, %c0_64] : memref<1x18x18x128xf32, #tpu.memory_space<vmem>>, vector<1x18x16x128xf32>
    %56 = vector.extract_strided_slice %53 {offsets = [0, 0, 0, 0], sizes = [1, 16, 16, 128], strides = [1, 1, 1, 1]} : vector<1x18x16x128xf32> to vector<1x16x16x128xf32>
    %57 = vector.extract_strided_slice %54 {offsets = [0, 0, 0, 0], sizes = [1, 16, 16, 128], strides = [1, 1, 1, 1]} : vector<1x18x16x128xf32> to vector<1x16x16x128xf32>
    %58 = vector.extract_strided_slice %55 {offsets = [0, 0, 0, 0], sizes = [1, 16, 16, 128], strides = [1, 1, 1, 1]} : vector<1x18x16x128xf32> to vector<1x16x16x128xf32>
    %59 = tpu.concatenate %56, %57, %58 in 3 : vector<1x16x16x128xf32>, vector<1x16x16x128xf32>, vector<1x16x16x128xf32> -> vector<1x16x16x384xf32>
    %60 = vector.shape_cast %59 : vector<1x16x16x384xf32> to vector<256x384xf32>
    %c0_65 = arith.constant 0 : index
    %c0_66 = arith.constant 0 : index
    %61 = vector.load %arg3[%c0_65, %c0_66] : memref<1152x128xf32, #tpu.memory_space<vmem>>, vector<384x128xf32>
    %cst_67 = arith.constant dense<0.000000e+00> : vector<256x128xf32>
    %62 = tpu.matmul %60, %61, %cst_67 {dimension_numbers = #tpu.dot_dimension_numbers<[1], [0], [0], [1], [0, 0, 1, 1], [], []>} : vector<256x384xf32>, vector<384x128xf32>, vector<256x128xf32> -> vector<256x128xf32>
    %63 = vector.extract_strided_slice %53 {offsets = [0, 1, 0, 0], sizes = [1, 16, 16, 128], strides = [1, 1, 1, 1]} : vector<1x18x16x128xf32> to vector<1x16x16x128xf32>
    %64 = vector.extract_strided_slice %54 {offsets = [0, 1, 0, 0], sizes = [1, 16, 16, 128], strides = [1, 1, 1, 1]} : vector<1x18x16x128xf32> to vector<1x16x16x128xf32>
    %65 = vector.extract_strided_slice %55 {offsets = [0, 1, 0, 0], sizes = [1, 16, 16, 128], strides = [1, 1, 1, 1]} : vector<1x18x16x128xf32> to vector<1x16x16x128xf32>
    %66 = tpu.concatenate %63, %64, %65 in 3 : vector<1x16x16x128xf32>, vector<1x16x16x128xf32>, vector<1x16x16x128xf32> -> vector<1x16x16x384xf32>
    %67 = vector.shape_cast %66 : vector<1x16x16x384xf32> to vector<256x384xf32>
    %c384_68 = arith.constant 384 : index
    %c0_69 = arith.constant 0 : index
    %68 = vector.load %arg3[%c384_68, %c0_69] : memref<1152x128xf32, #tpu.memory_space<vmem>>, vector<384x128xf32>
    %cst_70 = arith.constant dense<0.000000e+00> : vector<256x128xf32>
    %69 = tpu.matmul %67, %68, %cst_70 {dimension_numbers = #tpu.dot_dimension_numbers<[1], [0], [0], [1], [0, 0, 1, 1], [], []>} : vector<256x384xf32>, vector<384x128xf32>, vector<256x128xf32> -> vector<256x128xf32>
    %70 = arith.addf %62, %69 : vector<256x128xf32>
    %71 = vector.extract_strided_slice %53 {offsets = [0, 2, 0, 0], sizes = [1, 16, 16, 128], strides = [1, 1, 1, 1]} : vector<1x18x16x128xf32> to vector<1x16x16x128xf32>
    %72 = vector.extract_strided_slice %54 {offsets = [0, 2, 0, 0], sizes = [1, 16, 16, 128], strides = [1, 1, 1, 1]} : vector<1x18x16x128xf32> to vector<1x16x16x128xf32>
    %73 = vector.extract_strided_slice %55 {offsets = [0, 2, 0, 0], sizes = [1, 16, 16, 128], strides = [1, 1, 1, 1]} : vector<1x18x16x128xf32> to vector<1x16x16x128xf32>
    %74 = tpu.concatenate %71, %72, %73 in 3 : vector<1x16x16x128xf32>, vector<1x16x16x128xf32>, vector<1x16x16x128xf32> -> vector<1x16x16x384xf32>
    %75 = vector.shape_cast %74 : vector<1x16x16x384xf32> to vector<256x384xf32>
    %c768_71 = arith.constant 768 : index
    %c0_72 = arith.constant 0 : index
    %76 = vector.load %arg3[%c768_71, %c0_72] : memref<1152x128xf32, #tpu.memory_space<vmem>>, vector<384x128xf32>
    %cst_73 = arith.constant dense<0.000000e+00> : vector<256x128xf32>
    %77 = tpu.matmul %75, %76, %cst_73 {dimension_numbers = #tpu.dot_dimension_numbers<[1], [0], [0], [1], [0, 0, 1, 1], [], []>} : vector<256x384xf32>, vector<384x128xf32>, vector<256x128xf32> -> vector<256x128xf32>
    %78 = arith.addf %70, %77 : vector<256x128xf32>
    %c0_74 = arith.constant 0 : index
    %c0_75 = arith.constant 0 : index
    %79 = vector.load %arg8[%c0_74, %c0_75] : memref<1x128xf32, #tpu.memory_space<vmem>>, vector<1x128xf32>
    %80 = vector.broadcast %79 : vector<1x128xf32> to vector<256x128xf32>
    %81 = arith.addf %78, %80 : vector<256x128xf32>
    %82 = vector.shape_cast %81 : vector<256x128xf32> to vector<1x16x16x128xf32>
    %c0_76 = arith.constant 0 : index
    %c0_77 = arith.constant 0 : index
    %c0_78 = arith.constant 0 : index
    %c0_79 = arith.constant 0 : index
    %83 = vector.load %arg1[%c0_76, %c0_77, %c0_78, %c0_79] : memref<1x16x16x128xf32, #tpu.memory_space<vmem>>, vector<1x16x16x128xf32>
    %84 = arith.addf %82, %83 : vector<1x16x16x128xf32>
    %c0_80 = arith.constant 0 : index
    %c0_81 = arith.constant 0 : index
    %c0_82 = arith.constant 0 : index
    %c0_83 = arith.constant 0 : index
    %85 = vector.load %arg9[%c0_80, %c0_81, %c0_82, %c0_83] : memref<1x16x16x128xf32, #tpu.memory_space<vmem>>, vector<1x16x16x128xf32>
    tpu.vector_store %arg9[%c0_80, %c0_81, %c0_82, %c0_83], %84 {strides = array<i32>} : memref<1x16x16x128xf32, #tpu.memory_space<vmem>>, vector<1x16x16x128xf32>,
    return
  }
  func.func @transform_0(%arg0: i32) -> (i32, i32, i32, i32) {
    %c0_i32 = arith.constant 0 : i32
    %c0_i32_0 = arith.constant 0 : i32
    %c0_i32_1 = arith.constant 0 : i32
    %c0_i32_2 = arith.constant 0 : i32
    return %arg0, %c0_i32, %c0_i32_0, %c0_i32_1 : i32, i32, i32, i32
  }
  func.func @transform_1(%arg0: i32) -> (i32, i32) {
    %c0_i32 = arith.constant 0 : i32
    %c0_i32_0 = arith.constant 0 : i32
    %c0_i32_1 = arith.constant 0 : i32
    return %c0_i32, %c0_i32_0 : i32, i32
  }
  func.func @transform_2(%arg0: i32) -> (i32, i32) {
    %c0_i32 = arith.constant 0 : i32
    %c0_i32_0 = arith.constant 0 : i32
    %c0_i32_1 = arith.constant 0 : i32
    return %c0_i32, %c0_i32_0 : i32, i32
  }
  func.func @transform_3(%arg0: i32) -> (i32, i32) {
    %c0_i32 = arith.constant 0 : i32
    %c0_i32_0 = arith.constant 0 : i32
    %c0_i32_1 = arith.constant 0 : i32
    return %c0_i32, %c0_i32_0 : i32, i32
  }
  func.func @transform_4(%arg0: i32) -> (i32, i32) {
    %c0_i32 = arith.constant 0 : i32
    %c0_i32_0 = arith.constant 0 : i32
    %c0_i32_1 = arith.constant 0 : i32
    return %c0_i32, %c0_i32_0 : i32, i32
  }
  func.func @transform_5(%arg0: i32) -> (i32, i32) {
    %c0_i32 = arith.constant 0 : i32
    %c0_i32_0 = arith.constant 0 : i32
    %c0_i32_1 = arith.constant 0 : i32
    return %c0_i32, %c0_i32_0 : i32, i32
  }
  func.func @transform_6(%arg0: i32) -> (i32, i32) {
    %c0_i32 = arith.constant 0 : i32
    %c0_i32_0 = arith.constant 0 : i32
    %c0_i32_1 = arith.constant 0 : i32
    return %c0_i32, %c0_i32_0 : i32, i32
  }
  func.func @transform_7(%arg0: i32) -> (i32, i32) {
    %c0_i32 = arith.constant 0 : i32
    %c0_i32_0 = arith.constant 0 : i32
    %c0_i32_1 = arith.constant 0 : i32
    return %c0_i32, %c0_i32_0 : i32, i32
  }
  func.func @transform_8(%arg0: i32) -> (i32, i32, i32, i32) {
    %c0_i32 = arith.constant 0 : i32
    %c0_i32_0 = arith.constant 0 : i32
    %c0_i32_1 = arith.constant 0 : i32
    %c0_i32_2 = arith.constant 0 : i32
    return %arg0, %c0_i32, %c0_i32_0, %c0_i32_1 : i32, i32, i32, i32
  }
}

module attributes {stable_mosaic.version = 11 : i64} {
  func.func @_ibasic_block_kernel(%arg0: i32, %arg1: memref<1x16x16x128xf32, #tpu.memory_space<vmem>>, %arg2: memref<1152x128xf32, #tpu.memory_space<vmem>>, %arg3: memref<1152x128xf32, #tpu.memory_space<vmem>>, %arg4: memref<1x128xf32, #tpu.memory_space<vmem>>, %arg5: memref<1x128xf32, #tpu.memory_space<vmem>>, %arg6: memref<1x128xf32, #tpu.memory_space<vmem>>, %arg7: memref<1x128xf32, #tpu.memory_space<vmem>>, %arg8: memref<1x128xf32, #tpu.memory_space<vmem>>, %arg9: memref<1x16x16x128xf32, #tpu.memory_space<vmem>>, %arg10: memref<1x18x18x128xf32, #tpu.memory_space<vmem>>) attributes {dimension_semantics = [#tpu.dimension_semantics<parallel>], iteration_bounds = array<i64: 2>, scalar_prefetch = 0 : i64, scratch_operands = 1 : i64, tpu.core_type = #tpu.core_type<tc>, window_params = [{transform_indices = @transform_0, window_bounds = array<i64: 1, 16, 16, 128>}, {pipeline_mode = #tpu.pipeline_mode<synchronous>, transform_indices = @transform_1, window_bounds = array<i64: 1152, 128>}, {pipeline_mode = #tpu.pipeline_mode<synchronous>, transform_indices = @transform_2, window_bounds = array<i64: 1152, 128>}, {pipeline_mode = #tpu.pipeline_mode<synchronous>, transform_indices = @transform_3, window_bounds = array<i64: 1, 128>}, {pipeline_mode = #tpu.pipeline_mode<synchronous>, transform_indices = @transform_4, window_bounds = array<i64: 1, 128>}, {pipeline_mode = #tpu.pipeline_mode<synchronous>, transform_indices = @transform_5, window_bounds = array<i64: 1, 128>}, {pipeline_mode = #tpu.pipeline_mode<synchronous>, transform_indices = @transform_6, window_bounds = array<i64: 1, 128>}, {pipeline_mode = #tpu.pipeline_mode<synchronous>, transform_indices = @transform_7, window_bounds = array<i64: 1, 128>}, {transform_indices = @transform_8, window_bounds = array<i64: 1, 16, 16, 128>}]} {
    %cst = arith.constant 0.000000e+00 : f32
    %0 = vector.broadcast %cst : f32 to vector<1x1x18x128xf32>
    %cst_0 = arith.constant 0.000000e+00 : f32
    %1 = vector.broadcast %cst_0 : f32 to vector<1x16x1x128xf32>
    %c0 = arith.constant 0 : index
    %c0_1 = arith.constant 0 : index
    %c0_2 = arith.constant 0 : index
    %c0_3 = arith.constant 0 : index
    %2 = vector.load %arg10[%c0, %c0_1, %c0_2, %c0_3] : memref<1x18x18x128xf32, #tpu.memory_space<vmem>>, vector<1x1x18x128xf32>
    tpu.vector_store %arg10[%c0, %c0_1, %c0_2, %c0_3], %0 {strides = array<i32>} : memref<1x18x18x128xf32, #tpu.memory_space<vmem>>, vector<1x1x18x128xf32>,
    %c0_4 = arith.constant 0 : index
    %c17 = arith.constant 17 : index
    %c0_5 = arith.constant 0 : index
    %c0_6 = arith.constant 0 : index
    %3 = vector.load %arg10[%c0_4, %c17, %c0_5, %c0_6] : memref<1x18x18x128xf32, #tpu.memory_space<vmem>>, vector<1x1x18x128xf32>
    tpu.vector_store %arg10[%c0_4, %c17, %c0_5, %c0_6], %0 {strides = array<i32>} : memref<1x18x18x128xf32, #tpu.memory_space<vmem>>, vector<1x1x18x128xf32>,
    %c0_7 = arith.constant 0 : index
    %c1 = arith.constant 1 : index
    %c0_8 = arith.constant 0 : index
    %c0_9 = arith.constant 0 : index
    %4 = vector.load %arg10[%c0_7, %c1, %c0_8, %c0_9] : memref<1x18x18x128xf32, #tpu.memory_space<vmem>>, vector<1x16x1x128xf32>
    tpu.vector_store %arg10[%c0_7, %c1, %c0_8, %c0_9], %1 {strides = array<i32>} : memref<1x18x18x128xf32, #tpu.memory_space<vmem>>, vector<1x16x1x128xf32>,
    %c0_10 = arith.constant 0 : index
    %c1_11 = arith.constant 1 : index
    %c17_12 = arith.constant 17 : index
    %c0_13 = arith.constant 0 : index
    %5 = vector.load %arg10[%c0_10, %c1_11, %c17_12, %c0_13] : memref<1x18x18x128xf32, #tpu.memory_space<vmem>>, vector<1x16x1x128xf32>
    tpu.vector_store %arg10[%c0_10, %c1_11, %c17_12, %c0_13], %1 {strides = array<i32>} : memref<1x18x18x128xf32, #tpu.memory_space<vmem>>, vector<1x16x1x128xf32>,
    %c0_14 = arith.constant 0 : index
    %c0_15 = arith.constant 0 : index
    %c0_16 = arith.constant 0 : index
    %c0_17 = arith.constant 0 : index
    %6 = vector.load %arg1[%c0_14, %c0_15, %c0_16, %c0_17] : memref<1x16x16x128xf32, #tpu.memory_space<vmem>>, vector<1x16x16x128xf32>
    %c0_18 = arith.constant 0 : index
    %c0_19 = arith.constant 0 : index
    %7 = vector.load %arg4[%c0_18, %c0_19] : memref<1x128xf32, #tpu.memory_space<vmem>>, vector<1x128xf32>
    %8 = vector.shape_cast %7 : vector<1x128xf32> to vector<1x1x1x128xf32>
    %9 = vector.broadcast %8 : vector<1x1x1x128xf32> to vector<1x16x16x128xf32>
    %10 = arith.mulf %6, %9 : vector<1x16x16x128xf32>
    %c0_20 = arith.constant 0 : index
    %c0_21 = arith.constant 0 : index
    %11 = vector.load %arg5[%c0_20, %c0_21] : memref<1x128xf32, #tpu.memory_space<vmem>>, vector<1x128xf32>
    %12 = vector.shape_cast %11 : vector<1x128xf32> to vector<1x1x1x128xf32>
    %13 = vector.broadcast %12 : vector<1x1x1x128xf32> to vector<1x16x16x128xf32>
    %14 = arith.addf %10, %13 : vector<1x16x16x128xf32>
    %c0_22 = arith.constant 0 : index
    %c1_23 = arith.constant 1 : index
    %c1_24 = arith.constant 1 : index
    %c0_25 = arith.constant 0 : index
    %15 = vector.load %arg10[%c0_22, %c1_23, %c1_24, %c0_25] : memref<1x18x18x128xf32, #tpu.memory_space<vmem>>, vector<1x16x16x128xf32>
    tpu.vector_store %arg10[%c0_22, %c1_23, %c1_24, %c0_25], %14 {strides = array<i32>} : memref<1x18x18x128xf32, #tpu.memory_space<vmem>>, vector<1x16x16x128xf32>,
    %c0_26 = arith.constant 0 : index
    %c0_27 = arith.constant 0 : index
    %c0_28 = arith.constant 0 : index
    %c0_29 = arith.constant 0 : index
    %16 = vector.load %arg10[%c0_26, %c0_27, %c0_28, %c0_29] : memref<1x18x18x128xf32, #tpu.memory_space<vmem>>, vector<1x18x16x128xf32>
    %c0_30 = arith.constant 0 : index
    %c0_31 = arith.constant 0 : index
    %c1_32 = arith.constant 1 : index
    %c0_33 = arith.constant 0 : index
    %17 = vector.load %arg10[%c0_30, %c0_31, %c1_32, %c0_33] : memref<1x18x18x128xf32, #tpu.memory_space<vmem>>, vector<1x18x16x128xf32>
    %c0_34 = arith.constant 0 : index
    %c0_35 = arith.constant 0 : index
    %c2 = arith.constant 2 : index
    %c0_36 = arith.constant 0 : index
    %18 = vector.load %arg10[%c0_34, %c0_35, %c2, %c0_36] : memref<1x18x18x128xf32, #tpu.memory_space<vmem>>, vector<1x18x16x128xf32>
    %19 = vector.extract_strided_slice %16 {offsets = [0, 0, 0, 0], sizes = [1, 16, 16, 128], strides = [1, 1, 1, 1]} : vector<1x18x16x128xf32> to vector<1x16x16x128xf32>
    %20 = vector.extract_strided_slice %17 {offsets = [0, 0, 0, 0], sizes = [1, 16, 16, 128], strides = [1, 1, 1, 1]} : vector<1x18x16x128xf32> to vector<1x16x16x128xf32>
    %21 = vector.extract_strided_slice %18 {offsets = [0, 0, 0, 0], sizes = [1, 16, 16, 128], strides = [1, 1, 1, 1]} : vector<1x18x16x128xf32> to vector<1x16x16x128xf32>
    %22 = tpu.concatenate %19, %20, %21 in 3 : vector<1x16x16x128xf32>, vector<1x16x16x128xf32>, vector<1x16x16x128xf32> -> vector<1x16x16x384xf32>
    %23 = vector.shape_cast %22 : vector<1x16x16x384xf32> to vector<256x384xf32>
    %c0_37 = arith.constant 0 : index
    %c0_38 = arith.constant 0 : index
    %24 = vector.load %arg2[%c0_37, %c0_38] : memref<1152x128xf32, #tpu.memory_space<vmem>>, vector<384x128xf32>
    %cst_39 = arith.constant dense<0.000000e+00> : vector<256x128xf32>
    %25 = tpu.matmul %23, %24, %cst_39 {dimension_numbers = #tpu.dot_dimension_numbers<[1], [0], [0], [1], [0, 0, 1, 1], [], []>} : vector<256x384xf32>, vector<384x128xf32>, vector<256x128xf32> -> vector<256x128xf32>
    %26 = vector.extract_strided_slice %16 {offsets = [0, 1, 0, 0], sizes = [1, 16, 16, 128], strides = [1, 1, 1, 1]} : vector<1x18x16x128xf32> to vector<1x16x16x128xf32>
    %27 = vector.extract_strided_slice %17 {offsets = [0, 1, 0, 0], sizes = [1, 16, 16, 128], strides = [1, 1, 1, 1]} : vector<1x18x16x128xf32> to vector<1x16x16x128xf32>
    %28 = vector.extract_strided_slice %18 {offsets = [0, 1, 0, 0], sizes = [1, 16, 16, 128], strides = [1, 1, 1, 1]} : vector<1x18x16x128xf32> to vector<1x16x16x128xf32>
    %29 = tpu.concatenate %26, %27, %28 in 3 : vector<1x16x16x128xf32>, vector<1x16x16x128xf32>, vector<1x16x16x128xf32> -> vector<1x16x16x384xf32>
    %30 = vector.shape_cast %29 : vector<1x16x16x384xf32> to vector<256x384xf32>
    %c384 = arith.constant 384 : index
    %c0_40 = arith.constant 0 : index
    %31 = vector.load %arg2[%c384, %c0_40] : memref<1152x128xf32, #tpu.memory_space<vmem>>, vector<384x128xf32>
    %cst_41 = arith.constant dense<0.000000e+00> : vector<256x128xf32>
    %32 = tpu.matmul %30, %31, %cst_41 {dimension_numbers = #tpu.dot_dimension_numbers<[1], [0], [0], [1], [0, 0, 1, 1], [], []>} : vector<256x384xf32>, vector<384x128xf32>, vector<256x128xf32> -> vector<256x128xf32>
    %33 = arith.addf %25, %32 : vector<256x128xf32>
    %34 = vector.extract_strided_slice %16 {offsets = [0, 2, 0, 0], sizes = [1, 16, 16, 128], strides = [1, 1, 1, 1]} : vector<1x18x16x128xf32> to vector<1x16x16x128xf32>
    %35 = vector.extract_strided_slice %17 {offsets = [0, 2, 0, 0], sizes = [1, 16, 16, 128], strides = [1, 1, 1, 1]} : vector<1x18x16x128xf32> to vector<1x16x16x128xf32>
    %36 = vector.extract_strided_slice %18 {offsets = [0, 2, 0, 0], sizes = [1, 16, 16, 128], strides = [1, 1, 1, 1]} : vector<1x18x16x128xf32> to vector<1x16x16x128xf32>
    %37 = tpu.concatenate %34, %35, %36 in 3 : vector<1x16x16x128xf32>, vector<1x16x16x128xf32>, vector<1x16x16x128xf32> -> vector<1x16x16x384xf32>
    %38 = vector.shape_cast %37 : vector<1x16x16x384xf32> to vector<256x384xf32>
    %c768 = arith.constant 768 : index
    %c0_42 = arith.constant 0 : index
    %39 = vector.load %arg2[%c768, %c0_42] : memref<1152x128xf32, #tpu.memory_space<vmem>>, vector<384x128xf32>
    %cst_43 = arith.constant dense<0.000000e+00> : vector<256x128xf32>
    %40 = tpu.matmul %38, %39, %cst_43 {dimension_numbers = #tpu.dot_dimension_numbers<[1], [0], [0], [1], [0, 0, 1, 1], [], []>} : vector<256x384xf32>, vector<384x128xf32>, vector<256x128xf32> -> vector<256x128xf32>
    %41 = arith.addf %33, %40 : vector<256x128xf32>
    %c0_44 = arith.constant 0 : index
    %c0_45 = arith.constant 0 : index
    %42 = vector.load %arg6[%c0_44, %c0_45] : memref<1x128xf32, #tpu.memory_space<vmem>>, vector<1x128xf32>
    %43 = vector.broadcast %42 : vector<1x128xf32> to vector<256x128xf32>
    %44 = arith.addf %41, %43 : vector<256x128xf32>
    %cst_46 = arith.constant 0.000000e+00 : f32
    %45 = vector.broadcast %cst_46 : f32 to vector<256x128xf32>
    %46 = arith.cmpf oge, %44, %45 : vector<256x128xf32>
    %c0_47 = arith.constant 0 : index
    %c0_48 = arith.constant 0 : index
    %47 = vector.load %arg7[%c0_47, %c0_48] : memref<1x128xf32, #tpu.memory_space<vmem>>, vector<1x128xf32>
    %48 = vector.broadcast %47 : vector<1x128xf32> to vector<256x128xf32>
    %49 = arith.mulf %48, %44 : vector<256x128xf32>
    %50 = arith.select %46, %44, %49 : vector<256x128xi1>, vector<256x128xf32>
    %51 = vector.shape_cast %50 : vector<256x128xf32> to vector<1x16x16x128xf32>
    %c0_49 = arith.constant 0 : index
    %c1_50 = arith.constant 1 : index
    %c1_51 = arith.constant 1 : index
    %c0_52 = arith.constant 0 : index
    %52 = vector.load %arg10[%c0_49, %c1_50, %c1_51, %c0_52] : memref<1x18x18x128xf32, #tpu.memory_space<vmem>>, vector<1x16x16x128xf32>
    tpu.vector_store %arg10[%c0_49, %c1_50, %c1_51, %c0_52], %51 {strides = array<i32>} : memref<1x18x18x128xf32, #tpu.memory_space<vmem>>, vector<1x16x16x128xf32>,
    %c0_53 = arith.constant 0 : index
    %c0_54 = arith.constant 0 : index
    %c0_55 = arith.constant 0 : index
    %c0_56 = arith.constant 0 : index
    %53 = vector.load %arg10[%c0_53, %c0_54, %c0_55, %c0_56] : memref<1x18x18x128xf32, #tpu.memory_space<vmem>>, vector<1x18x16x128xf32>
    %c0_57 = arith.constant 0 : index
    %c0_58 = arith.constant 0 : index
    %c1_59 = arith.constant 1 : index
    %c0_60 = arith.constant 0 : index
    %54 = vector.load %arg10[%c0_57, %c0_58, %c1_59, %c0_60] : memref<1x18x18x128xf32, #tpu.memory_space<vmem>>, vector<1x18x16x128xf32>
    %c0_61 = arith.constant 0 : index
    %c0_62 = arith.constant 0 : index
    %c2_63 = arith.constant 2 : index
    %c0_64 = arith.constant 0 : index
    %55 = vector.load %arg10[%c0_61, %c0_62, %c2_63, %c0_64] : memref<1x18x18x128xf32, #tpu.memory_space<vmem>>, vector<1x18x16x128xf32>
    %56 = vector.extract_strided_slice %53 {offsets = [0, 0, 0, 0], sizes = [1, 16, 16, 128], strides = [1, 1, 1, 1]} : vector<1x18x16x128xf32> to vector<1x16x16x128xf32>
    %57 = vector.extract_strided_slice %54 {offsets = [0, 0, 0, 0], sizes = [1, 16, 16, 128], strides = [1, 1, 1, 1]} : vector<1x18x16x128xf32> to vector<1x16x16x128xf32>
    %58 = vector.extract_strided_slice %55 {offsets = [0, 0, 0, 0], sizes = [1, 16, 16, 128], strides = [1, 1, 1, 1]} : vector<1x18x16x128xf32> to vector<1x16x16x128xf32>
    %59 = tpu.concatenate %56, %57, %58 in 3 : vector<1x16x16x128xf32>, vector<1x16x16x128xf32>, vector<1x16x16x128xf32> -> vector<1x16x16x384xf32>
    %60 = vector.shape_cast %59 : vector<1x16x16x384xf32> to vector<256x384xf32>
    %c0_65 = arith.constant 0 : index
    %c0_66 = arith.constant 0 : index
    %61 = vector.load %arg3[%c0_65, %c0_66] : memref<1152x128xf32, #tpu.memory_space<vmem>>, vector<384x128xf32>
    %cst_67 = arith.constant dense<0.000000e+00> : vector<256x128xf32>
    %62 = tpu.matmul %60, %61, %cst_67 {dimension_numbers = #tpu.dot_dimension_numbers<[1], [0], [0], [1], [0, 0, 1, 1], [], []>} : vector<256x384xf32>, vector<384x128xf32>, vector<256x128xf32> -> vector<256x128xf32>
    %63 = vector.extract_strided_slice %53 {offsets = [0, 1, 0, 0], sizes = [1, 16, 16, 128], strides = [1, 1, 1, 1]} : vector<1x18x16x128xf32> to vector<1x16x16x128xf32>
    %64 = vector.extract_strided_slice %54 {offsets = [0, 1, 0, 0], sizes = [1, 16, 16, 128], strides = [1, 1, 1, 1]} : vector<1x18x16x128xf32> to vector<1x16x16x128xf32>
    %65 = vector.extract_strided_slice %55 {offsets = [0, 1, 0, 0], sizes = [1, 16, 16, 128], strides = [1, 1, 1, 1]} : vector<1x18x16x128xf32> to vector<1x16x16x128xf32>
    %66 = tpu.concatenate %63, %64, %65 in 3 : vector<1x16x16x128xf32>, vector<1x16x16x128xf32>, vector<1x16x16x128xf32> -> vector<1x16x16x384xf32>
    %67 = vector.shape_cast %66 : vector<1x16x16x384xf32> to vector<256x384xf32>
    %c384_68 = arith.constant 384 : index
    %c0_69 = arith.constant 0 : index
    %68 = vector.load %arg3[%c384_68, %c0_69] : memref<1152x128xf32, #tpu.memory_space<vmem>>, vector<384x128xf32>
    %cst_70 = arith.constant dense<0.000000e+00> : vector<256x128xf32>
    %69 = tpu.matmul %67, %68, %cst_70 {dimension_numbers = #tpu.dot_dimension_numbers<[1], [0], [0], [1], [0, 0, 1, 1], [], []>} : vector<256x384xf32>, vector<384x128xf32>, vector<256x128xf32> -> vector<256x128xf32>
    %70 = arith.addf %62, %69 : vector<256x128xf32>
    %71 = vector.extract_strided_slice %53 {offsets = [0, 2, 0, 0], sizes = [1, 16, 16, 128], strides = [1, 1, 1, 1]} : vector<1x18x16x128xf32> to vector<1x16x16x128xf32>
    %72 = vector.extract_strided_slice %54 {offsets = [0, 2, 0, 0], sizes = [1, 16, 16, 128], strides = [1, 1, 1, 1]} : vector<1x18x16x128xf32> to vector<1x16x16x128xf32>
    %73 = vector.extract_strided_slice %55 {offsets = [0, 2, 0, 0], sizes = [1, 16, 16, 128], strides = [1, 1, 1, 1]} : vector<1x18x16x128xf32> to vector<1x16x16x128xf32>
    %74 = tpu.concatenate %71, %72, %73 in 3 : vector<1x16x16x128xf32>, vector<1x16x16x128xf32>, vector<1x16x16x128xf32> -> vector<1x16x16x384xf32>
    %75 = vector.shape_cast %74 : vector<1x16x16x384xf32> to vector<256x384xf32>
    %c768_71 = arith.constant 768 : index
    %c0_72 = arith.constant 0 : index
    %76 = vector.load %arg3[%c768_71, %c0_72] : memref<1152x128xf32, #tpu.memory_space<vmem>>, vector<384x128xf32>
    %cst_73 = arith.constant dense<0.000000e+00> : vector<256x128xf32>
    %77 = tpu.matmul %75, %76, %cst_73 {dimension_numbers = #tpu.dot_dimension_numbers<[1], [0], [0], [1], [0, 0, 1, 1], [], []>} : vector<256x384xf32>, vector<384x128xf32>, vector<256x128xf32> -> vector<256x128xf32>
    %78 = arith.addf %70, %77 : vector<256x128xf32>
    %c0_74 = arith.constant 0 : index
    %c0_75 = arith.constant 0 : index
    %79 = vector.load %arg8[%c0_74, %c0_75] : memref<1x128xf32, #tpu.memory_space<vmem>>, vector<1x128xf32>
    %80 = vector.broadcast %79 : vector<1x128xf32> to vector<256x128xf32>
    %81 = arith.addf %78, %80 : vector<256x128xf32>
    %82 = vector.shape_cast %81 : vector<256x128xf32> to vector<1x16x16x128xf32>
    %c0_76 = arith.constant 0 : index
    %c0_77 = arith.constant 0 : index
    %c0_78 = arith.constant 0 : index
    %c0_79 = arith.constant 0 : index
    %83 = vector.load %arg1[%c0_76, %c0_77, %c0_78, %c0_79] : memref<1x16x16x128xf32, #tpu.memory_space<vmem>>, vector<1x16x16x128xf32>
    %84 = arith.addf %82, %83 : vector<1x16x16x128xf32>
    %c0_80 = arith.constant 0 : index
    %c0_81 = arith.constant 0 : index
    %c0_82 = arith.constant 0 : index
    %c0_83 = arith.constant 0 : index
    %85 = vector.load %arg9[%c0_80, %c0_81, %c0_82, %c0_83] : memref<1x16x16x128xf32, #tpu.memory_space<vmem>>, vector<1x16x16x128xf32>
    tpu.vector_store %arg9[%c0_80, %c0_81, %c0_82, %c0_83], %84 {strides = array<i32>} : memref<1x16x16x128xf32, #tpu.memory_space<vmem>>, vector<1x16x16x128xf32>,
    return
  }
  func.func @transform_0(%arg0: i32) -> (i32, i32, i32, i32) {
    %c0_i32 = arith.constant 0 : i32
    %c0_i32_0 = arith.constant 0 : i32
    %c0_i32_1 = arith.constant 0 : i32
    %c0_i32_2 = arith.constant 0 : i32
    return %arg0, %c0_i32, %c0_i32_0, %c0_i32_1 : i32, i32, i32, i32
  }
  func.func @transform_1(%arg0: i32) -> (i32, i32) {
    %c0_i32 = arith.constant 0 : i32
    %c0_i32_0 = arith.constant 0 : i32
    %c0_i32_1 = arith.constant 0 : i32
    return %c0_i32, %c0_i32_0 : i32, i32
  }
  func.func @transform_2(%arg0: i32) -> (i32, i32) {
    %c0_i32 = arith.constant 0 : i32
    %c0_i32_0 = arith.constant 0 : i32
    %c0_i32_1 = arith.constant 0 : i32
    return %c0_i32, %c0_i32_0 : i32, i32
  }
  func.func @transform_3(%arg0: i32) -> (i32, i32) {
    %c0_i32 = arith.constant 0 : i32
    %c0_i32_0 = arith.constant 0 : i32
    %c0_i32_1 = arith.constant 0 : i32
    return %c0_i32, %c0_i32_0 : i32, i32
  }
  func.func @transform_4(%arg0: i32) -> (i32, i32) {
    %c0_i32 = arith.constant 0 : i32
    %c0_i32_0 = arith.constant 0 : i32
    %c0_i32_1 = arith.constant 0 : i32
    return %c0_i32, %c0_i32_0 : i32, i32
  }
  func.func @transform_5(%arg0: i32) -> (i32, i32) {
    %c0_i32 = arith.constant 0 : i32
    %c0_i32_0 = arith.constant 0 : i32
    %c0_i32_1 = arith.constant 0 : i32
    return %c0_i32, %c0_i32_0 : i32, i32
  }
  func.func @transform_6(%arg0: i32) -> (i32, i32) {
    %c0_i32 = arith.constant 0 : i32
    %c0_i32_0 = arith.constant 0 : i32
    %c0_i32_1 = arith.constant 0 : i32
    return %c0_i32, %c0_i32_0 : i32, i32
  }
  func.func @transform_7(%arg0: i32) -> (i32, i32) {
    %c0_i32 = arith.constant 0 : i32
    %c0_i32_0 = arith.constant 0 : i32
    %c0_i32_1 = arith.constant 0 : i32
    return %c0_i32, %c0_i32_0 : i32, i32
  }
  func.func @transform_8(%arg0: i32) -> (i32, i32, i32, i32) {
    %c0_i32 = arith.constant 0 : i32
    %c0_i32_0 = arith.constant 0 : i32
    %c0_i32_1 = arith.constant 0 : i32
    %c0_i32_2 = arith.constant 0 : i32
    return %arg0, %c0_i32, %c0_i32_0, %c0_i32_1 : i32, i32, i32, i32
  }
}

</mosaic_0001>

<llo_original>
// kernel: tpu_custom_call.1
$region0: #{tpu_custom_call.1}
  #allocation0 [shape = 'u32[]', space=smem, size = 0x4, offset = 0x4, fixed_abs, tag = 'smem constant byte address 0x4 - core index']
  #allocation1 [shape = 'u32[144,128]{1,0:T(1,128)}', space=vmem, size = 0x12000, scoped, tag = 'internal scratch']
  #allocation2 [shape = 'f32[1,18,18,128]{3,2,1,0:T(8,128)}', space=vmem, size = 0x36000, scoped, tag = 'scratch operand']
  %s0 = inlined_call_operand.hbm [shape: f32[2,16,16,128], index: 0, kind: input, shape index: {}]
  %s1 = inlined_call_operand.hbm [shape: f32[1152,128], index: 1, kind: input, shape index: {}]
  %s2 = inlined_call_operand.hbm [shape: f32[1152,128], index: 2, kind: input, shape index: {}]
  %s3 = inlined_call_operand.hbm [shape: f32[1,128], index: 3, kind: input, shape index: {}]
  %s4 = inlined_call_operand.hbm [shape: f32[1,128], index: 4, kind: input, shape index: {}]
  %s5 = inlined_call_operand.hbm [shape: f32[1,128], index: 5, kind: input, shape index: {}]
  %s6 = inlined_call_operand.hbm [shape: f32[1,128], index: 6, kind: input, shape index: {}]
  %s7 = inlined_call_operand.hbm [shape: f32[1,128], index: 7, kind: input, shape index: {}]
  %s8 = inlined_call_operand.hbm [shape: f32[2,16,16,128], index: 8, kind: output, shape index: {}]
  %s9 = sld [smem:[#allocation0]]
  $region97: #{tpu_custom_call.1} parent=0
    _
  %s11 = ssub.s32 1, %s9
  %s12 = scalar_select 0, %s11, %s9
  $region1: #{tpu_custom_call.1} parent=0
    #allocation3 [shape = 'u8[262144]{0}', space=vmem, size = 0x40000, scoped, tag = 'input window, operand 0']
    #allocation4 [shape = 's32[2]{0}', space=sflag, size = 0x8, scoped, tag = 'scoped memory for tpu_custom_call.1']
    #allocation5 [shape = 's32[2]{0}', space=sflag, size = 0x8, scoped, tag = 'scoped memory for tpu_custom_call.1']
    #allocation6 [shape = 'u8[589824]{0}', space=vmem, size = 0x90000, scoped, tag = 'input window, operand 1, single buffered']
    #allocation7 [shape = 's32[1]{0}', space=sflag, size = 0x4, scoped, tag = 'scoped memory for tpu_custom_call.1']
    #allocation8 [shape = 'u8[589824]{0}', space=vmem, size = 0x90000, scoped, tag = 'input window, operand 2, single buffered']
    #allocation9 [shape = 'u8[512]{0}', space=vmem, size = 0x400, scoped, tag = 'input window, operand 3, single buffered']
    #allocation10 [shape = 's32[1]{0}', space=sflag, size = 0x4, scoped, tag = 'scoped memory for tpu_custom_call.1']
    #allocation11 [shape = 'u8[512]{0}', space=vmem, size = 0x400, scoped, tag = 'input window, operand 4, single buffered']
    #allocation12 [shape = 'u8[512]{0}', space=vmem, size = 0x400, scoped, tag = 'input window, operand 5, single buffered']
    #allocation13 [shape = 's32[1]{0}', space=sflag, size = 0x4, scoped, tag = 'scoped memory for tpu_custom_call.1']
    #allocation14 [shape = 'u8[512]{0}', space=vmem, size = 0x400, scoped, tag = 'input window, operand 6, single buffered']
    #allocation15 [shape = 'u8[512]{0}', space=vmem, size = 0x400, scoped, tag = 'input window, operand 7, single buffered']
    #allocation16 [shape = 's32[1]{0}', space=sflag, size = 0x4, scoped, tag = 'scoped memory for tpu_custom_call.1']
    #allocation17 [shape = 'u8[262144]{0}', space=vmem, size = 0x40000, scoped, tag = 'output window, operand 0']
    %13 = vsyncpa [#allocation4], 0
    %s14 = scalar_lea.sflag [#allocation4], 1
    %15 = vsyncpa %s14, 0
    %16 = vsyncpa [#allocation7], 0
    %17 = vsyncpa [#allocation10], 0
    %18 = vsyncpa [#allocation13], 0
    %19 = vsyncpa [#allocation16], 0
    %20 = vsyncpa [#allocation5], 0
    %s21 = scalar_lea.sflag [#allocation5], 1
    %22 = vsyncpa %s21, 0
    loop: start=0, step=1, limit=4
    $region2: #{tpu_custom_call.1} parent=1 // loop_pre_header
      _
    $region3: #{tpu_custom_call.1} parent=1 // loop_header
      %s24 = sphi 0, %s28
      %p25 = scmp.ge.s32.totalorder %s24, 4
      %s34 = sphi 0, %s36
      %s37 = sphi 0, %s34
      %s38 = sphi 0, %s37
      %s54 = sphi 0, %s38
      %s58 = sphi 0, %s58
      %s60 = sphi 0, %s58
      %s61 = sphi 0, %s60
      %s75 = sphi 0, %s61
      %s79 = sphi 0, %s79
      %s81 = sphi 0, %s79
      %s82 = sphi 0, %s81
      %s96 = sphi 0, %s82
      %s100 = sphi 0, %s100
      %s102 = sphi 0, %s100
      %s103 = sphi 0, %s102
      %s117 = sphi 0, %s103
      %s121 = sphi 0, %s121
      %s123 = sphi 0, %s121
      %s124 = sphi 0, %s123
      %s138 = sphi 0, %s124
      %s142 = sphi 0, %s142
      %s144 = sphi 0, %s142
      %s145 = sphi 0, %s144
      %s159 = sphi 0, %s145
      %s163 = sphi 0, %s163
      %s165 = sphi 0, %s163
      %s166 = sphi 0, %s165
      %s180 = sphi 0, %s166
      %s184 = sphi 0, %s184
      %s186 = sphi 0, %s184
      %s187 = sphi 0, %s186
      %s201 = sphi 0, %s187
      %s207 = sphi 0, %s209
      %s210 = sphi 0, %s207
      %s211 = sphi 0, %s210
      %s227 = sphi 0, %s211
    $region4: #{tpu_custom_call.1} parent=1 // loop_header_branch
      %27 = sbr.rel (%p25) target = $region8
    $region5: #{tpu_custom_call.1} parent=1 // loop_body
      %s29 = ssub.s32 %s24, 1
      %s30 = ssub.s32 %s24, 2
      %s31 = sadd.s32 %s24, 1
      %s32 = ssub.s32 %s24, %s31
      %p33 = scmp.eq.s32.totalorder %s32, 0
      %s35 = sadd.s32 %s34, 1
      %s36 = scalar_select %p33, %s34, %s35
      %p39 = pneg %p33
      %p40 = scmp.eq.s32.totalorder %s24, 1
      %p41 = por %p39, %p40
      %p42 = scmp.ne.s32.totalorder %s34, %s37
      %p43 = scmp.eq.s32.totalorder %s24, 0
      %p44 = por %p42, %p43
      %p45 = scmp.ne.s32.totalorder %s34, %s37
      %p46 = scmp.eq.s32.totalorder %s29, 1
      %p47 = por %p45, %p46
      %p48 = scmp.ne.s32.totalorder %s37, %s38
      %p49 = scmp.eq.s32.totalorder %s29, 0
      %p50 = por %p48, %p49
      %p51 = scmp.ne.s32.totalorder %s37, %s38
      %p52 = scmp.eq.s32.totalorder %s30, 1
      %p53 = por %p51, %p52
      %p55 = scmp.ne.s32.totalorder %s38, %s54
      %p56 = scmp.eq.s32.totalorder %s30, 0
      %p57 = por %p55, %p56
      %s59 = sadd.s32 %s58, 1
      %p62 = scmp.eq.s32.totalorder %s24, 1
      %p63 = scmp.ne.s32.totalorder %s58, %s60
      %p64 = scmp.eq.s32.totalorder %s24, 0
      %p65 = por %p63, %p64
      %p66 = scmp.ne.s32.totalorder %s58, %s60
      %p67 = scmp.eq.s32.totalorder %s29, 1
      %p68 = por %p66, %p67
      %p69 = scmp.ne.s32.totalorder %s60, %s61
      %p70 = scmp.eq.s32.totalorder %s29, 0
      %p71 = por %p69, %p70
      %p72 = scmp.ne.s32.totalorder %s60, %s61
      %p73 = scmp.eq.s32.totalorder %s30, 1
      %p74 = por %p72, %p73
      %p76 = scmp.ne.s32.totalorder %s61, %s75
      %p77 = scmp.eq.s32.totalorder %s30, 0
      %p78 = por %p76, %p77
      %s80 = sadd.s32 %s79, 1
      %p83 = scmp.eq.s32.totalorder %s24, 1
      %p84 = scmp.ne.s32.totalorder %s79, %s81
      %p85 = scmp.eq.s32.totalorder %s24, 0
      %p86 = por %p84, %p85
      %p87 = scmp.ne.s32.totalorder %s79, %s81
      %p88 = scmp.eq.s32.totalorder %s29, 1
      %p89 = por %p87, %p88
      %p90 = scmp.ne.s32.totalorder %s81, %s82
      %p91 = scmp.eq.s32.totalorder %s29, 0
      %p92 = por %p90, %p91
      %p93 = scmp.ne.s32.totalorder %s81, %s82
      %p94 = scmp.eq.s32.totalorder %s30, 1
      %p95 = por %p93, %p94
      %p97 = scmp.ne.s32.totalorder %s82, %s96
      %p98 = scmp.eq.s32.totalorder %s30, 0
      %p99 = por %p97, %p98
      %s101 = sadd.s32 %s100, 1
      %p104 = scmp.eq.s32.totalorder %s24, 1
      %p105 = scmp.ne.s32.totalorder %s100, %s102
      %p106 = scmp.eq.s32.totalorder %s24, 0
      %p107 = por %p105, %p106
      %p108 = scmp.ne.s32.totalorder %s100, %s102
      %p109 = scmp.eq.s32.totalorder %s29, 1
      %p110 = por %p108, %p109
      %p111 = scmp.ne.s32.totalorder %s102, %s103
      %p112 = scmp.eq.s32.totalorder %s29, 0
      %p113 = por %p111, %p112
      %p114 = scmp.ne.s32.totalorder %s102, %s103
      %p115 = scmp.eq.s32.totalorder %s30, 1
      %p116 = por %p114, %p115
      %p118 = scmp.ne.s32.totalorder %s103, %s117
      %p119 = scmp.eq.s32.totalorder %s30, 0
      %p120 = por %p118, %p119
      %s122 = sadd.s32 %s121, 1
      %p125 = scmp.eq.s32.totalorder %s24, 1
      %p126 = scmp.ne.s32.totalorder %s121, %s123
      %p127 = scmp.eq.s32.totalorder %s24, 0
      %p128 = por %p126, %p127
      %p129 = scmp.ne.s32.totalorder %s121, %s123
      %p130 = scmp.eq.s32.totalorder %s29, 1
      %p131 = por %p129, %p130
      %p132 = scmp.ne.s32.totalorder %s123, %s124
      %p133 = scmp.eq.s32.totalorder %s29, 0
      %p134 = por %p132, %p133
      %p135 = scmp.ne.s32.totalorder %s123, %s124
      %p136 = scmp.eq.s32.totalorder %s30, 1
      %p137 = por %p135, %p136
      %p139 = scmp.ne.s32.totalorder %s124, %s138
      %p140 = scmp.eq.s32.totalorder %s30, 0
      %p141 = por %p139, %p140
      %s143 = sadd.s32 %s142, 1
      %p146 = scmp.eq.s32.totalorder %s24, 1
      %p147 = scmp.ne.s32.totalorder %s142, %s144
      %p148 = scmp.eq.s32.totalorder %s24, 0
      %p149 = por %p147, %p148
      %p150 = scmp.ne.s32.totalorder %s142, %s144
      %p151 = scmp.eq.s32.totalorder %s29, 1
      %p152 = por %p150, %p151
      %p153 = scmp.ne.s32.totalorder %s144, %s145
      %p154 = scmp.eq.s32.totalorder %s29, 0
      %p155 = por %p153, %p154
      %p156 = scmp.ne.s32.totalorder %s144, %s145
      %p157 = scmp.eq.s32.totalorder %s30, 1
      %p158 = por %p156, %p157
      %p160 = scmp.ne.s32.totalorder %s145, %s159
      %p161 = scmp.eq.s32.totalorder %s30, 0
      %p162 = por %p160, %p161
      %s164 = sadd.s32 %s163, 1
      %p167 = scmp.eq.s32.totalorder %s24, 1
      %p168 = scmp.ne.s32.totalorder %s163, %s165
      %p169 = scmp.eq.s32.totalorder %s24, 0
      %p170 = por %p168, %p169
      %p171 = scmp.ne.s32.totalorder %s163, %s165
      %p172 = scmp.eq.s32.totalorder %s29, 1
      %p173 = por %p171, %p172
      %p174 = scmp.ne.s32.totalorder %s165, %s166
      %p175 = scmp.eq.s32.totalorder %s29, 0
      %p176 = por %p174, %p175
      %p177 = scmp.ne.s32.totalorder %s165, %s166
      %p178 = scmp.eq.s32.totalorder %s30, 1
      %p179 = por %p177, %p178
      %p181 = scmp.ne.s32.totalorder %s166, %s180
      %p182 = scmp.eq.s32.totalorder %s30, 0
      %p183 = por %p181, %p182
      %s185 = sadd.s32 %s184, 1
      %p188 = scmp.eq.s32.totalorder %s24, 1
      %p189 = scmp.ne.s32.totalorder %s184, %s186
      %p190 = scmp.eq.s32.totalorder %s24, 0
      %p191 = por %p189, %p190
      %p192 = scmp.ne.s32.totalorder %s184, %s186
      %p193 = scmp.eq.s32.totalorder %s29, 1
      %p194 = por %p192, %p193
      %p195 = scmp.ne.s32.totalorder %s186, %s187
      %p196 = scmp.eq.s32.totalorder %s29, 0
      %p197 = por %p195, %p196
      %p198 = scmp.ne.s32.totalorder %s186, %s187
      %p199 = scmp.eq.s32.totalorder %s30, 1
      %p200 = por %p198, %p199
      %p202 = scmp.ne.s32.totalorder %s187, %s201
      %p203 = scmp.eq.s32.totalorder %s30, 0
      %p204 = por %p202, %p203
      %s205 = ssub.s32 %s24, %s31
      %p206 = scmp.eq.s32.totalorder %s205, 0
      %s208 = sadd.s32 %s207, 1
      %s209 = scalar_select %p206, %s207, %s208
      %p212 = pneg %p206
      %p213 = scmp.eq.s32.totalorder %s24, 1
      %p214 = por %p212, %p213
      %p215 = scmp.ne.s32.totalorder %s207, %s210
      %p216 = scmp.eq.s32.totalorder %s24, 0
      %p217 = por %p215, %p216
      %p218 = scmp.ne.s32.totalorder %s207, %s210
      %p219 = scmp.eq.s32.totalorder %s29, 1
      %p220 = por %p218, %p219
      %p221 = scmp.ne.s32.totalorder %s210, %s211
      %p222 = scmp.eq.s32.totalorder %s29, 0
      %p223 = por %p221, %p222
      %p224 = scmp.ne.s32.totalorder %s210, %s211
      %p225 = scmp.eq.s32.totalorder %s30, 1
      %p226 = por %p224, %p225
      %p228 = scmp.ne.s32.totalorder %s211, %s227
      %p229 = scmp.eq.s32.totalorder %s30, 0
      %p230 = por %p228, %p229
      %p231 = scmp.le.s32.totalorder 1, %s24
      %p232 = scmp.lt.s32.totalorder %s24, 3
      %p233 = pnand %p231, %p232
      %p234 = pneg %p233
      // Predicated region
      $region9: #{tpu_custom_call.1} parent=5 // pred_check
        _
      $region10: #{tpu_custom_call.1} parent=5 // pred_check_branch
        %236 = sbr.rel (%p233) target = $region12
      $region11: #{tpu_custom_call.1} parent=5 // pred_region
        %s237 = ssub.s32 %s24, 1
        // Predicated region
        $region13: #{tpu_custom_call.1} parent=11 // pred_check
          %p238 = pneg %p71
        $region14: #{tpu_custom_call.1} parent=11 // pred_check_branch
          %240 = sbr.rel (%p238) target = $region16
        $region15: #{tpu_custom_call.1} parent=11 // pred_region
          %s242 = ssub.s32 18432, 18432
          %243 = vsyncadd [#allocation7], %s242
          %s244 = sshll.u32 [#allocation6], 4
          %s245 = int_to_ptr.vmem [resolvable:$true] %s244
          %250 = dma.hbm_to_vmem [thread:$0]  %s1, 18432, %s245, [#allocation7], 128, 128, 8
        $region16: #{tpu_custom_call.1} parent=11 // pred_fallthru
          _
        // Predicated region
        $region17: #{tpu_custom_call.1} parent=11 // pred_check
          %p251 = pneg %p92
        $region18: #{tpu_custom_call.1} parent=11 // pred_check_branch
          %253 = sbr.rel (%p251) target = $region20
        $region19: #{tpu_custom_call.1} parent=11 // pred_region
          %s255 = ssub.s32 18432, 18432
          %256 = vsyncadd [#allocation7], %s255
          %s257 = sshll.u32 [#allocation8], 4
          %s258 = int_to_ptr.vmem [resolvable:$true] %s257
          %263 = dma.hbm_to_vmem [thread:$0]  %s2, 18432, %s258, [#allocation7], 128, 128, 8
        $region20: #{tpu_custom_call.1} parent=11 // pred_fallthru
          _
        // Predicated region
        $region21: #{tpu_custom_call.1} parent=11 // pred_check
          %p264 = pneg %p113
        $region22: #{tpu_custom_call.1} parent=11 // pred_check_branch
          %266 = sbr.rel (%p264) target = $region24
        $region23: #{tpu_custom_call.1} parent=11 // pred_region
          %s268 = ssub.s32 16, 16
          %269 = vsyncadd [#allocation10], %s268
          %s271 = sshll.u32 [#allocation9], 4
          %s272 = int_to_ptr.vmem [resolvable:$true] %s271
          %274 = dma.hbm_to_vmem [thread:$0]  %s3, 16, %s272, [#allocation10]
        $region24: #{tpu_custom_call.1} parent=11 // pred_fallthru
          _
        // Predicated region
        $region25: #{tpu_custom_call.1} parent=11 // pred_check
          %p275 = pneg %p134
        $region26: #{tpu_custom_call.1} parent=11 // pred_check_branch
          %277 = sbr.rel (%p275) target = $region28
        $region27: #{tpu_custom_call.1} parent=11 // pred_region
          %s279 = ssub.s32 16, 16
          %280 = vsyncadd [#allocation10], %s279
          %s282 = sshll.u32 [#allocation11], 4
          %s283 = int_to_ptr.vmem [resolvable:$true] %s282
          %285 = dma.hbm_to_vmem [thread:$0]  %s4, 16, %s283, [#allocation10]
        $region28: #{tpu_custom_call.1} parent=11 // pred_fallthru
          _
        // Predicated region
        $region29: #{tpu_custom_call.1} parent=11 // pred_check
          %p286 = pneg %p155
        $region30: #{tpu_custom_call.1} parent=11 // pred_check_branch
          %288 = sbr.rel (%p286) target = $region32
        $region31: #{tpu_custom_call.1} parent=11 // pred_region
          %s290 = ssub.s32 16, 16
          %291 = vsyncadd [#allocation13], %s290
          %s293 = sshll.u32 [#allocation12], 4
          %s294 = int_to_ptr.vmem [resolvable:$true] %s293
          %296 = dma.hbm_to_vmem [thread:$0]  %s5, 16, %s294, [#allocation13]
        $region32: #{tpu_custom_call.1} parent=11 // pred_fallthru
          _
        // Predicated region
        $region33: #{tpu_custom_call.1} parent=11 // pred_check
          %p297 = pneg %p176
        $region34: #{tpu_custom_call.1} parent=11 // pred_check_branch
          %299 = sbr.rel (%p297) target = $region36
        $region35: #{tpu_custom_call.1} parent=11 // pred_region
          %s301 = ssub.s32 16, 16
          %302 = vsyncadd [#allocation13], %s301
          %s304 = sshll.u32 [#allocation14], 4
          %s305 = int_to_ptr.vmem [resolvable:$true] %s304
          %307 = dma.hbm_to_vmem [thread:$0]  %s6, 16, %s305, [#allocation13]
        $region36: #{tpu_custom_call.1} parent=11 // pred_fallthru
          _
        // Predicated region
        $region37: #{tpu_custom_call.1} parent=11 // pred_check
          %p308 = pneg %p197
        $region38: #{tpu_custom_call.1} parent=11 // pred_check_branch
          %310 = sbr.rel (%p308) target = $region40
        $region39: #{tpu_custom_call.1} parent=11 // pred_region
          %s312 = ssub.s32 16, 16
          %313 = vsyncadd [#allocation16], %s312
          %s315 = sshll.u32 [#allocation15], 4
          %s316 = int_to_ptr.vmem [resolvable:$true] %s315
          %318 = dma.hbm_to_vmem [thread:$0]  %s7, 16, %s316, [#allocation16]
        $region40: #{tpu_custom_call.1} parent=11 // pred_fallthru
          _
      $region12: #{tpu_custom_call.1} parent=5 // pred_fallthru
        _
      %p319 = scmp.lt.s32.totalorder %s24, 2
      // Predicated region
      $region41: #{tpu_custom_call.1} parent=5 // pred_check
        %p320 = pneg %p319
      $region42: #{tpu_custom_call.1} parent=5 // pred_check_branch
        %322 = sbr.rel (%p320) target = $region44
      $region43: #{tpu_custom_call.1} parent=5 // pred_region
        // Predicated region
        $region45: #{tpu_custom_call.1} parent=43 // pred_check
          %p323 = pneg %p44
        $region46: #{tpu_custom_call.1} parent=43 // pred_check_branch
          %325 = sbr.rel (%p323) target = $region48
        $region47: #{tpu_custom_call.1} parent=43 // pred_region
          %s326 = sand.u32 %s34, 1
          %s327 = scalar_lea.sflag [#allocation4], %s326
          %s328 = sand.u32 %s34, 1
          %s329 = smul.addr %s328, 256
          %s330 = scalar_lea.vmem [#allocation3], %s329
          %s332 = ssub.s32 4096, 4096
          %333 = vsyncadd %s327, %s332
          %s334 = smul.addr %s24, 32
          %s335 = smul.addr %s334, 128
          %s336 = scalar_lea.hbm %s0, %s335
          %s337 = sshll.u32 %s330, 4
          %s338 = int_to_ptr.vmem [resolvable:$true] %s337
          %343 = dma.hbm_to_vmem [thread:$0]  %s336, 4096, %s338, %s327, 128, 128, 8
        $region48: #{tpu_custom_call.1} parent=43 // pred_fallthru
          _
      $region44: #{tpu_custom_call.1} parent=5 // pred_fallthru
        _
      %p344 = scmp.le.s32.totalorder 1, %s24
      %p345 = scmp.lt.s32.totalorder %s24, 3
      %p346 = pnand %p344, %p345
      %p347 = pneg %p346
      // Predicated region
      $region49: #{tpu_custom_call.1} parent=5 // pred_check
        _
      $region50: #{tpu_custom_call.1} parent=5 // pred_check_branch
        %349 = sbr.rel (%p346) target = $region52
      $region51: #{tpu_custom_call.1} parent=5 // pred_region
        %s350 = ssub.s32 %s24, 1
        %s351 = sand.u32 %s37, 1
        %s352 = scalar_lea.sflag [#allocation4], %s351
        %s353 = sand.u32 %s37, 1
        %s354 = smul.addr %s353, 256
        %s355 = scalar_lea.vmem [#allocation3], %s354
        // Predicated region
        $region53: #{tpu_custom_call.1} parent=51 // pred_check
          %p356 = pneg %p50
        $region54: #{tpu_custom_call.1} parent=51 // pred_check_branch
          %358 = sbr.rel (%p356) target = $region56
        $region55: #{tpu_custom_call.1} parent=51 // pred_region
          %359 = dma.done %s352, 4096
        $region56: #{tpu_custom_call.1} parent=51 // pred_fallthru
          _
        // Predicated region
        $region57: #{tpu_custom_call.1} parent=51 // pred_check
          %p360 = pneg %p71
        $region58: #{tpu_custom_call.1} parent=51 // pred_check_branch
          %362 = sbr.rel (%p360) target = $region60
        $region59: #{tpu_custom_call.1} parent=51 // pred_region
          %363 = dma.done [#allocation7], 18432
        $region60: #{tpu_custom_call.1} parent=51 // pred_fallthru
          _
        // Predicated region
        $region61: #{tpu_custom_call.1} parent=51 // pred_check
          %p364 = pneg %p92
        $region62: #{tpu_custom_call.1} parent=51 // pred_check_branch
          %366 = sbr.rel (%p364) target = $region64
        $region63: #{tpu_custom_call.1} parent=51 // pred_region
          %367 = dma.done [#allocation7], 18432
        $region64: #{tpu_custom_call.1} parent=51 // pred_fallthru
          _
        // Predicated region
        $region65: #{tpu_custom_call.1} parent=51 // pred_check
          %p368 = pneg %p113
        $region66: #{tpu_custom_call.1} parent=51 // pred_check_branch
          %370 = sbr.rel (%p368) target = $region68
        $region67: #{tpu_custom_call.1} parent=51 // pred_region
          %371 = dma.done [#allocation10], 16
        $region68: #{tpu_custom_call.1} parent=51 // pred_fallthru
          _
        // Predicated region
        $region69: #{tpu_custom_call.1} parent=51 // pred_check
          %p372 = pneg %p134
        $region70: #{tpu_custom_call.1} parent=51 // pred_check_branch
          %374 = sbr.rel (%p372) target = $region72
        $region71: #{tpu_custom_call.1} parent=51 // pred_region
          %375 = dma.done [#allocation10], 16
        $region72: #{tpu_custom_call.1} parent=51 // pred_fallthru
          _
        // Predicated region
        $region73: #{tpu_custom_call.1} parent=51 // pred_check
          %p376 = pneg %p155
        $region74: #{tpu_custom_call.1} parent=51 // pred_check_branch
          %378 = sbr.rel (%p376) target = $region76
        $region75: #{tpu_custom_call.1} parent=51 // pred_region
          %379 = dma.done [#allocation13], 16
        $region76: #{tpu_custom_call.1} parent=51 // pred_fallthru
          _
        // Predicated region
        $region77: #{tpu_custom_call.1} parent=51 // pred_check
          %p380 = pneg %p176
        $region78: #{tpu_custom_call.1} parent=51 // pred_check_branch
          %382 = sbr.rel (%p380) target = $region80
        $region79: #{tpu_custom_call.1} parent=51 // pred_region
          %383 = dma.done [#allocation13], 16
        $region80: #{tpu_custom_call.1} parent=51 // pred_fallthru
          _
        // Predicated region
        $region81: #{tpu_custom_call.1} parent=51 // pred_check
          %p384 = pneg %p197
        $region82: #{tpu_custom_call.1} parent=51 // pred_check_branch
          %386 = sbr.rel (%p384) target = $region84
        $region83: #{tpu_custom_call.1} parent=51 // pred_region
          %387 = dma.done [#allocation16], 16
        $region84: #{tpu_custom_call.1} parent=51 // pred_fallthru
          _
        %s388 = sand.u32 %s37, 1
        %s389 = scalar_lea.sflag [#allocation4], %s388
        %s390 = sand.u32 %s37, 1
        %s391 = smul.addr %s390, 256
        %s392 = scalar_lea.vmem [#allocation3], %s391
        %p393 = pneg %p50
        %p394 = pneg %p47
        %p395 = pneg %p71
        %p396 = pneg %p68
        %p397 = pneg %p92
        %p398 = pneg %p89
        %p399 = pneg %p113
        %p400 = pneg %p110
        %p401 = pneg %p134
        %p402 = pneg %p131
        %p403 = pneg %p155
        %p404 = pneg %p152
        %p405 = pneg %p176
        %p406 = pneg %p173
        %p407 = pneg %p197
        %p408 = pneg %p194
        %p409 = pneg %p223
        %p410 = pneg %p220
        %s411 = sand.u32 %s210, 1
        %s412 = scalar_lea.sflag [#allocation5], %s411
        %s413 = sand.u32 %s210, 1
        %s414 = smul.addr %s413, 256
        %s415 = scalar_lea.vmem [#allocation17], %s414
        %416 = vst [vmem:[#allocation2] sm:$0xff] 0.0
        %417 = vst [vmem:[#allocation2 + $0x8] sm:$0xff] 0.0
        %418 = vst [vmem:[#allocation2 + $0x10] sm:$0x3] 0.0
        %s419 = scalar_lea.vmem [#allocation2], 408
        %420 = vst [vmem:[%s419] sm:$0xff] 0.0
        %421 = vst [vmem:[%s419 + $0x8] sm:$0xff] 0.0
        %422 = vst [vmem:[%s419 + $0x10] sm:$0x3] 0.0
        %s423 = scalar_lea.vmem [#allocation2], 24
        %424 = vst [vmem:[%s423] sm:$0x1] 0.0
        %425 = vst [vmem:[%s423 + $0x18] sm:$0x1] 0.0
        %426 = vst [vmem:[%s423 + $0x30] sm:$0x1] 0.0
        %427 = vst [vmem:[%s423 + $0x48] sm:$0x1] 0.0
        %428 = vst [vmem:[%s423 + $0x60] sm:$0x1] 0.0
        %429 = vst [vmem:[%s423 + $0x78] sm:$0x1] 0.0
        %430 = vst [vmem:[%s423 + $0x90] sm:$0x1] 0.0
        %431 = vst [vmem:[%s423 + $0xa8] sm:$0x1] 0.0
        %432 = vst [vmem:[%s423 + $0xc0] sm:$0x1] 0.0
        %433 = vst [vmem:[%s423 + $0xd8] sm:$0x1] 0.0
        %434 = vst [vmem:[%s423 + $0xf0] sm:$0x1] 0.0
        %435 = vst [vmem:[%s423 + $0x108] sm:$0x1] 0.0
        %436 = vst [vmem:[%s423 + $0x120] sm:$0x1] 0.0
        %437 = vst [vmem:[%s423 + $0x138] sm:$0x1] 0.0
        %438 = vst [vmem:[%s423 + $0x150] sm:$0x1] 0.0
        %439 = vst [vmem:[%s423 + $0x168] sm:$0x1] 0.0
        %440 = vst [vmem:[%s423 + $0x11] sm:$0x1] 0.0
        %441 = vst [vmem:[%s423 + $0x29] sm:$0x1] 0.0
        %442 = vst [vmem:[%s423 + $0x41] sm:$0x1] 0.0
        %443 = vst [vmem:[%s423 + $0x59] sm:$0x1] 0.0
        %444 = vst [vmem:[%s423 + $0x71] sm:$0x1] 0.0
        %445 = vst [vmem:[%s423 + $0x89] sm:$0x1] 0.0
        %446 = vst [vmem:[%s423 + $0xa1] sm:$0x1] 0.0
        %447 = vst [vmem:[%s423 + $0xb9] sm:$0x1] 0.0
        %448 = vst [vmem:[%s423 + $0xd1] sm:$0x1] 0.0
        %449 = vst [vmem:[%s423 + $0xe9] sm:$0x1] 0.0
        %450 = vst [vmem:[%s423 + $0x101] sm:$0x1] 0.0
        %451 = vst [vmem:[%s423 + $0x119] sm:$0x1] 0.0
        %452 = vst [vmem:[%s423 + $0x131] sm:$0x1] 0.0
        %453 = vst [vmem:[%s423 + $0x149] sm:$0x1] 0.0
        %454 = vst [vmem:[%s423 + $0x161] sm:$0x1] 0.0
        %455 = vst [vmem:[%s423 + $0x179] sm:$0x1] 0.0
        %v456 = vld [vmem:[%s355] sm:$0xff]
        %v457 = vld [vmem:[%s355 + $0x8] sm:$0xff]
        %v458 = vld [vmem:[%s355 + $0x10] sm:$0xff]
        %v459 = vld [vmem:[%s355 + $0x18] sm:$0xff]
        %v460 = vld [vmem:[%s355 + $0x20] sm:$0xff]
        %v461 = vld [vmem:[%s355 + $0x28] sm:$0xff]
        %v462 = vld [vmem:[%s355 + $0x30] sm:$0xff]
        %v463 = vld [vmem:[%s355 + $0x38] sm:$0xff]
        %v464 = vld [vmem:[%s355 + $0x40] sm:$0xff]
        %v465 = vld [vmem:[%s355 + $0x48] sm:$0xff]
        %v466 = vld [vmem:[%s355 + $0x50] sm:$0xff]
        %v467 = vld [vmem:[%s355 + $0x58] sm:$0xff]
        %v468 = vld [vmem:[%s355 + $0x60] sm:$0xff]
        %v469 = vld [vmem:[%s355 + $0x68] sm:$0xff]
        %v470 = vld [vmem:[%s355 + $0x70] sm:$0xff]
        %v471 = vld [vmem:[%s355 + $0x78] sm:$0xff]
        %v472 = vld [vmem:[%s355 + $0x80] sm:$0xff]
        %v473 = vld [vmem:[%s355 + $0x88] sm:$0xff]
        %v474 = vld [vmem:[%s355 + $0x90] sm:$0xff]
        %v475 = vld [vmem:[%s355 + $0x98] sm:$0xff]
        %v476 = vld [vmem:[%s355 + $0xa0] sm:$0xff]
        %v477 = vld [vmem:[%s355 + $0xa8] sm:$0xff]
        %v478 = vld [vmem:[%s355 + $0xb0] sm:$0xff]
        %v479 = vld [vmem:[%s355 + $0xb8] sm:$0xff]
        %v480 = vld [vmem:[%s355 + $0xc0] sm:$0xff]
        %v481 = vld [vmem:[%s355 + $0xc8] sm:$0xff]
        %v482 = vld [vmem:[%s355 + $0xd0] sm:$0xff]
        %v483 = vld [vmem:[%s355 + $0xd8] sm:$0xff]
        %v484 = vld [vmem:[%s355 + $0xe0] sm:$0xff]
        %v485 = vld [vmem:[%s355 + $0xe8] sm:$0xff]
        %v486 = vld [vmem:[%s355 + $0xf0] sm:$0xff]
        %v487 = vld [vmem:[%s355 + $0xf8] sm:$0xff]
        %v488 = vld [vmem:[#allocation9] sm:$0x1]
        %v490 = vlaneseq
        %v491 = vshrl.u32 %v490, 7
        %v492 = vsub.s32 0, %v491
        %v493 = vrot.slane %v488, %v492
        %v495 = vmul.f32 %v456, %v493
        %v496 = vmul.f32 %v457, %v493
        %v497 = vmul.f32 %v458, %v493
        %v498 = vmul.f32 %v459, %v493
        %v499 = vmul.f32 %v460, %v493
        %v500 = vmul.f32 %v461, %v493
        %v501 = vmul.f32 %v462, %v493
        %v502 = vmul.f32 %v463, %v493
        %v503 = vmul.f32 %v464, %v493
        %v504 = vmul.f32 %v465, %v493
        %v505 = vmul.f32 %v466, %v493
        %v506 = vmul.f32 %v467, %v493
        %v507 = vmul.f32 %v468, %v493
        %v508 = vmul.f32 %v469, %v493
        %v509 = vmul.f32 %v470, %v493
        %v510 = vmul.f32 %v471, %v493
        %v511 = vmul.f32 %v472, %v493
        %v512 = vmul.f32 %v473, %v493
        %v513 = vmul.f32 %v474, %v493
        %v514 = vmul.f32 %v475, %v493
        %v515 = vmul.f32 %v476, %v493
        %v516 = vmul.f32 %v477, %v493
        %v517 = vmul.f32 %v478, %v493
        %v518 = vmul.f32 %v479, %v493
        %v519 = vmul.f32 %v480, %v493
        %v520 = vmul.f32 %v481, %v493
        %v521 = vmul.f32 %v482, %v493
        %v522 = vmul.f32 %v483, %v493
        %v523 = vmul.f32 %v484, %v493
        %v524 = vmul.f32 %v485, %v493
        %v525 = vmul.f32 %v486, %v493
        %v526 = vmul.f32 %v487, %v493
        %v527 = vld [vmem:[#allocation11] sm:$0x1]
        %v529 = vlaneseq
        %v530 = vshrl.u32 %v529, 7
        %v531 = vsub.s32 0, %v530
        %v532 = vrot.slane %v527, %v531
        %v534 = vadd.f32 %v495, %v532
        %v535 = vadd.f32 %v496, %v532
        %v536 = vadd.f32 %v497, %v532
        %v537 = vadd.f32 %v498, %v532
        %v538 = vadd.f32 %v499, %v532
        %v539 = vadd.f32 %v500, %v532
        %v540 = vadd.f32 %v501, %v532
        %v541 = vadd.f32 %v502, %v532
        %v542 = vadd.f32 %v503, %v532
        %v543 = vadd.f32 %v504, %v532
        %v544 = vadd.f32 %v505, %v532
        %v545 = vadd.f32 %v506, %v532
        %v546 = vadd.f32 %v507, %v532
        %v547 = vadd.f32 %v508, %v532
        %v548 = vadd.f32 %v509, %v532
        %v549 = vadd.f32 %v510, %v532
        %v550 = vadd.f32 %v511, %v532
        %v551 = vadd.f32 %v512, %v532
        %v552 = vadd.f32 %v513, %v532
        %v553 = vadd.f32 %v514, %v532
        %v554 = vadd.f32 %v515, %v532
        %v555 = vadd.f32 %v516, %v532
        %v556 = vadd.f32 %v517, %v532
        %v557 = vadd.f32 %v518, %v532
        %v558 = vadd.f32 %v519, %v532
        %v559 = vadd.f32 %v520, %v532
        %v560 = vadd.f32 %v521, %v532
        %v561 = vadd.f32 %v522, %v532
        %v562 = vadd.f32 %v523, %v532
        %v563 = vadd.f32 %v524, %v532
        %v564 = vadd.f32 %v525, %v532
        %v565 = vadd.f32 %v526, %v532
        %566 = vst [vmem:[%s423 + $0x1] sm:$0xff] %v534
        %567 = vst [vmem:[%s423 + $0x9] sm:$0xff] %v535
        %568 = vst [vmem:[%s423 + $0x19] sm:$0xff] %v536
        %569 = vst [vmem:[%s423 + $0x21] sm:$0xff] %v537
        %570 = vst [vmem:[%s423 + $0x31] sm:$0xff] %v538
        %571 = vst [vmem:[%s423 + $0x39] sm:$0xff] %v539
        %572 = vst [vmem:[%s423 + $0x49] sm:$0xff] %v540
        %573 = vst [vmem:[%s423 + $0x51] sm:$0xff] %v541
        %574 = vst [vmem:[%s423 + $0x61] sm:$0xff] %v542
        %575 = vst [vmem:[%s423 + $0x69] sm:$0xff] %v543
        %576 = vst [vmem:[%s423 + $0x79] sm:$0xff] %v544
        %577 = vst [vmem:[%s423 + $0x81] sm:$0xff] %v545
        %578 = vst [vmem:[%s423 + $0x91] sm:$0xff] %v546
        %579 = vst [vmem:[%s423 + $0x99] sm:$0xff] %v547
        %580 = vst [vmem:[%s423 + $0xa9] sm:$0xff] %v548
        %581 = vst [vmem:[%s423 + $0xb1] sm:$0xff] %v549
        %582 = vst [vmem:[%s423 + $0xc1] sm:$0xff] %v550
        %583 = vst [vmem:[%s423 + $0xc9] sm:$0xff] %v551
        %584 = vst [vmem:[%s423 + $0xd9] sm:$0xff] %v552
        %585 = vst [vmem:[%s423 + $0xe1] sm:$0xff] %v553
        %586 = vst [vmem:[%s423 + $0xf1] sm:$0xff] %v554
        %587 = vst [vmem:[%s423 + $0xf9] sm:$0xff] %v555
        %588 = vst [vmem:[%s423 + $0x109] sm:$0xff] %v556
        %589 = vst [vmem:[%s423 + $0x111] sm:$0xff] %v557
        %590 = vst [vmem:[%s423 + $0x121] sm:$0xff] %v558
        %591 = vst [vmem:[%s423 + $0x129] sm:$0xff] %v559
        %592 = vst [vmem:[%s423 + $0x139] sm:$0xff] %v560
        %593 = vst [vmem:[%s423 + $0x141] sm:$0xff] %v561
        %594 = vst [vmem:[%s423 + $0x151] sm:$0xff] %v562
        %595 = vst [vmem:[%s423 + $0x159] sm:$0xff] %v563
        %596 = vst [vmem:[%s423 + $0x169] sm:$0xff] %v564
        %597 = vst [vmem:[%s423 + $0x171] sm:$0xff] %v565
        %v598 = vld [vmem:[#allocation2] sm:$0xff]
        %v599 = vld [vmem:[#allocation2 + $0x8] sm:$0xff]
        %v600 = vld [vmem:[#allocation2 + $0x18] sm:$0xff]
        %v601 = vld [vmem:[#allocation2 + $0x20] sm:$0xff]
        %v602 = vld [vmem:[#allocation2 + $0x30] sm:$0xff]
        %v603 = vld [vmem:[#allocation2 + $0x38] sm:$0xff]
        %v604 = vld [vmem:[#allocation2 + $0x48] sm:$0xff]
        %v605 = vld [vmem:[#allocation2 + $0x50] sm:$0xff]
        %v606 = vld [vmem:[#allocation2 + $0x60] sm:$0xff]
        %v607 = vld [vmem:[#allocation2 + $0x68] sm:$0xff]
        %v608 = vld [vmem:[#allocation2 + $0x78] sm:$0xff]
        %v609 = vld [vmem:[#allocation2 + $0x80] sm:$0xff]
        %v610 = vld [vmem:[#allocation2 + $0x90] sm:$0xff]
        %v611 = vld [vmem:[#allocation2 + $0x98] sm:$0xff]
        %v612 = vld [vmem:[#allocation2 + $0xa8] sm:$0xff]
        %v613 = vld [vmem:[#allocation2 + $0xb0] sm:$0xff]
        %v614 = vld [vmem:[#allocation2 + $0xc0] sm:$0xff]
        %v615 = vld [vmem:[#allocation2 + $0xc8] sm:$0xff]
        %v616 = vld [vmem:[#allocation2 + $0xd8] sm:$0xff]
        %v617 = vld [vmem:[#allocation2 + $0xe0] sm:$0xff]
        %v618 = vld [vmem:[#allocation2 + $0xf0] sm:$0xff]
        %v619 = vld [vmem:[#allocation2 + $0xf8] sm:$0xff]
        %v620 = vld [vmem:[#allocation2 + $0x108] sm:$0xff]
        %v621 = vld [vmem:[#allocation2 + $0x110] sm:$0xff]
        %v622 = vld [vmem:[#allocation2 + $0x120] sm:$0xff]
        %v623 = vld [vmem:[#allocation2 + $0x128] sm:$0xff]
        %v624 = vld [vmem:[#allocation2 + $0x138] sm:$0xff]
        %v625 = vld [vmem:[#allocation2 + $0x140] sm:$0xff]
        %v626 = vld [vmem:[#allocation2 + $0x150] sm:$0xff]
        %v627 = vld [vmem:[#allocation2 + $0x158] sm:$0xff]
        %v628 = vld [vmem:[#allocation2 + $0x168] sm:$0xff]
        %v629 = vld [vmem:[#allocation2 + $0x170] sm:$0xff]
        %v630 = vld [vmem:[#allocation2 + $0x180] sm:$0xff]
        %v631 = vld [vmem:[#allocation2 + $0x188] sm:$0xff]
        %v632 = vld [vmem:[#allocation2 + $0x198] sm:$0xff]
        %v633 = vld [vmem:[#allocation2 + $0x1a0] sm:$0xff]
        %v634 = vld [vmem:[#allocation2 + $0x1] sm:$0xff]
        %v635 = vld [vmem:[#allocation2 + $0x9] sm:$0xff]
        %v636 = vld [vmem:[#allocation2 + $0x19] sm:$0xff]
        %v637 = vld [vmem:[#allocation2 + $0x21] sm:$0xff]
        %v638 = vld [vmem:[#allocation2 + $0x31] sm:$0xff]
        %v639 = vld [vmem:[#allocation2 + $0x39] sm:$0xff]
        %v640 = vld [vmem:[#allocation2 + $0x49] sm:$0xff]
        %v641 = vld [vmem:[#allocation2 + $0x51] sm:$0xff]
        %v642 = vld [vmem:[#allocation2 + $0x61] sm:$0xff]
        %v643 = vld [vmem:[#allocation2 + $0x69] sm:$0xff]
        %v644 = vld [vmem:[#allocation2 + $0x79] sm:$0xff]
        %v645 = vld [vmem:[#allocation2 + $0x81] sm:$0xff]
        %v646 = vld [vmem:[#allocation2 + $0x91] sm:$0xff]
        %v647 = vld [vmem:[#allocation2 + $0x99] sm:$0xff]
        %v648 = vld [vmem:[#allocation2 + $0xa9] sm:$0xff]
        %v649 = vld [vmem:[#allocation2 + $0xb1] sm:$0xff]
        %v650 = vld [vmem:[#allocation2 + $0xc1] sm:$0xff]
        %v651 = vld [vmem:[#allocation2 + $0xc9] sm:$0xff]
        %v652 = vld [vmem:[#allocation2 + $0xd9] sm:$0xff]
        %v653 = vld [vmem:[#allocation2 + $0xe1] sm:$0xff]
        %v654 = vld [vmem:[#allocation2 + $0xf1] sm:$0xff]
        %v655 = vld [vmem:[#allocation2 + $0xf9] sm:$0xff]
        %v656 = vld [vmem:[#allocation2 + $0x109] sm:$0xff]
        %v657 = vld [vmem:[#allocation2 + $0x111] sm:$0xff]
        %v658 = vld [vmem:[#allocation2 + $0x121] sm:$0xff]
        %v659 = vld [vmem:[#allocation2 + $0x129] sm:$0xff]
        %v660 = vld [vmem:[#allocation2 + $0x139] sm:$0xff]
        %v661 = vld [vmem:[#allocation2 + $0x141] sm:$0xff]
        %v662 = vld [vmem:[#allocation2 + $0x151] sm:$0xff]
        %v663 = vld [vmem:[#allocation2 + $0x159] sm:$0xff]
        %v664 = vld [vmem:[#allocation2 + $0x169] sm:$0xff]
        %v665 = vld [vmem:[#allocation2 + $0x171] sm:$0xff]
        %v666 = vld [vmem:[#allocation2 + $0x181] sm:$0xff]
        %v667 = vld [vmem:[#allocation2 + $0x189] sm:$0xff]
        %v668 = vld [vmem:[#allocation2 + $0x199] sm:$0xff]
        %v669 = vld [vmem:[#allocation2 + $0x1a1] sm:$0xff]
        %v670 = vld [vmem:[#allocation2 + $0x2] sm:$0xff]
        %v671 = vld [vmem:[#allocation2 + $0xa] sm:$0xff]
        %v672 = vld [vmem:[#allocation2 + $0x1a] sm:$0xff]
        %v673 = vld [vmem:[#allocation2 + $0x22] sm:$0xff]
        %v674 = vld [vmem:[#allocation2 + $0x32] sm:$0xff]
        %v675 = vld [vmem:[#allocation2 + $0x3a] sm:$0xff]
        %v676 = vld [vmem:[#allocation2 + $0x4a] sm:$0xff]
        %v677 = vld [vmem:[#allocation2 + $0x52] sm:$0xff]
        %v678 = vld [vmem:[#allocation2 + $0x62] sm:$0xff]
        %v679 = vld [vmem:[#allocation2 + $0x6a] sm:$0xff]
        %v680 = vld [vmem:[#allocation2 + $0x7a] sm:$0xff]
        %v681 = vld [vmem:[#allocation2 + $0x82] sm:$0xff]
        %v682 = vld [vmem:[#allocation2 + $0x92] sm:$0xff]
        %v683 = vld [vmem:[#allocation2 + $0x9a] sm:$0xff]
        %v684 = vld [vmem:[#allocation2 + $0xaa] sm:$0xff]
        %v685 = vld [vmem:[#allocation2 + $0xb2] sm:$0xff]
        %v686 = vld [vmem:[#allocation2 + $0xc2] sm:$0xff]
        %v687 = vld [vmem:[#allocation2 + $0xca] sm:$0xff]
        %v688 = vld [vmem:[#allocation2 + $0xda] sm:$0xff]
        %v689 = vld [vmem:[#allocation2 + $0xe2] sm:$0xff]
        %v690 = vld [vmem:[#allocation2 + $0xf2] sm:$0xff]
        %v691 = vld [vmem:[#allocation2 + $0xfa] sm:$0xff]
        %v692 = vld [vmem:[#allocation2 + $0x10a] sm:$0xff]
        %v693 = vld [vmem:[#allocation2 + $0x112] sm:$0xff]
        %v694 = vld [vmem:[#allocation2 + $0x122] sm:$0xff]
        %v695 = vld [vmem:[#allocation2 + $0x12a] sm:$0xff]
        %v696 = vld [vmem:[#allocation2 + $0x13a] sm:$0xff]
        %v697 = vld [vmem:[#allocation2 + $0x142] sm:$0xff]
        %v698 = vld [vmem:[#allocation2 + $0x152] sm:$0xff]
        %v699 = vld [vmem:[#allocation2 + $0x15a] sm:$0xff]
        %v700 = vld [vmem:[#allocation2 + $0x16a] sm:$0xff]
        %v701 = vld [vmem:[#allocation2 + $0x172] sm:$0xff]
        %v702 = vld [vmem:[#allocation2 + $0x182] sm:$0xff]
        %v703 = vld [vmem:[#allocation2 + $0x18a] sm:$0xff]
        %v704 = vld [vmem:[#allocation2 + $0x19a] sm:$0xff]
        %v705 = vld [vmem:[#allocation2 + $0x1a2] sm:$0xff]
        %v706 = vld [vmem:[#allocation6] sm:$0xff]
        %v707 = vld [vmem:[#allocation6 + $0x8] sm:$0xff]
        %v708 = vld [vmem:[#allocation6 + $0x10] sm:$0xff]
        %v709 = vld [vmem:[#allocation6 + $0x18] sm:$0xff]
        %v710 = vld [vmem:[#allocation6 + $0x20] sm:$0xff]
        %v711 = vld [vmem:[#allocation6 + $0x28] sm:$0xff]
        %v712 = vld [vmem:[#allocation6 + $0x30] sm:$0xff]
        %v713 = vld [vmem:[#allocation6 + $0x38] sm:$0xff]
        %v714 = vld [vmem:[#allocation6 + $0x40] sm:$0xff]
        %v715 = vld [vmem:[#allocation6 + $0x48] sm:$0xff]
        %v716 = vld [vmem:[#allocation6 + $0x50] sm:$0xff]
        %v717 = vld [vmem:[#allocation6 + $0x58] sm:$0xff]
        %v718 = vld [vmem:[#allocation6 + $0x60] sm:$0xff]
        %v719 = vld [vmem:[#allocation6 + $0x68] sm:$0xff]
        %v720 = vld [vmem:[#allocation6 + $0x70] sm:$0xff]
        %v721 = vld [vmem:[#allocation6 + $0x78] sm:$0xff]
        %v722 = vld [vmem:[#allocation6 + $0x80] sm:$0xff]
        %v723 = vld [vmem:[#allocation6 + $0x88] sm:$0xff]
        %v724 = vld [vmem:[#allocation6 + $0x90] sm:$0xff]
        %v725 = vld [vmem:[#allocation6 + $0x98] sm:$0xff]
        %v726 = vld [vmem:[#allocation6 + $0xa0] sm:$0xff]
        %v727 = vld [vmem:[#allocation6 + $0xa8] sm:$0xff]
        %v728 = vld [vmem:[#allocation6 + $0xb0] sm:$0xff]
        %v729 = vld [vmem:[#allocation6 + $0xb8] sm:$0xff]
        %v730 = vld [vmem:[#allocation6 + $0xc0] sm:$0xff]
        %v731 = vld [vmem:[#allocation6 + $0xc8] sm:$0xff]
        %v732 = vld [vmem:[#allocation6 + $0xd0] sm:$0xff]
        %v733 = vld [vmem:[#allocation6 + $0xd8] sm:$0xff]
        %v734 = vld [vmem:[#allocation6 + $0xe0] sm:$0xff]
        %v735 = vld [vmem:[#allocation6 + $0xe8] sm:$0xff]
        %v736 = vld [vmem:[#allocation6 + $0xf0] sm:$0xff]
        %v737 = vld [vmem:[#allocation6 + $0xf8] sm:$0xff]
        %v738 = vld [vmem:[#allocation6 + $0x100] sm:$0xff]
        %v739 = vld [vmem:[#allocation6 + $0x108] sm:$0xff]
        %v740 = vld [vmem:[#allocation6 + $0x110] sm:$0xff]
        %v741 = vld [vmem:[#allocation6 + $0x118] sm:$0xff]
        %v742 = vld [vmem:[#allocation6 + $0x120] sm:$0xff]
        %v743 = vld [vmem:[#allocation6 + $0x128] sm:$0xff]
        %v744 = vld [vmem:[#allocation6 + $0x130] sm:$0xff]
        %v745 = vld [vmem:[#allocation6 + $0x138] sm:$0xff]
        %v746 = vld [vmem:[#allocation6 + $0x140] sm:$0xff]
        %v747 = vld [vmem:[#allocation6 + $0x148] sm:$0xff]
        %v748 = vld [vmem:[#allocation6 + $0x150] sm:$0xff]
        %v749 = vld [vmem:[#allocation6 + $0x158] sm:$0xff]
        %v750 = vld [vmem:[#allocation6 + $0x160] sm:$0xff]
        %v751 = vld [vmem:[#allocation6 + $0x168] sm:$0xff]
        %v752 = vld [vmem:[#allocation6 + $0x170] sm:$0xff]
        %v753 = vld [vmem:[#allocation6 + $0x178] sm:$0xff]
        %v754 = vld [vmem:[#allocation6 + $0x180] sm:$0xff]
        %v755 = vld [vmem:[#allocation6 + $0x188] sm:$0xff]
        %v756 = vld [vmem:[#allocation6 + $0x190] sm:$0xff]
        %v757 = vld [vmem:[#allocation6 + $0x198] sm:$0xff]
        %v758 = vld [vmem:[#allocation6 + $0x1a0] sm:$0xff]
        %v759 = vld [vmem:[#allocation6 + $0x1a8] sm:$0xff]
        %v760 = vld [vmem:[#allocation6 + $0x1b0] sm:$0xff]
        %v761 = vld [vmem:[#allocation6 + $0x1b8] sm:$0xff]
        %v762 = vld [vmem:[#allocation6 + $0x1c0] sm:$0xff]
        %v763 = vld [vmem:[#allocation6 + $0x1c8] sm:$0xff]
        %v764 = vld [vmem:[#allocation6 + $0x1d0] sm:$0xff]
        %v765 = vld [vmem:[#allocation6 + $0x1d8] sm:$0xff]
        %v766 = vld [vmem:[#allocation6 + $0x1e0] sm:$0xff]
        %v767 = vld [vmem:[#allocation6 + $0x1e8] sm:$0xff]
        %v768 = vld [vmem:[#allocation6 + $0x1f0] sm:$0xff]
        %v769 = vld [vmem:[#allocation6 + $0x1f8] sm:$0xff]
        %v770 = vld [vmem:[#allocation6 + $0x200] sm:$0xff]
        %v771 = vld [vmem:[#allocation6 + $0x208] sm:$0xff]
        %v772 = vld [vmem:[#allocation6 + $0x210] sm:$0xff]
        %v773 = vld [vmem:[#allocation6 + $0x218] sm:$0xff]
        %v774 = vld [vmem:[#allocation6 + $0x220] sm:$0xff]
        %v775 = vld [vmem:[#allocation6 + $0x228] sm:$0xff]
        %v776 = vld [vmem:[#allocation6 + $0x230] sm:$0xff]
        %v777 = vld [vmem:[#allocation6 + $0x238] sm:$0xff]
        %v778 = vld [vmem:[#allocation6 + $0x240] sm:$0xff]
        %v779 = vld [vmem:[#allocation6 + $0x248] sm:$0xff]
        %v780 = vld [vmem:[#allocation6 + $0x250] sm:$0xff]
        %v781 = vld [vmem:[#allocation6 + $0x258] sm:$0xff]
        %v782 = vld [vmem:[#allocation6 + $0x260] sm:$0xff]
        %v783 = vld [vmem:[#allocation6 + $0x268] sm:$0xff]
        %v784 = vld [vmem:[#allocation6 + $0x270] sm:$0xff]
        %v785 = vld [vmem:[#allocation6 + $0x278] sm:$0xff]
        %v786 = vld [vmem:[#allocation6 + $0x280] sm:$0xff]
        %v787 = vld [vmem:[#allocation6 + $0x288] sm:$0xff]
        %v788 = vld [vmem:[#allocation6 + $0x290] sm:$0xff]
        %v789 = vld [vmem:[#allocation6 + $0x298] sm:$0xff]
        %v790 = vld [vmem:[#allocation6 + $0x2a0] sm:$0xff]
        %v791 = vld [vmem:[#allocation6 + $0x2a8] sm:$0xff]
        %v792 = vld [vmem:[#allocation6 + $0x2b0] sm:$0xff]
        %v793 = vld [vmem:[#allocation6 + $0x2b8] sm:$0xff]
        %v794 = vld [vmem:[#allocation6 + $0x2c0] sm:$0xff]
        %v795 = vld [vmem:[#allocation6 + $0x2c8] sm:$0xff]
        %v796 = vld [vmem:[#allocation6 + $0x2d0] sm:$0xff]
        %v797 = vld [vmem:[#allocation6 + $0x2d8] sm:$0xff]
        %v798 = vld [vmem:[#allocation6 + $0x2e0] sm:$0xff]
        %v799 = vld [vmem:[#allocation6 + $0x2e8] sm:$0xff]
        %v800 = vld [vmem:[#allocation6 + $0x2f0] sm:$0xff]
        %v801 = vld [vmem:[#allocation6 + $0x2f8] sm:$0xff]
        %802 = vmatprep.subr.mxu0 0.0
        %803 = vmatpush1.msra.mxu0 %v754
        %804 = vmatprep.subr.mxu0 0.0
        %805 = vmatpush1.msra.mxu0 %v755
        %806 = vmatprep.subr.mxu0 0.0
        %807 = vmatpush1.msra.mxu0 %v756
        %808 = vmatprep.subr.mxu0 0.0
        %809 = vmatpush1.msra.mxu0 %v757
        %810 = vmatprep.subr.mxu0 0.0
        %811 = vmatpush1.msra.mxu0 %v758
        %812 = vmatprep.subr.mxu0 0.0
        %813 = vmatpush1.msra.mxu0 %v759
        %814 = vmatprep.subr.mxu0 0.0
        %815 = vmatpush1.msra.mxu0 %v760
        %816 = vmatprep.subr.mxu0 0.0
        %817 = vmatpush1.msra.mxu0 %v761
        %818 = vmatprep.subr.mxu0 0.0
        %819 = vmatpush1.msra.mxu0 %v762
        %820 = vmatprep.subr.mxu0 0.0
        %821 = vmatpush1.msra.mxu0 %v763
        %822 = vmatprep.subr.mxu0 0.0
        %823 = vmatpush1.msra.mxu0 %v764
        %824 = vmatprep.subr.mxu0 0.0
        %825 = vmatpush1.msra.mxu0 %v765
        %826 = vmatprep.subr.mxu0 0.0
        %827 = vmatpush1.msra.mxu0 %v766
        %828 = vmatprep.subr.mxu0 0.0
        %829 = vmatpush1.msra.mxu0 %v767
        %830 = vmatprep.subr.mxu0 0.0
        %831 = vmatpush1.msra.mxu0 %v768
        %832 = vmatprep.subr.mxu0 0.0
        %833 = vmatpush1.msra.mxu0 %v769
        %834 = vmatprep.subr.mxu0 0.0
        %835 = vmatpush1.msra.mxu0 %v770
        %836 = vmatprep.subr.mxu0 0.0
        %837 = vmatpush1.msra.mxu0 %v771
        %838 = vmatprep.subr.mxu0 0.0
        %839 = vmatpush1.msra.mxu0 %v772
        %840 = vmatprep.subr.mxu0 0.0
        %841 = vmatpush1.msra.mxu0 %v773
        %842 = vmatprep.subr.mxu0 0.0
        %843 = vmatpush1.msra.mxu0 %v774
        %844 = vmatprep.subr.mxu0 0.0
        %845 = vmatpush1.msra.mxu0 %v775
        %846 = vmatprep.subr.mxu0 0.0
        %847 = vmatpush1.msra.mxu0 %v776
        %848 = vmatprep.subr.mxu0 0.0
        %849 = vmatpush1.msra.mxu0 %v777
        %850 = vmatprep.subr.mxu0 0.0
        %851 = vmatpush1.msra.mxu0 %v778
        %852 = vmatprep.subr.mxu0 0.0
        %853 = vmatpush1.msra.mxu0 %v779
        %854 = vmatprep.subr.mxu0 0.0
        %855 = vmatpush1.msra.mxu0 %v780
        %856 = vmatprep.subr.mxu0 0.0
        %857 = vmatpush1.msra.mxu0 %v781
        %858 = vmatprep.subr.mxu0 0.0
        %859 = vmatpush1.msra.mxu0 %v782
        %860 = vmatprep.subr.mxu0 0.0
        %861 = vmatpush1.msra.mxu0 %v783
        %862 = vmatprep.subr.mxu0 0.0
        %863 = vmatpush1.msra.mxu0 %v784
        %864 = vmatprep.subr.mxu0 0.0
        %865 = vmatpush1.msra.mxu0 %v785
        %866 = vmatprep.mubr.f32.mxu0 %v636
        %867 = vmatmul.mubr.f32.gmra.mrb[0].mxu0 %v600
        %v868 = vpop.f32.mrb[0].mxu0
        %v869 = vadd.f32 0.0, %v868
        %v870 = vpop.f32.mrb[0].mxu0
        %871 = vmatprep.mubr.f32.mxu0 %v637
        %872 = vmatmul.mubr.f32.gmra.mrb[0].mxu0 %v601
        %v873 = vpop.f32.mrb[0].mxu0
        %v874 = vadd.f32 0.0, %v873
        %v875 = vpop.f32.mrb[0].mxu0
        %876 = vmatprep.mubr.f32.mxu0 %v638
        %877 = vmatmul.mubr.f32.gmra.mrb[0].mxu0 %v602
        %v878 = vpop.f32.mrb[0].mxu0
        %v879 = vadd.f32 0.0, %v878
        %v880 = vpop.f32.mrb[0].mxu0
        %881 = vmatprep.mubr.f32.mxu0 %v639
        %882 = vmatmul.mubr.f32.gmra.mrb[0].mxu0 %v603
        %v883 = vpop.f32.mrb[0].mxu0
        %v884 = vadd.f32 0.0, %v883
        %v885 = vpop.f32.mrb[0].mxu0
        %886 = vmatprep.mubr.f32.mxu0 %v640
        %887 = vmatmul.mubr.f32.gmra.mrb[0].mxu0 %v604
        %v888 = vpop.f32.mrb[0].mxu0
        %v889 = vadd.f32 0.0, %v888
        %v890 = vpop.f32.mrb[0].mxu0
        %891 = vmatprep.mubr.f32.mxu0 %v641
        %892 = vmatmul.mubr.f32.gmra.mrb[0].mxu0 %v605
        %v893 = vpop.f32.mrb[0].mxu0
        %v894 = vadd.f32 0.0, %v893
        %v895 = vpop.f32.mrb[0].mxu0
        %896 = vmatprep.mubr.f32.mxu0 %v642
        %897 = vmatmul.mubr.f32.gmra.mrb[0].mxu0 %v606
        %v898 = vpop.f32.mrb[0].mxu0
        %v899 = vadd.f32 0.0, %v898
        %v900 = vpop.f32.mrb[0].mxu0
        %901 = vmatprep.mubr.f32.mxu0 %v643
        %902 = vmatmul.mubr.f32.gmra.mrb[0].mxu0 %v607
        %v903 = vpop.f32.mrb[0].mxu0
        %v904 = vadd.f32 0.0, %v903
        %v905 = vpop.f32.mrb[0].mxu0
        %906 = vmatprep.mubr.f32.mxu0 %v644
        %907 = vmatmul.mubr.f32.gmra.mrb[0].mxu0 %v608
        %v908 = vpop.f32.mrb[0].mxu0
        %v909 = vadd.f32 0.0, %v908
        %v910 = vpop.f32.mrb[0].mxu0
        %911 = vmatprep.mubr.f32.mxu0 %v645
        %912 = vmatmul.mubr.f32.gmra.mrb[0].mxu0 %v609
        %v913 = vpop.f32.mrb[0].mxu0
        %v914 = vadd.f32 0.0, %v913
        %v915 = vpop.f32.mrb[0].mxu0
        %916 = vmatprep.mubr.f32.mxu0 %v646
        %917 = vmatmul.mubr.f32.gmra.mrb[0].mxu0 %v610
        %v918 = vpop.f32.mrb[0].mxu0
        %v919 = vadd.f32 0.0, %v918
        %v920 = vpop.f32.mrb[0].mxu0
        %921 = vmatprep.mubr.f32.mxu0 %v647
        %922 = vmatmul.mubr.f32.gmra.mrb[0].mxu0 %v611
        %v923 = vpop.f32.mrb[0].mxu0
        %v924 = vadd.f32 0.0, %v923
        %v925 = vpop.f32.mrb[0].mxu0
        %926 = vmatprep.mubr.f32.mxu0 %v648
        %927 = vmatmul.mubr.f32.gmra.mrb[0].mxu0 %v612
        %v928 = vpop.f32.mrb[0].mxu0
        %v929 = vadd.f32 0.0, %v928
        %v930 = vpop.f32.mrb[0].mxu0
        %931 = vmatprep.mubr.f32.mxu0 %v649
        %932 = vmatmul.mubr.f32.gmra.mrb[0].mxu0 %v613
        %v933 = vpop.f32.mrb[0].mxu0
        %v934 = vadd.f32 0.0, %v933
        %v935 = vpop.f32.mrb[0].mxu0
        %936 = vmatprep.mubr.f32.mxu0 %v650
        %937 = vmatmul.mubr.f32.gmra.mrb[0].mxu0 %v614
        %v938 = vpop.f32.mrb[0].mxu0
        %v939 = vadd.f32 0.0, %v938
        %v940 = vpop.f32.mrb[0].mxu0
        %941 = vmatprep.mubr.f32.mxu0 %v651
        %942 = vmatmul.mubr.f32.gmra.mrb[0].mxu0 %v615
        %v943 = vpop.f32.mrb[0].mxu0
        %v944 = vadd.f32 0.0, %v943
        %v945 = vpop.f32.mrb[0].mxu0
        %946 = vmatprep.mubr.f32.mxu0 %v652
        %947 = vmatmul.mubr.f32.gmra.mrb[0].mxu0 %v616
        %v948 = vpop.f32.mrb[0].mxu0
        %v949 = vadd.f32 0.0, %v948
        %v950 = vpop.f32.mrb[0].mxu0
        %951 = vmatprep.mubr.f32.mxu0 %v653
        %952 = vmatmul.mubr.f32.gmra.mrb[0].mxu0 %v617
        %v953 = vpop.f32.mrb[0].mxu0
        %v954 = vadd.f32 0.0, %v953
        %v955 = vpop.f32.mrb[0].mxu0
        %956 = vmatprep.mubr.f32.mxu0 %v654
        %957 = vmatmul.mubr.f32.gmra.mrb[0].mxu0 %v618
        %v958 = vpop.f32.mrb[0].mxu0
        %v959 = vadd.f32 0.0, %v958
        %v960 = vpop.f32.mrb[0].mxu0
        %961 = vmatprep.mubr.f32.mxu0 %v655
        %962 = vmatmul.mubr.f32.gmra.mrb[0].mxu0 %v619
        %v963 = vpop.f32.mrb[0].mxu0
        %v964 = vadd.f32 0.0, %v963
        %v965 = vpop.f32.mrb[0].mxu0
        %966 = vmatprep.mubr.f32.mxu0 %v656
        %967 = vmatmul.mubr.f32.gmra.mrb[0].mxu0 %v620
        %v968 = vpop.f32.mrb[0].mxu0
        %v969 = vadd.f32 0.0, %v968
        %v970 = vpop.f32.mrb[0].mxu0
        %971 = vmatprep.mubr.f32.mxu0 %v657
        %972 = vmatmul.mubr.f32.gmra.mrb[0].mxu0 %v621
        %v973 = vpop.f32.mrb[0].mxu0
        %v974 = vadd.f32 0.0, %v973
        %v975 = vpop.f32.mrb[0].mxu0
        %976 = vmatprep.mubr.f32.mxu0 %v658
        %977 = vmatmul.mubr.f32.gmra.mrb[0].mxu0 %v622
        %v978 = vpop.f32.mrb[0].mxu0
        %v979 = vadd.f32 0.0, %v978
        %v980 = vpop.f32.mrb[0].mxu0
        %981 = vmatprep.mubr.f32.mxu0 %v659
        %982 = vmatmul.mubr.f32.gmra.mrb[0].mxu0 %v623
        %v983 = vpop.f32.mrb[0].mxu0
        %v984 = vadd.f32 0.0, %v983
        %v985 = vpop.f32.mrb[0].mxu0
        %986 = vmatprep.mubr.f32.mxu0 %v660
        %987 = vmatmul.mubr.f32.gmra.mrb[0].mxu0 %v624
        %v988 = vpop.f32.mrb[0].mxu0
        %v989 = vadd.f32 0.0, %v988
        %v990 = vpop.f32.mrb[0].mxu0
        %991 = vmatprep.mubr.f32.mxu0 %v661
        %992 = vmatmul.mubr.f32.gmra.mrb[0].mxu0 %v625
        %v993 = vpop.f32.mrb[0].mxu0
        %v994 = vadd.f32 0.0, %v993
        %v995 = vpop.f32.mrb[0].mxu0
        %996 = vmatprep.mubr.f32.mxu0 %v662
        %997 = vmatmul.mubr.f32.gmra.mrb[0].mxu0 %v626
        %v998 = vpop.f32.mrb[0].mxu0
        %v999 = vadd.f32 0.0, %v998
        %v1000 = vpop.f32.mrb[0].mxu0
        %1001 = vmatprep.mubr.f32.mxu0 %v663
        %1002 = vmatmul.mubr.f32.gmra.mrb[0].mxu0 %v627
        %v1003 = vpop.f32.mrb[0].mxu0
        %v1004 = vadd.f32 0.0, %v1003
        %v1005 = vpop.f32.mrb[0].mxu0
        %1006 = vmatprep.mubr.f32.mxu0 %v664
        %1007 = vmatmul.mubr.f32.gmra.mrb[0].mxu0 %v628
        %v1008 = vpop.f32.mrb[0].mxu0
        %v1009 = vadd.f32 0.0, %v1008
        %v1010 = vpop.f32.mrb[0].mxu0
        %1011 = vmatprep.mubr.f32.mxu0 %v665
        %1012 = vmatmul.mubr.f32.gmra.mrb[0].mxu0 %v629
        %v1013 = vpop.f32.mrb[0].mxu0
        %v1014 = vadd.f32 0.0, %v1013
        %v1015 = vpop.f32.mrb[0].mxu0
        %1016 = vmatprep.mubr.f32.mxu0 %v666
        %1017 = vmatmul.mubr.f32.gmra.mrb[0].mxu0 %v630
        %v1018 = vpop.f32.mrb[0].mxu0
        %v1019 = vadd.f32 0.0, %v1018
        %v1020 = vpop.f32.mrb[0].mxu0
        %1021 = vmatprep.mubr.f32.mxu0 %v667
        %1022 = vmatmul.mubr.f32.gmra.mrb[0].mxu0 %v631
        %v1023 = vpop.f32.mrb[0].mxu0
        %v1024 = vadd.f32 0.0, %v1023
        %v1025 = vpop.f32.mrb[0].mxu0
        %1026 = vdwg.mxu0
        %1027 = vmatprep.subr.mxu0 0.0
        %1028 = vmatpush1.msra.mxu0 %v786
        %1029 = vmatprep.subr.mxu0 0.0
        %1030 = vmatpush1.msra.mxu0 %v787
        %1031 = vmatprep.subr.mxu0 0.0
        %1032 = vmatpush1.msra.mxu0 %v788
        %1033 = vmatprep.subr.mxu0 0.0
        %1034 = vmatpush1.msra.mxu0 %v789
        %1035 = vmatprep.subr.mxu0 0.0
        %1036 = vmatpush1.msra.mxu0 %v790
        %1037 = vmatprep.subr.mxu0 0.0
        %1038 = vmatpush1.msra.mxu0 %v791
        %1039 = vmatprep.subr.mxu0 0.0
        %1040 = vmatpush1.msra.mxu0 %v792
        %1041 = vmatprep.subr.mxu0 0.0
        %1042 = vmatpush1.msra.mxu0 %v793
        %1043 = vmatprep.subr.mxu0 0.0
        %1044 = vmatpush1.msra.mxu0 %v794
        %1045 = vmatprep.subr.mxu0 0.0
        %1046 = vmatpush1.msra.mxu0 %v795
        %1047 = vmatprep.subr.mxu0 0.0
        %1048 = vmatpush1.msra.mxu0 %v796
        %1049 = vmatprep.subr.mxu0 0.0
        %1050 = vmatpush1.msra.mxu0 %v797
        %1051 = vmatprep.subr.mxu0 0.0
        %1052 = vmatpush1.msra.mxu0 %v798
        %1053 = vmatprep.subr.mxu0 0.0
        %1054 = vmatpush1.msra.mxu0 %v799
        %1055 = vmatprep.subr.mxu0 0.0
        %1056 = vmatpush1.msra.mxu0 %v800
        %1057 = vmatprep.subr.mxu0 0.0
        %1058 = vmatpush1.msra.mxu0 %v801
        %1059 = vmatprep.subr.mxu0 0.0
        %1060 = vmatpush1.msra.mxu0 0.0
        %1061 = vmatprep.subr.mxu0 0.0
        %1062 = vmatpush1.msra.mxu0 0.0
        %1063 = vmatprep.subr.mxu0 0.0
        %1064 = vmatpush1.msra.mxu0 0.0
        %1065 = vmatprep.subr.mxu0 0.0
        %1066 = vmatpush1.msra.mxu0 0.0
        %1067 = vmatprep.subr.mxu0 0.0
        %1068 = vmatpush1.msra.mxu0 0.0
        %1069 = vmatprep.subr.mxu0 0.0
        %1070 = vmatpush1.msra.mxu0 0.0
        %1071 = vmatprep.subr.mxu0 0.0
        %1072 = vmatpush1.msra.mxu0 0.0
        %1073 = vmatprep.subr.mxu0 0.0
        %1074 = vmatpush1.msra.mxu0 0.0
        %1075 = vmatprep.subr.mxu0 0.0
        %1076 = vmatpush1.msra.mxu0 0.0
        %1077 = vmatprep.subr.mxu0 0.0
        %1078 = vmatpush1.msra.mxu0 0.0
        %1079 = vmatprep.subr.mxu0 0.0
        %1080 = vmatpush1.msra.mxu0 0.0
        %1081 = vmatprep.subr.mxu0 0.0
        %1082 = vmatpush1.msra.mxu0 0.0
        %1083 = vmatprep.subr.mxu0 0.0
        %1084 = vmatpush1.msra.mxu0 0.0
        %1085 = vmatprep.subr.mxu0 0.0
        %1086 = vmatpush1.msra.mxu0 0.0
        %1087 = vmatprep.subr.mxu0 0.0
        %1088 = vmatpush1.msra.mxu0 0.0
        %1089 = vmatprep.subr.mxu0 0.0
        %1090 = vmatpush1.msra.mxu0 0.0
        %1091 = vmatprep.mubr.f32.mxu0 0.0
        %1092 = vmatmul.mubr.f32.gmra.mrb[0].mxu0 %v672
        %v1093 = vpop.f32.mrb[0].mxu0
        %v1094 = vadd.f32 %v869, %v1093
        %v1095 = vpop.f32.mrb[0].mxu0
        %1096 = vmatprep.mubr.f32.mxu0 0.0
        %1097 = vmatmul.mubr.f32.gmra.mrb[0].mxu0 %v673
        %v1098 = vpop.f32.mrb[0].mxu0
        %v1099 = vadd.f32 %v874, %v1098
        %v1100 = vpop.f32.mrb[0].mxu0
        %1101 = vmatprep.mubr.f32.mxu0 0.0
        %1102 = vmatmul.mubr.f32.gmra.mrb[0].mxu0 %v674
        %v1103 = vpop.f32.mrb[0].mxu0
        %v1104 = vadd.f32 %v879, %v1103
        %v1105 = vpop.f32.mrb[0].mxu0
        %1106 = vmatprep.mubr.f32.mxu0 0.0
        %1107 = vmatmul.mubr.f32.gmra.mrb[0].mxu0 %v675
        %v1108 = vpop.f32.mrb[0].mxu0
        %v1109 = vadd.f32 %v884, %v1108
        %v1110 = vpop.f32.mrb[0].mxu0
        %1111 = vmatprep.mubr.f32.mxu0 0.0
        %1112 = vmatmul.mubr.f32.gmra.mrb[0].mxu0 %v676
        %v1113 = vpop.f32.mrb[0].mxu0
        %v1114 = vadd.f32 %v889, %v1113
        %v1115 = vpop.f32.mrb[0].mxu0
        %1116 = vmatprep.mubr.f32.mxu0 0.0
        %1117 = vmatmul.mubr.f32.gmra.mrb[0].mxu0 %v677
        %v1118 = vpop.f32.mrb[0].mxu0
        %v1119 = vadd.f32 %v894, %v1118
        %v1120 = vpop.f32.mrb[0].mxu0
        %1121 = vmatprep.mubr.f32.mxu0 0.0
        %1122 = vmatmul.mubr.f32.gmra.mrb[0].mxu0 %v678
        %v1123 = vpop.f32.mrb[0].mxu0
        %v1124 = vadd.f32 %v899, %v1123
        %v1125 = vpop.f32.mrb[0].mxu0
        %1126 = vmatprep.mubr.f32.mxu0 0.0
        %1127 = vmatmul.mubr.f32.gmra.mrb[0].mxu0 %v679
        %v1128 = vpop.f32.mrb[0].mxu0
        %v1129 = vadd.f32 %v904, %v1128
        %v1130 = vpop.f32.mrb[0].mxu0
        %1131 = vmatprep.mubr.f32.mxu0 0.0
        %1132 = vmatmul.mubr.f32.gmra.mrb[0].mxu0 %v680
        %v1133 = vpop.f32.mrb[0].mxu0
        %v1134 = vadd.f32 %v909, %v1133
        %v1135 = vpop.f32.mrb[0].mxu0
        %1136 = vmatprep.mubr.f32.mxu0 0.0
        %1137 = vmatmul.mubr.f32.gmra.mrb[0].mxu0 %v681
        %v1138 = vpop.f32.mrb[0].mxu0
        %v1139 = vadd.f32 %v914, %v1138
        %v1140 = vpop.f32.mrb[0].mxu0
        %1141 = vmatprep.mubr.f32.mxu0 0.0
        %1142 = vmatmul.mubr.f32.gmra.mrb[0].mxu0 %v682
        %v1143 = vpop.f32.mrb[0].mxu0
        %v1144 = vadd.f32 %v919, %v1143
        %v1145 = vpop.f32.mrb[0].mxu0
        %1146 = vmatprep.mubr.f32.mxu0 0.0
        %1147 = vmatmul.mubr.f32.gmra.mrb[0].mxu0 %v683
        %v1148 = vpop.f32.mrb[0].mxu0
        %v1149 = vadd.f32 %v924, %v1148
        %v1150 = vpop.f32.mrb[0].mxu0
        %1151 = vmatprep.mubr.f32.mxu0 0.0
        %1152 = vmatmul.mubr.f32.gmra.mrb[0].mxu0 %v684
        %v1153 = vpop.f32.mrb[0].mxu0
        %v1154 = vadd.f32 %v929, %v1153
        %v1155 = vpop.f32.mrb[0].mxu0
        %1156 = vmatprep.mubr.f32.mxu0 0.0
        %1157 = vmatmul.mubr.f32.gmra.mrb[0].mxu0 %v685
        %v1158 = vpop.f32.mrb[0].mxu0
        %v1159 = vadd.f32 %v934, %v1158
        %v1160 = vpop.f32.mrb[0].mxu0
        %1161 = vmatprep.mubr.f32.mxu0 0.0
        %1162 = vmatmul.mubr.f32.gmra.mrb[0].mxu0 %v686
        %v1163 = vpop.f32.mrb[0].mxu0
        %v1164 = vadd.f32 %v939, %v1163
        %v1165 = vpop.f32.mrb[0].mxu0
        %1166 = vmatprep.mubr.f32.mxu0 0.0
        %1167 = vmatmul.mubr.f32.gmra.mrb[0].mxu0 %v687
        %v1168 = vpop.f32.mrb[0].mxu0
        %v1169 = vadd.f32 %v944, %v1168
        %v1170 = vpop.f32.mrb[0].mxu0
        %1171 = vmatprep.mubr.f32.mxu0 0.0
        %1172 = vmatmul.mubr.f32.gmra.mrb[0].mxu0 %v688
        %v1173 = vpop.f32.mrb[0].mxu0
        %v1174 = vadd.f32 %v949, %v1173
        %v1175 = vpop.f32.mrb[0].mxu0
        %1176 = vmatprep.mubr.f32.mxu0 0.0
        %1177 = vmatmul.mubr.f32.gmra.mrb[0].mxu0 %v689
        %v1178 = vpop.f32.mrb[0].mxu0
        %v1179 = vadd.f32 %v954, %v1178
        %v1180 = vpop.f32.mrb[0].mxu0
        %1181 = vmatprep.mubr.f32.mxu0 0.0
        %1182 = vmatmul.mubr.f32.gmra.mrb[0].mxu0 %v690
        %v1183 = vpop.f32.mrb[0].mxu0
        %v1184 = vadd.f32 %v959, %v1183
        %v1185 = vpop.f32.mrb[0].mxu0
        %1186 = vmatprep.mubr.f32.mxu0 0.0
        %1187 = vmatmul.mubr.f32.gmra.mrb[0].mxu0 %v691
        %v1188 = vpop.f32.mrb[0].mxu0
        %v1189 = vadd.f32 %v964, %v1188
        %v1190 = vpop.f32.mrb[0].mxu0
        %1191 = vmatprep.mubr.f32.mxu0 0.0
        %1192 = vmatmul.mubr.f32.gmra.mrb[0].mxu0 %v692
        %v1193 = vpop.f32.mrb[0].mxu0
        %v1194 = vadd.f32 %v969, %v1193
        %v1195 = vpop.f32.mrb[0].mxu0
        %1196 = vmatprep.mubr.f32.mxu0 0.0
        %1197 = vmatmul.mubr.f32.gmra.mrb[0].mxu0 %v693
        %v1198 = vpop.f32.mrb[0].mxu0
        %v1199 = vadd.f32 %v974, %v1198
        %v1200 = vpop.f32.mrb[0].mxu0
        %1201 = vmatprep.mubr.f32.mxu0 0.0
        %1202 = vmatmul.mubr.f32.gmra.mrb[0].mxu0 %v694
        %v1203 = vpop.f32.mrb[0].mxu0
        %v1204 = vadd.f32 %v979, %v1203
        %v1205 = vpop.f32.mrb[0].mxu0
        %1206 = vmatprep.mubr.f32.mxu0 0.0
        %1207 = vmatmul.mubr.f32.gmra.mrb[0].mxu0 %v695
        %v1208 = vpop.f32.mrb[0].mxu0
        %v1209 = vadd.f32 %v984, %v1208
        %v1210 = vpop.f32.mrb[0].mxu0
        %1211 = vmatprep.mubr.f32.mxu0 0.0
        %1212 = vmatmul.mubr.f32.gmra.mrb[0].mxu0 %v696
        %v1213 = vpop.f32.mrb[0].mxu0
        %v1214 = vadd.f32 %v989, %v1213
        %v1215 = vpop.f32.mrb[0].mxu0
        %1216 = vmatprep.mubr.f32.mxu0 0.0
        %1217 = vmatmul.mubr.f32.gmra.mrb[0].mxu0 %v697
        %v1218 = vpop.f32.mrb[0].mxu0
        %v1219 = vadd.f32 %v994, %v1218
        %v1220 = vpop.f32.mrb[0].mxu0
        %1221 = vmatprep.mubr.f32.mxu0 0.0
        %1222 = vmatmul.mubr.f32.gmra.mrb[0].mxu0 %v698
        %v1223 = vpop.f32.mrb[0].mxu0
        %v1224 = vadd.f32 %v999, %v1223
        %v1225 = vpop.f32.mrb[0].mxu0
        %1226 = vmatprep.mubr.f32.mxu0 0.0
        %1227 = vmatmul.mubr.f32.gmra.mrb[0].mxu0 %v699
        %v1228 = vpop.f32.mrb[0].mxu0
        %v1229 = vadd.f32 %v1004, %v1228
        %v1230 = vpop.f32.mrb[0].mxu0
        %1231 = vmatprep.mubr.f32.mxu0 0.0
        %1232 = vmatmul.mubr.f32.gmra.mrb[0].mxu0 %v700
        %v1233 = vpop.f32.mrb[0].mxu0
        %v1234 = vadd.f32 %v1009, %v1233
        %v1235 = vpop.f32.mrb[0].mxu0
        %1236 = vmatprep.mubr.f32.mxu0 0.0
        %1237 = vmatmul.mubr.f32.gmra.mrb[0].mxu0 %v701
        %v1238 = vpop.f32.mrb[0].mxu0
        %v1239 = vadd.f32 %v1014, %v1238
        %v1240 = vpop.f32.mrb[0].mxu0
        %1241 = vmatprep.mubr.f32.mxu0 0.0
        %1242 = vmatmul.mubr.f32.gmra.mrb[0].mxu0 %v702
        %v1243 = vpop.f32.mrb[0].mxu0
        %v1244 = vadd.f32 %v1019, %v1243
        %v1245 = vpop.f32.mrb[0].mxu0
        %1246 = vmatprep.mubr.f32.mxu0 0.0
        %1247 = vmatmul.mubr.f32.gmra.mrb[0].mxu0 %v703
        %v1248 = vpop.f32.mrb[0].mxu0
        %v1249 = vadd.f32 %v1024, %v1248
        %v1250 = vpop.f32.mrb[0].mxu0
        %1251 = vdwg.mxu0
        %1252 = vmatprep.subr.mxu0 0.0
        %1253 = vmatpush1.msra.mxu0 %v706
        %1254 = vmatprep.subr.mxu0 0.0
        %1255 = vmatpush1.msra.mxu0 %v707
        %1256 = vmatprep.subr.mxu0 0.0
        %1257 = vmatpush1.msra.mxu0 %v708
        %1258 = vmatprep.subr.mxu0 0.0
        %1259 = vmatpush1.msra.mxu0 %v709
        %1260 = vmatprep.subr.mxu0 0.0
        %1261 = vmatpush1.msra.mxu0 %v710
        %1262 = vmatprep.subr.mxu0 0.0
        %1263 = vmatpush1.msra.mxu0 %v711
        %1264 = vmatprep.subr.mxu0 0.0
        %1265 = vmatpush1.msra.mxu0 %v712
        %1266 = vmatprep.subr.mxu0 0.0
        %1267 = vmatpush1.msra.mxu0 %v713
        %1268 = vmatprep.subr.mxu0 0.0
        %1269 = vmatpush1.msra.mxu0 %v714
        %1270 = vmatprep.subr.mxu0 0.0
        %1271 = vmatpush1.msra.mxu0 %v715
        %1272 = vmatprep.subr.mxu0 0.0
        %1273 = vmatpush1.msra.mxu0 %v716
        %1274 = vmatprep.subr.mxu0 0.0
        %1275 = vmatpush1.msra.mxu0 %v717
        %1276 = vmatprep.subr.mxu0 0.0
        %1277 = vmatpush1.msra.mxu0 %v718
        %1278 = vmatprep.subr.mxu0 0.0
        %1279 = vmatpush1.msra.mxu0 %v719
        %1280 = vmatprep.subr.mxu0 0.0
        %1281 = vmatpush1.msra.mxu0 %v720
        %1282 = vmatprep.subr.mxu0 0.0
        %1283 = vmatpush1.msra.mxu0 %v721
        %1284 = vmatprep.subr.mxu0 0.0
        %1285 = vmatpush1.msra.mxu0 %v722
        %1286 = vmatprep.subr.mxu0 0.0
        %1287 = vmatpush1.msra.mxu0 %v723
        %1288 = vmatprep.subr.mxu0 0.0
        %1289 = vmatpush1.msra.mxu0 %v724
        %1290 = vmatprep.subr.mxu0 0.0
        %1291 = vmatpush1.msra.mxu0 %v725
        %1292 = vmatprep.subr.mxu0 0.0
        %1293 = vmatpush1.msra.mxu0 %v726
        %1294 = vmatprep.subr.mxu0 0.0
        %1295 = vmatpush1.msra.mxu0 %v727
        %1296 = vmatprep.subr.mxu0 0.0
        %1297 = vmatpush1.msra.mxu0 %v728
        %1298 = vmatprep.subr.mxu0 0.0
        %1299 = vmatpush1.msra.mxu0 %v729
        %1300 = vmatprep.subr.mxu0 0.0
        %1301 = vmatpush1.msra.mxu0 %v730
        %1302 = vmatprep.subr.mxu0 0.0
        %1303 = vmatpush1.msra.mxu0 %v731
        %1304 = vmatprep.subr.mxu0 0.0
        %1305 = vmatpush1.msra.mxu0 %v732
        %1306 = vmatprep.subr.mxu0 0.0
        %1307 = vmatpush1.msra.mxu0 %v733
        %1308 = vmatprep.subr.mxu0 0.0
        %1309 = vmatpush1.msra.mxu0 %v734
        %1310 = vmatprep.subr.mxu0 0.0
        %1311 = vmatpush1.msra.mxu0 %v735
        %1312 = vmatprep.subr.mxu0 0.0
        %1313 = vmatpush1.msra.mxu0 %v736
        %1314 = vmatprep.subr.mxu0 0.0
        %1315 = vmatpush1.msra.mxu0 %v737
        %1316 = vmatprep.mubr.f32.mxu0 %v634
        %1317 = vmatmul.mubr.f32.gmra.mrb[0].mxu0 %v598
        %v1318 = vpop.f32.mrb[0].mxu0
        %v1319 = vadd.f32 %v1094, %v1318
        %v1320 = vpop.f32.mrb[0].mxu0
        %1321 = vmatprep.mubr.f32.mxu0 %v635
        %1322 = vmatmul.mubr.f32.gmra.mrb[0].mxu0 %v599
        %v1323 = vpop.f32.mrb[0].mxu0
        %v1324 = vadd.f32 %v1099, %v1323
        %v1325 = vpop.f32.mrb[0].mxu0
        %1326 = vmatprep.mubr.f32.mxu0 %v636
        %1327 = vmatmul.mubr.f32.gmra.mrb[0].mxu0 %v600
        %v1328 = vpop.f32.mrb[0].mxu0
        %v1329 = vadd.f32 %v1104, %v1328
        %v1330 = vpop.f32.mrb[0].mxu0
        %1331 = vmatprep.mubr.f32.mxu0 %v637
        %1332 = vmatmul.mubr.f32.gmra.mrb[0].mxu0 %v601
        %v1333 = vpop.f32.mrb[0].mxu0
        %v1334 = vadd.f32 %v1109, %v1333
        %v1335 = vpop.f32.mrb[0].mxu0
        %1336 = vmatprep.mubr.f32.mxu0 %v638
        %1337 = vmatmul.mubr.f32.gmra.mrb[0].mxu0 %v602
        %v1338 = vpop.f32.mrb[0].mxu0
        %v1339 = vadd.f32 %v1114, %v1338
        %v1340 = vpop.f32.mrb[0].mxu0
        %1341 = vmatprep.mubr.f32.mxu0 %v639
        %1342 = vmatmul.mubr.f32.gmra.mrb[0].mxu0 %v603
        %v1343 = vpop.f32.mrb[0].mxu0
        %v1344 = vadd.f32 %v1119, %v1343
        %v1345 = vpop.f32.mrb[0].mxu0
        %1346 = vmatprep.mubr.f32.mxu0 %v640
        %1347 = vmatmul.mubr.f32.gmra.mrb[0].mxu0 %v604
        %v1348 = vpop.f32.mrb[0].mxu0
        %v1349 = vadd.f32 %v1124, %v1348
        %v1350 = vpop.f32.mrb[0].mxu0
        %1351 = vmatprep.mubr.f32.mxu0 %v641
        %1352 = vmatmul.mubr.f32.gmra.mrb[0].mxu0 %v605
        %v1353 = vpop.f32.mrb[0].mxu0
        %v1354 = vadd.f32 %v1129, %v1353
        %v1355 = vpop.f32.mrb[0].mxu0
        %1356 = vmatprep.mubr.f32.mxu0 %v642
        %1357 = vmatmul.mubr.f32.gmra.mrb[0].mxu0 %v606
        %v1358 = vpop.f32.mrb[0].mxu0
        %v1359 = vadd.f32 %v1134, %v1358
        %v1360 = vpop.f32.mrb[0].mxu0
        %1361 = vmatprep.mubr.f32.mxu0 %v643
        %1362 = vmatmul.mubr.f32.gmra.mrb[0].mxu0 %v607
        %v1363 = vpop.f32.mrb[0].mxu0
        %v1364 = vadd.f32 %v1139, %v1363
        %v1365 = vpop.f32.mrb[0].mxu0
        %1366 = vmatprep.mubr.f32.mxu0 %v644
        %1367 = vmatmul.mubr.f32.gmra.mrb[0].mxu0 %v608
        %v1368 = vpop.f32.mrb[0].mxu0
        %v1369 = vadd.f32 %v1144, %v1368
        %v1370 = vpop.f32.mrb[0].mxu0
        %1371 = vmatprep.mubr.f32.mxu0 %v645
        %1372 = vmatmul.mubr.f32.gmra.mrb[0].mxu0 %v609
        %v1373 = vpop.f32.mrb[0].mxu0
        %v1374 = vadd.f32 %v1149, %v1373
        %v1375 = vpop.f32.mrb[0].mxu0
        %1376 = vmatprep.mubr.f32.mxu0 %v646
        %1377 = vmatmul.mubr.f32.gmra.mrb[0].mxu0 %v610
        %v1378 = vpop.f32.mrb[0].mxu0
        %v1379 = vadd.f32 %v1154, %v1378
        %v1380 = vpop.f32.mrb[0].mxu0
        %1381 = vmatprep.mubr.f32.mxu0 %v647
        %1382 = vmatmul.mubr.f32.gmra.mrb[0].mxu0 %v611
        %v1383 = vpop.f32.mrb[0].mxu0
        %v1384 = vadd.f32 %v1159, %v1383
        %v1385 = vpop.f32.mrb[0].mxu0
        %1386 = vmatprep.mubr.f32.mxu0 %v648
        %1387 = vmatmul.mubr.f32.gmra.mrb[0].mxu0 %v612
        %v1388 = vpop.f32.mrb[0].mxu0
        %v1389 = vadd.f32 %v1164, %v1388
        %v1390 = vpop.f32.mrb[0].mxu0
        %1391 = vmatprep.mubr.f32.mxu0 %v649
        %1392 = vmatmul.mubr.f32.gmra.mrb[0].mxu0 %v613
        %v1393 = vpop.f32.mrb[0].mxu0
        %v1394 = vadd.f32 %v1169, %v1393
        %v1395 = vpop.f32.mrb[0].mxu0
        %1396 = vmatprep.mubr.f32.mxu0 %v650
        %1397 = vmatmul.mubr.f32.gmra.mrb[0].mxu0 %v614
        %v1398 = vpop.f32.mrb[0].mxu0
        %v1399 = vadd.f32 %v1174, %v1398
        %v1400 = vpop.f32.mrb[0].mxu0
        %1401 = vmatprep.mubr.f32.mxu0 %v651
        %1402 = vmatmul.mubr.f32.gmra.mrb[0].mxu0 %v615
        %v1403 = vpop.f32.mrb[0].mxu0
        %v1404 = vadd.f32 %v1179, %v1403
        %v1405 = vpop.f32.mrb[0].mxu0
        %1406 = vmatprep.mubr.f32.mxu0 %v652
        %1407 = vmatmul.mubr.f32.gmra.mrb[0].mxu0 %v616
        %v1408 = vpop.f32.mrb[0].mxu0
        %v1409 = vadd.f32 %v1184, %v1408
        %v1410 = vpop.f32.mrb[0].mxu0
        %1411 = vmatprep.mubr.f32.mxu0 %v653
        %1412 = vmatmul.mubr.f32.gmra.mrb[0].mxu0 %v617
        %v1413 = vpop.f32.mrb[0].mxu0
        %v1414 = vadd.f32 %v1189, %v1413
        %v1415 = vpop.f32.mrb[0].mxu0
        %1416 = vmatprep.mubr.f32.mxu0 %v654
        %1417 = vmatmul.mubr.f32.gmra.mrb[0].mxu0 %v618
        %v1418 = vpop.f32.mrb[0].mxu0
        %v1419 = vadd.f32 %v1194, %v1418
        %v1420 = vpop.f32.mrb[0].mxu0
        %1421 = vmatprep.mubr.f32.mxu0 %v655
        %1422 = vmatmul.mubr.f32.gmra.mrb[0].mxu0 %v619
        %v1423 = vpop.f32.mrb[0].mxu0
        %v1424 = vadd.f32 %v1199, %v1423
        %v1425 = vpop.f32.mrb[0].mxu0
        %1426 = vmatprep.mubr.f32.mxu0 %v656
        %1427 = vmatmul.mubr.f32.gmra.mrb[0].mxu0 %v620
        %v1428 = vpop.f32.mrb[0].mxu0
        %v1429 = vadd.f32 %v1204, %v1428
        %v1430 = vpop.f32.mrb[0].mxu0
        %1431 = vmatprep.mubr.f32.mxu0 %v657
        %1432 = vmatmul.mubr.f32.gmra.mrb[0].mxu0 %v621
        %v1433 = vpop.f32.mrb[0].mxu0
        %v1434 = vadd.f32 %v1209, %v1433
        %v1435 = vpop.f32.mrb[0].mxu0
        %1436 = vmatprep.mubr.f32.mxu0 %v658
        %1437 = vmatmul.mubr.f32.gmra.mrb[0].mxu0 %v622
        %v1438 = vpop.f32.mrb[0].mxu0
        %v1439 = vadd.f32 %v1214, %v1438
        %v1440 = vpop.f32.mrb[0].mxu0
        %1441 = vmatprep.mubr.f32.mxu0 %v659
        %1442 = vmatmul.mubr.f32.gmra.mrb[0].mxu0 %v623
        %v1443 = vpop.f32.mrb[0].mxu0
        %v1444 = vadd.f32 %v1219, %v1443
        %v1445 = vpop.f32.mrb[0].mxu0
        %1446 = vmatprep.mubr.f32.mxu0 %v660
        %1447 = vmatmul.mubr.f32.gmra.mrb[0].mxu0 %v624
        %v1448 = vpop.f32.mrb[0].mxu0
        %v1449 = vadd.f32 %v1224, %v1448
        %v1450 = vpop.f32.mrb[0].mxu0
        %1451 = vmatprep.mubr.f32.mxu0 %v661
        %1452 = vmatmul.mubr.f32.gmra.mrb[0].mxu0 %v625
        %v1453 = vpop.f32.mrb[0].mxu0
        %v1454 = vadd.f32 %v1229, %v1453
        %v1455 = vpop.f32.mrb[0].mxu0
        %1456 = vmatprep.mubr.f32.mxu0 %v662
        %1457 = vmatmul.mubr.f32.gmra.mrb[0].mxu0 %v626
        %v1458 = vpop.f32.mrb[0].mxu0
        %v1459 = vadd.f32 %v1234, %v1458
        %v1460 = vpop.f32.mrb[0].mxu0
        %1461 = vmatprep.mubr.f32.mxu0 %v663
        %1462 = vmatmul.mubr.f32.gmra.mrb[0].mxu0 %v627
        %v1463 = vpop.f32.mrb[0].mxu0
        %v1464 = vadd.f32 %v1239, %v1463
        %v1465 = vpop.f32.mrb[0].mxu0
        %1466 = vmatprep.mubr.f32.mxu0 %v664
        %1467 = vmatmul.mubr.f32.gmra.mrb[0].mxu0 %v628
        %v1468 = vpop.f32.mrb[0].mxu0
        %v1469 = vadd.f32 %v1244, %v1468
        %v1470 = vpop.f32.mrb[0].mxu0
        %1471 = vmatprep.mubr.f32.mxu0 %v665
        %1472 = vmatmul.mubr.f32.gmra.mrb[0].mxu0 %v629
        %v1473 = vpop.f32.mrb[0].mxu0
        %v1474 = vadd.f32 %v1249, %v1473
        %v1475 = vpop.f32.mrb[0].mxu0
        %1476 = vdwg.mxu0
        %1477 = vmatprep.subr.mxu0 0.0
        %1478 = vmatpush1.msra.mxu0 %v738
        %1479 = vmatprep.subr.mxu0 0.0
        %1480 = vmatpush1.msra.mxu0 %v739
        %1481 = vmatprep.subr.mxu0 0.0
        %1482 = vmatpush1.msra.mxu0 %v740
        %1483 = vmatprep.subr.mxu0 0.0
        %1484 = vmatpush1.msra.mxu0 %v741
        %1485 = vmatprep.subr.mxu0 0.0
        %1486 = vmatpush1.msra.mxu0 %v742
        %1487 = vmatprep.subr.mxu0 0.0
        %1488 = vmatpush1.msra.mxu0 %v743
        %1489 = vmatprep.subr.mxu0 0.0
        %1490 = vmatpush1.msra.mxu0 %v744
        %1491 = vmatprep.subr.mxu0 0.0
        %1492 = vmatpush1.msra.mxu0 %v745
        %1493 = vmatprep.subr.mxu0 0.0
        %1494 = vmatpush1.msra.mxu0 %v746
        %1495 = vmatprep.subr.mxu0 0.0
        %1496 = vmatpush1.msra.mxu0 %v747
        %1497 = vmatprep.subr.mxu0 0.0
        %1498 = vmatpush1.msra.mxu0 %v748
        %1499 = vmatprep.subr.mxu0 0.0
        %1500 = vmatpush1.msra.mxu0 %v749
        %1501 = vmatprep.subr.mxu0 0.0
        %1502 = vmatpush1.msra.mxu0 %v750
        %1503 = vmatprep.subr.mxu0 0.0
        %1504 = vmatpush1.msra.mxu0 %v751
        %1505 = vmatprep.subr.mxu0 0.0
        %1506 = vmatpush1.msra.mxu0 %v752
        %1507 = vmatprep.subr.mxu0 0.0
        %1508 = vmatpush1.msra.mxu0 %v753
        %1509 = vmatprep.subr.mxu0 0.0
        %1510 = vmatpush1.msra.mxu0 0.0
        %1511 = vmatprep.subr.mxu0 0.0
        %1512 = vmatpush1.msra.mxu0 0.0
        %1513 = vmatprep.subr.mxu0 0.0
        %1514 = vmatpush1.msra.mxu0 0.0
        %1515 = vmatprep.subr.mxu0 0.0
        %1516 = vmatpush1.msra.mxu0 0.0
        %1517 = vmatprep.subr.mxu0 0.0
        %1518 = vmatpush1.msra.mxu0 0.0
        %1519 = vmatprep.subr.mxu0 0.0
        %1520 = vmatpush1.msra.mxu0 0.0
        %1521 = vmatprep.subr.mxu0 0.0
        %1522 = vmatpush1.msra.mxu0 0.0
        %1523 = vmatprep.subr.mxu0 0.0
        %1524 = vmatpush1.msra.mxu0 0.0
        %1525 = vmatprep.subr.mxu0 0.0
        %1526 = vmatpush1.msra.mxu0 0.0
        %1527 = vmatprep.subr.mxu0 0.0
        %1528 = vmatpush1.msra.mxu0 0.0
        %1529 = vmatprep.subr.mxu0 0.0
        %1530 = vmatpush1.msra.mxu0 0.0
        %1531 = vmatprep.subr.mxu0 0.0
        %1532 = vmatpush1.msra.mxu0 0.0
        %1533 = vmatprep.subr.mxu0 0.0
        %1534 = vmatpush1.msra.mxu0 0.0
        %1535 = vmatprep.subr.mxu0 0.0
        %1536 = vmatpush1.msra.mxu0 0.0
        %1537 = vmatprep.subr.mxu0 0.0
        %1538 = vmatpush1.msra.mxu0 0.0
        %1539 = vmatprep.subr.mxu0 0.0
        %1540 = vmatpush1.msra.mxu0 0.0
        %1541 = vmatprep.mubr.f32.mxu0 0.0
        %1542 = vmatmul.mubr.f32.gmra.mrb[0].mxu0 %v670
        %v1543 = vpop.f32.mrb[0].mxu0
        %v1544 = vadd.f32 %v1319, %v1543
        %v1545 = vpop.f32.mrb[0].mxu0
        %1546 = vmatprep.mubr.f32.mxu0 0.0
        %1547 = vmatmul.mubr.f32.gmra.mrb[0].mxu0 %v671
        %v1548 = vpop.f32.mrb[0].mxu0
        %v1549 = vadd.f32 %v1324, %v1548
        %v1550 = vpop.f32.mrb[0].mxu0
        %1551 = vmatprep.mubr.f32.mxu0 0.0
        %1552 = vmatmul.mubr.f32.gmra.mrb[0].mxu0 %v672
        %v1553 = vpop.f32.mrb[0].mxu0
        %v1554 = vadd.f32 %v1329, %v1553
        %v1555 = vpop.f32.mrb[0].mxu0
        %1556 = vmatprep.mubr.f32.mxu0 0.0
        %1557 = vmatmul.mubr.f32.gmra.mrb[0].mxu0 %v673
        %v1558 = vpop.f32.mrb[0].mxu0
        %v1559 = vadd.f32 %v1334, %v1558
        %v1560 = vpop.f32.mrb[0].mxu0
        %1561 = vmatprep.mubr.f32.mxu0 0.0
        %1562 = vmatmul.mubr.f32.gmra.mrb[0].mxu0 %v674
        %v1563 = vpop.f32.mrb[0].mxu0
        %v1564 = vadd.f32 %v1339, %v1563
        %v1565 = vpop.f32.mrb[0].mxu0
        %1566 = vmatprep.mubr.f32.mxu0 0.0
        %1567 = vmatmul.mubr.f32.gmra.mrb[0].mxu0 %v675
        %v1568 = vpop.f32.mrb[0].mxu0
        %v1569 = vadd.f32 %v1344, %v1568
        %v1570 = vpop.f32.mrb[0].mxu0
        %1571 = vmatprep.mubr.f32.mxu0 0.0
        %1572 = vmatmul.mubr.f32.gmra.mrb[0].mxu0 %v676
        %v1573 = vpop.f32.mrb[0].mxu0
        %v1574 = vadd.f32 %v1349, %v1573
        %v1575 = vpop.f32.mrb[0].mxu0
        %1576 = vmatprep.mubr.f32.mxu0 0.0
        %1577 = vmatmul.mubr.f32.gmra.mrb[0].mxu0 %v677
        %v1578 = vpop.f32.mrb[0].mxu0
        %v1579 = vadd.f32 %v1354, %v1578
        %v1580 = vpop.f32.mrb[0].mxu0
        %1581 = vmatprep.mubr.f32.mxu0 0.0
        %1582 = vmatmul.mubr.f32.gmra.mrb[0].mxu0 %v678
        %v1583 = vpop.f32.mrb[0].mxu0
        %v1584 = vadd.f32 %v1359, %v1583
        %v1585 = vpop.f32.mrb[0].mxu0
        %1586 = vmatprep.mubr.f32.mxu0 0.0
        %1587 = vmatmul.mubr.f32.gmra.mrb[0].mxu0 %v679
        %v1588 = vpop.f32.mrb[0].mxu0
        %v1589 = vadd.f32 %v1364, %v1588
        %v1590 = vpop.f32.mrb[0].mxu0
        %1591 = vmatprep.mubr.f32.mxu0 0.0
        %1592 = vmatmul.mubr.f32.gmra.mrb[0].mxu0 %v680
        %v1593 = vpop.f32.mrb[0].mxu0
        %v1594 = vadd.f32 %v1369, %v1593
        %v1595 = vpop.f32.mrb[0].mxu0
        %1596 = vmatprep.mubr.f32.mxu0 0.0
        %1597 = vmatmul.mubr.f32.gmra.mrb[0].mxu0 %v681
        %v1598 = vpop.f32.mrb[0].mxu0
        %v1599 = vadd.f32 %v1374, %v1598
        %v1600 = vpop.f32.mrb[0].mxu0
        %1601 = vmatprep.mubr.f32.mxu0 0.0
        %1602 = vmatmul.mubr.f32.gmra.mrb[0].mxu0 %v682
        %v1603 = vpop.f32.mrb[0].mxu0
        %v1604 = vadd.f32 %v1379, %v1603
        %v1605 = vpop.f32.mrb[0].mxu0
        %1606 = vmatprep.mubr.f32.mxu0 0.0
        %1607 = vmatmul.mubr.f32.gmra.mrb[0].mxu0 %v683
        %v1608 = vpop.f32.mrb[0].mxu0
        %v1609 = vadd.f32 %v1384, %v1608
        %v1610 = vpop.f32.mrb[0].mxu0
        %1611 = vmatprep.mubr.f32.mxu0 0.0
        %1612 = vmatmul.mubr.f32.gmra.mrb[0].mxu0 %v684
        %v1613 = vpop.f32.mrb[0].mxu0
        %v1614 = vadd.f32 %v1389, %v1613
        %v1615 = vpop.f32.mrb[0].mxu0
        %1616 = vmatprep.mubr.f32.mxu0 0.0
        %1617 = vmatmul.mubr.f32.gmra.mrb[0].mxu0 %v685
        %v1618 = vpop.f32.mrb[0].mxu0
        %v1619 = vadd.f32 %v1394, %v1618
        %v1620 = vpop.f32.mrb[0].mxu0
        %1621 = vmatprep.mubr.f32.mxu0 0.0
        %1622 = vmatmul.mubr.f32.gmra.mrb[0].mxu0 %v686
        %v1623 = vpop.f32.mrb[0].mxu0
        %v1624 = vadd.f32 %v1399, %v1623
        %v1625 = vpop.f32.mrb[0].mxu0
        %1626 = vmatprep.mubr.f32.mxu0 0.0
        %1627 = vmatmul.mubr.f32.gmra.mrb[0].mxu0 %v687
        %v1628 = vpop.f32.mrb[0].mxu0
        %v1629 = vadd.f32 %v1404, %v1628
        %v1630 = vpop.f32.mrb[0].mxu0
        %1631 = vmatprep.mubr.f32.mxu0 0.0
        %1632 = vmatmul.mubr.f32.gmra.mrb[0].mxu0 %v688
        %v1633 = vpop.f32.mrb[0].mxu0
        %v1634 = vadd.f32 %v1409, %v1633
        %v1635 = vpop.f32.mrb[0].mxu0
        %1636 = vmatprep.mubr.f32.mxu0 0.0
        %1637 = vmatmul.mubr.f32.gmra.mrb[0].mxu0 %v689
        %v1638 = vpop.f32.mrb[0].mxu0
        %v1639 = vadd.f32 %v1414, %v1638
        %v1640 = vpop.f32.mrb[0].mxu0
        %1641 = vmatprep.mubr.f32.mxu0 0.0
        %1642 = vmatmul.mubr.f32.gmra.mrb[0].mxu0 %v690
        %v1643 = vpop.f32.mrb[0].mxu0
        %v1644 = vadd.f32 %v1419, %v1643
        %v1645 = vpop.f32.mrb[0].mxu0
        %1646 = vmatprep.mubr.f32.mxu0 0.0
        %1647 = vmatmul.mubr.f32.gmra.mrb[0].mxu0 %v691
        %v1648 = vpop.f32.mrb[0].mxu0
        %v1649 = vadd.f32 %v1424, %v1648
        %v1650 = vpop.f32.mrb[0].mxu0
        %1651 = vmatprep.mubr.f32.mxu0 0.0
        %1652 = vmatmul.mubr.f32.gmra.mrb[0].mxu0 %v692
        %v1653 = vpop.f32.mrb[0].mxu0
        %v1654 = vadd.f32 %v1429, %v1653
        %v1655 = vpop.f32.mrb[0].mxu0
        %1656 = vmatprep.mubr.f32.mxu0 0.0
        %1657 = vmatmul.mubr.f32.gmra.mrb[0].mxu0 %v693
        %v1658 = vpop.f32.mrb[0].mxu0
        %v1659 = vadd.f32 %v1434, %v1658
        %v1660 = vpop.f32.mrb[0].mxu0
        %1661 = vmatprep.mubr.f32.mxu0 0.0
        %1662 = vmatmul.mubr.f32.gmra.mrb[0].mxu0 %v694
        %v1663 = vpop.f32.mrb[0].mxu0
        %v1664 = vadd.f32 %v1439, %v1663
        %v1665 = vpop.f32.mrb[0].mxu0
        %1666 = vmatprep.mubr.f32.mxu0 0.0
        %1667 = vmatmul.mubr.f32.gmra.mrb[0].mxu0 %v695
        %v1668 = vpop.f32.mrb[0].mxu0
        %v1669 = vadd.f32 %v1444, %v1668
        %v1670 = vpop.f32.mrb[0].mxu0
        %1671 = vmatprep.mubr.f32.mxu0 0.0
        %1672 = vmatmul.mubr.f32.gmra.mrb[0].mxu0 %v696
        %v1673 = vpop.f32.mrb[0].mxu0
        %v1674 = vadd.f32 %v1449, %v1673
        %v1675 = vpop.f32.mrb[0].mxu0
        %1676 = vmatprep.mubr.f32.mxu0 0.0
        %1677 = vmatmul.mubr.f32.gmra.mrb[0].mxu0 %v697
        %v1678 = vpop.f32.mrb[0].mxu0
        %v1679 = vadd.f32 %v1454, %v1678
        %v1680 = vpop.f32.mrb[0].mxu0
        %1681 = vmatprep.mubr.f32.mxu0 0.0
        %1682 = vmatmul.mubr.f32.gmra.mrb[0].mxu0 %v698
        %v1683 = vpop.f32.mrb[0].mxu0
        %v1684 = vadd.f32 %v1459, %v1683
        %v1685 = vpop.f32.mrb[0].mxu0
        %1686 = vmatprep.mubr.f32.mxu0 0.0
        %1687 = vmatmul.mubr.f32.gmra.mrb[0].mxu0 %v699
        %v1688 = vpop.f32.mrb[0].mxu0
        %v1689 = vadd.f32 %v1464, %v1688
        %v1690 = vpop.f32.mrb[0].mxu0
        %1691 = vmatprep.mubr.f32.mxu0 0.0
        %1692 = vmatmul.mubr.f32.gmra.mrb[0].mxu0 %v700
        %v1693 = vpop.f32.mrb[0].mxu0
        %v1694 = vadd.f32 %v1469, %v1693
        %v1695 = vpop.f32.mrb[0].mxu0
        %1696 = vmatprep.mubr.f32.mxu0 0.0
        %1697 = vmatmul.mubr.f32.gmra.mrb[0].mxu0 %v701
        %v1698 = vpop.f32.mrb[0].mxu0
        %v1699 = vadd.f32 %v1474, %v1698
        %v1700 = vpop.f32.mrb[0].mxu0
        %1701 = vdwg.mxu0
        %v1702 = vld [vmem:[#allocation6 + $0x300] sm:$0xff]
        %v1703 = vld [vmem:[#allocation6 + $0x308] sm:$0xff]
        %v1704 = vld [vmem:[#allocation6 + $0x310] sm:$0xff]
        %v1705 = vld [vmem:[#allocation6 + $0x318] sm:$0xff]
        %v1706 = vld [vmem:[#allocation6 + $0x320] sm:$0xff]
        %v1707 = vld [vmem:[#allocation6 + $0x328] sm:$0xff]
        %v1708 = vld [vmem:[#allocation6 + $0x330] sm:$0xff]
        %v1709 = vld [vmem:[#allocation6 + $0x338] sm:$0xff]
        %v1710 = vld [vmem:[#allocation6 + $0x340] sm:$0xff]
        %v1711 = vld [vmem:[#allocation6 + $0x348] sm:$0xff]
        %v1712 = vld [vmem:[#allocation6 + $0x350] sm:$0xff]
        %v1713 = vld [vmem:[#allocation6 + $0x358] sm:$0xff]
        %v1714 = vld [vmem:[#allocation6 + $0x360] sm:$0xff]
        %v1715 = vld [vmem:[#allocation6 + $0x368] sm:$0xff]
        %v1716 = vld [vmem:[#allocation6 + $0x370] sm:$0xff]
        %v1717 = vld [vmem:[#allocation6 + $0x378] sm:$0xff]
        %v1718 = vld [vmem:[#allocation6 + $0x380] sm:$0xff]
        %v1719 = vld [vmem:[#allocation6 + $0x388] sm:$0xff]
        %v1720 = vld [vmem:[#allocation6 + $0x390] sm:$0xff]
        %v1721 = vld [vmem:[#allocation6 + $0x398] sm:$0xff]
        %v1722 = vld [vmem:[#allocation6 + $0x3a0] sm:$0xff]
        %v1723 = vld [vmem:[#allocation6 + $0x3a8] sm:$0xff]
        %v1724 = vld [vmem:[#allocation6 + $0x3b0] sm:$0xff]
        %v1725 = vld [vmem:[#allocation6 + $0x3b8] sm:$0xff]
        %v1726 = vld [vmem:[#allocation6 + $0x3c0] sm:$0xff]
        %v1727 = vld [vmem:[#allocation6 + $0x3c8] sm:$0xff]
        %v1728 = vld [vmem:[#allocation6 + $0x3d0] sm:$0xff]
        %v1729 = vld [vmem:[#allocation6 + $0x3d8] sm:$0xff]
        %v1730 = vld [vmem:[#allocation6 + $0x3e0] sm:$0xff]
        %v1731 = vld [vmem:[#allocation6 + $0x3e8] sm:$0xff]
        %v1732 = vld [vmem:[#allocation6 + $0x3f0] sm:$0xff]
        %v1733 = vld [vmem:[#allocation6 + $0x3f8] sm:$0xff]
        %v1734 = vld [vmem:[#allocation6 + $0x400] sm:$0xff]
        %v1735 = vld [vmem:[#allocation6 + $0x408] sm:$0xff]
        %v1736 = vld [vmem:[#allocation6 + $0x410] sm:$0xff]
        %v1737 = vld [vmem:[#allocation6 + $0x418] sm:$0xff]
        %v1738 = vld [vmem:[#allocation6 + $0x420] sm:$0xff]
        %v1739 = vld [vmem:[#allocation6 + $0x428] sm:$0xff]
        %v1740 = vld [vmem:[#allocation6 + $0x430] sm:$0xff]
        %v1741 = vld [vmem:[#allocation6 + $0x438] sm:$0xff]
        %v1742 = vld [vmem:[#allocation6 + $0x440] sm:$0xff]
        %v1743 = vld [vmem:[#allocation6 + $0x448] sm:$0xff]
        %v1744 = vld [vmem:[#allocation6 + $0x450] sm:$0xff]
        %v1745 = vld [vmem:[#allocation6 + $0x458] sm:$0xff]
        %v1746 = vld [vmem:[#allocation6 + $0x460] sm:$0xff]
        %v1747 = vld [vmem:[#allocation6 + $0x468] sm:$0xff]
        %v1748 = vld [vmem:[#allocation6 + $0x470] sm:$0xff]
        %v1749 = vld [vmem:[#allocation6 + $0x478] sm:$0xff]
        %1750 = vmatprep.subr.mxu0 0.0
        %1751 = vmatpush1.msra.mxu0 %v1702
        %1752 = vmatprep.subr.mxu0 0.0
        %1753 = vmatpush1.msra.mxu0 %v1703
        %1754 = vmatprep.subr.mxu0 0.0
        %1755 = vmatpush1.msra.mxu0 %v1704
        %1756 = vmatprep.subr.mxu0 0.0
        %1757 = vmatpush1.msra.mxu0 %v1705
        %1758 = vmatprep.subr.mxu0 0.0
        %1759 = vmatpush1.msra.mxu0 %v1706
        %1760 = vmatprep.subr.mxu0 0.0
        %1761 = vmatpush1.msra.mxu0 %v1707
        %1762 = vmatprep.subr.mxu0 0.0
        %1763 = vmatpush1.msra.mxu0 %v1708
        %1764 = vmatprep.subr.mxu0 0.0
        %1765 = vmatpush1.msra.mxu0 %v1709
        %1766 = vmatprep.subr.mxu0 0.0
        %1767 = vmatpush1.msra.mxu0 %v1710
        %1768 = vmatprep.subr.mxu0 0.0
        %1769 = vmatpush1.msra.mxu0 %v1711
        %1770 = vmatprep.subr.mxu0 0.0
        %1771 = vmatpush1.msra.mxu0 %v1712
        %1772 = vmatprep.subr.mxu0 0.0
        %1773 = vmatpush1.msra.mxu0 %v1713
        %1774 = vmatprep.subr.mxu0 0.0
        %1775 = vmatpush1.msra.mxu0 %v1714
        %1776 = vmatprep.subr.mxu0 0.0
        %1777 = vmatpush1.msra.mxu0 %v1715
        %1778 = vmatprep.subr.mxu0 0.0
        %1779 = vmatpush1.msra.mxu0 %v1716
        %1780 = vmatprep.subr.mxu0 0.0
        %1781 = vmatpush1.msra.mxu0 %v1717
        %1782 = vmatprep.subr.mxu0 0.0
        %1783 = vmatpush1.msra.mxu0 %v1718
        %1784 = vmatprep.subr.mxu0 0.0
        %1785 = vmatpush1.msra.mxu0 %v1719
        %1786 = vmatprep.subr.mxu0 0.0
        %1787 = vmatpush1.msra.mxu0 %v1720
        %1788 = vmatprep.subr.mxu0 0.0
        %1789 = vmatpush1.msra.mxu0 %v1721
        %1790 = vmatprep.subr.mxu0 0.0
        %1791 = vmatpush1.msra.mxu0 %v1722
        %1792 = vmatprep.subr.mxu0 0.0
        %1793 = vmatpush1.msra.mxu0 %v1723
        %1794 = vmatprep.subr.mxu0 0.0
        %1795 = vmatpush1.msra.mxu0 %v1724
        %1796 = vmatprep.subr.mxu0 0.0
        %1797 = vmatpush1.msra.mxu0 %v1725
        %1798 = vmatprep.subr.mxu0 0.0
        %1799 = vmatpush1.msra.mxu0 %v1726
        %1800 = vmatprep.subr.mxu0 0.0
        %1801 = vmatpush1.msra.mxu0 %v1727
        %1802 = vmatprep.subr.mxu0 0.0
        %1803 = vmatpush1.msra.mxu0 %v1728
        %1804 = vmatprep.subr.mxu0 0.0
        %1805 = vmatpush1.msra.mxu0 %v1729
        %1806 = vmatprep.subr.mxu0 0.0
        %1807 = vmatpush1.msra.mxu0 %v1730
        %1808 = vmatprep.subr.mxu0 0.0
        %1809 = vmatpush1.msra.mxu0 %v1731
        %1810 = vmatprep.subr.mxu0 0.0
        %1811 = vmatpush1.msra.mxu0 %v1732
        %1812 = vmatprep.subr.mxu0 0.0
        %1813 = vmatpush1.msra.mxu0 %v1733
        %1814 = vmatprep.mubr.f32.mxu0 %v638
        %1815 = vmatmul.mubr.f32.gmra.mrb[0].mxu0 %v602
        %v1816 = vpop.f32.mrb[0].mxu0
        %v1817 = vadd.f32 0.0, %v1816
        %v1818 = vpop.f32.mrb[0].mxu0
        %1819 = vmatprep.mubr.f32.mxu0 %v639
        %1820 = vmatmul.mubr.f32.gmra.mrb[0].mxu0 %v603
        %v1821 = vpop.f32.mrb[0].mxu0
        %v1822 = vadd.f32 0.0, %v1821
        %v1823 = vpop.f32.mrb[0].mxu0
        %1824 = vmatprep.mubr.f32.mxu0 %v640
        %1825 = vmatmul.mubr.f32.gmra.mrb[0].mxu0 %v604
        %v1826 = vpop.f32.mrb[0].mxu0
        %v1827 = vadd.f32 0.0, %v1826
        %v1828 = vpop.f32.mrb[0].mxu0
        %1829 = vmatprep.mubr.f32.mxu0 %v641
        %1830 = vmatmul.mubr.f32.gmra.mrb[0].mxu0 %v605
        %v1831 = vpop.f32.mrb[0].mxu0
        %v1832 = vadd.f32 0.0, %v1831
        %v1833 = vpop.f32.mrb[0].mxu0
        %1834 = vmatprep.mubr.f32.mxu0 %v642
        %1835 = vmatmul.mubr.f32.gmra.mrb[0].mxu0 %v606
        %v1836 = vpop.f32.mrb[0].mxu0
        %v1837 = vadd.f32 0.0, %v1836
        %v1838 = vpop.f32.mrb[0].mxu0
        %1839 = vmatprep.mubr.f32.mxu0 %v643
        %1840 = vmatmul.mubr.f32.gmra.mrb[0].mxu0 %v607
        %v1841 = vpop.f32.mrb[0].mxu0
        %v1842 = vadd.f32 0.0, %v1841
        %v1843 = vpop.f32.mrb[0].mxu0
        %1844 = vmatprep.mubr.f32.mxu0 %v644
        %1845 = vmatmul.mubr.f32.gmra.mrb[0].mxu0 %v608
        %v1846 = vpop.f32.mrb[0].mxu0
        %v1847 = vadd.f32 0.0, %v1846
        %v1848 = vpop.f32.mrb[0].mxu0
        %1849 = vmatprep.mubr.f32.mxu0 %v645
        %1850 = vmatmul.mubr.f32.gmra.mrb[0].mxu0 %v609
        %v1851 = vpop.f32.mrb[0].mxu0
        %v1852 = vadd.f32 0.0, %v1851
        %v1853 = vpop.f32.mrb[0].mxu0
        %1854 = vmatprep.mubr.f32.mxu0 %v646
        %1855 = vmatmul.mubr.f32.gmra.mrb[0].mxu0 %v610
        %v1856 = vpop.f32.mrb[0].mxu0
        %v1857 = vadd.f32 0.0, %v1856
        %v1858 = vpop.f32.mrb[0].mxu0
        %1859 = vmatprep.mubr.f32.mxu0 %v647
        %1860 = vmatmul.mubr.f32.gmra.mrb[0].mxu0 %v611
        %v1861 = vpop.f32.mrb[0].mxu0
        %v1862 = vadd.f32 0.0, %v1861
        %v1863 = vpop.f32.mrb[0].mxu0
        %1864 = vmatprep.mubr.f32.mxu0 %v648
        %1865 = vmatmul.mubr.f32.gmra.mrb[0].mxu0 %v612
        %v1866 = vpop.f32.mrb[0].mxu0
        %v1867 = vadd.f32 0.0, %v1866
        %v1868 = vpop.f32.mrb[0].mxu0
        %1869 = vmatprep.mubr.f32.mxu0 %v649
        %1870 = vmatmul.mubr.f32.gmra.mrb[0].mxu0 %v613
        %v1871 = vpop.f32.mrb[0].mxu0
        %v1872 = vadd.f32 0.0, %v1871
        %v1873 = vpop.f32.mrb[0].mxu0
        %1874 = vmatprep.mubr.f32.mxu0 %v650
        %1875 = vmatmul.mubr.f32.gmra.mrb[0].mxu0 %v614
        %v1876 = vpop.f32.mrb[0].mxu0
        %v1877 = vadd.f32 0.0, %v1876
        %v1878 = vpop.f32.mrb[0].mxu0
        %1879 = vmatprep.mubr.f32.mxu0 %v651
        %1880 = vmatmul.mubr.f32.gmra.mrb[0].mxu0 %v615
        %v1881 = vpop.f32.mrb[0].mxu0
        %v1882 = vadd.f32 0.0, %v1881
        %v1883 = vpop.f32.mrb[0].mxu0
        %1884 = vmatprep.mubr.f32.mxu0 %v652
        %1885 = vmatmul.mubr.f32.gmra.mrb[0].mxu0 %v616
        %v1886 = vpop.f32.mrb[0].mxu0
        %v1887 = vadd.f32 0.0, %v1886
        %v1888 = vpop.f32.mrb[0].mxu0
        %1889 = vmatprep.mubr.f32.mxu0 %v653
        %1890 = vmatmul.mubr.f32.gmra.mrb[0].mxu0 %v617
        %v1891 = vpop.f32.mrb[0].mxu0
        %v1892 = vadd.f32 0.0, %v1891
        %v1893 = vpop.f32.mrb[0].mxu0
        %1894 = vmatprep.mubr.f32.mxu0 %v654
        %1895 = vmatmul.mubr.f32.gmra.mrb[0].mxu0 %v618
        %v1896 = vpop.f32.mrb[0].mxu0
        %v1897 = vadd.f32 0.0, %v1896
        %v1898 = vpop.f32.mrb[0].mxu0
        %1899 = vmatprep.mubr.f32.mxu0 %v655
        %1900 = vmatmul.mubr.f32.gmra.mrb[0].mxu0 %v619
        %v1901 = vpop.f32.mrb[0].mxu0
        %v1902 = vadd.f32 0.0, %v1901
        %v1903 = vpop.f32.mrb[0].mxu0
        %1904 = vmatprep.mubr.f32.mxu0 %v656
        %1905 = vmatmul.mubr.f32.gmra.mrb[0].mxu0 %v620
        %v1906 = vpop.f32.mrb[0].mxu0
        %v1907 = vadd.f32 0.0, %v1906
        %v1908 = vpop.f32.mrb[0].mxu0
        %1909 = vmatprep.mubr.f32.mxu0 %v657
        %1910 = vmatmul.mubr.f32.gmra.mrb[0].mxu0 %v621
        %v1911 = vpop.f32.mrb[0].mxu0
        %v1912 = vadd.f32 0.0, %v1911
        %v1913 = vpop.f32.mrb[0].mxu0
        %1914 = vmatprep.mubr.f32.mxu0 %v658
        %1915 = vmatmul.mubr.f32.gmra.mrb[0].mxu0 %v622
        %v1916 = vpop.f32.mrb[0].mxu0
        %v1917 = vadd.f32 0.0, %v1916
        %v1918 = vpop.f32.mrb[0].mxu0
        %1919 = vmatprep.mubr.f32.mxu0 %v659
        %1920 = vmatmul.mubr.f32.gmra.mrb[0].mxu0 %v623
        %v1921 = vpop.f32.mrb[0].mxu0
        %v1922 = vadd.f32 0.0, %v1921
        %v1923 = vpop.f32.mrb[0].mxu0
        %1924 = vmatprep.mubr.f32.mxu0 %v660
        %1925 = vmatmul.mubr.f32.gmra.mrb[0].mxu0 %v624
        %v1926 = vpop.f32.mrb[0].mxu0
        %v1927 = vadd.f32 0.0, %v1926
        %v1928 = vpop.f32.mrb[0].mxu0
        %1929 = vmatprep.mubr.f32.mxu0 %v661
        %1930 = vmatmul.mubr.f32.gmra.mrb[0].mxu0 %v625
        %v1931 = vpop.f32.mrb[0].mxu0
        %v1932 = vadd.f32 0.0, %v1931
        %v1933 = vpop.f32.mrb[0].mxu0
        %1934 = vmatprep.mubr.f32.mxu0 %v662
        %1935 = vmatmul.mubr.f32.gmra.mrb[0].mxu0 %v626
        %v1936 = vpop.f32.mrb[0].mxu0
        %v1937 = vadd.f32 0.0, %v1936
        %v1938 = vpop.f32.mrb[0].mxu0
        %1939 = vmatprep.mubr.f32.mxu0 %v663
        %1940 = vmatmul.mubr.f32.gmra.mrb[0].mxu0 %v627
        %v1941 = vpop.f32.mrb[0].mxu0
        %v1942 = vadd.f32 0.0, %v1941
        %v1943 = vpop.f32.mrb[0].mxu0
        %1944 = vmatprep.mubr.f32.mxu0 %v664
        %1945 = vmatmul.mubr.f32.gmra.mrb[0].mxu0 %v628
        %v1946 = vpop.f32.mrb[0].mxu0
        %v1947 = vadd.f32 0.0, %v1946
        %v1948 = vpop.f32.mrb[0].mxu0
        %1949 = vmatprep.mubr.f32.mxu0 %v665
        %1950 = vmatmul.mubr.f32.gmra.mrb[0].mxu0 %v629
        %v1951 = vpop.f32.mrb[0].mxu0
        %v1952 = vadd.f32 0.0, %v1951
        %v1953 = vpop.f32.mrb[0].mxu0
        %1954 = vmatprep.mubr.f32.mxu0 %v666
        %1955 = vmatmul.mubr.f32.gmra.mrb[0].mxu0 %v630
        %v1956 = vpop.f32.mrb[0].mxu0
        %v1957 = vadd.f32 0.0, %v1956
        %v1958 = vpop.f32.mrb[0].mxu0
        %1959 = vmatprep.mubr.f32.mxu0 %v667
        %1960 = vmatmul.mubr.f32.gmra.mrb[0].mxu0 %v631
        %v1961 = vpop.f32.mrb[0].mxu0
        %v1962 = vadd.f32 0.0, %v1961
        %v1963 = vpop.f32.mrb[0].mxu0
        %1964 = vmatprep.mubr.f32.mxu0 %v668
        %1965 = vmatmul.mubr.f32.gmra.mrb[0].mxu0 %v632
        %v1966 = vpop.f32.mrb[0].mxu0
        %v1967 = vadd.f32 0.0, %v1966
        %v1968 = vpop.f32.mrb[0].mxu0
        %1969 = vmatprep.mubr.f32.mxu0 %v669
        %1970 = vmatmul.mubr.f32.gmra.mrb[0].mxu0 %v633
        %v1971 = vpop.f32.mrb[0].mxu0
        %v1972 = vadd.f32 0.0, %v1971
        %v1973 = vpop.f32.mrb[0].mxu0
        %1974 = vdwg.mxu0
        %1975 = vmatprep.subr.mxu0 0.0
        %1976 = vmatpush1.msra.mxu0 %v1734
        %1977 = vmatprep.subr.mxu0 0.0
        %1978 = vmatpush1.msra.mxu0 %v1735
        %1979 = vmatprep.subr.mxu0 0.0
        %1980 = vmatpush1.msra.mxu0 %v1736
        %1981 = vmatprep.subr.mxu0 0.0
        %1982 = vmatpush1.msra.mxu0 %v1737
        %1983 = vmatprep.subr.mxu0 0.0
        %1984 = vmatpush1.msra.mxu0 %v1738
        %1985 = vmatprep.subr.mxu0 0.0
        %1986 = vmatpush1.msra.mxu0 %v1739
        %1987 = vmatprep.subr.mxu0 0.0
        %1988 = vmatpush1.msra.mxu0 %v1740
        %1989 = vmatprep.subr.mxu0 0.0
        %1990 = vmatpush1.msra.mxu0 %v1741
        %1991 = vmatprep.subr.mxu0 0.0
        %1992 = vmatpush1.msra.mxu0 %v1742
        %1993 = vmatprep.subr.mxu0 0.0
        %1994 = vmatpush1.msra.mxu0 %v1743
        %1995 = vmatprep.subr.mxu0 0.0
        %1996 = vmatpush1.msra.mxu0 %v1744
        %1997 = vmatprep.subr.mxu0 0.0
        %1998 = vmatpush1.msra.mxu0 %v1745
        %1999 = vmatprep.subr.mxu0 0.0
        %2000 = vmatpush1.msra.mxu0 %v1746
        %2001 = vmatprep.subr.mxu0 0.0
        %2002 = vmatpush1.msra.mxu0 %v1747
        %2003 = vmatprep.subr.mxu0 0.0
        %2004 = vmatpush1.msra.mxu0 %v1748
        %2005 = vmatprep.subr.mxu0 0.0
        %2006 = vmatpush1.msra.mxu0 %v1749
        %2007 = vmatprep.subr.mxu0 0.0
        %2008 = vmatpush1.msra.mxu0 0.0
        %2009 = vmatprep.subr.mxu0 0.0
        %2010 = vmatpush1.msra.mxu0 0.0
        %2011 = vmatprep.subr.mxu0 0.0
        %2012 = vmatpush1.msra.mxu0 0.0
        %2013 = vmatprep.subr.mxu0 0.0
        %2014 = vmatpush1.msra.mxu0 0.0
        %2015 = vmatprep.subr.mxu0 0.0
        %2016 = vmatpush1.msra.mxu0 0.0
        %2017 = vmatprep.subr.mxu0 0.0
        %2018 = vmatpush1.msra.mxu0 0.0
        %2019 = vmatprep.subr.mxu0 0.0
        %2020 = vmatpush1.msra.mxu0 0.0
        %2021 = vmatprep.subr.mxu0 0.0
        %2022 = vmatpush1.msra.mxu0 0.0
        %2023 = vmatprep.subr.mxu0 0.0
        %2024 = vmatpush1.msra.mxu0 0.0
        %2025 = vmatprep.subr.mxu0 0.0
        %2026 = vmatpush1.msra.mxu0 0.0
        %2027 = vmatprep.subr.mxu0 0.0
        %2028 = vmatpush1.msra.mxu0 0.0
        %2029 = vmatprep.subr.mxu0 0.0
        %2030 = vmatpush1.msra.mxu0 0.0
        %2031 = vmatprep.subr.mxu0 0.0
        %2032 = vmatpush1.msra.mxu0 0.0
        %2033 = vmatprep.subr.mxu0 0.0
        %2034 = vmatpush1.msra.mxu0 0.0
        %2035 = vmatprep.subr.mxu0 0.0
        %2036 = vmatpush1.msra.mxu0 0.0
        %2037 = vmatprep.subr.mxu0 0.0
        %2038 = vmatpush1.msra.mxu0 0.0
        %2039 = vmatprep.mubr.f32.mxu0 0.0
        %2040 = vmatmul.mubr.f32.gmra.mrb[0].mxu0 %v674
        %v2041 = vpop.f32.mrb[0].mxu0
        %v2042 = vadd.f32 %v1817, %v2041
        %v2043 = vpop.f32.mrb[0].mxu0
        %2044 = vmatprep.mubr.f32.mxu0 0.0
        %2045 = vmatmul.mubr.f32.gmra.mrb[0].mxu0 %v675
        %v2046 = vpop.f32.mrb[0].mxu0
        %v2047 = vadd.f32 %v1822, %v2046
        %v2048 = vpop.f32.mrb[0].mxu0
        %2049 = vmatprep.mubr.f32.mxu0 0.0
        %2050 = vmatmul.mubr.f32.gmra.mrb[0].mxu0 %v676
        %v2051 = vpop.f32.mrb[0].mxu0
        %v2052 = vadd.f32 %v1827, %v2051
        %v2053 = vpop.f32.mrb[0].mxu0
        %2054 = vmatprep.mubr.f32.mxu0 0.0
        %2055 = vmatmul.mubr.f32.gmra.mrb[0].mxu0 %v677
        %v2056 = vpop.f32.mrb[0].mxu0
        %v2057 = vadd.f32 %v1832, %v2056
        %v2058 = vpop.f32.mrb[0].mxu0
        %2059 = vmatprep.mubr.f32.mxu0 0.0
        %2060 = vmatmul.mubr.f32.gmra.mrb[0].mxu0 %v678
        %v2061 = vpop.f32.mrb[0].mxu0
        %v2062 = vadd.f32 %v1837, %v2061
        %v2063 = vpop.f32.mrb[0].mxu0
        %2064 = vmatprep.mubr.f32.mxu0 0.0
        %2065 = vmatmul.mubr.f32.gmra.mrb[0].mxu0 %v679
        %v2066 = vpop.f32.mrb[0].mxu0
        %v2067 = vadd.f32 %v1842, %v2066
        %v2068 = vpop.f32.mrb[0].mxu0
        %2069 = vmatprep.mubr.f32.mxu0 0.0
        %2070 = vmatmul.mubr.f32.gmra.mrb[0].mxu0 %v680
        %v2071 = vpop.f32.mrb[0].mxu0
        %v2072 = vadd.f32 %v1847, %v2071
        %v2073 = vpop.f32.mrb[0].mxu0
        %2074 = vmatprep.mubr.f32.mxu0 0.0
        %2075 = vmatmul.mubr.f32.gmra.mrb[0].mxu0 %v681
        %v2076 = vpop.f32.mrb[0].mxu0
        %v2077 = vadd.f32 %v1852, %v2076
        %v2078 = vpop.f32.mrb[0].mxu0
        %2079 = vmatprep.mubr.f32.mxu0 0.0
        %2080 = vmatmul.mubr.f32.gmra.mrb[0].mxu0 %v682
        %v2081 = vpop.f32.mrb[0].mxu0
        %v2082 = vadd.f32 %v1857, %v2081
        %v2083 = vpop.f32.mrb[0].mxu0
        %2084 = vmatprep.mubr.f32.mxu0 0.0
        %2085 = vmatmul.mubr.f32.gmra.mrb[0].mxu0 %v683
        %v2086 = vpop.f32.mrb[0].mxu0
        %v2087 = vadd.f32 %v1862, %v2086
        %v2088 = vpop.f32.mrb[0].mxu0
        %2089 = vmatprep.mubr.f32.mxu0 0.0
        %2090 = vmatmul.mubr.f32.gmra.mrb[0].mxu0 %v684
        %v2091 = vpop.f32.mrb[0].mxu0
        %v2092 = vadd.f32 %v1867, %v2091
        %v2093 = vpop.f32.mrb[0].mxu0
        %2094 = vmatprep.mubr.f32.mxu0 0.0
        %2095 = vmatmul.mubr.f32.gmra.mrb[0].mxu0 %v685
        %v2096 = vpop.f32.mrb[0].mxu0
        %v2097 = vadd.f32 %v1872, %v2096
        %v2098 = vpop.f32.mrb[0].mxu0
        %2099 = vmatprep.mubr.f32.mxu0 0.0
        %2100 = vmatmul.mubr.f32.gmra.mrb[0].mxu0 %v686
        %v2101 = vpop.f32.mrb[0].mxu0
        %v2102 = vadd.f32 %v1877, %v2101
        %v2103 = vpop.f32.mrb[0].mxu0
        %2104 = vmatprep.mubr.f32.mxu0 0.0
        %2105 = vmatmul.mubr.f32.gmra.mrb[0].mxu0 %v687
        %v2106 = vpop.f32.mrb[0].mxu0
        %v2107 = vadd.f32 %v1882, %v2106
        %v2108 = vpop.f32.mrb[0].mxu0
        %2109 = vmatprep.mubr.f32.mxu0 0.0
        %2110 = vmatmul.mubr.f32.gmra.mrb[0].mxu0 %v688
        %v2111 = vpop.f32.mrb[0].mxu0
        %v2112 = vadd.f32 %v1887, %v2111
        %v2113 = vpop.f32.mrb[0].mxu0
        %2114 = vmatprep.mubr.f32.mxu0 0.0
        %2115 = vmatmul.mubr.f32.gmra.mrb[0].mxu0 %v689
        %v2116 = vpop.f32.mrb[0].mxu0
        %v2117 = vadd.f32 %v1892, %v2116
        %v2118 = vpop.f32.mrb[0].mxu0
        %2119 = vmatprep.mubr.f32.mxu0 0.0
        %2120 = vmatmul.mubr.f32.gmra.mrb[0].mxu0 %v690
        %v2121 = vpop.f32.mrb[0].mxu0
        %v2122 = vadd.f32 %v1897, %v2121
        %v2123 = vpop.f32.mrb[0].mxu0
        %2124 = vmatprep.mubr.f32.mxu0 0.0
        %2125 = vmatmul.mubr.f32.gmra.mrb[0].mxu0 %v691
        %v2126 = vpop.f32.mrb[0].mxu0
        %v2127 = vadd.f32 %v1902, %v2126
        %v2128 = vpop.f32.mrb[0].mxu0
        %2129 = vmatprep.mubr.f32.mxu0 0.0
        %2130 = vmatmul.mubr.f32.gmra.mrb[0].mxu0 %v692
        %v2131 = vpop.f32.mrb[0].mxu0
        %v2132 = vadd.f32 %v1907, %v2131
        %v2133 = vpop.f32.mrb[0].mxu0
        %2134 = vmatprep.mubr.f32.mxu0 0.0
        %2135 = vmatmul.mubr.f32.gmra.mrb[0].mxu0 %v693
        %v2136 = vpop.f32.mrb[0].mxu0
        %v2137 = vadd.f32 %v1912, %v2136
        %v2138 = vpop.f32.mrb[0].mxu0
        %2139 = vmatprep.mubr.f32.mxu0 0.0
        %2140 = vmatmul.mubr.f32.gmra.mrb[0].mxu0 %v694
        %v2141 = vpop.f32.mrb[0].mxu0
        %v2142 = vadd.f32 %v1917, %v2141
        %v2143 = vpop.f32.mrb[0].mxu0
        %2144 = vmatprep.mubr.f32.mxu0 0.0
        %2145 = vmatmul.mubr.f32.gmra.mrb[0].mxu0 %v695
        %v2146 = vpop.f32.mrb[0].mxu0
        %v2147 = vadd.f32 %v1922, %v2146
        %v2148 = vpop.f32.mrb[0].mxu0
        %2149 = vmatprep.mubr.f32.mxu0 0.0
        %2150 = vmatmul.mubr.f32.gmra.mrb[0].mxu0 %v696
        %v2151 = vpop.f32.mrb[0].mxu0
        %v2152 = vadd.f32 %v1927, %v2151
        %v2153 = vpop.f32.mrb[0].mxu0
        %2154 = vmatprep.mubr.f32.mxu0 0.0
        %2155 = vmatmul.mubr.f32.gmra.mrb[0].mxu0 %v697
        %v2156 = vpop.f32.mrb[0].mxu0
        %v2157 = vadd.f32 %v1932, %v2156
        %v2158 = vpop.f32.mrb[0].mxu0
        %2159 = vmatprep.mubr.f32.mxu0 0.0
        %2160 = vmatmul.mubr.f32.gmra.mrb[0].mxu0 %v698
        %v2161 = vpop.f32.mrb[0].mxu0
        %v2162 = vadd.f32 %v1937, %v2161
        %v2163 = vpop.f32.mrb[0].mxu0
        %2164 = vmatprep.mubr.f32.mxu0 0.0
        %2165 = vmatmul.mubr.f32.gmra.mrb[0].mxu0 %v699
        %v2166 = vpop.f32.mrb[0].mxu0
        %v2167 = vadd.f32 %v1942, %v2166
        %v2168 = vpop.f32.mrb[0].mxu0
        %2169 = vmatprep.mubr.f32.mxu0 0.0
        %2170 = vmatmul.mubr.f32.gmra.mrb[0].mxu0 %v700
        %v2171 = vpop.f32.mrb[0].mxu0
        %v2172 = vadd.f32 %v1947, %v2171
        %v2173 = vpop.f32.mrb[0].mxu0
        %2174 = vmatprep.mubr.f32.mxu0 0.0
        %2175 = vmatmul.mubr.f32.gmra.mrb[0].mxu0 %v701
        %v2176 = vpop.f32.mrb[0].mxu0
        %v2177 = vadd.f32 %v1952, %v2176
        %v2178 = vpop.f32.mrb[0].mxu0
        %2179 = vmatprep.mubr.f32.mxu0 0.0
        %2180 = vmatmul.mubr.f32.gmra.mrb[0].mxu0 %v702
        %v2181 = vpop.f32.mrb[0].mxu0
        %v2182 = vadd.f32 %v1957, %v2181
        %v2183 = vpop.f32.mrb[0].mxu0
        %2184 = vmatprep.mubr.f32.mxu0 0.0
        %2185 = vmatmul.mubr.f32.gmra.mrb[0].mxu0 %v703
        %v2186 = vpop.f32.mrb[0].mxu0
        %v2187 = vadd.f32 %v1962, %v2186
        %v2188 = vpop.f32.mrb[0].mxu0
        %2189 = vmatprep.mubr.f32.mxu0 0.0
        %2190 = vmatmul.mubr.f32.gmra.mrb[0].mxu0 %v704
        %v2191 = vpop.f32.mrb[0].mxu0
        %v2192 = vadd.f32 %v1967, %v2191
        %v2193 = vpop.f32.mrb[0].mxu0
        %2194 = vmatprep.mubr.f32.mxu0 0.0
        %2195 = vmatmul.mubr.f32.gmra.mrb[0].mxu0 %v705
        %v2196 = vpop.f32.mrb[0].mxu0
        %v2197 = vadd.f32 %v1972, %v2196
        %v2198 = vpop.f32.mrb[0].mxu0
        %2199 = vdwg.mxu0
        %v2200 = vadd.f32 %v1544, %v2042
        %v2201 = vadd.f32 %v1549, %v2047
        %v2202 = vadd.f32 %v1554, %v2052
        %v2203 = vadd.f32 %v1559, %v2057
        %v2204 = vadd.f32 %v1564, %v2062
        %v2205 = vadd.f32 %v1569, %v2067
        %v2206 = vadd.f32 %v1574, %v2072
        %v2207 = vadd.f32 %v1579, %v2077
        %v2208 = vadd.f32 %v1584, %v2082
        %v2209 = vadd.f32 %v1589, %v2087
        %v2210 = vadd.f32 %v1594, %v2092
        %v2211 = vadd.f32 %v1599, %v2097
        %v2212 = vadd.f32 %v1604, %v2102
        %v2213 = vadd.f32 %v1609, %v2107
        %v2214 = vadd.f32 %v1614, %v2112
        %v2215 = vadd.f32 %v1619, %v2117
        %v2216 = vadd.f32 %v1624, %v2122
        %v2217 = vadd.f32 %v1629, %v2127
        %v2218 = vadd.f32 %v1634, %v2132
        %v2219 = vadd.f32 %v1639, %v2137
        %v2220 = vadd.f32 %v1644, %v2142
        %v2221 = vadd.f32 %v1649, %v2147
        %v2222 = vadd.f32 %v1654, %v2152
        %v2223 = vadd.f32 %v1659, %v2157
        %v2224 = vadd.f32 %v1664, %v2162
        %v2225 = vadd.f32 %v1669, %v2167
        %v2226 = vadd.f32 %v1674, %v2172
        %v2227 = vadd.f32 %v1679, %v2177
        %v2228 = vadd.f32 %v1684, %v2182
        %v2229 = vadd.f32 %v1689, %v2187
        %v2230 = vadd.f32 %v1694, %v2192
        %v2231 = vadd.f32 %v1699, %v2197
        %v2232 = vld [vmem:[#allocation12] sm:$0x1]
        %v2234 = vlaneseq
        %v2235 = vshrl.u32 %v2234, 7
        %v2236 = vsub.s32 0, %v2235
        %v2237 = vrot.slane %v2232, %v2236
        %v2239 = vadd.f32 %v2200, %v2237
        %v2240 = vadd.f32 %v2201, %v2237
        %v2241 = vadd.f32 %v2202, %v2237
        %v2242 = vadd.f32 %v2203, %v2237
        %v2243 = vadd.f32 %v2204, %v2237
        %v2244 = vadd.f32 %v2205, %v2237
        %v2245 = vadd.f32 %v2206, %v2237
        %v2246 = vadd.f32 %v2207, %v2237
        %v2247 = vadd.f32 %v2208, %v2237
        %v2248 = vadd.f32 %v2209, %v2237
        %v2249 = vadd.f32 %v2210, %v2237
        %v2250 = vadd.f32 %v2211, %v2237
        %v2251 = vadd.f32 %v2212, %v2237
        %v2252 = vadd.f32 %v2213, %v2237
        %v2253 = vadd.f32 %v2214, %v2237
        %v2254 = vadd.f32 %v2215, %v2237
        %v2255 = vadd.f32 %v2216, %v2237
        %v2256 = vadd.f32 %v2217, %v2237
        %v2257 = vadd.f32 %v2218, %v2237
        %v2258 = vadd.f32 %v2219, %v2237
        %v2259 = vadd.f32 %v2220, %v2237
        %v2260 = vadd.f32 %v2221, %v2237
        %v2261 = vadd.f32 %v2222, %v2237
        %v2262 = vadd.f32 %v2223, %v2237
        %v2263 = vadd.f32 %v2224, %v2237
        %v2264 = vadd.f32 %v2225, %v2237
        %v2265 = vadd.f32 %v2226, %v2237
        %v2266 = vadd.f32 %v2227, %v2237
        %v2267 = vadd.f32 %v2228, %v2237
        %v2268 = vadd.f32 %v2229, %v2237
        %v2269 = vadd.f32 %v2230, %v2237
        %v2270 = vadd.f32 %v2231, %v2237
        %vm2271 = vcmp.ge.f32.partialorder %v2239, 0.0
        %vm2272 = vcmp.ge.f32.partialorder %v2240, 0.0
        %vm2273 = vcmp.ge.f32.partialorder %v2241, 0.0
        %vm2274 = vcmp.ge.f32.partialorder %v2242, 0.0
        %vm2275 = vcmp.ge.f32.partialorder %v2243, 0.0
        %vm2276 = vcmp.ge.f32.partialorder %v2244, 0.0
        %vm2277 = vcmp.ge.f32.partialorder %v2245, 0.0
        %vm2278 = vcmp.ge.f32.partialorder %v2246, 0.0
        %vm2279 = vcmp.ge.f32.partialorder %v2247, 0.0
        %vm2280 = vcmp.ge.f32.partialorder %v2248, 0.0
        %vm2281 = vcmp.ge.f32.partialorder %v2249, 0.0
        %vm2282 = vcmp.ge.f32.partialorder %v2250, 0.0
        %vm2283 = vcmp.ge.f32.partialorder %v2251, 0.0
        %vm2284 = vcmp.ge.f32.partialorder %v2252, 0.0
        %vm2285 = vcmp.ge.f32.partialorder %v2253, 0.0
        %vm2286 = vcmp.ge.f32.partialorder %v2254, 0.0
        %vm2287 = vcmp.ge.f32.partialorder %v2255, 0.0
        %vm2288 = vcmp.ge.f32.partialorder %v2256, 0.0
        %vm2289 = vcmp.ge.f32.partialorder %v2257, 0.0
        %vm2290 = vcmp.ge.f32.partialorder %v2258, 0.0
        %vm2291 = vcmp.ge.f32.partialorder %v2259, 0.0
        %vm2292 = vcmp.ge.f32.partialorder %v2260, 0.0
        %vm2293 = vcmp.ge.f32.partialorder %v2261, 0.0
        %vm2294 = vcmp.ge.f32.partialorder %v2262, 0.0
        %vm2295 = vcmp.ge.f32.partialorder %v2263, 0.0
        %vm2296 = vcmp.ge.f32.partialorder %v2264, 0.0
        %vm2297 = vcmp.ge.f32.partialorder %v2265, 0.0
        %vm2298 = vcmp.ge.f32.partialorder %v2266, 0.0
        %vm2299 = vcmp.ge.f32.partialorder %v2267, 0.0
        %vm2300 = vcmp.ge.f32.partialorder %v2268, 0.0
        %vm2301 = vcmp.ge.f32.partialorder %v2269, 0.0
        %vm2302 = vcmp.ge.f32.partialorder %v2270, 0.0
        %v2303 = vld [vmem:[#allocation14] sm:$0x1]
        %v2305 = vlaneseq
        %v2306 = vshrl.u32 %v2305, 7
        %v2307 = vsub.s32 0, %v2306
        %v2308 = vrot.slane %v2303, %v2307
        %v2310 = vmul.f32 %v2308, %v2239
        %v2311 = vmul.f32 %v2308, %v2240
        %v2312 = vmul.f32 %v2308, %v2241
        %v2313 = vmul.f32 %v2308, %v2242
        %v2314 = vmul.f32 %v2308, %v2243
        %v2315 = vmul.f32 %v2308, %v2244
        %v2316 = vmul.f32 %v2308, %v2245
        %v2317 = vmul.f32 %v2308, %v2246
        %v2318 = vmul.f32 %v2308, %v2247
        %v2319 = vmul.f32 %v2308, %v2248
        %v2320 = vmul.f32 %v2308, %v2249
        %v2321 = vmul.f32 %v2308, %v2250
        %v2322 = vmul.f32 %v2308, %v2251
        %v2323 = vmul.f32 %v2308, %v2252
        %v2324 = vmul.f32 %v2308, %v2253
        %v2325 = vmul.f32 %v2308, %v2254
        %v2326 = vmul.f32 %v2308, %v2255
        %v2327 = vmul.f32 %v2308, %v2256
        %v2328 = vmul.f32 %v2308, %v2257
        %v2329 = vmul.f32 %v2308, %v2258
        %v2330 = vmul.f32 %v2308, %v2259
        %v2331 = vmul.f32 %v2308, %v2260
        %v2332 = vmul.f32 %v2308, %v2261
        %v2333 = vmul.f32 %v2308, %v2262
        %v2334 = vmul.f32 %v2308, %v2263
        %v2335 = vmul.f32 %v2308, %v2264
        %v2336 = vmul.f32 %v2308, %v2265
        %v2337 = vmul.f32 %v2308, %v2266
        %v2338 = vmul.f32 %v2308, %v2267
        %v2339 = vmul.f32 %v2308, %v2268
        %v2340 = vmul.f32 %v2308, %v2269
        %v2341 = vmul.f32 %v2308, %v2270
        %v2342 = vsel %vm2271, %v2239, %v2310
        %v2343 = vsel %vm2272, %v2240, %v2311
        %v2344 = vsel %vm2273, %v2241, %v2312
        %v2345 = vsel %vm2274, %v2242, %v2313
        %v2346 = vsel %vm2275, %v2243, %v2314
        %v2347 = vsel %vm2276, %v2244, %v2315
        %v2348 = vsel %vm2277, %v2245, %v2316
        %v2349 = vsel %vm2278, %v2246, %v2317
        %v2350 = vsel %vm2279, %v2247, %v2318
        %v2351 = vsel %vm2280, %v2248, %v2319
        %v2352 = vsel %vm2281, %v2249, %v2320
        %v2353 = vsel %vm2282, %v2250, %v2321
        %v2354 = vsel %vm2283, %v2251, %v2322
        %v2355 = vsel %vm2284, %v2252, %v2323
        %v2356 = vsel %vm2285, %v2253, %v2324
        %v2357 = vsel %vm2286, %v2254, %v2325
        %v2358 = vsel %vm2287, %v2255, %v2326
        %v2359 = vsel %vm2288, %v2256, %v2327
        %v2360 = vsel %vm2289, %v2257, %v2328
        %v2361 = vsel %vm2290, %v2258, %v2329
        %v2362 = vsel %vm2291, %v2259, %v2330
        %v2363 = vsel %vm2292, %v2260, %v2331
        %v2364 = vsel %vm2293, %v2261, %v2332
        %v2365 = vsel %vm2294, %v2262, %v2333
        %v2366 = vsel %vm2295, %v2263, %v2334
        %v2367 = vsel %vm2296, %v2264, %v2335
        %v2368 = vsel %vm2297, %v2265, %v2336
        %v2369 = vsel %vm2298, %v2266, %v2337
        %v2370 = vsel %vm2299, %v2267, %v2338
        %v2371 = vsel %vm2300, %v2268, %v2339
        %v2372 = vsel %vm2301, %v2269, %v2340
        %v2373 = vsel %vm2302, %v2270, %v2341
        %2374 = vst [vmem:[%s423 + $0x1] sm:$0xff] %v2342
        %2375 = vst [vmem:[%s423 + $0x9] sm:$0xff] %v2343
        %2376 = vst [vmem:[%s423 + $0x19] sm:$0xff] %v2344
        %2377 = vst [vmem:[%s423 + $0x21] sm:$0xff] %v2345
        %2378 = vst [vmem:[%s423 + $0x31] sm:$0xff] %v2346
        %2379 = vst [vmem:[%s423 + $0x39] sm:$0xff] %v2347
        %2380 = vst [vmem:[%s423 + $0x49] sm:$0xff] %v2348
        %2381 = vst [vmem:[%s423 + $0x51] sm:$0xff] %v2349
        %2382 = vst [vmem:[%s423 + $0x61] sm:$0xff] %v2350
        %2383 = vst [vmem:[%s423 + $0x69] sm:$0xff] %v2351
        %2384 = vst [vmem:[%s423 + $0x79] sm:$0xff] %v2352
        %2385 = vst [vmem:[%s423 + $0x81] sm:$0xff] %v2353
        %2386 = vst [vmem:[%s423 + $0x91] sm:$0xff] %v2354
        %2387 = vst [vmem:[%s423 + $0x99] sm:$0xff] %v2355
        %2388 = vst [vmem:[%s423 + $0xa9] sm:$0xff] %v2356
        %2389 = vst [vmem:[%s423 + $0xb1] sm:$0xff] %v2357
        %2390 = vst [vmem:[%s423 + $0xc1] sm:$0xff] %v2358
        %2391 = vst [vmem:[%s423 + $0xc9] sm:$0xff] %v2359
        %2392 = vst [vmem:[%s423 + $0xd9] sm:$0xff] %v2360
        %2393 = vst [vmem:[%s423 + $0xe1] sm:$0xff] %v2361
        %2394 = vst [vmem:[%s423 + $0xf1] sm:$0xff] %v2362
        %2395 = vst [vmem:[%s423 + $0xf9] sm:$0xff] %v2363
        %2396 = vst [vmem:[%s423 + $0x109] sm:$0xff] %v2364
        %2397 = vst [vmem:[%s423 + $0x111] sm:$0xff] %v2365
        %2398 = vst [vmem:[%s423 + $0x121] sm:$0xff] %v2366
        %2399 = vst [vmem:[%s423 + $0x129] sm:$0xff] %v2367
        %2400 = vst [vmem:[%s423 + $0x139] sm:$0xff] %v2368
        %2401 = vst [vmem:[%s423 + $0x141] sm:$0xff] %v2369
        %2402 = vst [vmem:[%s423 + $0x151] sm:$0xff] %v2370
        %2403 = vst [vmem:[%s423 + $0x159] sm:$0xff] %v2371
        %2404 = vst [vmem:[%s423 + $0x169] sm:$0xff] %v2372
        %2405 = vst [vmem:[%s423 + $0x171] sm:$0xff] %v2373
        %v2406 = vld [vmem:[#allocation2] sm:$0xff]
        %v2407 = vld [vmem:[#allocation2 + $0x8] sm:$0xff]
        %v2408 = vld [vmem:[#allocation2 + $0x18] sm:$0xff]
        %v2409 = vld [vmem:[#allocation2 + $0x20] sm:$0xff]
        %v2410 = vld [vmem:[#allocation2 + $0x30] sm:$0xff]
        %v2411 = vld [vmem:[#allocation2 + $0x38] sm:$0xff]
        %v2412 = vld [vmem:[#allocation2 + $0x48] sm:$0xff]
        %v2413 = vld [vmem:[#allocation2 + $0x50] sm:$0xff]
        %v2414 = vld [vmem:[#allocation2 + $0x60] sm:$0xff]
        %v2415 = vld [vmem:[#allocation2 + $0x68] sm:$0xff]
        %v2416 = vld [vmem:[#allocation2 + $0x78] sm:$0xff]
        %v2417 = vld [vmem:[#allocation2 + $0x80] sm:$0xff]
        %v2418 = vld [vmem:[#allocation2 + $0x90] sm:$0xff]
        %v2419 = vld [vmem:[#allocation2 + $0x98] sm:$0xff]
        %v2420 = vld [vmem:[#allocation2 + $0xa8] sm:$0xff]
        %v2421 = vld [vmem:[#allocation2 + $0xb0] sm:$0xff]
        %v2422 = vld [vmem:[#allocation2 + $0xc0] sm:$0xff]
        %v2423 = vld [vmem:[#allocation2 + $0xc8] sm:$0xff]
        %v2424 = vld [vmem:[#allocation2 + $0xd8] sm:$0xff]
        %v2425 = vld [vmem:[#allocation2 + $0xe0] sm:$0xff]
        %v2426 = vld [vmem:[#allocation2 + $0xf0] sm:$0xff]
        %v2427 = vld [vmem:[#allocation2 + $0xf8] sm:$0xff]
        %v2428 = vld [vmem:[#allocation2 + $0x108] sm:$0xff]
        %v2429 = vld [vmem:[#allocation2 + $0x110] sm:$0xff]
        %v2430 = vld [vmem:[#allocation2 + $0x120] sm:$0xff]
        %v2431 = vld [vmem:[#allocation2 + $0x128] sm:$0xff]
        %v2432 = vld [vmem:[#allocation2 + $0x138] sm:$0xff]
        %v2433 = vld [vmem:[#allocation2 + $0x140] sm:$0xff]
        %v2434 = vld [vmem:[#allocation2 + $0x150] sm:$0xff]
        %v2435 = vld [vmem:[#allocation2 + $0x158] sm:$0xff]
        %v2436 = vld [vmem:[#allocation2 + $0x168] sm:$0xff]
        %v2437 = vld [vmem:[#allocation2 + $0x170] sm:$0xff]
        %v2438 = vld [vmem:[#allocation2 + $0x180] sm:$0xff]
        %v2439 = vld [vmem:[#allocation2 + $0x188] sm:$0xff]
        %v2440 = vld [vmem:[#allocation2 + $0x198] sm:$0xff]
        %v2441 = vld [vmem:[#allocation2 + $0x1a0] sm:$0xff]
        %v2442 = vld [vmem:[#allocation2 + $0x1] sm:$0xff]
        %v2443 = vld [vmem:[#allocation2 + $0x9] sm:$0xff]
        %v2444 = vld [vmem:[#allocation2 + $0x19] sm:$0xff]
        %v2445 = vld [vmem:[#allocation2 + $0x21] sm:$0xff]
        %v2446 = vld [vmem:[#allocation2 + $0x31] sm:$0xff]
        %v2447 = vld [vmem:[#allocation2 + $0x39] sm:$0xff]
        %v2448 = vld [vmem:[#allocation2 + $0x49] sm:$0xff]
        %v2449 = vld [vmem:[#allocation2 + $0x51] sm:$0xff]
        %v2450 = vld [vmem:[#allocation2 + $0x61] sm:$0xff]
        %v2451 = vld [vmem:[#allocation2 + $0x69] sm:$0xff]
        %v2452 = vld [vmem:[#allocation2 + $0x79] sm:$0xff]
        %v2453 = vld [vmem:[#allocation2 + $0x81] sm:$0xff]
        %v2454 = vld [vmem:[#allocation2 + $0x91] sm:$0xff]
        %v2455 = vld [vmem:[#allocation2 + $0x99] sm:$0xff]
        %v2456 = vld [vmem:[#allocation2 + $0xa9] sm:$0xff]
        %v2457 = vld [vmem:[#allocation2 + $0xb1] sm:$0xff]
        %v2458 = vld [vmem:[#allocation2 + $0xc1] sm:$0xff]
        %v2459 = vld [vmem:[#allocation2 + $0xc9] sm:$0xff]
        %v2460 = vld [vmem:[#allocation2 + $0xd9] sm:$0xff]
        %v2461 = vld [vmem:[#allocation2 + $0xe1] sm:$0xff]
        %v2462 = vld [vmem:[#allocation2 + $0xf1] sm:$0xff]
        %v2463 = vld [vmem:[#allocation2 + $0xf9] sm:$0xff]
        %v2464 = vld [vmem:[#allocation2 + $0x109] sm:$0xff]
        %v2465 = vld [vmem:[#allocation2 + $0x111] sm:$0xff]
        %v2466 = vld [vmem:[#allocation2 + $0x121] sm:$0xff]
        %v2467 = vld [vmem:[#allocation2 + $0x129] sm:$0xff]
        %v2468 = vld [vmem:[#allocation2 + $0x139] sm:$0xff]
        %v2469 = vld [vmem:[#allocation2 + $0x141] sm:$0xff]
        %v2470 = vld [vmem:[#allocation2 + $0x151] sm:$0xff]
        %v2471 = vld [vmem:[#allocation2 + $0x159] sm:$0xff]
        %v2472 = vld [vmem:[#allocation2 + $0x169] sm:$0xff]
        %v2473 = vld [vmem:[#allocation2 + $0x171] sm:$0xff]
        %v2474 = vld [vmem:[#allocation2 + $0x181] sm:$0xff]
        %v2475 = vld [vmem:[#allocation2 + $0x189] sm:$0xff]
        %v2476 = vld [vmem:[#allocation2 + $0x199] sm:$0xff]
        %v2477 = vld [vmem:[#allocation2 + $0x1a1] sm:$0xff]
        %v2478 = vld [vmem:[#allocation2 + $0x2] sm:$0xff]
        %v2479 = vld [vmem:[#allocation2 + $0xa] sm:$0xff]
        %v2480 = vld [vmem:[#allocation2 + $0x1a] sm:$0xff]
        %v2481 = vld [vmem:[#allocation2 + $0x22] sm:$0xff]
        %v2482 = vld [vmem:[#allocation2 + $0x32] sm:$0xff]
        %v2483 = vld [vmem:[#allocation2 + $0x3a] sm:$0xff]
        %v2484 = vld [vmem:[#allocation2 + $0x4a] sm:$0xff]
        %v2485 = vld [vmem:[#allocation2 + $0x52] sm:$0xff]
        %v2486 = vld [vmem:[#allocation2 + $0x62] sm:$0xff]
        %v2487 = vld [vmem:[#allocation2 + $0x6a] sm:$0xff]
        %v2488 = vld [vmem:[#allocation2 + $0x7a] sm:$0xff]
        %v2489 = vld [vmem:[#allocation2 + $0x82] sm:$0xff]
        %v2490 = vld [vmem:[#allocation2 + $0x92] sm:$0xff]
        %v2491 = vld [vmem:[#allocation2 + $0x9a] sm:$0xff]
        %v2492 = vld [vmem:[#allocation2 + $0xaa] sm:$0xff]
        %v2493 = vld [vmem:[#allocation2 + $0xb2] sm:$0xff]
        %v2494 = vld [vmem:[#allocation2 + $0xc2] sm:$0xff]
        %v2495 = vld [vmem:[#allocation2 + $0xca] sm:$0xff]
        %v2496 = vld [vmem:[#allocation2 + $0xda] sm:$0xff]
        %v2497 = vld [vmem:[#allocation2 + $0xe2] sm:$0xff]
        %v2498 = vld [vmem:[#allocation2 + $0xf2] sm:$0xff]
        %v2499 = vld [vmem:[#allocation2 + $0xfa] sm:$0xff]
        %v2500 = vld [vmem:[#allocation2 + $0x10a] sm:$0xff]
        %v2501 = vld [vmem:[#allocation2 + $0x112] sm:$0xff]
        %v2502 = vld [vmem:[#allocation2 + $0x122] sm:$0xff]
        %v2503 = vld [vmem:[#allocation2 + $0x12a] sm:$0xff]
        %v2504 = vld [vmem:[#allocation2 + $0x13a] sm:$0xff]
        %v2505 = vld [vmem:[#allocation2 + $0x142] sm:$0xff]
        %v2506 = vld [vmem:[#allocation2 + $0x152] sm:$0xff]
        %v2507 = vld [vmem:[#allocation2 + $0x15a] sm:$0xff]
        %v2508 = vld [vmem:[#allocation2 + $0x16a] sm:$0xff]
        %v2509 = vld [vmem:[#allocation2 + $0x172] sm:$0xff]
        %v2510 = vld [vmem:[#allocation2 + $0x182] sm:$0xff]
        %v2511 = vld [vmem:[#allocation2 + $0x18a] sm:$0xff]
        %v2512 = vld [vmem:[#allocation2 + $0x19a] sm:$0xff]
        %v2513 = vld [vmem:[#allocation2 + $0x1a2] sm:$0xff]
        %v2514 = vld [vmem:[#allocation8] sm:$0xff]
        %v2515 = vld [vmem:[#allocation8 + $0x8] sm:$0xff]
        %v2516 = vld [vmem:[#allocation8 + $0x10] sm:$0xff]
        %v2517 = vld [vmem:[#allocation8 + $0x18] sm:$0xff]
        %v2518 = vld [vmem:[#allocation8 + $0x20] sm:$0xff]
        %v2519 = vld [vmem:[#allocation8 + $0x28] sm:$0xff]
        %v2520 = vld [vmem:[#allocation8 + $0x30] sm:$0xff]
        %v2521 = vld [vmem:[#allocation8 + $0x38] sm:$0xff]
        %v2522 = vld [vmem:[#allocation8 + $0x40] sm:$0xff]
        %v2523 = vld [vmem:[#allocation8 + $0x48] sm:$0xff]
        %v2524 = vld [vmem:[#allocation8 + $0x50] sm:$0xff]
        %v2525 = vld [vmem:[#allocation8 + $0x58] sm:$0xff]
        %v2526 = vld [vmem:[#allocation8 + $0x60] sm:$0xff]
        %v2527 = vld [vmem:[#allocation8 + $0x68] sm:$0xff]
        %v2528 = vld [vmem:[#allocation8 + $0x70] sm:$0xff]
        %v2529 = vld [vmem:[#allocation8 + $0x78] sm:$0xff]
        %v2530 = vld [vmem:[#allocation8 + $0x80] sm:$0xff]
        %v2531 = vld [vmem:[#allocation8 + $0x88] sm:$0xff]
        %v2532 = vld [vmem:[#allocation8 + $0x90] sm:$0xff]
        %v2533 = vld [vmem:[#allocation8 + $0x98] sm:$0xff]
        %v2534 = vld [vmem:[#allocation8 + $0xa0] sm:$0xff]
        %v2535 = vld [vmem:[#allocation8 + $0xa8] sm:$0xff]
        %v2536 = vld [vmem:[#allocation8 + $0xb0] sm:$0xff]
        %v2537 = vld [vmem:[#allocation8 + $0xb8] sm:$0xff]
        %v2538 = vld [vmem:[#allocation8 + $0xc0] sm:$0xff]
        %v2539 = vld [vmem:[#allocation8 + $0xc8] sm:$0xff]
        %v2540 = vld [vmem:[#allocation8 + $0xd0] sm:$0xff]
        %v2541 = vld [vmem:[#allocation8 + $0xd8] sm:$0xff]
        %v2542 = vld [vmem:[#allocation8 + $0xe0] sm:$0xff]
        %v2543 = vld [vmem:[#allocation8 + $0xe8] sm:$0xff]
        %v2544 = vld [vmem:[#allocation8 + $0xf0] sm:$0xff]
        %v2545 = vld [vmem:[#allocation8 + $0xf8] sm:$0xff]
        %v2546 = vld [vmem:[#allocation8 + $0x100] sm:$0xff]
        %v2547 = vld [vmem:[#allocation8 + $0x108] sm:$0xff]
        %v2548 = vld [vmem:[#allocation8 + $0x110] sm:$0xff]
        %v2549 = vld [vmem:[#allocation8 + $0x118] sm:$0xff]
        %v2550 = vld [vmem:[#allocation8 + $0x120] sm:$0xff]
        %v2551 = vld [vmem:[#allocation8 + $0x128] sm:$0xff]
        %v2552 = vld [vmem:[#allocation8 + $0x130] sm:$0xff]
        %v2553 = vld [vmem:[#allocation8 + $0x138] sm:$0xff]
        %v2554 = vld [vmem:[#allocation8 + $0x140] sm:$0xff]
        %v2555 = vld [vmem:[#allocation8 + $0x148] sm:$0xff]
        %v2556 = vld [vmem:[#allocation8 + $0x150] sm:$0xff]
        %v2557 = vld [vmem:[#allocation8 + $0x158] sm:$0xff]
        %v2558 = vld [vmem:[#allocation8 + $0x160] sm:$0xff]
        %v2559 = vld [vmem:[#allocation8 + $0x168] sm:$0xff]
        %v2560 = vld [vmem:[#allocation8 + $0x170] sm:$0xff]
        %v2561 = vld [vmem:[#allocation8 + $0x178] sm:$0xff]
        %v2562 = vld [vmem:[#allocation8 + $0x180] sm:$0xff]
        %v2563 = vld [vmem:[#allocation8 + $0x188] sm:$0xff]
        %v2564 = vld [vmem:[#allocation8 + $0x190] sm:$0xff]
        %v2565 = vld [vmem:[#allocation8 + $0x198] sm:$0xff]
        %v2566 = vld [vmem:[#allocation8 + $0x1a0] sm:$0xff]
        %v2567 = vld [vmem:[#allocation8 + $0x1a8] sm:$0xff]
        %v2568 = vld [vmem:[#allocation8 + $0x1b0] sm:$0xff]
        %v2569 = vld [vmem:[#allocation8 + $0x1b8] sm:$0xff]
        %v2570 = vld [vmem:[#allocation8 + $0x1c0] sm:$0xff]
        %v2571 = vld [vmem:[#allocation8 + $0x1c8] sm:$0xff]
        %v2572 = vld [vmem:[#allocation8 + $0x1d0] sm:$0xff]
        %v2573 = vld [vmem:[#allocation8 + $0x1d8] sm:$0xff]
        %v2574 = vld [vmem:[#allocation8 + $0x1e0] sm:$0xff]
        %v2575 = vld [vmem:[#allocation8 + $0x1e8] sm:$0xff]
        %v2576 = vld [vmem:[#allocation8 + $0x1f0] sm:$0xff]
        %v2577 = vld [vmem:[#allocation8 + $0x1f8] sm:$0xff]
        %v2578 = vld [vmem:[#allocation8 + $0x200] sm:$0xff]
        %v2579 = vld [vmem:[#allocation8 + $0x208] sm:$0xff]
        %v2580 = vld [vmem:[#allocation8 + $0x210] sm:$0xff]
        %v2581 = vld [vmem:[#allocation8 + $0x218] sm:$0xff]
        %v2582 = vld [vmem:[#allocation8 + $0x220] sm:$0xff]
        %v2583 = vld [vmem:[#allocation8 + $0x228] sm:$0xff]
        %v2584 = vld [vmem:[#allocation8 + $0x230] sm:$0xff]
        %v2585 = vld [vmem:[#allocation8 + $0x238] sm:$0xff]
        %v2586 = vld [vmem:[#allocation8 + $0x240] sm:$0xff]
        %v2587 = vld [vmem:[#allocation8 + $0x248] sm:$0xff]
        %v2588 = vld [vmem:[#allocation8 + $0x250] sm:$0xff]
        %v2589 = vld [vmem:[#allocation8 + $0x258] sm:$0xff]
        %v2590 = vld [vmem:[#allocation8 + $0x260] sm:$0xff]
        %v2591 = vld [vmem:[#allocation8 + $0x268] sm:$0xff]
        %v2592 = vld [vmem:[#allocation8 + $0x270] sm:$0xff]
        %v2593 = vld [vmem:[#allocation8 + $0x278] sm:$0xff]
        %v2594 = vld [vmem:[#allocation8 + $0x280] sm:$0xff]
        %v2595 = vld [vmem:[#allocation8 + $0x288] sm:$0xff]
        %v2596 = vld [vmem:[#allocation8 + $0x290] sm:$0xff]
        %v2597 = vld [vmem:[#allocation8 + $0x298] sm:$0xff]
        %v2598 = vld [vmem:[#allocation8 + $0x2a0] sm:$0xff]
        %v2599 = vld [vmem:[#allocation8 + $0x2a8] sm:$0xff]
        %v2600 = vld [vmem:[#allocation8 + $0x2b0] sm:$0xff]
        %v2601 = vld [vmem:[#allocation8 + $0x2b8] sm:$0xff]
        %v2602 = vld [vmem:[#allocation8 + $0x2c0] sm:$0xff]
        %v2603 = vld [vmem:[#allocation8 + $0x2c8] sm:$0xff]
        %v2604 = vld [vmem:[#allocation8 + $0x2d0] sm:$0xff]
        %v2605 = vld [vmem:[#allocation8 + $0x2d8] sm:$0xff]
        %v2606 = vld [vmem:[#allocation8 + $0x2e0] sm:$0xff]
        %v2607 = vld [vmem:[#allocation8 + $0x2e8] sm:$0xff]
        %v2608 = vld [vmem:[#allocation8 + $0x2f0] sm:$0xff]
        %v2609 = vld [vmem:[#allocation8 + $0x2f8] sm:$0xff]
        %2610 = vmatprep.subr.mxu0 0.0
        %2611 = vmatpush1.msra.mxu0 %v2562
        %2612 = vmatprep.subr.mxu0 0.0
        %2613 = vmatpush1.msra.mxu0 %v2563
        %2614 = vmatprep.subr.mxu0 0.0
        %2615 = vmatpush1.msra.mxu0 %v2564
        %2616 = vmatprep.subr.mxu0 0.0
        %2617 = vmatpush1.msra.mxu0 %v2565
        %2618 = vmatprep.subr.mxu0 0.0
        %2619 = vmatpush1.msra.mxu0 %v2566
        %2620 = vmatprep.subr.mxu0 0.0
        %2621 = vmatpush1.msra.mxu0 %v2567
        %2622 = vmatprep.subr.mxu0 0.0
        %2623 = vmatpush1.msra.mxu0 %v2568
        %2624 = vmatprep.subr.mxu0 0.0
        %2625 = vmatpush1.msra.mxu0 %v2569
        %2626 = vmatprep.subr.mxu0 0.0
        %2627 = vmatpush1.msra.mxu0 %v2570
        %2628 = vmatprep.subr.mxu0 0.0
        %2629 = vmatpush1.msra.mxu0 %v2571
        %2630 = vmatprep.subr.mxu0 0.0
        %2631 = vmatpush1.msra.mxu0 %v2572
        %2632 = vmatprep.subr.mxu0 0.0
        %2633 = vmatpush1.msra.mxu0 %v2573
        %2634 = vmatprep.subr.mxu0 0.0
        %2635 = vmatpush1.msra.mxu0 %v2574
        %2636 = vmatprep.subr.mxu0 0.0
        %2637 = vmatpush1.msra.mxu0 %v2575
        %2638 = vmatprep.subr.mxu0 0.0
        %2639 = vmatpush1.msra.mxu0 %v2576
        %2640 = vmatprep.subr.mxu0 0.0
        %2641 = vmatpush1.msra.mxu0 %v2577
        %2642 = vmatprep.subr.mxu0 0.0
        %2643 = vmatpush1.msra.mxu0 %v2578
        %2644 = vmatprep.subr.mxu0 0.0
        %2645 = vmatpush1.msra.mxu0 %v2579
        %2646 = vmatprep.subr.mxu0 0.0
        %2647 = vmatpush1.msra.mxu0 %v2580
        %2648 = vmatprep.subr.mxu0 0.0
        %2649 = vmatpush1.msra.mxu0 %v2581
        %2650 = vmatprep.subr.mxu0 0.0
        %2651 = vmatpush1.msra.mxu0 %v2582
        %2652 = vmatprep.subr.mxu0 0.0
        %2653 = vmatpush1.msra.mxu0 %v2583
        %2654 = vmatprep.subr.mxu0 0.0
        %2655 = vmatpush1.msra.mxu0 %v2584
        %2656 = vmatprep.subr.mxu0 0.0
        %2657 = vmatpush1.msra.mxu0 %v2585
        %2658 = vmatprep.subr.mxu0 0.0
        %2659 = vmatpush1.msra.mxu0 %v2586
        %2660 = vmatprep.subr.mxu0 0.0
        %2661 = vmatpush1.msra.mxu0 %v2587
        %2662 = vmatprep.subr.mxu0 0.0
        %2663 = vmatpush1.msra.mxu0 %v2588
        %2664 = vmatprep.subr.mxu0 0.0
        %2665 = vmatpush1.msra.mxu0 %v2589
        %2666 = vmatprep.subr.mxu0 0.0
        %2667 = vmatpush1.msra.mxu0 %v2590
        %2668 = vmatprep.subr.mxu0 0.0
        %2669 = vmatpush1.msra.mxu0 %v2591
        %2670 = vmatprep.subr.mxu0 0.0
        %2671 = vmatpush1.msra.mxu0 %v2592
        %2672 = vmatprep.subr.mxu0 0.0
        %2673 = vmatpush1.msra.mxu0 %v2593
        %2674 = vmatprep.mubr.f32.mxu0 %v2444
        %2675 = vmatmul.mubr.f32.gmra.mrb[0].mxu0 %v2408
        %v2676 = vpop.f32.mrb[0].mxu0
        %v2677 = vadd.f32 0.0, %v2676
        %v2678 = vpop.f32.mrb[0].mxu0
        %2679 = vmatprep.mubr.f32.mxu0 %v2445
        %2680 = vmatmul.mubr.f32.gmra.mrb[0].mxu0 %v2409
        %v2681 = vpop.f32.mrb[0].mxu0
        %v2682 = vadd.f32 0.0, %v2681
        %v2683 = vpop.f32.mrb[0].mxu0
        %2684 = vmatprep.mubr.f32.mxu0 %v2446
        %2685 = vmatmul.mubr.f32.gmra.mrb[0].mxu0 %v2410
        %v2686 = vpop.f32.mrb[0].mxu0
        %v2687 = vadd.f32 0.0, %v2686
        %v2688 = vpop.f32.mrb[0].mxu0
        %2689 = vmatprep.mubr.f32.mxu0 %v2447
        %2690 = vmatmul.mubr.f32.gmra.mrb[0].mxu0 %v2411
        %v2691 = vpop.f32.mrb[0].mxu0
        %v2692 = vadd.f32 0.0, %v2691
        %v2693 = vpop.f32.mrb[0].mxu0
        %2694 = vmatprep.mubr.f32.mxu0 %v2448
        %2695 = vmatmul.mubr.f32.gmra.mrb[0].mxu0 %v2412
        %v2696 = vpop.f32.mrb[0].mxu0
        %v2697 = vadd.f32 0.0, %v2696
        %v2698 = vpop.f32.mrb[0].mxu0
        %2699 = vmatprep.mubr.f32.mxu0 %v2449
        %2700 = vmatmul.mubr.f32.gmra.mrb[0].mxu0 %v2413
        %v2701 = vpop.f32.mrb[0].mxu0
        %v2702 = vadd.f32 0.0, %v2701
        %v2703 = vpop.f32.mrb[0].mxu0
        %2704 = vmatprep.mubr.f32.mxu0 %v2450
        %2705 = vmatmul.mubr.f32.gmra.mrb[0].mxu0 %v2414
        %v2706 = vpop.f32.mrb[0].mxu0
        %v2707 = vadd.f32 0.0, %v2706
        %v2708 = vpop.f32.mrb[0].mxu0
        %2709 = vmatprep.mubr.f32.mxu0 %v2451
        %2710 = vmatmul.mubr.f32.gmra.mrb[0].mxu0 %v2415
        %v2711 = vpop.f32.mrb[0].mxu0
        %v2712 = vadd.f32 0.0, %v2711
        %v2713 = vpop.f32.mrb[0].mxu0
        %2714 = vmatprep.mubr.f32.mxu0 %v2452
        %2715 = vmatmul.mubr.f32.gmra.mrb[0].mxu0 %v2416
        %v2716 = vpop.f32.mrb[0].mxu0
        %v2717 = vadd.f32 0.0, %v2716
        %v2718 = vpop.f32.mrb[0].mxu0
        %2719 = vmatprep.mubr.f32.mxu0 %v2453
        %2720 = vmatmul.mubr.f32.gmra.mrb[0].mxu0 %v2417
        %v2721 = vpop.f32.mrb[0].mxu0
        %v2722 = vadd.f32 0.0, %v2721
        %v2723 = vpop.f32.mrb[0].mxu0
        %2724 = vmatprep.mubr.f32.mxu0 %v2454
        %2725 = vmatmul.mubr.f32.gmra.mrb[0].mxu0 %v2418
        %v2726 = vpop.f32.mrb[0].mxu0
        %v2727 = vadd.f32 0.0, %v2726
        %v2728 = vpop.f32.mrb[0].mxu0
        %2729 = vmatprep.mubr.f32.mxu0 %v2455
        %2730 = vmatmul.mubr.f32.gmra.mrb[0].mxu0 %v2419
        %v2731 = vpop.f32.mrb[0].mxu0
        %v2732 = vadd.f32 0.0, %v2731
        %v2733 = vpop.f32.mrb[0].mxu0
        %2734 = vmatprep.mubr.f32.mxu0 %v2456
        %2735 = vmatmul.mubr.f32.gmra.mrb[0].mxu0 %v2420
        %v2736 = vpop.f32.mrb[0].mxu0
        %v2737 = vadd.f32 0.0, %v2736
        %v2738 = vpop.f32.mrb[0].mxu0
        %2739 = vmatprep.mubr.f32.mxu0 %v2457
        %2740 = vmatmul.mubr.f32.gmra.mrb[0].mxu0 %v2421
        %v2741 = vpop.f32.mrb[0].mxu0
        %v2742 = vadd.f32 0.0, %v2741
        %v2743 = vpop.f32.mrb[0].mxu0
        %2744 = vmatprep.mubr.f32.mxu0 %v2458
        %2745 = vmatmul.mubr.f32.gmra.mrb[0].mxu0 %v2422
        %v2746 = vpop.f32.mrb[0].mxu0
        %v2747 = vadd.f32 0.0, %v2746
        %v2748 = vpop.f32.mrb[0].mxu0
        %2749 = vmatprep.mubr.f32.mxu0 %v2459
        %2750 = vmatmul.mubr.f32.gmra.mrb[0].mxu0 %v2423
        %v2751 = vpop.f32.mrb[0].mxu0
        %v2752 = vadd.f32 0.0, %v2751
        %v2753 = vpop.f32.mrb[0].mxu0
        %2754 = vmatprep.mubr.f32.mxu0 %v2460
        %2755 = vmatmul.mubr.f32.gmra.mrb[0].mxu0 %v2424
        %v2756 = vpop.f32.mrb[0].mxu0
        %v2757 = vadd.f32 0.0, %v2756
        %v2758 = vpop.f32.mrb[0].mxu0
        %2759 = vmatprep.mubr.f32.mxu0 %v2461
        %2760 = vmatmul.mubr.f32.gmra.mrb[0].mxu0 %v2425
        %v2761 = vpop.f32.mrb[0].mxu0
        %v2762 = vadd.f32 0.0, %v2761
        %v2763 = vpop.f32.mrb[0].mxu0
        %2764 = vmatprep.mubr.f32.mxu0 %v2462
        %2765 = vmatmul.mubr.f32.gmra.mrb[0].mxu0 %v2426
        %v2766 = vpop.f32.mrb[0].mxu0
        %v2767 = vadd.f32 0.0, %v2766
        %v2768 = vpop.f32.mrb[0].mxu0
        %2769 = vmatprep.mubr.f32.mxu0 %v2463
        %2770 = vmatmul.mubr.f32.gmra.mrb[0].mxu0 %v2427
        %v2771 = vpop.f32.mrb[0].mxu0
        %v2772 = vadd.f32 0.0, %v2771
        %v2773 = vpop.f32.mrb[0].mxu0
        %2774 = vmatprep.mubr.f32.mxu0 %v2464
        %2775 = vmatmul.mubr.f32.gmra.mrb[0].mxu0 %v2428
        %v2776 = vpop.f32.mrb[0].mxu0
        %v2777 = vadd.f32 0.0, %v2776
        %v2778 = vpop.f32.mrb[0].mxu0
        %2779 = vmatprep.mubr.f32.mxu0 %v2465
        %2780 = vmatmul.mubr.f32.gmra.mrb[0].mxu0 %v2429
        %v2781 = vpop.f32.mrb[0].mxu0
        %v2782 = vadd.f32 0.0, %v2781
        %v2783 = vpop.f32.mrb[0].mxu0
        %2784 = vmatprep.mubr.f32.mxu0 %v2466
        %2785 = vmatmul.mubr.f32.gmra.mrb[0].mxu0 %v2430
        %v2786 = vpop.f32.mrb[0].mxu0
        %v2787 = vadd.f32 0.0, %v2786
        %v2788 = vpop.f32.mrb[0].mxu0
        %2789 = vmatprep.mubr.f32.mxu0 %v2467
        %2790 = vmatmul.mubr.f32.gmra.mrb[0].mxu0 %v2431
        %v2791 = vpop.f32.mrb[0].mxu0
        %v2792 = vadd.f32 0.0, %v2791
        %v2793 = vpop.f32.mrb[0].mxu0
        %2794 = vmatprep.mubr.f32.mxu0 %v2468
        %2795 = vmatmul.mubr.f32.gmra.mrb[0].mxu0 %v2432
        %v2796 = vpop.f32.mrb[0].mxu0
        %v2797 = vadd.f32 0.0, %v2796
        %v2798 = vpop.f32.mrb[0].mxu0
        %2799 = vmatprep.mubr.f32.mxu0 %v2469
        %2800 = vmatmul.mubr.f32.gmra.mrb[0].mxu0 %v2433
        %v2801 = vpop.f32.mrb[0].mxu0
        %v2802 = vadd.f32 0.0, %v2801
        %v2803 = vpop.f32.mrb[0].mxu0
        %2804 = vmatprep.mubr.f32.mxu0 %v2470
        %2805 = vmatmul.mubr.f32.gmra.mrb[0].mxu0 %v2434
        %v2806 = vpop.f32.mrb[0].mxu0
        %v2807 = vadd.f32 0.0, %v2806
        %v2808 = vpop.f32.mrb[0].mxu0
        %2809 = vmatprep.mubr.f32.mxu0 %v2471
        %2810 = vmatmul.mubr.f32.gmra.mrb[0].mxu0 %v2435
        %v2811 = vpop.f32.mrb[0].mxu0
        %v2812 = vadd.f32 0.0, %v2811
        %v2813 = vpop.f32.mrb[0].mxu0
        %2814 = vmatprep.mubr.f32.mxu0 %v2472
        %2815 = vmatmul.mubr.f32.gmra.mrb[0].mxu0 %v2436
        %v2816 = vpop.f32.mrb[0].mxu0
        %v2817 = vadd.f32 0.0, %v2816
        %v2818 = vpop.f32.mrb[0].mxu0
        %2819 = vmatprep.mubr.f32.mxu0 %v2473
        %2820 = vmatmul.mubr.f32.gmra.mrb[0].mxu0 %v2437
        %v2821 = vpop.f32.mrb[0].mxu0
        %v2822 = vadd.f32 0.0, %v2821
        %v2823 = vpop.f32.mrb[0].mxu0
        %2824 = vmatprep.mubr.f32.mxu0 %v2474
        %2825 = vmatmul.mubr.f32.gmra.mrb[0].mxu0 %v2438
        %v2826 = vpop.f32.mrb[0].mxu0
        %v2827 = vadd.f32 0.0, %v2826
        %v2828 = vpop.f32.mrb[0].mxu0
        %2829 = vmatprep.mubr.f32.mxu0 %v2475
        %2830 = vmatmul.mubr.f32.gmra.mrb[0].mxu0 %v2439
        %v2831 = vpop.f32.mrb[0].mxu0
        %v2832 = vadd.f32 0.0, %v2831
        %v2833 = vpop.f32.mrb[0].mxu0
        %2834 = vdwg.mxu0
        %2835 = vmatprep.subr.mxu0 0.0
        %2836 = vmatpush1.msra.mxu0 %v2594
        %2837 = vmatprep.subr.mxu0 0.0
        %2838 = vmatpush1.msra.mxu0 %v2595
        %2839 = vmatprep.subr.mxu0 0.0
        %2840 = vmatpush1.msra.mxu0 %v2596
        %2841 = vmatprep.subr.mxu0 0.0
        %2842 = vmatpush1.msra.mxu0 %v2597
        %2843 = vmatprep.subr.mxu0 0.0
        %2844 = vmatpush1.msra.mxu0 %v2598
        %2845 = vmatprep.subr.mxu0 0.0
        %2846 = vmatpush1.msra.mxu0 %v2599
        %2847 = vmatprep.subr.mxu0 0.0
        %2848 = vmatpush1.msra.mxu0 %v2600
        %2849 = vmatprep.subr.mxu0 0.0
        %2850 = vmatpush1.msra.mxu0 %v2601
        %2851 = vmatprep.subr.mxu0 0.0
        %2852 = vmatpush1.msra.mxu0 %v2602
        %2853 = vmatprep.subr.mxu0 0.0
        %2854 = vmatpush1.msra.mxu0 %v2603
        %2855 = vmatprep.subr.mxu0 0.0
        %2856 = vmatpush1.msra.mxu0 %v2604
        %2857 = vmatprep.subr.mxu0 0.0
        %2858 = vmatpush1.msra.mxu0 %v2605
        %2859 = vmatprep.subr.mxu0 0.0
        %2860 = vmatpush1.msra.mxu0 %v2606
        %2861 = vmatprep.subr.mxu0 0.0
        %2862 = vmatpush1.msra.mxu0 %v2607
        %2863 = vmatprep.subr.mxu0 0.0
        %2864 = vmatpush1.msra.mxu0 %v2608
        %2865 = vmatprep.subr.mxu0 0.0
        %2866 = vmatpush1.msra.mxu0 %v2609
        %2867 = vmatprep.subr.mxu0 0.0
        %2868 = vmatpush1.msra.mxu0 0.0
        %2869 = vmatprep.subr.mxu0 0.0
        %2870 = vmatpush1.msra.mxu0 0.0
        %2871 = vmatprep.subr.mxu0 0.0
        %2872 = vmatpush1.msra.mxu0 0.0
        %2873 = vmatprep.subr.mxu0 0.0
        %2874 = vmatpush1.msra.mxu0 0.0
        %2875 = vmatprep.subr.mxu0 0.0
        %2876 = vmatpush1.msra.mxu0 0.0
        %2877 = vmatprep.subr.mxu0 0.0
        %2878 = vmatpush1.msra.mxu0 0.0
        %2879 = vmatprep.subr.mxu0 0.0
        %2880 = vmatpush1.msra.mxu0 0.0
        %2881 = vmatprep.subr.mxu0 0.0
        %2882 = vmatpush1.msra.mxu0 0.0
        %2883 = vmatprep.subr.mxu0 0.0
        %2884 = vmatpush1.msra.mxu0 0.0
        %2885 = vmatprep.subr.mxu0 0.0
        %2886 = vmatpush1.msra.mxu0 0.0
        %2887 = vmatprep.subr.mxu0 0.0
        %2888 = vmatpush1.msra.mxu0 0.0
        %2889 = vmatprep.subr.mxu0 0.0
        %2890 = vmatpush1.msra.mxu0 0.0
        %2891 = vmatprep.subr.mxu0 0.0
        %2892 = vmatpush1.msra.mxu0 0.0
        %2893 = vmatprep.subr.mxu0 0.0
        %2894 = vmatpush1.msra.mxu0 0.0
        %2895 = vmatprep.subr.mxu0 0.0
        %2896 = vmatpush1.msra.mxu0 0.0
        %2897 = vmatprep.subr.mxu0 0.0
        %2898 = vmatpush1.msra.mxu0 0.0
        %2899 = vmatprep.mubr.f32.mxu0 0.0
        %2900 = vmatmul.mubr.f32.gmra.mrb[0].mxu0 %v2480
        %v2901 = vpop.f32.mrb[0].mxu0
        %v2902 = vadd.f32 %v2677, %v2901
        %v2903 = vpop.f32.mrb[0].mxu0
        %2904 = vmatprep.mubr.f32.mxu0 0.0
        %2905 = vmatmul.mubr.f32.gmra.mrb[0].mxu0 %v2481
        %v2906 = vpop.f32.mrb[0].mxu0
        %v2907 = vadd.f32 %v2682, %v2906
        %v2908 = vpop.f32.mrb[0].mxu0
        %2909 = vmatprep.mubr.f32.mxu0 0.0
        %2910 = vmatmul.mubr.f32.gmra.mrb[0].mxu0 %v2482
        %v2911 = vpop.f32.mrb[0].mxu0
        %v2912 = vadd.f32 %v2687, %v2911
        %v2913 = vpop.f32.mrb[0].mxu0
        %2914 = vmatprep.mubr.f32.mxu0 0.0
        %2915 = vmatmul.mubr.f32.gmra.mrb[0].mxu0 %v2483
        %v2916 = vpop.f32.mrb[0].mxu0
        %v2917 = vadd.f32 %v2692, %v2916
        %v2918 = vpop.f32.mrb[0].mxu0
        %2919 = vmatprep.mubr.f32.mxu0 0.0
        %2920 = vmatmul.mubr.f32.gmra.mrb[0].mxu0 %v2484
        %v2921 = vpop.f32.mrb[0].mxu0
        %v2922 = vadd.f32 %v2697, %v2921
        %v2923 = vpop.f32.mrb[0].mxu0
        %2924 = vmatprep.mubr.f32.mxu0 0.0
        %2925 = vmatmul.mubr.f32.gmra.mrb[0].mxu0 %v2485
        %v2926 = vpop.f32.mrb[0].mxu0
        %v2927 = vadd.f32 %v2702, %v2926
        %v2928 = vpop.f32.mrb[0].mxu0
        %2929 = vmatprep.mubr.f32.mxu0 0.0
        %2930 = vmatmul.mubr.f32.gmra.mrb[0].mxu0 %v2486
        %v2931 = vpop.f32.mrb[0].mxu0
        %v2932 = vadd.f32 %v2707, %v2931
        %v2933 = vpop.f32.mrb[0].mxu0
        %2934 = vmatprep.mubr.f32.mxu0 0.0
        %2935 = vmatmul.mubr.f32.gmra.mrb[0].mxu0 %v2487
        %v2936 = vpop.f32.mrb[0].mxu0
        %v2937 = vadd.f32 %v2712, %v2936
        %v2938 = vpop.f32.mrb[0].mxu0
        %2939 = vmatprep.mubr.f32.mxu0 0.0
        %2940 = vmatmul.mubr.f32.gmra.mrb[0].mxu0 %v2488
        %v2941 = vpop.f32.mrb[0].mxu0
        %v2942 = vadd.f32 %v2717, %v2941
        %v2943 = vpop.f32.mrb[0].mxu0
        %2944 = vmatprep.mubr.f32.mxu0 0.0
        %2945 = vmatmul.mubr.f32.gmra.mrb[0].mxu0 %v2489
        %v2946 = vpop.f32.mrb[0].mxu0
        %v2947 = vadd.f32 %v2722, %v2946
        %v2948 = vpop.f32.mrb[0].mxu0
        %2949 = vmatprep.mubr.f32.mxu0 0.0
        %2950 = vmatmul.mubr.f32.gmra.mrb[0].mxu0 %v2490
        %v2951 = vpop.f32.mrb[0].mxu0
        %v2952 = vadd.f32 %v2727, %v2951
        %v2953 = vpop.f32.mrb[0].mxu0
        %2954 = vmatprep.mubr.f32.mxu0 0.0
        %2955 = vmatmul.mubr.f32.gmra.mrb[0].mxu0 %v2491
        %v2956 = vpop.f32.mrb[0].mxu0
        %v2957 = vadd.f32 %v2732, %v2956
        %v2958 = vpop.f32.mrb[0].mxu0
        %2959 = vmatprep.mubr.f32.mxu0 0.0
        %2960 = vmatmul.mubr.f32.gmra.mrb[0].mxu0 %v2492
        %v2961 = vpop.f32.mrb[0].mxu0
        %v2962 = vadd.f32 %v2737, %v2961
        %v2963 = vpop.f32.mrb[0].mxu0
        %2964 = vmatprep.mubr.f32.mxu0 0.0
        %2965 = vmatmul.mubr.f32.gmra.mrb[0].mxu0 %v2493
        %v2966 = vpop.f32.mrb[0].mxu0
        %v2967 = vadd.f32 %v2742, %v2966
        %v2968 = vpop.f32.mrb[0].mxu0
        %2969 = vmatprep.mubr.f32.mxu0 0.0
        %2970 = vmatmul.mubr.f32.gmra.mrb[0].mxu0 %v2494
        %v2971 = vpop.f32.mrb[0].mxu0
        %v2972 = vadd.f32 %v2747, %v2971
        %v2973 = vpop.f32.mrb[0].mxu0
        %2974 = vmatprep.mubr.f32.mxu0 0.0
        %2975 = vmatmul.mubr.f32.gmra.mrb[0].mxu0 %v2495
        %v2976 = vpop.f32.mrb[0].mxu0
        %v2977 = vadd.f32 %v2752, %v2976
        %v2978 = vpop.f32.mrb[0].mxu0
        %2979 = vmatprep.mubr.f32.mxu0 0.0
        %2980 = vmatmul.mubr.f32.gmra.mrb[0].mxu0 %v2496
        %v2981 = vpop.f32.mrb[0].mxu0
        %v2982 = vadd.f32 %v2757, %v2981
        %v2983 = vpop.f32.mrb[0].mxu0
        %2984 = vmatprep.mubr.f32.mxu0 0.0
        %2985 = vmatmul.mubr.f32.gmra.mrb[0].mxu0 %v2497
        %v2986 = vpop.f32.mrb[0].mxu0
        %v2987 = vadd.f32 %v2762, %v2986
        %v2988 = vpop.f32.mrb[0].mxu0
        %2989 = vmatprep.mubr.f32.mxu0 0.0
        %2990 = vmatmul.mubr.f32.gmra.mrb[0].mxu0 %v2498
        %v2991 = vpop.f32.mrb[0].mxu0
        %v2992 = vadd.f32 %v2767, %v2991
        %v2993 = vpop.f32.mrb[0].mxu0
        %2994 = vmatprep.mubr.f32.mxu0 0.0
        %2995 = vmatmul.mubr.f32.gmra.mrb[0].mxu0 %v2499
        %v2996 = vpop.f32.mrb[0].mxu0
        %v2997 = vadd.f32 %v2772, %v2996
        %v2998 = vpop.f32.mrb[0].mxu0
        %2999 = vmatprep.mubr.f32.mxu0 0.0
        %3000 = vmatmul.mubr.f32.gmra.mrb[0].mxu0 %v2500
        %v3001 = vpop.f32.mrb[0].mxu0
        %v3002 = vadd.f32 %v2777, %v3001
        %v3003 = vpop.f32.mrb[0].mxu0
        %3004 = vmatprep.mubr.f32.mxu0 0.0
        %3005 = vmatmul.mubr.f32.gmra.mrb[0].mxu0 %v2501
        %v3006 = vpop.f32.mrb[0].mxu0
        %v3007 = vadd.f32 %v2782, %v3006
        %v3008 = vpop.f32.mrb[0].mxu0
        %3009 = vmatprep.mubr.f32.mxu0 0.0
        %3010 = vmatmul.mubr.f32.gmra.mrb[0].mxu0 %v2502
        %v3011 = vpop.f32.mrb[0].mxu0
        %v3012 = vadd.f32 %v2787, %v3011
        %v3013 = vpop.f32.mrb[0].mxu0
        %3014 = vmatprep.mubr.f32.mxu0 0.0
        %3015 = vmatmul.mubr.f32.gmra.mrb[0].mxu0 %v2503
        %v3016 = vpop.f32.mrb[0].mxu0
        %v3017 = vadd.f32 %v2792, %v3016
        %v3018 = vpop.f32.mrb[0].mxu0
        %3019 = vmatprep.mubr.f32.mxu0 0.0
        %3020 = vmatmul.mubr.f32.gmra.mrb[0].mxu0 %v2504
        %v3021 = vpop.f32.mrb[0].mxu0
        %v3022 = vadd.f32 %v2797, %v3021
        %v3023 = vpop.f32.mrb[0].mxu0
        %3024 = vmatprep.mubr.f32.mxu0 0.0
        %3025 = vmatmul.mubr.f32.gmra.mrb[0].mxu0 %v2505
        %v3026 = vpop.f32.mrb[0].mxu0
        %v3027 = vadd.f32 %v2802, %v3026
        %v3028 = vpop.f32.mrb[0].mxu0
        %3029 = vmatprep.mubr.f32.mxu0 0.0
        %3030 = vmatmul.mubr.f32.gmra.mrb[0].mxu0 %v2506
        %v3031 = vpop.f32.mrb[0].mxu0
        %v3032 = vadd.f32 %v2807, %v3031
        %v3033 = vpop.f32.mrb[0].mxu0
        %3034 = vmatprep.mubr.f32.mxu0 0.0
        %3035 = vmatmul.mubr.f32.gmra.mrb[0].mxu0 %v2507
        %v3036 = vpop.f32.mrb[0].mxu0
        %v3037 = vadd.f32 %v2812, %v3036
        %v3038 = vpop.f32.mrb[0].mxu0
        %3039 = vmatprep.mubr.f32.mxu0 0.0
        %3040 = vmatmul.mubr.f32.gmra.mrb[0].mxu0 %v2508
        %v3041 = vpop.f32.mrb[0].mxu0
        %v3042 = vadd.f32 %v2817, %v3041
        %v3043 = vpop.f32.mrb[0].mxu0
        %3044 = vmatprep.mubr.f32.mxu0 0.0
        %3045 = vmatmul.mubr.f32.gmra.mrb[0].mxu0 %v2509
        %v3046 = vpop.f32.mrb[0].mxu0
        %v3047 = vadd.f32 %v2822, %v3046
        %v3048 = vpop.f32.mrb[0].mxu0
        %3049 = vmatprep.mubr.f32.mxu0 0.0
        %3050 = vmatmul.mubr.f32.gmra.mrb[0].mxu0 %v2510
        %v3051 = vpop.f32.mrb[0].mxu0
        %v3052 = vadd.f32 %v2827, %v3051
        %v3053 = vpop.f32.mrb[0].mxu0
        %3054 = vmatprep.mubr.f32.mxu0 0.0
        %3055 = vmatmul.mubr.f32.gmra.mrb[0].mxu0 %v2511
        %v3056 = vpop.f32.mrb[0].mxu0
        %v3057 = vadd.f32 %v2832, %v3056
        %v3058 = vpop.f32.mrb[0].mxu0
        %3059 = vdwg.mxu0
        %3060 = vmatprep.subr.mxu0 0.0
        %3061 = vmatpush1.msra.mxu0 %v2514
        %3062 = vmatprep.subr.mxu0 0.0
        %3063 = vmatpush1.msra.mxu0 %v2515
        %3064 = vmatprep.subr.mxu0 0.0
        %3065 = vmatpush1.msra.mxu0 %v2516
        %3066 = vmatprep.subr.mxu0 0.0
        %3067 = vmatpush1.msra.mxu0 %v2517
        %3068 = vmatprep.subr.mxu0 0.0
        %3069 = vmatpush1.msra.mxu0 %v2518
        %3070 = vmatprep.subr.mxu0 0.0
        %3071 = vmatpush1.msra.mxu0 %v2519
        %3072 = vmatprep.subr.mxu0 0.0
        %3073 = vmatpush1.msra.mxu0 %v2520
        %3074 = vmatprep.subr.mxu0 0.0
        %3075 = vmatpush1.msra.mxu0 %v2521
        %3076 = vmatprep.subr.mxu0 0.0
        %3077 = vmatpush1.msra.mxu0 %v2522
        %3078 = vmatprep.subr.mxu0 0.0
        %3079 = vmatpush1.msra.mxu0 %v2523
        %3080 = vmatprep.subr.mxu0 0.0
        %3081 = vmatpush1.msra.mxu0 %v2524
        %3082 = vmatprep.subr.mxu0 0.0
        %3083 = vmatpush1.msra.mxu0 %v2525
        %3084 = vmatprep.subr.mxu0 0.0
        %3085 = vmatpush1.msra.mxu0 %v2526
        %3086 = vmatprep.subr.mxu0 0.0
        %3087 = vmatpush1.msra.mxu0 %v2527
        %3088 = vmatprep.subr.mxu0 0.0
        %3089 = vmatpush1.msra.mxu0 %v2528
        %3090 = vmatprep.subr.mxu0 0.0
        %3091 = vmatpush1.msra.mxu0 %v2529
        %3092 = vmatprep.subr.mxu0 0.0
        %3093 = vmatpush1.msra.mxu0 %v2530
        %3094 = vmatprep.subr.mxu0 0.0
        %3095 = vmatpush1.msra.mxu0 %v2531
        %3096 = vmatprep.subr.mxu0 0.0
        %3097 = vmatpush1.msra.mxu0 %v2532
        %3098 = vmatprep.subr.mxu0 0.0
        %3099 = vmatpush1.msra.mxu0 %v2533
        %3100 = vmatprep.subr.mxu0 0.0
        %3101 = vmatpush1.msra.mxu0 %v2534
        %3102 = vmatprep.subr.mxu0 0.0
        %3103 = vmatpush1.msra.mxu0 %v2535
        %3104 = vmatprep.subr.mxu0 0.0
        %3105 = vmatpush1.msra.mxu0 %v2536
        %3106 = vmatprep.subr.mxu0 0.0
        %3107 = vmatpush1.msra.mxu0 %v2537
        %3108 = vmatprep.subr.mxu0 0.0
        %3109 = vmatpush1.msra.mxu0 %v2538
        %3110 = vmatprep.subr.mxu0 0.0
        %3111 = vmatpush1.msra.mxu0 %v2539
        %3112 = vmatprep.subr.mxu0 0.0
        %3113 = vmatpush1.msra.mxu0 %v2540
        %3114 = vmatprep.subr.mxu0 0.0
        %3115 = vmatpush1.msra.mxu0 %v2541
        %3116 = vmatprep.subr.mxu0 0.0
        %3117 = vmatpush1.msra.mxu0 %v2542
        %3118 = vmatprep.subr.mxu0 0.0
        %3119 = vmatpush1.msra.mxu0 %v2543
        %3120 = vmatprep.subr.mxu0 0.0
        %3121 = vmatpush1.msra.mxu0 %v2544
        %3122 = vmatprep.subr.mxu0 0.0
        %3123 = vmatpush1.msra.mxu0 %v2545
        %3124 = vmatprep.mubr.f32.mxu0 %v2442
        %3125 = vmatmul.mubr.f32.gmra.mrb[0].mxu0 %v2406
        %v3126 = vpop.f32.mrb[0].mxu0
        %v3127 = vadd.f32 %v2902, %v3126
        %v3128 = vpop.f32.mrb[0].mxu0
        %3129 = vmatprep.mubr.f32.mxu0 %v2443
        %3130 = vmatmul.mubr.f32.gmra.mrb[0].mxu0 %v2407
        %v3131 = vpop.f32.mrb[0].mxu0
        %v3132 = vadd.f32 %v2907, %v3131
        %v3133 = vpop.f32.mrb[0].mxu0
        %3134 = vmatprep.mubr.f32.mxu0 %v2444
        %3135 = vmatmul.mubr.f32.gmra.mrb[0].mxu0 %v2408
        %v3136 = vpop.f32.mrb[0].mxu0
        %v3137 = vadd.f32 %v2912, %v3136
        %v3138 = vpop.f32.mrb[0].mxu0
        %3139 = vmatprep.mubr.f32.mxu0 %v2445
        %3140 = vmatmul.mubr.f32.gmra.mrb[0].mxu0 %v2409
        %v3141 = vpop.f32.mrb[0].mxu0
        %v3142 = vadd.f32 %v2917, %v3141
        %v3143 = vpop.f32.mrb[0].mxu0
        %3144 = vmatprep.mubr.f32.mxu0 %v2446
        %3145 = vmatmul.mubr.f32.gmra.mrb[0].mxu0 %v2410
        %v3146 = vpop.f32.mrb[0].mxu0
        %v3147 = vadd.f32 %v2922, %v3146
        %v3148 = vpop.f32.mrb[0].mxu0
        %3149 = vmatprep.mubr.f32.mxu0 %v2447
        %3150 = vmatmul.mubr.f32.gmra.mrb[0].mxu0 %v2411
        %v3151 = vpop.f32.mrb[0].mxu0
        %v3152 = vadd.f32 %v2927, %v3151
        %v3153 = vpop.f32.mrb[0].mxu0
        %3154 = vmatprep.mubr.f32.mxu0 %v2448
        %3155 = vmatmul.mubr.f32.gmra.mrb[0].mxu0 %v2412
        %v3156 = vpop.f32.mrb[0].mxu0
        %v3157 = vadd.f32 %v2932, %v3156
        %v3158 = vpop.f32.mrb[0].mxu0
        %3159 = vmatprep.mubr.f32.mxu0 %v2449
        %3160 = vmatmul.mubr.f32.gmra.mrb[0].mxu0 %v2413
        %v3161 = vpop.f32.mrb[0].mxu0
        %v3162 = vadd.f32 %v2937, %v3161
        %v3163 = vpop.f32.mrb[0].mxu0
        %3164 = vmatprep.mubr.f32.mxu0 %v2450
        %3165 = vmatmul.mubr.f32.gmra.mrb[0].mxu0 %v2414
        %v3166 = vpop.f32.mrb[0].mxu0
        %v3167 = vadd.f32 %v2942, %v3166
        %v3168 = vpop.f32.mrb[0].mxu0
        %3169 = vmatprep.mubr.f32.mxu0 %v2451
        %3170 = vmatmul.mubr.f32.gmra.mrb[0].mxu0 %v2415
        %v3171 = vpop.f32.mrb[0].mxu0
        %v3172 = vadd.f32 %v2947, %v3171
        %v3173 = vpop.f32.mrb[0].mxu0
        %3174 = vmatprep.mubr.f32.mxu0 %v2452
        %3175 = vmatmul.mubr.f32.gmra.mrb[0].mxu0 %v2416
        %v3176 = vpop.f32.mrb[0].mxu0
        %v3177 = vadd.f32 %v2952, %v3176
        %v3178 = vpop.f32.mrb[0].mxu0
        %3179 = vmatprep.mubr.f32.mxu0 %v2453
        %3180 = vmatmul.mubr.f32.gmra.mrb[0].mxu0 %v2417
        %v3181 = vpop.f32.mrb[0].mxu0
        %v3182 = vadd.f32 %v2957, %v3181
        %v3183 = vpop.f32.mrb[0].mxu0
        %3184 = vmatprep.mubr.f32.mxu0 %v2454
        %3185 = vmatmul.mubr.f32.gmra.mrb[0].mxu0 %v2418
        %v3186 = vpop.f32.mrb[0].mxu0
        %v3187 = vadd.f32 %v2962, %v3186
        %v3188 = vpop.f32.mrb[0].mxu0
        %3189 = vmatprep.mubr.f32.mxu0 %v2455
        %3190 = vmatmul.mubr.f32.gmra.mrb[0].mxu0 %v2419
        %v3191 = vpop.f32.mrb[0].mxu0
        %v3192 = vadd.f32 %v2967, %v3191
        %v3193 = vpop.f32.mrb[0].mxu0
        %3194 = vmatprep.mubr.f32.mxu0 %v2456
        %3195 = vmatmul.mubr.f32.gmra.mrb[0].mxu0 %v2420
        %v3196 = vpop.f32.mrb[0].mxu0
        %v3197 = vadd.f32 %v2972, %v3196
        %v3198 = vpop.f32.mrb[0].mxu0
        %3199 = vmatprep.mubr.f32.mxu0 %v2457
        %3200 = vmatmul.mubr.f32.gmra.mrb[0].mxu0 %v2421
        %v3201 = vpop.f32.mrb[0].mxu0
        %v3202 = vadd.f32 %v2977, %v3201
        %v3203 = vpop.f32.mrb[0].mxu0
        %3204 = vmatprep.mubr.f32.mxu0 %v2458
        %3205 = vmatmul.mubr.f32.gmra.mrb[0].mxu0 %v2422
        %v3206 = vpop.f32.mrb[0].mxu0
        %v3207 = vadd.f32 %v2982, %v3206
        %v3208 = vpop.f32.mrb[0].mxu0
        %3209 = vmatprep.mubr.f32.mxu0 %v2459
        %3210 = vmatmul.mubr.f32.gmra.mrb[0].mxu0 %v2423
        %v3211 = vpop.f32.mrb[0].mxu0
        %v3212 = vadd.f32 %v2987, %v3211
        %v3213 = vpop.f32.mrb[0].mxu0
        %3214 = vmatprep.mubr.f32.mxu0 %v2460
        %3215 = vmatmul.mubr.f32.gmra.mrb[0].mxu0 %v2424
        %v3216 = vpop.f32.mrb[0].mxu0
        %v3217 = vadd.f32 %v2992, %v3216
        %v3218 = vpop.f32.mrb[0].mxu0
        %3219 = vmatprep.mubr.f32.mxu0 %v2461
        %3220 = vmatmul.mubr.f32.gmra.mrb[0].mxu0 %v2425
        %v3221 = vpop.f32.mrb[0].mxu0
        %v3222 = vadd.f32 %v2997, %v3221
        %v3223 = vpop.f32.mrb[0].mxu0
        %3224 = vmatprep.mubr.f32.mxu0 %v2462
        %3225 = vmatmul.mubr.f32.gmra.mrb[0].mxu0 %v2426
        %v3226 = vpop.f32.mrb[0].mxu0
        %v3227 = vadd.f32 %v3002, %v3226
        %v3228 = vpop.f32.mrb[0].mxu0
        %3229 = vmatprep.mubr.f32.mxu0 %v2463
        %3230 = vmatmul.mubr.f32.gmra.mrb[0].mxu0 %v2427
        %v3231 = vpop.f32.mrb[0].mxu0
        %v3232 = vadd.f32 %v3007, %v3231
        %v3233 = vpop.f32.mrb[0].mxu0
        %3234 = vmatprep.mubr.f32.mxu0 %v2464
        %3235 = vmatmul.mubr.f32.gmra.mrb[0].mxu0 %v2428
        %v3236 = vpop.f32.mrb[0].mxu0
        %v3237 = vadd.f32 %v3012, %v3236
        %v3238 = vpop.f32.mrb[0].mxu0
        %3239 = vmatprep.mubr.f32.mxu0 %v2465
        %3240 = vmatmul.mubr.f32.gmra.mrb[0].mxu0 %v2429
        %v3241 = vpop.f32.mrb[0].mxu0
        %v3242 = vadd.f32 %v3017, %v3241
        %v3243 = vpop.f32.mrb[0].mxu0
        %3244 = vmatprep.mubr.f32.mxu0 %v2466
        %3245 = vmatmul.mubr.f32.gmra.mrb[0].mxu0 %v2430
        %v3246 = vpop.f32.mrb[0].mxu0
        %v3247 = vadd.f32 %v3022, %v3246
        %v3248 = vpop.f32.mrb[0].mxu0
        %3249 = vmatprep.mubr.f32.mxu0 %v2467
        %3250 = vmatmul.mubr.f32.gmra.mrb[0].mxu0 %v2431
        %v3251 = vpop.f32.mrb[0].mxu0
        %v3252 = vadd.f32 %v3027, %v3251
        %v3253 = vpop.f32.mrb[0].mxu0
        %3254 = vmatprep.mubr.f32.mxu0 %v2468
        %3255 = vmatmul.mubr.f32.gmra.mrb[0].mxu0 %v2432
        %v3256 = vpop.f32.mrb[0].mxu0
        %v3257 = vadd.f32 %v3032, %v3256
        %v3258 = vpop.f32.mrb[0].mxu0
        %3259 = vmatprep.mubr.f32.mxu0 %v2469
        %3260 = vmatmul.mubr.f32.gmra.mrb[0].mxu0 %v2433
        %v3261 = vpop.f32.mrb[0].mxu0
        %v3262 = vadd.f32 %v3037, %v3261
        %v3263 = vpop.f32.mrb[0].mxu0
        %3264 = vmatprep.mubr.f32.mxu0 %v2470
        %3265 = vmatmul.mubr.f32.gmra.mrb[0].mxu0 %v2434
        %v3266 = vpop.f32.mrb[0].mxu0
        %v3267 = vadd.f32 %v3042, %v3266
        %v3268 = vpop.f32.mrb[0].mxu0
        %3269 = vmatprep.mubr.f32.mxu0 %v2471
        %3270 = vmatmul.mubr.f32.gmra.mrb[0].mxu0 %v2435
        %v3271 = vpop.f32.mrb[0].mxu0
        %v3272 = vadd.f32 %v3047, %v3271
        %v3273 = vpop.f32.mrb[0].mxu0
        %3274 = vmatprep.mubr.f32.mxu0 %v2472
        %3275 = vmatmul.mubr.f32.gmra.mrb[0].mxu0 %v2436
        %v3276 = vpop.f32.mrb[0].mxu0
        %v3277 = vadd.f32 %v3052, %v3276
        %v3278 = vpop.f32.mrb[0].mxu0
        %3279 = vmatprep.mubr.f32.mxu0 %v2473
        %3280 = vmatmul.mubr.f32.gmra.mrb[0].mxu0 %v2437
        %v3281 = vpop.f32.mrb[0].mxu0
        %v3282 = vadd.f32 %v3057, %v3281
        %v3283 = vpop.f32.mrb[0].mxu0
        %3284 = vdwg.mxu0
        %3285 = vmatprep.subr.mxu0 0.0
        %3286 = vmatpush1.msra.mxu0 %v2546
        %3287 = vmatprep.subr.mxu0 0.0
        %3288 = vmatpush1.msra.mxu0 %v2547
        %3289 = vmatprep.subr.mxu0 0.0
        %3290 = vmatpush1.msra.mxu0 %v2548
        %3291 = vmatprep.subr.mxu0 0.0
        %3292 = vmatpush1.msra.mxu0 %v2549
        %3293 = vmatprep.subr.mxu0 0.0
        %3294 = vmatpush1.msra.mxu0 %v2550
        %3295 = vmatprep.subr.mxu0 0.0
        %3296 = vmatpush1.msra.mxu0 %v2551
        %3297 = vmatprep.subr.mxu0 0.0
        %3298 = vmatpush1.msra.mxu0 %v2552
        %3299 = vmatprep.subr.mxu0 0.0
        %3300 = vmatpush1.msra.mxu0 %v2553
        %3301 = vmatprep.subr.mxu0 0.0
        %3302 = vmatpush1.msra.mxu0 %v2554
        %3303 = vmatprep.subr.mxu0 0.0
        %3304 = vmatpush1.msra.mxu0 %v2555
        %3305 = vmatprep.subr.mxu0 0.0
        %3306 = vmatpush1.msra.mxu0 %v2556
        %3307 = vmatprep.subr.mxu0 0.0
        %3308 = vmatpush1.msra.mxu0 %v2557
        %3309 = vmatprep.subr.mxu0 0.0
        %3310 = vmatpush1.msra.mxu0 %v2558
        %3311 = vmatprep.subr.mxu0 0.0
        %3312 = vmatpush1.msra.mxu0 %v2559
        %3313 = vmatprep.subr.mxu0 0.0
        %3314 = vmatpush1.msra.mxu0 %v2560
        %3315 = vmatprep.subr.mxu0 0.0
        %3316 = vmatpush1.msra.mxu0 %v2561
        %3317 = vmatprep.subr.mxu0 0.0
        %3318 = vmatpush1.msra.mxu0 0.0
        %3319 = vmatprep.subr.mxu0 0.0
        %3320 = vmatpush1.msra.mxu0 0.0
        %3321 = vmatprep.subr.mxu0 0.0
        %3322 = vmatpush1.msra.mxu0 0.0
        %3323 = vmatprep.subr.mxu0 0.0
        %3324 = vmatpush1.msra.mxu0 0.0
        %3325 = vmatprep.subr.mxu0 0.0
        %3326 = vmatpush1.msra.mxu0 0.0
        %3327 = vmatprep.subr.mxu0 0.0
        %3328 = vmatpush1.msra.mxu0 0.0
        %3329 = vmatprep.subr.mxu0 0.0
        %3330 = vmatpush1.msra.mxu0 0.0
        %3331 = vmatprep.subr.mxu0 0.0
        %3332 = vmatpush1.msra.mxu0 0.0
        %3333 = vmatprep.subr.mxu0 0.0
        %3334 = vmatpush1.msra.mxu0 0.0
        %3335 = vmatprep.subr.mxu0 0.0
        %3336 = vmatpush1.msra.mxu0 0.0
        %3337 = vmatprep.subr.mxu0 0.0
        %3338 = vmatpush1.msra.mxu0 0.0
        %3339 = vmatprep.subr.mxu0 0.0
        %3340 = vmatpush1.msra.mxu0 0.0
        %3341 = vmatprep.subr.mxu0 0.0
        %3342 = vmatpush1.msra.mxu0 0.0
        %3343 = vmatprep.subr.mxu0 0.0
        %3344 = vmatpush1.msra.mxu0 0.0
        %3345 = vmatprep.subr.mxu0 0.0
        %3346 = vmatpush1.msra.mxu0 0.0
        %3347 = vmatprep.subr.mxu0 0.0
        %3348 = vmatpush1.msra.mxu0 0.0
        %3349 = vmatprep.mubr.f32.mxu0 0.0
        %3350 = vmatmul.mubr.f32.gmra.mrb[0].mxu0 %v2478
        %v3351 = vpop.f32.mrb[0].mxu0
        %v3352 = vadd.f32 %v3127, %v3351
        %v3353 = vpop.f32.mrb[0].mxu0
        %3354 = vmatprep.mubr.f32.mxu0 0.0
        %3355 = vmatmul.mubr.f32.gmra.mrb[0].mxu0 %v2479
        %v3356 = vpop.f32.mrb[0].mxu0
        %v3357 = vadd.f32 %v3132, %v3356
        %v3358 = vpop.f32.mrb[0].mxu0
        %3359 = vmatprep.mubr.f32.mxu0 0.0
        %3360 = vmatmul.mubr.f32.gmra.mrb[0].mxu0 %v2480
        %v3361 = vpop.f32.mrb[0].mxu0
        %v3362 = vadd.f32 %v3137, %v3361
        %v3363 = vpop.f32.mrb[0].mxu0
        %3364 = vmatprep.mubr.f32.mxu0 0.0
        %3365 = vmatmul.mubr.f32.gmra.mrb[0].mxu0 %v2481
        %v3366 = vpop.f32.mrb[0].mxu0
        %v3367 = vadd.f32 %v3142, %v3366
        %v3368 = vpop.f32.mrb[0].mxu0
        %3369 = vmatprep.mubr.f32.mxu0 0.0
        %3370 = vmatmul.mubr.f32.gmra.mrb[0].mxu0 %v2482
        %v3371 = vpop.f32.mrb[0].mxu0
        %v3372 = vadd.f32 %v3147, %v3371
        %v3373 = vpop.f32.mrb[0].mxu0
        %3374 = vmatprep.mubr.f32.mxu0 0.0
        %3375 = vmatmul.mubr.f32.gmra.mrb[0].mxu0 %v2483
        %v3376 = vpop.f32.mrb[0].mxu0
        %v3377 = vadd.f32 %v3152, %v3376
        %v3378 = vpop.f32.mrb[0].mxu0
        %3379 = vmatprep.mubr.f32.mxu0 0.0
        %3380 = vmatmul.mubr.f32.gmra.mrb[0].mxu0 %v2484
        %v3381 = vpop.f32.mrb[0].mxu0
        %v3382 = vadd.f32 %v3157, %v3381
        %v3383 = vpop.f32.mrb[0].mxu0
        %3384 = vmatprep.mubr.f32.mxu0 0.0
        %3385 = vmatmul.mubr.f32.gmra.mrb[0].mxu0 %v2485
        %v3386 = vpop.f32.mrb[0].mxu0
        %v3387 = vadd.f32 %v3162, %v3386
        %v3388 = vpop.f32.mrb[0].mxu0
        %3389 = vmatprep.mubr.f32.mxu0 0.0
        %3390 = vmatmul.mubr.f32.gmra.mrb[0].mxu0 %v2486
        %v3391 = vpop.f32.mrb[0].mxu0
        %v3392 = vadd.f32 %v3167, %v3391
        %v3393 = vpop.f32.mrb[0].mxu0
        %3394 = vmatprep.mubr.f32.mxu0 0.0
        %3395 = vmatmul.mubr.f32.gmra.mrb[0].mxu0 %v2487
        %v3396 = vpop.f32.mrb[0].mxu0
        %v3397 = vadd.f32 %v3172, %v3396
        %v3398 = vpop.f32.mrb[0].mxu0
        %3399 = vmatprep.mubr.f32.mxu0 0.0
        %3400 = vmatmul.mubr.f32.gmra.mrb[0].mxu0 %v2488
        %v3401 = vpop.f32.mrb[0].mxu0
        %v3402 = vadd.f32 %v3177, %v3401
        %v3403 = vpop.f32.mrb[0].mxu0
        %3404 = vmatprep.mubr.f32.mxu0 0.0
        %3405 = vmatmul.mubr.f32.gmra.mrb[0].mxu0 %v2489
        %v3406 = vpop.f32.mrb[0].mxu0
        %v3407 = vadd.f32 %v3182, %v3406
        %v3408 = vpop.f32.mrb[0].mxu0
        %3409 = vmatprep.mubr.f32.mxu0 0.0
        %3410 = vmatmul.mubr.f32.gmra.mrb[0].mxu0 %v2490
        %v3411 = vpop.f32.mrb[0].mxu0
        %v3412 = vadd.f32 %v3187, %v3411
        %v3413 = vpop.f32.mrb[0].mxu0
        %3414 = vmatprep.mubr.f32.mxu0 0.0
        %3415 = vmatmul.mubr.f32.gmra.mrb[0].mxu0 %v2491
        %v3416 = vpop.f32.mrb[0].mxu0
        %v3417 = vadd.f32 %v3192, %v3416
        %v3418 = vpop.f32.mrb[0].mxu0
        %3419 = vmatprep.mubr.f32.mxu0 0.0
        %3420 = vmatmul.mubr.f32.gmra.mrb[0].mxu0 %v2492
        %v3421 = vpop.f32.mrb[0].mxu0
        %v3422 = vadd.f32 %v3197, %v3421
        %v3423 = vpop.f32.mrb[0].mxu0
        %3424 = vmatprep.mubr.f32.mxu0 0.0
        %3425 = vmatmul.mubr.f32.gmra.mrb[0].mxu0 %v2493
        %v3426 = vpop.f32.mrb[0].mxu0
        %v3427 = vadd.f32 %v3202, %v3426
        %v3428 = vpop.f32.mrb[0].mxu0
        %3429 = vmatprep.mubr.f32.mxu0 0.0
        %3430 = vmatmul.mubr.f32.gmra.mrb[0].mxu0 %v2494
        %v3431 = vpop.f32.mrb[0].mxu0
        %v3432 = vadd.f32 %v3207, %v3431
        %v3433 = vpop.f32.mrb[0].mxu0
        %3434 = vmatprep.mubr.f32.mxu0 0.0
        %3435 = vmatmul.mubr.f32.gmra.mrb[0].mxu0 %v2495
        %v3436 = vpop.f32.mrb[0].mxu0
        %v3437 = vadd.f32 %v3212, %v3436
        %v3438 = vpop.f32.mrb[0].mxu0
        %3439 = vmatprep.mubr.f32.mxu0 0.0
        %3440 = vmatmul.mubr.f32.gmra.mrb[0].mxu0 %v2496
        %v3441 = vpop.f32.mrb[0].mxu0
        %v3442 = vadd.f32 %v3217, %v3441
        %v3443 = vpop.f32.mrb[0].mxu0
        %3444 = vmatprep.mubr.f32.mxu0 0.0
        %3445 = vmatmul.mubr.f32.gmra.mrb[0].mxu0 %v2497
        %v3446 = vpop.f32.mrb[0].mxu0
        %v3447 = vadd.f32 %v3222, %v3446
        %v3448 = vpop.f32.mrb[0].mxu0
        %3449 = vmatprep.mubr.f32.mxu0 0.0
        %3450 = vmatmul.mubr.f32.gmra.mrb[0].mxu0 %v2498
        %v3451 = vpop.f32.mrb[0].mxu0
        %v3452 = vadd.f32 %v3227, %v3451
        %v3453 = vpop.f32.mrb[0].mxu0
        %3454 = vmatprep.mubr.f32.mxu0 0.0
        %3455 = vmatmul.mubr.f32.gmra.mrb[0].mxu0 %v2499
        %v3456 = vpop.f32.mrb[0].mxu0
        %v3457 = vadd.f32 %v3232, %v3456
        %v3458 = vpop.f32.mrb[0].mxu0
        %3459 = vmatprep.mubr.f32.mxu0 0.0
        %3460 = vmatmul.mubr.f32.gmra.mrb[0].mxu0 %v2500
        %v3461 = vpop.f32.mrb[0].mxu0
        %v3462 = vadd.f32 %v3237, %v3461
        %v3463 = vpop.f32.mrb[0].mxu0
        %3464 = vmatprep.mubr.f32.mxu0 0.0
        %3465 = vmatmul.mubr.f32.gmra.mrb[0].mxu0 %v2501
        %v3466 = vpop.f32.mrb[0].mxu0
        %v3467 = vadd.f32 %v3242, %v3466
        %v3468 = vpop.f32.mrb[0].mxu0
        %3469 = vmatprep.mubr.f32.mxu0 0.0
        %3470 = vmatmul.mubr.f32.gmra.mrb[0].mxu0 %v2502
        %v3471 = vpop.f32.mrb[0].mxu0
        %v3472 = vadd.f32 %v3247, %v3471
        %v3473 = vpop.f32.mrb[0].mxu0
        %3474 = vmatprep.mubr.f32.mxu0 0.0
        %3475 = vmatmul.mubr.f32.gmra.mrb[0].mxu0 %v2503
        %v3476 = vpop.f32.mrb[0].mxu0
        %v3477 = vadd.f32 %v3252, %v3476
        %v3478 = vpop.f32.mrb[0].mxu0
        %3479 = vmatprep.mubr.f32.mxu0 0.0
        %3480 = vmatmul.mubr.f32.gmra.mrb[0].mxu0 %v2504
        %v3481 = vpop.f32.mrb[0].mxu0
        %v3482 = vadd.f32 %v3257, %v3481
        %v3483 = vpop.f32.mrb[0].mxu0
        %3484 = vmatprep.mubr.f32.mxu0 0.0
        %3485 = vmatmul.mubr.f32.gmra.mrb[0].mxu0 %v2505
        %v3486 = vpop.f32.mrb[0].mxu0
        %v3487 = vadd.f32 %v3262, %v3486
        %v3488 = vpop.f32.mrb[0].mxu0
        %3489 = vmatprep.mubr.f32.mxu0 0.0
        %3490 = vmatmul.mubr.f32.gmra.mrb[0].mxu0 %v2506
        %v3491 = vpop.f32.mrb[0].mxu0
        %v3492 = vadd.f32 %v3267, %v3491
        %v3493 = vpop.f32.mrb[0].mxu0
        %3494 = vmatprep.mubr.f32.mxu0 0.0
        %3495 = vmatmul.mubr.f32.gmra.mrb[0].mxu0 %v2507
        %v3496 = vpop.f32.mrb[0].mxu0
        %v3497 = vadd.f32 %v3272, %v3496
        %v3498 = vpop.f32.mrb[0].mxu0
        %3499 = vmatprep.mubr.f32.mxu0 0.0
        %3500 = vmatmul.mubr.f32.gmra.mrb[0].mxu0 %v2508
        %v3501 = vpop.f32.mrb[0].mxu0
        %v3502 = vadd.f32 %v3277, %v3501
        %v3503 = vpop.f32.mrb[0].mxu0
        %3504 = vmatprep.mubr.f32.mxu0 0.0
        %3505 = vmatmul.mubr.f32.gmra.mrb[0].mxu0 %v2509
        %v3506 = vpop.f32.mrb[0].mxu0
        %v3507 = vadd.f32 %v3282, %v3506
        %v3508 = vpop.f32.mrb[0].mxu0
        %3509 = vdwg.mxu0
        %v3510 = vld [vmem:[#allocation8 + $0x300] sm:$0xff]
        %v3511 = vld [vmem:[#allocation8 + $0x308] sm:$0xff]
        %v3512 = vld [vmem:[#allocation8 + $0x310] sm:$0xff]
        %v3513 = vld [vmem:[#allocation8 + $0x318] sm:$0xff]
        %v3514 = vld [vmem:[#allocation8 + $0x320] sm:$0xff]
        %v3515 = vld [vmem:[#allocation8 + $0x328] sm:$0xff]
        %v3516 = vld [vmem:[#allocation8 + $0x330] sm:$0xff]
        %v3517 = vld [vmem:[#allocation8 + $0x338] sm:$0xff]
        %v3518 = vld [vmem:[#allocation8 + $0x340] sm:$0xff]
        %v3519 = vld [vmem:[#allocation8 + $0x348] sm:$0xff]
        %v3520 = vld [vmem:[#allocation8 + $0x350] sm:$0xff]
        %v3521 = vld [vmem:[#allocation8 + $0x358] sm:$0xff]
        %v3522 = vld [vmem:[#allocation8 + $0x360] sm:$0xff]
        %v3523 = vld [vmem:[#allocation8 + $0x368] sm:$0xff]
        %v3524 = vld [vmem:[#allocation8 + $0x370] sm:$0xff]
        %v3525 = vld [vmem:[#allocation8 + $0x378] sm:$0xff]
        %v3526 = vld [vmem:[#allocation8 + $0x380] sm:$0xff]
        %v3527 = vld [vmem:[#allocation8 + $0x388] sm:$0xff]
        %v3528 = vld [vmem:[#allocation8 + $0x390] sm:$0xff]
        %v3529 = vld [vmem:[#allocation8 + $0x398] sm:$0xff]
        %v3530 = vld [vmem:[#allocation8 + $0x3a0] sm:$0xff]
        %v3531 = vld [vmem:[#allocation8 + $0x3a8] sm:$0xff]
        %v3532 = vld [vmem:[#allocation8 + $0x3b0] sm:$0xff]
        %v3533 = vld [vmem:[#allocation8 + $0x3b8] sm:$0xff]
        %v3534 = vld [vmem:[#allocation8 + $0x3c0] sm:$0xff]
        %v3535 = vld [vmem:[#allocation8 + $0x3c8] sm:$0xff]
        %v3536 = vld [vmem:[#allocation8 + $0x3d0] sm:$0xff]
        %v3537 = vld [vmem:[#allocation8 + $0x3d8] sm:$0xff]
        %v3538 = vld [vmem:[#allocation8 + $0x3e0] sm:$0xff]
        %v3539 = vld [vmem:[#allocation8 + $0x3e8] sm:$0xff]
        %v3540 = vld [vmem:[#allocation8 + $0x3f0] sm:$0xff]
        %v3541 = vld [vmem:[#allocation8 + $0x3f8] sm:$0xff]
        %v3542 = vld [vmem:[#allocation8 + $0x400] sm:$0xff]
        %v3543 = vld [vmem:[#allocation8 + $0x408] sm:$0xff]
        %v3544 = vld [vmem:[#allocation8 + $0x410] sm:$0xff]
        %v3545 = vld [vmem:[#allocation8 + $0x418] sm:$0xff]
        %v3546 = vld [vmem:[#allocation8 + $0x420] sm:$0xff]
        %v3547 = vld [vmem:[#allocation8 + $0x428] sm:$0xff]
        %v3548 = vld [vmem:[#allocation8 + $0x430] sm:$0xff]
        %v3549 = vld [vmem:[#allocation8 + $0x438] sm:$0xff]
        %v3550 = vld [vmem:[#allocation8 + $0x440] sm:$0xff]
        %v3551 = vld [vmem:[#allocation8 + $0x448] sm:$0xff]
        %v3552 = vld [vmem:[#allocation8 + $0x450] sm:$0xff]
        %v3553 = vld [vmem:[#allocation8 + $0x458] sm:$0xff]
        %v3554 = vld [vmem:[#allocation8 + $0x460] sm:$0xff]
        %v3555 = vld [vmem:[#allocation8 + $0x468] sm:$0xff]
        %v3556 = vld [vmem:[#allocation8 + $0x470] sm:$0xff]
        %v3557 = vld [vmem:[#allocation8 + $0x478] sm:$0xff]
        %3558 = vmatprep.subr.mxu0 0.0
        %3559 = vmatpush1.msra.mxu0 %v3510
        %3560 = vmatprep.subr.mxu0 0.0
        %3561 = vmatpush1.msra.mxu0 %v3511
        %3562 = vmatprep.subr.mxu0 0.0
        %3563 = vmatpush1.msra.mxu0 %v3512
        %3564 = vmatprep.subr.mxu0 0.0
        %3565 = vmatpush1.msra.mxu0 %v3513
        %3566 = vmatprep.subr.mxu0 0.0
        %3567 = vmatpush1.msra.mxu0 %v3514
        %3568 = vmatprep.subr.mxu0 0.0
        %3569 = vmatpush1.msra.mxu0 %v3515
        %3570 = vmatprep.subr.mxu0 0.0
        %3571 = vmatpush1.msra.mxu0 %v3516
        %3572 = vmatprep.subr.mxu0 0.0
        %3573 = vmatpush1.msra.mxu0 %v3517
        %3574 = vmatprep.subr.mxu0 0.0
        %3575 = vmatpush1.msra.mxu0 %v3518
        %3576 = vmatprep.subr.mxu0 0.0
        %3577 = vmatpush1.msra.mxu0 %v3519
        %3578 = vmatprep.subr.mxu0 0.0
        %3579 = vmatpush1.msra.mxu0 %v3520
        %3580 = vmatprep.subr.mxu0 0.0
        %3581 = vmatpush1.msra.mxu0 %v3521
        %3582 = vmatprep.subr.mxu0 0.0
        %3583 = vmatpush1.msra.mxu0 %v3522
        %3584 = vmatprep.subr.mxu0 0.0
        %3585 = vmatpush1.msra.mxu0 %v3523
        %3586 = vmatprep.subr.mxu0 0.0
        %3587 = vmatpush1.msra.mxu0 %v3524
        %3588 = vmatprep.subr.mxu0 0.0
        %3589 = vmatpush1.msra.mxu0 %v3525
        %3590 = vmatprep.subr.mxu0 0.0
        %3591 = vmatpush1.msra.mxu0 %v3526
        %3592 = vmatprep.subr.mxu0 0.0
        %3593 = vmatpush1.msra.mxu0 %v3527
        %3594 = vmatprep.subr.mxu0 0.0
        %3595 = vmatpush1.msra.mxu0 %v3528
        %3596 = vmatprep.subr.mxu0 0.0
        %3597 = vmatpush1.msra.mxu0 %v3529
        %3598 = vmatprep.subr.mxu0 0.0
        %3599 = vmatpush1.msra.mxu0 %v3530
        %3600 = vmatprep.subr.mxu0 0.0
        %3601 = vmatpush1.msra.mxu0 %v3531
        %3602 = vmatprep.subr.mxu0 0.0
        %3603 = vmatpush1.msra.mxu0 %v3532
        %3604 = vmatprep.subr.mxu0 0.0
        %3605 = vmatpush1.msra.mxu0 %v3533
        %3606 = vmatprep.subr.mxu0 0.0
        %3607 = vmatpush1.msra.mxu0 %v3534
        %3608 = vmatprep.subr.mxu0 0.0
        %3609 = vmatpush1.msra.mxu0 %v3535
        %3610 = vmatprep.subr.mxu0 0.0
        %3611 = vmatpush1.msra.mxu0 %v3536
        %3612 = vmatprep.subr.mxu0 0.0
        %3613 = vmatpush1.msra.mxu0 %v3537
        %3614 = vmatprep.subr.mxu0 0.0
        %3615 = vmatpush1.msra.mxu0 %v3538
        %3616 = vmatprep.subr.mxu0 0.0
        %3617 = vmatpush1.msra.mxu0 %v3539
        %3618 = vmatprep.subr.mxu0 0.0
        %3619 = vmatpush1.msra.mxu0 %v3540
        %3620 = vmatprep.subr.mxu0 0.0
        %3621 = vmatpush1.msra.mxu0 %v3541
        %3622 = vmatprep.mubr.f32.mxu0 %v2446
        %3623 = vmatmul.mubr.f32.gmra.mrb[0].mxu0 %v2410
        %v3624 = vpop.f32.mrb[0].mxu0
        %v3625 = vadd.f32 0.0, %v3624
        %v3626 = vpop.f32.mrb[0].mxu0
        %3627 = vmatprep.mubr.f32.mxu0 %v2447
        %3628 = vmatmul.mubr.f32.gmra.mrb[0].mxu0 %v2411
        %v3629 = vpop.f32.mrb[0].mxu0
        %v3630 = vadd.f32 0.0, %v3629
        %v3631 = vpop.f32.mrb[0].mxu0
        %3632 = vmatprep.mubr.f32.mxu0 %v2448
        %3633 = vmatmul.mubr.f32.gmra.mrb[0].mxu0 %v2412
        %v3634 = vpop.f32.mrb[0].mxu0
        %v3635 = vadd.f32 0.0, %v3634
        %v3636 = vpop.f32.mrb[0].mxu0
        %3637 = vmatprep.mubr.f32.mxu0 %v2449
        %3638 = vmatmul.mubr.f32.gmra.mrb[0].mxu0 %v2413
        %v3639 = vpop.f32.mrb[0].mxu0
        %v3640 = vadd.f32 0.0, %v3639
        %v3641 = vpop.f32.mrb[0].mxu0
        %3642 = vmatprep.mubr.f32.mxu0 %v2450
        %3643 = vmatmul.mubr.f32.gmra.mrb[0].mxu0 %v2414
        %v3644 = vpop.f32.mrb[0].mxu0
        %v3645 = vadd.f32 0.0, %v3644
        %v3646 = vpop.f32.mrb[0].mxu0
        %3647 = vmatprep.mubr.f32.mxu0 %v2451
        %3648 = vmatmul.mubr.f32.gmra.mrb[0].mxu0 %v2415
        %v3649 = vpop.f32.mrb[0].mxu0
        %v3650 = vadd.f32 0.0, %v3649
        %v3651 = vpop.f32.mrb[0].mxu0
        %3652 = vmatprep.mubr.f32.mxu0 %v2452
        %3653 = vmatmul.mubr.f32.gmra.mrb[0].mxu0 %v2416
        %v3654 = vpop.f32.mrb[0].mxu0
        %v3655 = vadd.f32 0.0, %v3654
        %v3656 = vpop.f32.mrb[0].mxu0
        %3657 = vmatprep.mubr.f32.mxu0 %v2453
        %3658 = vmatmul.mubr.f32.gmra.mrb[0].mxu0 %v2417
        %v3659 = vpop.f32.mrb[0].mxu0
        %v3660 = vadd.f32 0.0, %v3659
        %v3661 = vpop.f32.mrb[0].mxu0
        %3662 = vmatprep.mubr.f32.mxu0 %v2454
        %3663 = vmatmul.mubr.f32.gmra.mrb[0].mxu0 %v2418
        %v3664 = vpop.f32.mrb[0].mxu0
        %v3665 = vadd.f32 0.0, %v3664
        %v3666 = vpop.f32.mrb[0].mxu0
        %3667 = vmatprep.mubr.f32.mxu0 %v2455
        %3668 = vmatmul.mubr.f32.gmra.mrb[0].mxu0 %v2419
        %v3669 = vpop.f32.mrb[0].mxu0
        %v3670 = vadd.f32 0.0, %v3669
        %v3671 = vpop.f32.mrb[0].mxu0
        %3672 = vmatprep.mubr.f32.mxu0 %v2456
        %3673 = vmatmul.mubr.f32.gmra.mrb[0].mxu0 %v2420
        %v3674 = vpop.f32.mrb[0].mxu0
        %v3675 = vadd.f32 0.0, %v3674
        %v3676 = vpop.f32.mrb[0].mxu0
        %3677 = vmatprep.mubr.f32.mxu0 %v2457
        %3678 = vmatmul.mubr.f32.gmra.mrb[0].mxu0 %v2421
        %v3679 = vpop.f32.mrb[0].mxu0
        %v3680 = vadd.f32 0.0, %v3679
        %v3681 = vpop.f32.mrb[0].mxu0
        %3682 = vmatprep.mubr.f32.mxu0 %v2458
        %3683 = vmatmul.mubr.f32.gmra.mrb[0].mxu0 %v2422
        %v3684 = vpop.f32.mrb[0].mxu0
        %v3685 = vadd.f32 0.0, %v3684
        %v3686 = vpop.f32.mrb[0].mxu0
        %3687 = vmatprep.mubr.f32.mxu0 %v2459
        %3688 = vmatmul.mubr.f32.gmra.mrb[0].mxu0 %v2423
        %v3689 = vpop.f32.mrb[0].mxu0
        %v3690 = vadd.f32 0.0, %v3689
        %v3691 = vpop.f32.mrb[0].mxu0
        %3692 = vmatprep.mubr.f32.mxu0 %v2460
        %3693 = vmatmul.mubr.f32.gmra.mrb[0].mxu0 %v2424
        %v3694 = vpop.f32.mrb[0].mxu0
        %v3695 = vadd.f32 0.0, %v3694
        %v3696 = vpop.f32.mrb[0].mxu0
        %3697 = vmatprep.mubr.f32.mxu0 %v2461
        %3698 = vmatmul.mubr.f32.gmra.mrb[0].mxu0 %v2425
        %v3699 = vpop.f32.mrb[0].mxu0
        %v3700 = vadd.f32 0.0, %v3699
        %v3701 = vpop.f32.mrb[0].mxu0
        %3702 = vmatprep.mubr.f32.mxu0 %v2462
        %3703 = vmatmul.mubr.f32.gmra.mrb[0].mxu0 %v2426
        %v3704 = vpop.f32.mrb[0].mxu0
        %v3705 = vadd.f32 0.0, %v3704
        %v3706 = vpop.f32.mrb[0].mxu0
        %3707 = vmatprep.mubr.f32.mxu0 %v2463
        %3708 = vmatmul.mubr.f32.gmra.mrb[0].mxu0 %v2427
        %v3709 = vpop.f32.mrb[0].mxu0
        %v3710 = vadd.f32 0.0, %v3709
        %v3711 = vpop.f32.mrb[0].mxu0
        %3712 = vmatprep.mubr.f32.mxu0 %v2464
        %3713 = vmatmul.mubr.f32.gmra.mrb[0].mxu0 %v2428
        %v3714 = vpop.f32.mrb[0].mxu0
        %v3715 = vadd.f32 0.0, %v3714
        %v3716 = vpop.f32.mrb[0].mxu0
        %3717 = vmatprep.mubr.f32.mxu0 %v2465
        %3718 = vmatmul.mubr.f32.gmra.mrb[0].mxu0 %v2429
        %v3719 = vpop.f32.mrb[0].mxu0
        %v3720 = vadd.f32 0.0, %v3719
        %v3721 = vpop.f32.mrb[0].mxu0
        %3722 = vmatprep.mubr.f32.mxu0 %v2466
        %3723 = vmatmul.mubr.f32.gmra.mrb[0].mxu0 %v2430
        %v3724 = vpop.f32.mrb[0].mxu0
        %v3725 = vadd.f32 0.0, %v3724
        %v3726 = vpop.f32.mrb[0].mxu0
        %3727 = vmatprep.mubr.f32.mxu0 %v2467
        %3728 = vmatmul.mubr.f32.gmra.mrb[0].mxu0 %v2431
        %v3729 = vpop.f32.mrb[0].mxu0
        %v3730 = vadd.f32 0.0, %v3729
        %v3731 = vpop.f32.mrb[0].mxu0
        %3732 = vmatprep.mubr.f32.mxu0 %v2468
        %3733 = vmatmul.mubr.f32.gmra.mrb[0].mxu0 %v2432
        %v3734 = vpop.f32.mrb[0].mxu0
        %v3735 = vadd.f32 0.0, %v3734
        %v3736 = vpop.f32.mrb[0].mxu0
        %3737 = vmatprep.mubr.f32.mxu0 %v2469
        %3738 = vmatmul.mubr.f32.gmra.mrb[0].mxu0 %v2433
        %v3739 = vpop.f32.mrb[0].mxu0
        %v3740 = vadd.f32 0.0, %v3739
        %v3741 = vpop.f32.mrb[0].mxu0
        %3742 = vmatprep.mubr.f32.mxu0 %v2470
        %3743 = vmatmul.mubr.f32.gmra.mrb[0].mxu0 %v2434
        %v3744 = vpop.f32.mrb[0].mxu0
        %v3745 = vadd.f32 0.0, %v3744
        %v3746 = vpop.f32.mrb[0].mxu0
        %3747 = vmatprep.mubr.f32.mxu0 %v2471
        %3748 = vmatmul.mubr.f32.gmra.mrb[0].mxu0 %v2435
        %v3749 = vpop.f32.mrb[0].mxu0
        %v3750 = vadd.f32 0.0, %v3749
        %v3751 = vpop.f32.mrb[0].mxu0
        %3752 = vmatprep.mubr.f32.mxu0 %v2472
        %3753 = vmatmul.mubr.f32.gmra.mrb[0].mxu0 %v2436
        %v3754 = vpop.f32.mrb[0].mxu0
        %v3755 = vadd.f32 0.0, %v3754
        %v3756 = vpop.f32.mrb[0].mxu0
        %3757 = vmatprep.mubr.f32.mxu0 %v2473
        %3758 = vmatmul.mubr.f32.gmra.mrb[0].mxu0 %v2437
        %v3759 = vpop.f32.mrb[0].mxu0
        %v3760 = vadd.f32 0.0, %v3759
        %v3761 = vpop.f32.mrb[0].mxu0
        %3762 = vmatprep.mubr.f32.mxu0 %v2474
        %3763 = vmatmul.mubr.f32.gmra.mrb[0].mxu0 %v2438
        %v3764 = vpop.f32.mrb[0].mxu0
        %v3765 = vadd.f32 0.0, %v3764
        %v3766 = vpop.f32.mrb[0].mxu0
        %3767 = vmatprep.mubr.f32.mxu0 %v2475
        %3768 = vmatmul.mubr.f32.gmra.mrb[0].mxu0 %v2439
        %v3769 = vpop.f32.mrb[0].mxu0
        %v3770 = vadd.f32 0.0, %v3769
        %v3771 = vpop.f32.mrb[0].mxu0
        %3772 = vmatprep.mubr.f32.mxu0 %v2476
        %3773 = vmatmul.mubr.f32.gmra.mrb[0].mxu0 %v2440
        %v3774 = vpop.f32.mrb[0].mxu0
        %v3775 = vadd.f32 0.0, %v3774
        %v3776 = vpop.f32.mrb[0].mxu0
        %3777 = vmatprep.mubr.f32.mxu0 %v2477
        %3778 = vmatmul.mubr.f32.gmra.mrb[0].mxu0 %v2441
        %v3779 = vpop.f32.mrb[0].mxu0
        %v3780 = vadd.f32 0.0, %v3779
        %v3781 = vpop.f32.mrb[0].mxu0
        %3782 = vdwg.mxu0
        %3783 = vmatprep.subr.mxu0 0.0
        %3784 = vmatpush1.msra.mxu0 %v3542
        %3785 = vmatprep.subr.mxu0 0.0
        %3786 = vmatpush1.msra.mxu0 %v3543
        %3787 = vmatprep.subr.mxu0 0.0
        %3788 = vmatpush1.msra.mxu0 %v3544
        %3789 = vmatprep.subr.mxu0 0.0
        %3790 = vmatpush1.msra.mxu0 %v3545
        %3791 = vmatprep.subr.mxu0 0.0
        %3792 = vmatpush1.msra.mxu0 %v3546
        %3793 = vmatprep.subr.mxu0 0.0
        %3794 = vmatpush1.msra.mxu0 %v3547
        %3795 = vmatprep.subr.mxu0 0.0
        %3796 = vmatpush1.msra.mxu0 %v3548
        %3797 = vmatprep.subr.mxu0 0.0
        %3798 = vmatpush1.msra.mxu0 %v3549
        %3799 = vmatprep.subr.mxu0 0.0
        %3800 = vmatpush1.msra.mxu0 %v3550
        %3801 = vmatprep.subr.mxu0 0.0
        %3802 = vmatpush1.msra.mxu0 %v3551
        %3803 = vmatprep.subr.mxu0 0.0
        %3804 = vmatpush1.msra.mxu0 %v3552
        %3805 = vmatprep.subr.mxu0 0.0
        %3806 = vmatpush1.msra.mxu0 %v3553
        %3807 = vmatprep.subr.mxu0 0.0
        %3808 = vmatpush1.msra.mxu0 %v3554
        %3809 = vmatprep.subr.mxu0 0.0
        %3810 = vmatpush1.msra.mxu0 %v3555
        %3811 = vmatprep.subr.mxu0 0.0
        %3812 = vmatpush1.msra.mxu0 %v3556
        %3813 = vmatprep.subr.mxu0 0.0
        %3814 = vmatpush1.msra.mxu0 %v3557
        %3815 = vmatprep.subr.mxu0 0.0
        %3816 = vmatpush1.msra.mxu0 0.0
        %3817 = vmatprep.subr.mxu0 0.0
        %3818 = vmatpush1.msra.mxu0 0.0
        %3819 = vmatprep.subr.mxu0 0.0
        %3820 = vmatpush1.msra.mxu0 0.0
        %3821 = vmatprep.subr.mxu0 0.0
        %3822 = vmatpush1.msra.mxu0 0.0
        %3823 = vmatprep.subr.mxu0 0.0
        %3824 = vmatpush1.msra.mxu0 0.0
        %3825 = vmatprep.subr.mxu0 0.0
        %3826 = vmatpush1.msra.mxu0 0.0
        %3827 = vmatprep.subr.mxu0 0.0
        %3828 = vmatpush1.msra.mxu0 0.0
        %3829 = vmatprep.subr.mxu0 0.0
        %3830 = vmatpush1.msra.mxu0 0.0
        %3831 = vmatprep.subr.mxu0 0.0
        %3832 = vmatpush1.msra.mxu0 0.0
        %3833 = vmatprep.subr.mxu0 0.0
        %3834 = vmatpush1.msra.mxu0 0.0
        %3835 = vmatprep.subr.mxu0 0.0
        %3836 = vmatpush1.msra.mxu0 0.0
        %3837 = vmatprep.subr.mxu0 0.0
        %3838 = vmatpush1.msra.mxu0 0.0
        %3839 = vmatprep.subr.mxu0 0.0
        %3840 = vmatpush1.msra.mxu0 0.0
        %3841 = vmatprep.subr.mxu0 0.0
        %3842 = vmatpush1.msra.mxu0 0.0
        %3843 = vmatprep.subr.mxu0 0.0
        %3844 = vmatpush1.msra.mxu0 0.0
        %3845 = vmatprep.subr.mxu0 0.0
        %3846 = vmatpush1.msra.mxu0 0.0
        %3847 = vmatprep.mubr.f32.mxu0 0.0
        %3848 = vmatmul.mubr.f32.gmra.mrb[0].mxu0 %v2482
        %v3849 = vpop.f32.mrb[0].mxu0
        %v3850 = vadd.f32 %v3625, %v3849
        %v3851 = vpop.f32.mrb[0].mxu0
        %3852 = vmatprep.mubr.f32.mxu0 0.0
        %3853 = vmatmul.mubr.f32.gmra.mrb[0].mxu0 %v2483
        %v3854 = vpop.f32.mrb[0].mxu0
        %v3855 = vadd.f32 %v3630, %v3854
        %v3856 = vpop.f32.mrb[0].mxu0
        %3857 = vmatprep.mubr.f32.mxu0 0.0
        %3858 = vmatmul.mubr.f32.gmra.mrb[0].mxu0 %v2484
        %v3859 = vpop.f32.mrb[0].mxu0
        %v3860 = vadd.f32 %v3635, %v3859
        %v3861 = vpop.f32.mrb[0].mxu0
        %3862 = vmatprep.mubr.f32.mxu0 0.0
        %3863 = vmatmul.mubr.f32.gmra.mrb[0].mxu0 %v2485
        %v3864 = vpop.f32.mrb[0].mxu0
        %v3865 = vadd.f32 %v3640, %v3864
        %v3866 = vpop.f32.mrb[0].mxu0
        %3867 = vmatprep.mubr.f32.mxu0 0.0
        %3868 = vmatmul.mubr.f32.gmra.mrb[0].mxu0 %v2486
        %v3869 = vpop.f32.mrb[0].mxu0
        %v3870 = vadd.f32 %v3645, %v3869
        %v3871 = vpop.f32.mrb[0].mxu0
        %3872 = vmatprep.mubr.f32.mxu0 0.0
        %3873 = vmatmul.mubr.f32.gmra.mrb[0].mxu0 %v2487
        %v3874 = vpop.f32.mrb[0].mxu0
        %v3875 = vadd.f32 %v3650, %v3874
        %v3876 = vpop.f32.mrb[0].mxu0
        %3877 = vmatprep.mubr.f32.mxu0 0.0
        %3878 = vmatmul.mubr.f32.gmra.mrb[0].mxu0 %v2488
        %v3879 = vpop.f32.mrb[0].mxu0
        %v3880 = vadd.f32 %v3655, %v3879
        %v3881 = vpop.f32.mrb[0].mxu0
        %3882 = vmatprep.mubr.f32.mxu0 0.0
        %3883 = vmatmul.mubr.f32.gmra.mrb[0].mxu0 %v2489
        %v3884 = vpop.f32.mrb[0].mxu0
        %v3885 = vadd.f32 %v3660, %v3884
        %v3886 = vpop.f32.mrb[0].mxu0
        %3887 = vmatprep.mubr.f32.mxu0 0.0
        %3888 = vmatmul.mubr.f32.gmra.mrb[0].mxu0 %v2490
        %v3889 = vpop.f32.mrb[0].mxu0
        %v3890 = vadd.f32 %v3665, %v3889
        %v3891 = vpop.f32.mrb[0].mxu0
        %3892 = vmatprep.mubr.f32.mxu0 0.0
        %3893 = vmatmul.mubr.f32.gmra.mrb[0].mxu0 %v2491
        %v3894 = vpop.f32.mrb[0].mxu0
        %v3895 = vadd.f32 %v3670, %v3894
        %v3896 = vpop.f32.mrb[0].mxu0
        %3897 = vmatprep.mubr.f32.mxu0 0.0
        %3898 = vmatmul.mubr.f32.gmra.mrb[0].mxu0 %v2492
        %v3899 = vpop.f32.mrb[0].mxu0
        %v3900 = vadd.f32 %v3675, %v3899
        %v3901 = vpop.f32.mrb[0].mxu0
        %3902 = vmatprep.mubr.f32.mxu0 0.0
        %3903 = vmatmul.mubr.f32.gmra.mrb[0].mxu0 %v2493
        %v3904 = vpop.f32.mrb[0].mxu0
        %v3905 = vadd.f32 %v3680, %v3904
        %v3906 = vpop.f32.mrb[0].mxu0
        %3907 = vmatprep.mubr.f32.mxu0 0.0
        %3908 = vmatmul.mubr.f32.gmra.mrb[0].mxu0 %v2494
        %v3909 = vpop.f32.mrb[0].mxu0
        %v3910 = vadd.f32 %v3685, %v3909
        %v3911 = vpop.f32.mrb[0].mxu0
        %3912 = vmatprep.mubr.f32.mxu0 0.0
        %3913 = vmatmul.mubr.f32.gmra.mrb[0].mxu0 %v2495
        %v3914 = vpop.f32.mrb[0].mxu0
        %v3915 = vadd.f32 %v3690, %v3914
        %v3916 = vpop.f32.mrb[0].mxu0
        %3917 = vmatprep.mubr.f32.mxu0 0.0
        %3918 = vmatmul.mubr.f32.gmra.mrb[0].mxu0 %v2496
        %v3919 = vpop.f32.mrb[0].mxu0
        %v3920 = vadd.f32 %v3695, %v3919
        %v3921 = vpop.f32.mrb[0].mxu0
        %3922 = vmatprep.mubr.f32.mxu0 0.0
        %3923 = vmatmul.mubr.f32.gmra.mrb[0].mxu0 %v2497
        %v3924 = vpop.f32.mrb[0].mxu0
        %v3925 = vadd.f32 %v3700, %v3924
        %v3926 = vpop.f32.mrb[0].mxu0
        %3927 = vmatprep.mubr.f32.mxu0 0.0
        %3928 = vmatmul.mubr.f32.gmra.mrb[0].mxu0 %v2498
        %v3929 = vpop.f32.mrb[0].mxu0
        %v3930 = vadd.f32 %v3705, %v3929
        %v3931 = vpop.f32.mrb[0].mxu0
        %3932 = vmatprep.mubr.f32.mxu0 0.0
        %3933 = vmatmul.mubr.f32.gmra.mrb[0].mxu0 %v2499
        %v3934 = vpop.f32.mrb[0].mxu0
        %v3935 = vadd.f32 %v3710, %v3934
        %v3936 = vpop.f32.mrb[0].mxu0
        %3937 = vmatprep.mubr.f32.mxu0 0.0
        %3938 = vmatmul.mubr.f32.gmra.mrb[0].mxu0 %v2500
        %v3939 = vpop.f32.mrb[0].mxu0
        %v3940 = vadd.f32 %v3715, %v3939
        %v3941 = vpop.f32.mrb[0].mxu0
        %3942 = vmatprep.mubr.f32.mxu0 0.0
        %3943 = vmatmul.mubr.f32.gmra.mrb[0].mxu0 %v2501
        %v3944 = vpop.f32.mrb[0].mxu0
        %v3945 = vadd.f32 %v3720, %v3944
        %v3946 = vpop.f32.mrb[0].mxu0
        %3947 = vmatprep.mubr.f32.mxu0 0.0
        %3948 = vmatmul.mubr.f32.gmra.mrb[0].mxu0 %v2502
        %v3949 = vpop.f32.mrb[0].mxu0
        %v3950 = vadd.f32 %v3725, %v3949
        %v3951 = vpop.f32.mrb[0].mxu0
        %3952 = vmatprep.mubr.f32.mxu0 0.0
        %3953 = vmatmul.mubr.f32.gmra.mrb[0].mxu0 %v2503
        %v3954 = vpop.f32.mrb[0].mxu0
        %v3955 = vadd.f32 %v3730, %v3954
        %v3956 = vpop.f32.mrb[0].mxu0
        %3957 = vmatprep.mubr.f32.mxu0 0.0
        %3958 = vmatmul.mubr.f32.gmra.mrb[0].mxu0 %v2504
        %v3959 = vpop.f32.mrb[0].mxu0
        %v3960 = vadd.f32 %v3735, %v3959
        %v3961 = vpop.f32.mrb[0].mxu0
        %3962 = vmatprep.mubr.f32.mxu0 0.0
        %3963 = vmatmul.mubr.f32.gmra.mrb[0].mxu0 %v2505
        %v3964 = vpop.f32.mrb[0].mxu0
        %v3965 = vadd.f32 %v3740, %v3964
        %v3966 = vpop.f32.mrb[0].mxu0
        %3967 = vmatprep.mubr.f32.mxu0 0.0
        %3968 = vmatmul.mubr.f32.gmra.mrb[0].mxu0 %v2506
        %v3969 = vpop.f32.mrb[0].mxu0
        %v3970 = vadd.f32 %v3745, %v3969
        %v3971 = vpop.f32.mrb[0].mxu0
        %3972 = vmatprep.mubr.f32.mxu0 0.0
        %3973 = vmatmul.mubr.f32.gmra.mrb[0].mxu0 %v2507
        %v3974 = vpop.f32.mrb[0].mxu0
        %v3975 = vadd.f32 %v3750, %v3974
        %v3976 = vpop.f32.mrb[0].mxu0
        %3977 = vmatprep.mubr.f32.mxu0 0.0
        %3978 = vmatmul.mubr.f32.gmra.mrb[0].mxu0 %v2508
        %v3979 = vpop.f32.mrb[0].mxu0
        %v3980 = vadd.f32 %v3755, %v3979
        %v3981 = vpop.f32.mrb[0].mxu0
        %3982 = vmatprep.mubr.f32.mxu0 0.0
        %3983 = vmatmul.mubr.f32.gmra.mrb[0].mxu0 %v2509
        %v3984 = vpop.f32.mrb[0].mxu0
        %v3985 = vadd.f32 %v3760, %v3984
        %v3986 = vpop.f32.mrb[0].mxu0
        %3987 = vmatprep.mubr.f32.mxu0 0.0
        %3988 = vmatmul.mubr.f32.gmra.mrb[0].mxu0 %v2510
        %v3989 = vpop.f32.mrb[0].mxu0
        %v3990 = vadd.f32 %v3765, %v3989
        %v3991 = vpop.f32.mrb[0].mxu0
        %3992 = vmatprep.mubr.f32.mxu0 0.0
        %3993 = vmatmul.mubr.f32.gmra.mrb[0].mxu0 %v2511
        %v3994 = vpop.f32.mrb[0].mxu0
        %v3995 = vadd.f32 %v3770, %v3994
        %v3996 = vpop.f32.mrb[0].mxu0
        %3997 = vmatprep.mubr.f32.mxu0 0.0
        %3998 = vmatmul.mubr.f32.gmra.mrb[0].mxu0 %v2512
        %v3999 = vpop.f32.mrb[0].mxu0
        %v4000 = vadd.f32 %v3775, %v3999
        %v4001 = vpop.f32.mrb[0].mxu0
        %4002 = vmatprep.mubr.f32.mxu0 0.0
        %4003 = vmatmul.mubr.f32.gmra.mrb[0].mxu0 %v2513
        %v4004 = vpop.f32.mrb[0].mxu0
        %v4005 = vadd.f32 %v3780, %v4004
        %v4006 = vpop.f32.mrb[0].mxu0
        %4007 = vdwg.mxu0
        %v4008 = vadd.f32 %v3352, %v3850
        %v4009 = vadd.f32 %v3357, %v3855
        %v4010 = vadd.f32 %v3362, %v3860
        %v4011 = vadd.f32 %v3367, %v3865
        %v4012 = vadd.f32 %v3372, %v3870
        %v4013 = vadd.f32 %v3377, %v3875
        %v4014 = vadd.f32 %v3382, %v3880
        %v4015 = vadd.f32 %v3387, %v3885
        %v4016 = vadd.f32 %v3392, %v3890
        %v4017 = vadd.f32 %v3397, %v3895
        %v4018 = vadd.f32 %v3402, %v3900
        %v4019 = vadd.f32 %v3407, %v3905
        %v4020 = vadd.f32 %v3412, %v3910
        %v4021 = vadd.f32 %v3417, %v3915
        %v4022 = vadd.f32 %v3422, %v3920
        %v4023 = vadd.f32 %v3427, %v3925
        %v4024 = vadd.f32 %v3432, %v3930
        %v4025 = vadd.f32 %v3437, %v3935
        %v4026 = vadd.f32 %v3442, %v3940
        %v4027 = vadd.f32 %v3447, %v3945
        %v4028 = vadd.f32 %v3452, %v3950
        %v4029 = vadd.f32 %v3457, %v3955
        %v4030 = vadd.f32 %v3462, %v3960
        %v4031 = vadd.f32 %v3467, %v3965
        %v4032 = vadd.f32 %v3472, %v3970
        %v4033 = vadd.f32 %v3477, %v3975
        %v4034 = vadd.f32 %v3482, %v3980
        %v4035 = vadd.f32 %v3487, %v3985
        %v4036 = vadd.f32 %v3492, %v3990
        %v4037 = vadd.f32 %v3497, %v3995
        %v4038 = vadd.f32 %v3502, %v4000
        %v4039 = vadd.f32 %v3507, %v4005
        %v4040 = vld [vmem:[#allocation15] sm:$0x1]
        %v4042 = vlaneseq
        %v4043 = vshrl.u32 %v4042, 7
        %v4044 = vsub.s32 0, %v4043
        %v4045 = vrot.slane %v4040, %v4044
        %v4047 = vadd.f32 %v4008, %v4045
        %v4048 = vadd.f32 %v4009, %v4045
        %v4049 = vadd.f32 %v4010, %v4045
        %v4050 = vadd.f32 %v4011, %v4045
        %v4051 = vadd.f32 %v4012, %v4045
        %v4052 = vadd.f32 %v4013, %v4045
        %v4053 = vadd.f32 %v4014, %v4045
        %v4054 = vadd.f32 %v4015, %v4045
        %v4055 = vadd.f32 %v4016, %v4045
        %v4056 = vadd.f32 %v4017, %v4045
        %v4057 = vadd.f32 %v4018, %v4045
        %v4058 = vadd.f32 %v4019, %v4045
        %v4059 = vadd.f32 %v4020, %v4045
        %v4060 = vadd.f32 %v4021, %v4045
        %v4061 = vadd.f32 %v4022, %v4045
        %v4062 = vadd.f32 %v4023, %v4045
        %v4063 = vadd.f32 %v4024, %v4045
        %v4064 = vadd.f32 %v4025, %v4045
        %v4065 = vadd.f32 %v4026, %v4045
        %v4066 = vadd.f32 %v4027, %v4045
        %v4067 = vadd.f32 %v4028, %v4045
        %v4068 = vadd.f32 %v4029, %v4045
        %v4069 = vadd.f32 %v4030, %v4045
        %v4070 = vadd.f32 %v4031, %v4045
        %v4071 = vadd.f32 %v4032, %v4045
        %v4072 = vadd.f32 %v4033, %v4045
        %v4073 = vadd.f32 %v4034, %v4045
        %v4074 = vadd.f32 %v4035, %v4045
        %v4075 = vadd.f32 %v4036, %v4045
        %v4076 = vadd.f32 %v4037, %v4045
        %v4077 = vadd.f32 %v4038, %v4045
        %v4078 = vadd.f32 %v4039, %v4045
        %v4079 = vld [vmem:[%s355] sm:$0xff]
        %v4080 = vld [vmem:[%s355 + $0x8] sm:$0xff]
        %v4081 = vld [vmem:[%s355 + $0x10] sm:$0xff]
        %v4082 = vld [vmem:[%s355 + $0x18] sm:$0xff]
        %v4083 = vld [vmem:[%s355 + $0x20] sm:$0xff]
        %v4084 = vld [vmem:[%s355 + $0x28] sm:$0xff]
        %v4085 = vld [vmem:[%s355 + $0x30] sm:$0xff]
        %v4086 = vld [vmem:[%s355 + $0x38] sm:$0xff]
        %v4087 = vld [vmem:[%s355 + $0x40] sm:$0xff]
        %v4088 = vld [vmem:[%s355 + $0x48] sm:$0xff]
        %v4089 = vld [vmem:[%s355 + $0x50] sm:$0xff]
        %v4090 = vld [vmem:[%s355 + $0x58] sm:$0xff]
        %v4091 = vld [vmem:[%s355 + $0x60] sm:$0xff]
        %v4092 = vld [vmem:[%s355 + $0x68] sm:$0xff]
        %v4093 = vld [vmem:[%s355 + $0x70] sm:$0xff]
        %v4094 = vld [vmem:[%s355 + $0x78] sm:$0xff]
        %v4095 = vld [vmem:[%s355 + $0x80] sm:$0xff]
        %v4096 = vld [vmem:[%s355 + $0x88] sm:$0xff]
        %v4097 = vld [vmem:[%s355 + $0x90] sm:$0xff]
        %v4098 = vld [vmem:[%s355 + $0x98] sm:$0xff]
        %v4099 = vld [vmem:[%s355 + $0xa0] sm:$0xff]
        %v4100 = vld [vmem:[%s355 + $0xa8] sm:$0xff]
        %v4101 = vld [vmem:[%s355 + $0xb0] sm:$0xff]
        %v4102 = vld [vmem:[%s355 + $0xb8] sm:$0xff]
        %v4103 = vld [vmem:[%s355 + $0xc0] sm:$0xff]
        %v4104 = vld [vmem:[%s355 + $0xc8] sm:$0xff]
        %v4105 = vld [vmem:[%s355 + $0xd0] sm:$0xff]
        %v4106 = vld [vmem:[%s355 + $0xd8] sm:$0xff]
        %v4107 = vld [vmem:[%s355 + $0xe0] sm:$0xff]
        %v4108 = vld [vmem:[%s355 + $0xe8] sm:$0xff]
        %v4109 = vld [vmem:[%s355 + $0xf0] sm:$0xff]
        %v4110 = vld [vmem:[%s355 + $0xf8] sm:$0xff]
        %v4111 = vadd.f32 %v4047, %v4079
        %v4112 = vadd.f32 %v4048, %v4080
        %v4113 = vadd.f32 %v4049, %v4081
        %v4114 = vadd.f32 %v4050, %v4082
        %v4115 = vadd.f32 %v4051, %v4083
        %v4116 = vadd.f32 %v4052, %v4084
        %v4117 = vadd.f32 %v4053, %v4085
        %v4118 = vadd.f32 %v4054, %v4086
        %v4119 = vadd.f32 %v4055, %v4087
        %v4120 = vadd.f32 %v4056, %v4088
        %v4121 = vadd.f32 %v4057, %v4089
        %v4122 = vadd.f32 %v4058, %v4090
        %v4123 = vadd.f32 %v4059, %v4091
        %v4124 = vadd.f32 %v4060, %v4092
        %v4125 = vadd.f32 %v4061, %v4093
        %v4126 = vadd.f32 %v4062, %v4094
        %v4127 = vadd.f32 %v4063, %v4095
        %v4128 = vadd.f32 %v4064, %v4096
        %v4129 = vadd.f32 %v4065, %v4097
        %v4130 = vadd.f32 %v4066, %v4098
        %v4131 = vadd.f32 %v4067, %v4099
        %v4132 = vadd.f32 %v4068, %v4100
        %v4133 = vadd.f32 %v4069, %v4101
        %v4134 = vadd.f32 %v4070, %v4102
        %v4135 = vadd.f32 %v4071, %v4103
        %v4136 = vadd.f32 %v4072, %v4104
        %v4137 = vadd.f32 %v4073, %v4105
        %v4138 = vadd.f32 %v4074, %v4106
        %v4139 = vadd.f32 %v4075, %v4107
        %v4140 = vadd.f32 %v4076, %v4108
        %v4141 = vadd.f32 %v4077, %v4109
        %v4142 = vadd.f32 %v4078, %v4110
        %4143 = vst [vmem:[%s415] sm:$0xff] %v4111
        %4144 = vst [vmem:[%s415 + $0x8] sm:$0xff] %v4112
        %4145 = vst [vmem:[%s415 + $0x10] sm:$0xff] %v4113
        %4146 = vst [vmem:[%s415 + $0x18] sm:$0xff] %v4114
        %4147 = vst [vmem:[%s415 + $0x20] sm:$0xff] %v4115
        %4148 = vst [vmem:[%s415 + $0x28] sm:$0xff] %v4116
        %4149 = vst [vmem:[%s415 + $0x30] sm:$0xff] %v4117
        %4150 = vst [vmem:[%s415 + $0x38] sm:$0xff] %v4118
        %4151 = vst [vmem:[%s415 + $0x40] sm:$0xff] %v4119
        %4152 = vst [vmem:[%s415 + $0x48] sm:$0xff] %v4120
        %4153 = vst [vmem:[%s415 + $0x50] sm:$0xff] %v4121
        %4154 = vst [vmem:[%s415 + $0x58] sm:$0xff] %v4122
        %4155 = vst [vmem:[%s415 + $0x60] sm:$0xff] %v4123
        %4156 = vst [vmem:[%s415 + $0x68] sm:$0xff] %v4124
        %4157 = vst [vmem:[%s415 + $0x70] sm:$0xff] %v4125
        %4158 = vst [vmem:[%s415 + $0x78] sm:$0xff] %v4126
        %4159 = vst [vmem:[%s415 + $0x80] sm:$0xff] %v4127
        %4160 = vst [vmem:[%s415 + $0x88] sm:$0xff] %v4128
        %4161 = vst [vmem:[%s415 + $0x90] sm:$0xff] %v4129
        %4162 = vst [vmem:[%s415 + $0x98] sm:$0xff] %v4130
        %4163 = vst [vmem:[%s415 + $0xa0] sm:$0xff] %v4131
        %4164 = vst [vmem:[%s415 + $0xa8] sm:$0xff] %v4132
        %4165 = vst [vmem:[%s415 + $0xb0] sm:$0xff] %v4133
        %4166 = vst [vmem:[%s415 + $0xb8] sm:$0xff] %v4134
        %4167 = vst [vmem:[%s415 + $0xc0] sm:$0xff] %v4135
        %4168 = vst [vmem:[%s415 + $0xc8] sm:$0xff] %v4136
        %4169 = vst [vmem:[%s415 + $0xd0] sm:$0xff] %v4137
        %4170 = vst [vmem:[%s415 + $0xd8] sm:$0xff] %v4138
        %4171 = vst [vmem:[%s415 + $0xe0] sm:$0xff] %v4139
        %4172 = vst [vmem:[%s415 + $0xe8] sm:$0xff] %v4140
        %4173 = vst [vmem:[%s415 + $0xf0] sm:$0xff] %v4141
        %4174 = vst [vmem:[%s415 + $0xf8] sm:$0xff] %v4142
        %s4175 = sand.u32 %s210, 1
        %s4176 = scalar_lea.sflag [#allocation5], %s4175
        %s4177 = sand.u32 %s210, 1
        %s4178 = smul.addr %s4177, 256
        %s4179 = scalar_lea.vmem [#allocation17], %s4178
        // Predicated region
        $region85: #{tpu_custom_call.1} parent=51 // pred_check
          %p4180 = pneg %p220
        $region86: #{tpu_custom_call.1} parent=51 // pred_check_branch
          %4182 = sbr.rel (%p4180) target = $region88
        $region87: #{tpu_custom_call.1} parent=51 // pred_region
          %s4184 = ssub.s32 4096, 4096
          %4185 = vsyncadd %s4176, %s4184
          %s4186 = smul.addr %s29, 32
          %s4187 = smul.addr %s4186, 128
          %s4188 = scalar_lea.hbm %s8, %s4187
          %s4189 = sshll.u32 %s4179, 4
          %s4190 = int_to_ptr.vmem [resolvable:$true] %s4189
          %4195 = dma.vmem_to_hbm [thread:$0]  %s4190, 4096, %s4188, %s4176, 128, 128, 8
        $region88: #{tpu_custom_call.1} parent=51 // pred_fallthru
          _
      $region52: #{tpu_custom_call.1} parent=5 // pred_fallthru
        _
      %p4196 = scmp.le.s32.totalorder 2, %s24
      // Predicated region
      $region89: #{tpu_custom_call.1} parent=5 // pred_check
        %p4197 = pneg %p4196
      $region90: #{tpu_custom_call.1} parent=5 // pred_check_branch
        %4199 = sbr.rel (%p4197) target = $region92
      $region91: #{tpu_custom_call.1} parent=5 // pred_region
        %s4200 = ssub.s32 %s24, 2
        // Predicated region
        $region93: #{tpu_custom_call.1} parent=91 // pred_check
          %p4201 = pneg %p226
        $region94: #{tpu_custom_call.1} parent=91 // pred_check_branch
          %4203 = sbr.rel (%p4201) target = $region96
        $region95: #{tpu_custom_call.1} parent=91 // pred_region
          %s4204 = sand.u32 %s211, 1
          %s4205 = scalar_lea.sflag [#allocation5], %s4204
          %s4206 = sand.u32 %s211, 1
          %s4207 = smul.addr %s4206, 256
          %s4208 = scalar_lea.vmem [#allocation17], %s4207
          %4209 = dma.done %s4205, 4096
        $region96: #{tpu_custom_call.1} parent=91 // pred_fallthru
          _
      $region92: #{tpu_custom_call.1} parent=5 // pred_fallthru
        _
    $region6: #{tpu_custom_call.1} parent=1 // loop_footer
      %s28 = sadd.s32 1, %s24
    $region7: #{tpu_custom_call.1} parent=1 // loop_footer_branch
      %23 = sbr.rel target = $region3
    $region8: #{tpu_custom_call.1} parent=1 // loop_exit
      _
    %4210 = vsyncpa [#allocation4], 1
    %s4211 = scalar_lea.sflag [#allocation4], 1
    %4212 = vsyncpa %s4211, 1
    %4213 = vsyncpa [#allocation7], 1
    %4214 = vsyncpa [#allocation10], 1
    %4215 = vsyncpa [#allocation13], 1
    %4216 = vsyncpa [#allocation16], 1
    %4217 = vsyncpa [#allocation5], 1
    %s4218 = scalar_lea.sflag [#allocation5], 1
    %4219 = vsyncpa %s4218, 1

// kernel: tpu_custom_call.1
$region0: #{tpu_custom_call.1}
  #allocation0 [shape = 'u32[]', space=smem, size = 0x4, offset = 0x4, fixed_abs, tag = 'smem constant byte address 0x4 - core index']
  #allocation1 [shape = 'u32[144,128]{1,0:T(1,128)}', space=vmem, size = 0x12000, scoped, tag = 'internal scratch']
  #allocation2 [shape = 'f32[1,18,18,128]{3,2,1,0:T(8,128)}', space=vmem, size = 0x36000, scoped, tag = 'scratch operand']
  %s0 = inlined_call_operand.hbm [shape: f32[2,16,16,128], index: 0, kind: input, shape index: {}]
  %s1 = inlined_call_operand.hbm [shape: f32[1152,128], index: 1, kind: input, shape index: {}]
  %s2 = inlined_call_operand.hbm [shape: f32[1152,128], index: 2, kind: input, shape index: {}]
  %s3 = inlined_call_operand.hbm [shape: f32[1,128], index: 3, kind: input, shape index: {}]
  %s4 = inlined_call_operand.hbm [shape: f32[1,128], index: 4, kind: input, shape index: {}]
  %s5 = inlined_call_operand.hbm [shape: f32[1,128], index: 5, kind: input, shape index: {}]
  %s6 = inlined_call_operand.hbm [shape: f32[1,128], index: 6, kind: input, shape index: {}]
  %s7 = inlined_call_operand.hbm [shape: f32[1,128], index: 7, kind: input, shape index: {}]
  %s8 = inlined_call_operand.hbm [shape: f32[2,16,16,128], index: 8, kind: output, shape index: {}]
  %s9 = sld [smem:[#allocation0]]
  $region97: #{tpu_custom_call.1} parent=0
    _
  %s11 = ssub.s32 1, %s9
  %s12 = scalar_select 0, %s11, %s9
  $region1: #{tpu_custom_call.1} parent=0
    #allocation3 [shape = 'u8[262144]{0}', space=vmem, size = 0x40000, scoped, tag = 'input window, operand 0']
    #allocation4 [shape = 's32[2]{0}', space=sflag, size = 0x8, scoped, tag = 'scoped memory for tpu_custom_call.1']
    #allocation5 [shape = 's32[2]{0}', space=sflag, size = 0x8, scoped, tag = 'scoped memory for tpu_custom_call.1']
    #allocation6 [shape = 'u8[589824]{0}', space=vmem, size = 0x90000, scoped, tag = 'input window, operand 1, single buffered']
    #allocation7 [shape = 's32[1]{0}', space=sflag, size = 0x4, scoped, tag = 'scoped memory for tpu_custom_call.1']
    #allocation8 [shape = 'u8[589824]{0}', space=vmem, size = 0x90000, scoped, tag = 'input window, operand 2, single buffered']
    #allocation9 [shape = 'u8[512]{0}', space=vmem, size = 0x400, scoped, tag = 'input window, operand 3, single buffered']
    #allocation10 [shape = 's32[1]{0}', space=sflag, size = 0x4, scoped, tag = 'scoped memory for tpu_custom_call.1']
    #allocation11 [shape = 'u8[512]{0}', space=vmem, size = 0x400, scoped, tag = 'input window, operand 4, single buffered']
    #allocation12 [shape = 'u8[512]{0}', space=vmem, size = 0x400, scoped, tag = 'input window, operand 5, single buffered']
    #allocation13 [shape = 's32[1]{0}', space=sflag, size = 0x4, scoped, tag = 'scoped memory for tpu_custom_call.1']
    #allocation14 [shape = 'u8[512]{0}', space=vmem, size = 0x400, scoped, tag = 'input window, operand 6, single buffered']
    #allocation15 [shape = 'u8[512]{0}', space=vmem, size = 0x400, scoped, tag = 'input window, operand 7, single buffered']
    #allocation16 [shape = 's32[1]{0}', space=sflag, size = 0x4, scoped, tag = 'scoped memory for tpu_custom_call.1']
    #allocation17 [shape = 'u8[262144]{0}', space=vmem, size = 0x40000, scoped, tag = 'output window, operand 0']
    %13 = vsyncpa [#allocation4], 0
    %s14 = scalar_lea.sflag [#allocation4], 1
    %15 = vsyncpa %s14, 0
    %16 = vsyncpa [#allocation7], 0
    %17 = vsyncpa [#allocation10], 0
    %18 = vsyncpa [#allocation13], 0
    %19 = vsyncpa [#allocation16], 0
    %20 = vsyncpa [#allocation5], 0
    %s21 = scalar_lea.sflag [#allocation5], 1
    %22 = vsyncpa %s21, 0
    loop: start=0, step=1, limit=4
    $region2: #{tpu_custom_call.1} parent=1 // loop_pre_header
      _
    $region3: #{tpu_custom_call.1} parent=1 // loop_header
      %s24 = sphi 0, %s28
      %p25 = scmp.ge.s32.totalorder %s24, 4
      %s34 = sphi 0, %s36
      %s37 = sphi 0, %s34
      %s38 = sphi 0, %s37
      %s54 = sphi 0, %s38
      %s58 = sphi 0, %s58
      %s60 = sphi 0, %s58
      %s61 = sphi 0, %s60
      %s75 = sphi 0, %s61
      %s79 = sphi 0, %s79
      %s81 = sphi 0, %s79
      %s82 = sphi 0, %s81
      %s96 = sphi 0, %s82
      %s100 = sphi 0, %s100
      %s102 = sphi 0, %s100
      %s103 = sphi 0, %s102
      %s117 = sphi 0, %s103
      %s121 = sphi 0, %s121
      %s123 = sphi 0, %s121
      %s124 = sphi 0, %s123
      %s138 = sphi 0, %s124
      %s142 = sphi 0, %s142
      %s144 = sphi 0, %s142
      %s145 = sphi 0, %s144
      %s159 = sphi 0, %s145
      %s163 = sphi 0, %s163
      %s165 = sphi 0, %s163
      %s166 = sphi 0, %s165
      %s180 = sphi 0, %s166
      %s184 = sphi 0, %s184
      %s186 = sphi 0, %s184
      %s187 = sphi 0, %s186
      %s201 = sphi 0, %s187
      %s207 = sphi 0, %s209
      %s210 = sphi 0, %s207
      %s211 = sphi 0, %s210
      %s227 = sphi 0, %s211
    $region4: #{tpu_custom_call.1} parent=1 // loop_header_branch
      %27 = sbr.rel (%p25) target = $region8
    $region5: #{tpu_custom_call.1} parent=1 // loop_body
      %s29 = ssub.s32 %s24, 1
      %s30 = ssub.s32 %s24, 2
      %s31 = sadd.s32 %s24, 1
      %s32 = ssub.s32 %s24, %s31
      %p33 = scmp.eq.s32.totalorder %s32, 0
      %s35 = sadd.s32 %s34, 1
      %s36 = scalar_select %p33, %s34, %s35
      %p39 = pneg %p33
      %p40 = scmp.eq.s32.totalorder %s24, 1
      %p41 = por %p39, %p40
      %p42 = scmp.ne.s32.totalorder %s34, %s37
      %p43 = scmp.eq.s32.totalorder %s24, 0
      %p44 = por %p42, %p43
      %p45 = scmp.ne.s32.totalorder %s34, %s37
      %p46 = scmp.eq.s32.totalorder %s29, 1
      %p47 = por %p45, %p46
      %p48 = scmp.ne.s32.totalorder %s37, %s38
      %p49 = scmp.eq.s32.totalorder %s29, 0
      %p50 = por %p48, %p49
      %p51 = scmp.ne.s32.totalorder %s37, %s38
      %p52 = scmp.eq.s32.totalorder %s30, 1
      %p53 = por %p51, %p52
      %p55 = scmp.ne.s32.totalorder %s38, %s54
      %p56 = scmp.eq.s32.totalorder %s30, 0
      %p57 = por %p55, %p56
      %s59 = sadd.s32 %s58, 1
      %p62 = scmp.eq.s32.totalorder %s24, 1
      %p63 = scmp.ne.s32.totalorder %s58, %s60
      %p64 = scmp.eq.s32.totalorder %s24, 0
      %p65 = por %p63, %p64
      %p66 = scmp.ne.s32.totalorder %s58, %s60
      %p67 = scmp.eq.s32.totalorder %s29, 1
      %p68 = por %p66, %p67
      %p69 = scmp.ne.s32.totalorder %s60, %s61
      %p70 = scmp.eq.s32.totalorder %s29, 0
      %p71 = por %p69, %p70
      %p72 = scmp.ne.s32.totalorder %s60, %s61
      %p73 = scmp.eq.s32.totalorder %s30, 1
      %p74 = por %p72, %p73
      %p76 = scmp.ne.s32.totalorder %s61, %s75
      %p77 = scmp.eq.s32.totalorder %s30, 0
      %p78 = por %p76, %p77
      %s80 = sadd.s32 %s79, 1
      %p83 = scmp.eq.s32.totalorder %s24, 1
      %p84 = scmp.ne.s32.totalorder %s79, %s81
      %p85 = scmp.eq.s32.totalorder %s24, 0
      %p86 = por %p84, %p85
      %p87 = scmp.ne.s32.totalorder %s79, %s81
      %p88 = scmp.eq.s32.totalorder %s29, 1
      %p89 = por %p87, %p88
      %p90 = scmp.ne.s32.totalorder %s81, %s82
      %p91 = scmp.eq.s32.totalorder %s29, 0
      %p92 = por %p90, %p91
      %p93 = scmp.ne.s32.totalorder %s81, %s82
      %p94 = scmp.eq.s32.totalorder %s30, 1
      %p95 = por %p93, %p94
      %p97 = scmp.ne.s32.totalorder %s82, %s96
      %p98 = scmp.eq.s32.totalorder %s30, 0
      %p99 = por %p97, %p98
      %s101 = sadd.s32 %s100, 1
      %p104 = scmp.eq.s32.totalorder %s24, 1
      %p105 = scmp.ne.s32.totalorder %s100, %s102
      %p106 = scmp.eq.s32.totalorder %s24, 0
      %p107 = por %p105, %p106
      %p108 = scmp.ne.s32.totalorder %s100, %s102
      %p109 = scmp.eq.s32.totalorder %s29, 1
      %p110 = por %p108, %p109
      %p111 = scmp.ne.s32.totalorder %s102, %s103
      %p112 = scmp.eq.s32.totalorder %s29, 0
      %p113 = por %p111, %p112
      %p114 = scmp.ne.s32.totalorder %s102, %s103
      %p115 = scmp.eq.s32.totalorder %s30, 1
      %p116 = por %p114, %p115
      %p118 = scmp.ne.s32.totalorder %s103, %s117
      %p119 = scmp.eq.s32.totalorder %s30, 0
      %p120 = por %p118, %p119
      %s122 = sadd.s32 %s121, 1
      %p125 = scmp.eq.s32.totalorder %s24, 1
      %p126 = scmp.ne.s32.totalorder %s121, %s123
      %p127 = scmp.eq.s32.totalorder %s24, 0
      %p128 = por %p126, %p127
      %p129 = scmp.ne.s32.totalorder %s121, %s123
      %p130 = scmp.eq.s32.totalorder %s29, 1
      %p131 = por %p129, %p130
      %p132 = scmp.ne.s32.totalorder %s123, %s124
      %p133 = scmp.eq.s32.totalorder %s29, 0
      %p134 = por %p132, %p133
      %p135 = scmp.ne.s32.totalorder %s123, %s124
      %p136 = scmp.eq.s32.totalorder %s30, 1
      %p137 = por %p135, %p136
      %p139 = scmp.ne.s32.totalorder %s124, %s138
      %p140 = scmp.eq.s32.totalorder %s30, 0
      %p141 = por %p139, %p140
      %s143 = sadd.s32 %s142, 1
      %p146 = scmp.eq.s32.totalorder %s24, 1
      %p147 = scmp.ne.s32.totalorder %s142, %s144
      %p148 = scmp.eq.s32.totalorder %s24, 0
      %p149 = por %p147, %p148
      %p150 = scmp.ne.s32.totalorder %s142, %s144
      %p151 = scmp.eq.s32.totalorder %s29, 1
      %p152 = por %p150, %p151
      %p153 = scmp.ne.s32.totalorder %s144, %s145
      %p154 = scmp.eq.s32.totalorder %s29, 0
      %p155 = por %p153, %p154
      %p156 = scmp.ne.s32.totalorder %s144, %s145
      %p157 = scmp.eq.s32.totalorder %s30, 1
      %p158 = por %p156, %p157
      %p160 = scmp.ne.s32.totalorder %s145, %s159
      %p161 = scmp.eq.s32.totalorder %s30, 0
      %p162 = por %p160, %p161
      %s164 = sadd.s32 %s163, 1
      %p167 = scmp.eq.s32.totalorder %s24, 1
      %p168 = scmp.ne.s32.totalorder %s163, %s165
      %p169 = scmp.eq.s32.totalorder %s24, 0
      %p170 = por %p168, %p169
      %p171 = scmp.ne.s32.totalorder %s163, %s165
      %p172 = scmp.eq.s32.totalorder %s29, 1
      %p173 = por %p171, %p172
      %p174 = scmp.ne.s32.totalorder %s165, %s166
      %p175 = scmp.eq.s32.totalorder %s29, 0
      %p176 = por %p174, %p175
      %p177 = scmp.ne.s32.totalorder %s165, %s166
      %p178 = scmp.eq.s32.totalorder %s30, 1
      %p179 = por %p177, %p178
      %p181 = scmp.ne.s32.totalorder %s166, %s180
      %p182 = scmp.eq.s32.totalorder %s30, 0
      %p183 = por %p181, %p182
      %s185 = sadd.s32 %s184, 1
      %p188 = scmp.eq.s32.totalorder %s24, 1
      %p189 = scmp.ne.s32.totalorder %s184, %s186
      %p190 = scmp.eq.s32.totalorder %s24, 0
      %p191 = por %p189, %p190
      %p192 = scmp.ne.s32.totalorder %s184, %s186
      %p193 = scmp.eq.s32.totalorder %s29, 1
      %p194 = por %p192, %p193
      %p195 = scmp.ne.s32.totalorder %s186, %s187
      %p196 = scmp.eq.s32.totalorder %s29, 0
      %p197 = por %p195, %p196
      %p198 = scmp.ne.s32.totalorder %s186, %s187
      %p199 = scmp.eq.s32.totalorder %s30, 1
      %p200 = por %p198, %p199
      %p202 = scmp.ne.s32.totalorder %s187, %s201
      %p203 = scmp.eq.s32.totalorder %s30, 0
      %p204 = por %p202, %p203
      %s205 = ssub.s32 %s24, %s31
      %p206 = scmp.eq.s32.totalorder %s205, 0
      %s208 = sadd.s32 %s207, 1
      %s209 = scalar_select %p206, %s207, %s208
      %p212 = pneg %p206
      %p213 = scmp.eq.s32.totalorder %s24, 1
      %p214 = por %p212, %p213
      %p215 = scmp.ne.s32.totalorder %s207, %s210
      %p216 = scmp.eq.s32.totalorder %s24, 0
      %p217 = por %p215, %p216
      %p218 = scmp.ne.s32.totalorder %s207, %s210
      %p219 = scmp.eq.s32.totalorder %s29, 1
      %p220 = por %p218, %p219
      %p221 = scmp.ne.s32.totalorder %s210, %s211
      %p222 = scmp.eq.s32.totalorder %s29, 0
      %p223 = por %p221, %p222
      %p224 = scmp.ne.s32.totalorder %s210, %s211
      %p225 = scmp.eq.s32.totalorder %s30, 1
      %p226 = por %p224, %p225
      %p228 = scmp.ne.s32.totalorder %s211, %s227
      %p229 = scmp.eq.s32.totalorder %s30, 0
      %p230 = por %p228, %p229
      %p231 = scmp.le.s32.totalorder 1, %s24
      %p232 = scmp.lt.s32.totalorder %s24, 3
      %p233 = pnand %p231, %p232
      %p234 = pneg %p233
      // Predicated region
      $region9: #{tpu_custom_call.1} parent=5 // pred_check
        _
      $region10: #{tpu_custom_call.1} parent=5 // pred_check_branch
        %236 = sbr.rel (%p233) target = $region12
      $region11: #{tpu_custom_call.1} parent=5 // pred_region
        %s237 = ssub.s32 %s24, 1
        // Predicated region
        $region13: #{tpu_custom_call.1} parent=11 // pred_check
          %p238 = pneg %p71
        $region14: #{tpu_custom_call.1} parent=11 // pred_check_branch
          %240 = sbr.rel (%p238) target = $region16
        $region15: #{tpu_custom_call.1} parent=11 // pred_region
          %s242 = ssub.s32 18432, 18432
          %243 = vsyncadd [#allocation7], %s242
          %s244 = sshll.u32 [#allocation6], 4
          %s245 = int_to_ptr.vmem [resolvable:$true] %s244
          %250 = dma.hbm_to_vmem [thread:$0]  %s1, 18432, %s245, [#allocation7], 128, 128, 8
        $region16: #{tpu_custom_call.1} parent=11 // pred_fallthru
          _
        // Predicated region
        $region17: #{tpu_custom_call.1} parent=11 // pred_check
          %p251 = pneg %p92
        $region18: #{tpu_custom_call.1} parent=11 // pred_check_branch
          %253 = sbr.rel (%p251) target = $region20
        $region19: #{tpu_custom_call.1} parent=11 // pred_region
          %s255 = ssub.s32 18432, 18432
          %256 = vsyncadd [#allocation7], %s255
          %s257 = sshll.u32 [#allocation8], 4
          %s258 = int_to_ptr.vmem [resolvable:$true] %s257
          %263 = dma.hbm_to_vmem [thread:$0]  %s2, 18432, %s258, [#allocation7], 128, 128, 8
        $region20: #{tpu_custom_call.1} parent=11 // pred_fallthru
          _
        // Predicated region
        $region21: #{tpu_custom_call.1} parent=11 // pred_check
          %p264 = pneg %p113
        $region22: #{tpu_custom_call.1} parent=11 // pred_check_branch
          %266 = sbr.rel (%p264) target = $region24
        $region23: #{tpu_custom_call.1} parent=11 // pred_region
          %s268 = ssub.s32 16, 16
          %269 = vsyncadd [#allocation10], %s268
          %s271 = sshll.u32 [#allocation9], 4
          %s272 = int_to_ptr.vmem [resolvable:$true] %s271
          %274 = dma.hbm_to_vmem [thread:$0]  %s3, 16, %s272, [#allocation10]
        $region24: #{tpu_custom_call.1} parent=11 // pred_fallthru
          _
        // Predicated region
        $region25: #{tpu_custom_call.1} parent=11 // pred_check
          %p275 = pneg %p134
        $region26: #{tpu_custom_call.1} parent=11 // pred_check_branch
          %277 = sbr.rel (%p275) target = $region28
        $region27: #{tpu_custom_call.1} parent=11 // pred_region
          %s279 = ssub.s32 16, 16
          %280 = vsyncadd [#allocation10], %s279
          %s282 = sshll.u32 [#allocation11], 4
          %s283 = int_to_ptr.vmem [resolvable:$true] %s282
          %285 = dma.hbm_to_vmem [thread:$0]  %s4, 16, %s283, [#allocation10]
        $region28: #{tpu_custom_call.1} parent=11 // pred_fallthru
          _
        // Predicated region
        $region29: #{tpu_custom_call.1} parent=11 // pred_check
          %p286 = pneg %p155
        $region30: #{tpu_custom_call.1} parent=11 // pred_check_branch
          %288 = sbr.rel (%p286) target = $region32
        $region31: #{tpu_custom_call.1} parent=11 // pred_region
          %s290 = ssub.s32 16, 16
          %291 = vsyncadd [#allocation13], %s290
          %s293 = sshll.u32 [#allocation12], 4
          %s294 = int_to_ptr.vmem [resolvable:$true] %s293
          %296 = dma.hbm_to_vmem [thread:$0]  %s5, 16, %s294, [#allocation13]
        $region32: #{tpu_custom_call.1} parent=11 // pred_fallthru
          _
        // Predicated region
        $region33: #{tpu_custom_call.1} parent=11 // pred_check
          %p297 = pneg %p176
        $region34: #{tpu_custom_call.1} parent=11 // pred_check_branch
          %299 = sbr.rel (%p297) target = $region36
        $region35: #{tpu_custom_call.1} parent=11 // pred_region
          %s301 = ssub.s32 16, 16
          %302 = vsyncadd [#allocation13], %s301
          %s304 = sshll.u32 [#allocation14], 4
          %s305 = int_to_ptr.vmem [resolvable:$true] %s304
          %307 = dma.hbm_to_vmem [thread:$0]  %s6, 16, %s305, [#allocation13]
        $region36: #{tpu_custom_call.1} parent=11 // pred_fallthru
          _
        // Predicated region
        $region37: #{tpu_custom_call.1} parent=11 // pred_check
          %p308 = pneg %p197
        $region38: #{tpu_custom_call.1} parent=11 // pred_check_branch
          %310 = sbr.rel (%p308) target = $region40
        $region39: #{tpu_custom_call.1} parent=11 // pred_region
          %s312 = ssub.s32 16, 16
          %313 = vsyncadd [#allocation16], %s312
          %s315 = sshll.u32 [#allocation15], 4
          %s316 = int_to_ptr.vmem [resolvable:$true] %s315
          %318 = dma.hbm_to_vmem [thread:$0]  %s7, 16, %s316, [#allocation16]
        $region40: #{tpu_custom_call.1} parent=11 // pred_fallthru
          _
      $region12: #{tpu_custom_call.1} parent=5 // pred_fallthru
        _
      %p319 = scmp.lt.s32.totalorder %s24, 2
      // Predicated region
      $region41: #{tpu_custom_call.1} parent=5 // pred_check
        %p320 = pneg %p319
      $region42: #{tpu_custom_call.1} parent=5 // pred_check_branch
        %322 = sbr.rel (%p320) target = $region44
      $region43: #{tpu_custom_call.1} parent=5 // pred_region
        // Predicated region
        $region45: #{tpu_custom_call.1} parent=43 // pred_check
          %p323 = pneg %p44
        $region46: #{tpu_custom_call.1} parent=43 // pred_check_branch
          %325 = sbr.rel (%p323) target = $region48
        $region47: #{tpu_custom_call.1} parent=43 // pred_region
          %s326 = sand.u32 %s34, 1
          %s327 = scalar_lea.sflag [#allocation4], %s326
          %s328 = sand.u32 %s34, 1
          %s329 = smul.addr %s328, 256
          %s330 = scalar_lea.vmem [#allocation3], %s329
          %s332 = ssub.s32 4096, 4096
          %333 = vsyncadd %s327, %s332
          %s334 = smul.addr %s24, 32
          %s335 = smul.addr %s334, 128
          %s336 = scalar_lea.hbm %s0, %s335
          %s337 = sshll.u32 %s330, 4
          %s338 = int_to_ptr.vmem [resolvable:$true] %s337
          %343 = dma.hbm_to_vmem [thread:$0]  %s336, 4096, %s338, %s327, 128, 128, 8
        $region48: #{tpu_custom_call.1} parent=43 // pred_fallthru
          _
      $region44: #{tpu_custom_call.1} parent=5 // pred_fallthru
        _
      %p344 = scmp.le.s32.totalorder 1, %s24
      %p345 = scmp.lt.s32.totalorder %s24, 3
      %p346 = pnand %p344, %p345
      %p347 = pneg %p346
      // Predicated region
      $region49: #{tpu_custom_call.1} parent=5 // pred_check
        _
      $region50: #{tpu_custom_call.1} parent=5 // pred_check_branch
        %349 = sbr.rel (%p346) target = $region52
      $region51: #{tpu_custom_call.1} parent=5 // pred_region
        %s350 = ssub.s32 %s24, 1
        %s351 = sand.u32 %s37, 1
        %s352 = scalar_lea.sflag [#allocation4], %s351
        %s353 = sand.u32 %s37, 1
        %s354 = smul.addr %s353, 256
        %s355 = scalar_lea.vmem [#allocation3], %s354
        // Predicated region
        $region53: #{tpu_custom_call.1} parent=51 // pred_check
          %p356 = pneg %p50
        $region54: #{tpu_custom_call.1} parent=51 // pred_check_branch
          %358 = sbr.rel (%p356) target = $region56
        $region55: #{tpu_custom_call.1} parent=51 // pred_region
          %359 = dma.done %s352, 4096
        $region56: #{tpu_custom_call.1} parent=51 // pred_fallthru
          _
        // Predicated region
        $region57: #{tpu_custom_call.1} parent=51 // pred_check
          %p360 = pneg %p71
        $region58: #{tpu_custom_call.1} parent=51 // pred_check_branch
          %362 = sbr.rel (%p360) target = $region60
        $region59: #{tpu_custom_call.1} parent=51 // pred_region
          %363 = dma.done [#allocation7], 18432
        $region60: #{tpu_custom_call.1} parent=51 // pred_fallthru
          _
        // Predicated region
        $region61: #{tpu_custom_call.1} parent=51 // pred_check
          %p364 = pneg %p92
        $region62: #{tpu_custom_call.1} parent=51 // pred_check_branch
          %366 = sbr.rel (%p364) target = $region64
        $region63: #{tpu_custom_call.1} parent=51 // pred_region
          %367 = dma.done [#allocation7], 18432
        $region64: #{tpu_custom_call.1} parent=51 // pred_fallthru
          _
        // Predicated region
        $region65: #{tpu_custom_call.1} parent=51 // pred_check
          %p368 = pneg %p113
        $region66: #{tpu_custom_call.1} parent=51 // pred_check_branch
          %370 = sbr.rel (%p368) target = $region68
        $region67: #{tpu_custom_call.1} parent=51 // pred_region
          %371 = dma.done [#allocation10], 16
        $region68: #{tpu_custom_call.1} parent=51 // pred_fallthru
          _
        // Predicated region
        $region69: #{tpu_custom_call.1} parent=51 // pred_check
          %p372 = pneg %p134
        $region70: #{tpu_custom_call.1} parent=51 // pred_check_branch
          %374 = sbr.rel (%p372) target = $region72
        $region71: #{tpu_custom_call.1} parent=51 // pred_region
          %375 = dma.done [#allocation10], 16
        $region72: #{tpu_custom_call.1} parent=51 // pred_fallthru
          _
        // Predicated region
        $region73: #{tpu_custom_call.1} parent=51 // pred_check
          %p376 = pneg %p155
        $region74: #{tpu_custom_call.1} parent=51 // pred_check_branch
          %378 = sbr.rel (%p376) target = $region76
        $region75: #{tpu_custom_call.1} parent=51 // pred_region
          %379 = dma.done [#allocation13], 16
        $region76: #{tpu_custom_call.1} parent=51 // pred_fallthru
          _
        // Predicated region
        $region77: #{tpu_custom_call.1} parent=51 // pred_check
          %p380 = pneg %p176
        $region78: #{tpu_custom_call.1} parent=51 // pred_check_branch
          %382 = sbr.rel (%p380) target = $region80
        $region79: #{tpu_custom_call.1} parent=51 // pred_region
          %383 = dma.done [#allocation13], 16
        $region80: #{tpu_custom_call.1} parent=51 // pred_fallthru
          _
        // Predicated region
        $region81: #{tpu_custom_call.1} parent=51 // pred_check
          %p384 = pneg %p197
        $region82: #{tpu_custom_call.1} parent=51 // pred_check_branch
          %386 = sbr.rel (%p384) target = $region84
        $region83: #{tpu_custom_call.1} parent=51 // pred_region
          %387 = dma.done [#allocation16], 16
        $region84: #{tpu_custom_call.1} parent=51 // pred_fallthru
          _
        %s388 = sand.u32 %s37, 1
        %s389 = scalar_lea.sflag [#allocation4], %s388
        %s390 = sand.u32 %s37, 1
        %s391 = smul.addr %s390, 256
        %s392 = scalar_lea.vmem [#allocation3], %s391
        %p393 = pneg %p50
        %p394 = pneg %p47
        %p395 = pneg %p71
        %p396 = pneg %p68
        %p397 = pneg %p92
        %p398 = pneg %p89
        %p399 = pneg %p113
        %p400 = pneg %p110
        %p401 = pneg %p134
        %p402 = pneg %p131
        %p403 = pneg %p155
        %p404 = pneg %p152
        %p405 = pneg %p176
        %p406 = pneg %p173
        %p407 = pneg %p197
        %p408 = pneg %p194
        %p409 = pneg %p223
        %p410 = pneg %p220
        %s411 = sand.u32 %s210, 1
        %s412 = scalar_lea.sflag [#allocation5], %s411
        %s413 = sand.u32 %s210, 1
        %s414 = smul.addr %s413, 256
        %s415 = scalar_lea.vmem [#allocation17], %s414
        %416 = vst [vmem:[#allocation2] sm:$0xff] 0.0
        %417 = vst [vmem:[#allocation2 + $0x8] sm:$0xff] 0.0
        %418 = vst [vmem:[#allocation2 + $0x10] sm:$0x3] 0.0
        %s419 = scalar_lea.vmem [#allocation2], 408
        %420 = vst [vmem:[%s419] sm:$0xff] 0.0
        %421 = vst [vmem:[%s419 + $0x8] sm:$0xff] 0.0
        %422 = vst [vmem:[%s419 + $0x10] sm:$0x3] 0.0
        %s423 = scalar_lea.vmem [#allocation2], 24
        %424 = vst [vmem:[%s423] sm:$0x1] 0.0
        %425 = vst [vmem:[%s423 + $0x18] sm:$0x1] 0.0
        %426 = vst [vmem:[%s423 + $0x30] sm:$0x1] 0.0
        %427 = vst [vmem:[%s423 + $0x48] sm:$0x1] 0.0
        %428 = vst [vmem:[%s423 + $0x60] sm:$0x1] 0.0
        %429 = vst [vmem:[%s423 + $0x78] sm:$0x1] 0.0
        %430 = vst [vmem:[%s423 + $0x90] sm:$0x1] 0.0
        %431 = vst [vmem:[%s423 + $0xa8] sm:$0x1] 0.0
        %432 = vst [vmem:[%s423 + $0xc0] sm:$0x1] 0.0
        %433 = vst [vmem:[%s423 + $0xd8] sm:$0x1] 0.0
        %434 = vst [vmem:[%s423 + $0xf0] sm:$0x1] 0.0
        %435 = vst [vmem:[%s423 + $0x108] sm:$0x1] 0.0
        %436 = vst [vmem:[%s423 + $0x120] sm:$0x1] 0.0
        %437 = vst [vmem:[%s423 + $0x138] sm:$0x1] 0.0
        %438 = vst [vmem:[%s423 + $0x150] sm:$0x1] 0.0
        %439 = vst [vmem:[%s423 + $0x168] sm:$0x1] 0.0
        %440 = vst [vmem:[%s423 + $0x11] sm:$0x1] 0.0
        %441 = vst [vmem:[%s423 + $0x29] sm:$0x1] 0.0
        %442 = vst [vmem:[%s423 + $0x41] sm:$0x1] 0.0
        %443 = vst [vmem:[%s423 + $0x59] sm:$0x1] 0.0
        %444 = vst [vmem:[%s423 + $0x71] sm:$0x1] 0.0
        %445 = vst [vmem:[%s423 + $0x89] sm:$0x1] 0.0
        %446 = vst [vmem:[%s423 + $0xa1] sm:$0x1] 0.0
        %447 = vst [vmem:[%s423 + $0xb9] sm:$0x1] 0.0
        %448 = vst [vmem:[%s423 + $0xd1] sm:$0x1] 0.0
        %449 = vst [vmem:[%s423 + $0xe9] sm:$0x1] 0.0
        %450 = vst [vmem:[%s423 + $0x101] sm:$0x1] 0.0
        %451 = vst [vmem:[%s423 + $0x119] sm:$0x1] 0.0
        %452 = vst [vmem:[%s423 + $0x131] sm:$0x1] 0.0
        %453 = vst [vmem:[%s423 + $0x149] sm:$0x1] 0.0
        %454 = vst [vmem:[%s423 + $0x161] sm:$0x1] 0.0
        %455 = vst [vmem:[%s423 + $0x179] sm:$0x1] 0.0
        %v456 = vld [vmem:[%s355] sm:$0xff]
        %v457 = vld [vmem:[%s355 + $0x8] sm:$0xff]
        %v458 = vld [vmem:[%s355 + $0x10] sm:$0xff]
        %v459 = vld [vmem:[%s355 + $0x18] sm:$0xff]
        %v460 = vld [vmem:[%s355 + $0x20] sm:$0xff]
        %v461 = vld [vmem:[%s355 + $0x28] sm:$0xff]
        %v462 = vld [vmem:[%s355 + $0x30] sm:$0xff]
        %v463 = vld [vmem:[%s355 + $0x38] sm:$0xff]
        %v464 = vld [vmem:[%s355 + $0x40] sm:$0xff]
        %v465 = vld [vmem:[%s355 + $0x48] sm:$0xff]
        %v466 = vld [vmem:[%s355 + $0x50] sm:$0xff]
        %v467 = vld [vmem:[%s355 + $0x58] sm:$0xff]
        %v468 = vld [vmem:[%s355 + $0x60] sm:$0xff]
        %v469 = vld [vmem:[%s355 + $0x68] sm:$0xff]
        %v470 = vld [vmem:[%s355 + $0x70] sm:$0xff]
        %v471 = vld [vmem:[%s355 + $0x78] sm:$0xff]
        %v472 = vld [vmem:[%s355 + $0x80] sm:$0xff]
        %v473 = vld [vmem:[%s355 + $0x88] sm:$0xff]
        %v474 = vld [vmem:[%s355 + $0x90] sm:$0xff]
        %v475 = vld [vmem:[%s355 + $0x98] sm:$0xff]
        %v476 = vld [vmem:[%s355 + $0xa0] sm:$0xff]
        %v477 = vld [vmem:[%s355 + $0xa8] sm:$0xff]
        %v478 = vld [vmem:[%s355 + $0xb0] sm:$0xff]
        %v479 = vld [vmem:[%s355 + $0xb8] sm:$0xff]
        %v480 = vld [vmem:[%s355 + $0xc0] sm:$0xff]
        %v481 = vld [vmem:[%s355 + $0xc8] sm:$0xff]
        %v482 = vld [vmem:[%s355 + $0xd0] sm:$0xff]
        %v483 = vld [vmem:[%s355 + $0xd8] sm:$0xff]
        %v484 = vld [vmem:[%s355 + $0xe0] sm:$0xff]
        %v485 = vld [vmem:[%s355 + $0xe8] sm:$0xff]
        %v486 = vld [vmem:[%s355 + $0xf0] sm:$0xff]
        %v487 = vld [vmem:[%s355 + $0xf8] sm:$0xff]
        %v488 = vld [vmem:[#allocation9] sm:$0x1]
        %v490 = vlaneseq
        %v491 = vshrl.u32 %v490, 7
        %v492 = vsub.s32 0, %v491
        %v493 = vrot.slane %v488, %v492
        %v495 = vmul.f32 %v456, %v493
        %v496 = vmul.f32 %v457, %v493
        %v497 = vmul.f32 %v458, %v493
        %v498 = vmul.f32 %v459, %v493
        %v499 = vmul.f32 %v460, %v493
        %v500 = vmul.f32 %v461, %v493
        %v501 = vmul.f32 %v462, %v493
        %v502 = vmul.f32 %v463, %v493
        %v503 = vmul.f32 %v464, %v493
        %v504 = vmul.f32 %v465, %v493
        %v505 = vmul.f32 %v466, %v493
        %v506 = vmul.f32 %v467, %v493
        %v507 = vmul.f32 %v468, %v493
        %v508 = vmul.f32 %v469, %v493
        %v509 = vmul.f32 %v470, %v493
        %v510 = vmul.f32 %v471, %v493
        %v511 = vmul.f32 %v472, %v493
        %v512 = vmul.f32 %v473, %v493
        %v513 = vmul.f32 %v474, %v493
        %v514 = vmul.f32 %v475, %v493
        %v515 = vmul.f32 %v476, %v493
        %v516 = vmul.f32 %v477, %v493
        %v517 = vmul.f32 %v478, %v493
        %v518 = vmul.f32 %v479, %v493
        %v519 = vmul.f32 %v480, %v493
        %v520 = vmul.f32 %v481, %v493
        %v521 = vmul.f32 %v482, %v493
        %v522 = vmul.f32 %v483, %v493
        %v523 = vmul.f32 %v484, %v493
        %v524 = vmul.f32 %v485, %v493
        %v525 = vmul.f32 %v486, %v493
        %v526 = vmul.f32 %v487, %v493
        %v527 = vld [vmem:[#allocation11] sm:$0x1]
        %v529 = vlaneseq
        %v530 = vshrl.u32 %v529, 7
        %v531 = vsub.s32 0, %v530
        %v532 = vrot.slane %v527, %v531
        %v534 = vadd.f32 %v495, %v532
        %v535 = vadd.f32 %v496, %v532
        %v536 = vadd.f32 %v497, %v532
        %v537 = vadd.f32 %v498, %v532
        %v538 = vadd.f32 %v499, %v532
        %v539 = vadd.f32 %v500, %v532
        %v540 = vadd.f32 %v501, %v532
        %v541 = vadd.f32 %v502, %v532
        %v542 = vadd.f32 %v503, %v532
        %v543 = vadd.f32 %v504, %v532
        %v544 = vadd.f32 %v505, %v532
        %v545 = vadd.f32 %v506, %v532
        %v546 = vadd.f32 %v507, %v532
        %v547 = vadd.f32 %v508, %v532
        %v548 = vadd.f32 %v509, %v532
        %v549 = vadd.f32 %v510, %v532
        %v550 = vadd.f32 %v511, %v532
        %v551 = vadd.f32 %v512, %v532
        %v552 = vadd.f32 %v513, %v532
        %v553 = vadd.f32 %v514, %v532
        %v554 = vadd.f32 %v515, %v532
        %v555 = vadd.f32 %v516, %v532
        %v556 = vadd.f32 %v517, %v532
        %v557 = vadd.f32 %v518, %v532
        %v558 = vadd.f32 %v519, %v532
        %v559 = vadd.f32 %v520, %v532
        %v560 = vadd.f32 %v521, %v532
        %v561 = vadd.f32 %v522, %v532
        %v562 = vadd.f32 %v523, %v532
        %v563 = vadd.f32 %v524, %v532
        %v564 = vadd.f32 %v525, %v532
        %v565 = vadd.f32 %v526, %v532
        %566 = vst [vmem:[%s423 + $0x1] sm:$0xff] %v534
        %567 = vst [vmem:[%s423 + $0x9] sm:$0xff] %v535
        %568 = vst [vmem:[%s423 + $0x19] sm:$0xff] %v536
        %569 = vst [vmem:[%s423 + $0x21] sm:$0xff] %v537
        %570 = vst [vmem:[%s423 + $0x31] sm:$0xff] %v538
        %571 = vst [vmem:[%s423 + $0x39] sm:$0xff] %v539
        %572 = vst [vmem:[%s423 + $0x49] sm:$0xff] %v540
        %573 = vst [vmem:[%s423 + $0x51] sm:$0xff] %v541
        %574 = vst [vmem:[%s423 + $0x61] sm:$0xff] %v542
        %575 = vst [vmem:[%s423 + $0x69] sm:$0xff] %v543
        %576 = vst [vmem:[%s423 + $0x79] sm:$0xff] %v544
        %577 = vst [vmem:[%s423 + $0x81] sm:$0xff] %v545
        %578 = vst [vmem:[%s423 + $0x91] sm:$0xff] %v546
        %579 = vst [vmem:[%s423 + $0x99] sm:$0xff] %v547
        %580 = vst [vmem:[%s423 + $0xa9] sm:$0xff] %v548
        %581 = vst [vmem:[%s423 + $0xb1] sm:$0xff] %v549
        %582 = vst [vmem:[%s423 + $0xc1] sm:$0xff] %v550
        %583 = vst [vmem:[%s423 + $0xc9] sm:$0xff] %v551
        %584 = vst [vmem:[%s423 + $0xd9] sm:$0xff] %v552
        %585 = vst [vmem:[%s423 + $0xe1] sm:$0xff] %v553
        %586 = vst [vmem:[%s423 + $0xf1] sm:$0xff] %v554
        %587 = vst [vmem:[%s423 + $0xf9] sm:$0xff] %v555
        %588 = vst [vmem:[%s423 + $0x109] sm:$0xff] %v556
        %589 = vst [vmem:[%s423 + $0x111] sm:$0xff] %v557
        %590 = vst [vmem:[%s423 + $0x121] sm:$0xff] %v558
        %591 = vst [vmem:[%s423 + $0x129] sm:$0xff] %v559
        %592 = vst [vmem:[%s423 + $0x139] sm:$0xff] %v560
        %593 = vst [vmem:[%s423 + $0x141] sm:$0xff] %v561
        %594 = vst [vmem:[%s423 + $0x151] sm:$0xff] %v562
        %595 = vst [vmem:[%s423 + $0x159] sm:$0xff] %v563
        %596 = vst [vmem:[%s423 + $0x169] sm:$0xff] %v564
        %597 = vst [vmem:[%s423 + $0x171] sm:$0xff] %v565
        %v598 = vld [vmem:[#allocation2] sm:$0xff]
        %v599 = vld [vmem:[#allocation2 + $0x8] sm:$0xff]
        %v600 = vld [vmem:[#allocation2 + $0x18] sm:$0xff]
        %v601 = vld [vmem:[#allocation2 + $0x20] sm:$0xff]
        %v602 = vld [vmem:[#allocation2 + $0x30] sm:$0xff]
        %v603 = vld [vmem:[#allocation2 + $0x38] sm:$0xff]
        %v604 = vld [vmem:[#allocation2 + $0x48] sm:$0xff]
        %v605 = vld [vmem:[#allocation2 + $0x50] sm:$0xff]
        %v606 = vld [vmem:[#allocation2 + $0x60] sm:$0xff]
        %v607 = vld [vmem:[#allocation2 + $0x68] sm:$0xff]
        %v608 = vld [vmem:[#allocation2 + $0x78] sm:$0xff]
        %v609 = vld [vmem:[#allocation2 + $0x80] sm:$0xff]
        %v610 = vld [vmem:[#allocation2 + $0x90] sm:$0xff]
        %v611 = vld [vmem:[#allocation2 + $0x98] sm:$0xff]
        %v612 = vld [vmem:[#allocation2 + $0xa8] sm:$0xff]
        %v613 = vld [vmem:[#allocation2 + $0xb0] sm:$0xff]
        %v614 = vld [vmem:[#allocation2 + $0xc0] sm:$0xff]
        %v615 = vld [vmem:[#allocation2 + $0xc8] sm:$0xff]
        %v616 = vld [vmem:[#allocation2 + $0xd8] sm:$0xff]
        %v617 = vld [vmem:[#allocation2 + $0xe0] sm:$0xff]
        %v618 = vld [vmem:[#allocation2 + $0xf0] sm:$0xff]
        %v619 = vld [vmem:[#allocation2 + $0xf8] sm:$0xff]
        %v620 = vld [vmem:[#allocation2 + $0x108] sm:$0xff]
        %v621 = vld [vmem:[#allocation2 + $0x110] sm:$0xff]
        %v622 = vld [vmem:[#allocation2 + $0x120] sm:$0xff]
        %v623 = vld [vmem:[#allocation2 + $0x128] sm:$0xff]
        %v624 = vld [vmem:[#allocation2 + $0x138] sm:$0xff]
        %v625 = vld [vmem:[#allocation2 + $0x140] sm:$0xff]
        %v626 = vld [vmem:[#allocation2 + $0x150] sm:$0xff]
        %v627 = vld [vmem:[#allocation2 + $0x158] sm:$0xff]
        %v628 = vld [vmem:[#allocation2 + $0x168] sm:$0xff]
        %v629 = vld [vmem:[#allocation2 + $0x170] sm:$0xff]
        %v630 = vld [vmem:[#allocation2 + $0x180] sm:$0xff]
        %v631 = vld [vmem:[#allocation2 + $0x188] sm:$0xff]
        %v632 = vld [vmem:[#allocation2 + $0x198] sm:$0xff]
        %v633 = vld [vmem:[#allocation2 + $0x1a0] sm:$0xff]
        %v634 = vld [vmem:[#allocation2 + $0x1] sm:$0xff]
        %v635 = vld [vmem:[#allocation2 + $0x9] sm:$0xff]
        %v636 = vld [vmem:[#allocation2 + $0x19] sm:$0xff]
        %v637 = vld [vmem:[#allocation2 + $0x21] sm:$0xff]
        %v638 = vld [vmem:[#allocation2 + $0x31] sm:$0xff]
        %v639 = vld [vmem:[#allocation2 + $0x39] sm:$0xff]
        %v640 = vld [vmem:[#allocation2 + $0x49] sm:$0xff]
        %v641 = vld [vmem:[#allocation2 + $0x51] sm:$0xff]
        %v642 = vld [vmem:[#allocation2 + $0x61] sm:$0xff]
        %v643 = vld [vmem:[#allocation2 + $0x69] sm:$0xff]
        %v644 = vld [vmem:[#allocation2 + $0x79] sm:$0xff]
        %v645 = vld [vmem:[#allocation2 + $0x81] sm:$0xff]
        %v646 = vld [vmem:[#allocation2 + $0x91] sm:$0xff]
        %v647 = vld [vmem:[#allocation2 + $0x99] sm:$0xff]
        %v648 = vld [vmem:[#allocation2 + $0xa9] sm:$0xff]
        %v649 = vld [vmem:[#allocation2 + $0xb1] sm:$0xff]
        %v650 = vld [vmem:[#allocation2 + $0xc1] sm:$0xff]
        %v651 = vld [vmem:[#allocation2 + $0xc9] sm:$0xff]
        %v652 = vld [vmem:[#allocation2 + $0xd9] sm:$0xff]
        %v653 = vld [vmem:[#allocation2 + $0xe1] sm:$0xff]
        %v654 = vld [vmem:[#allocation2 + $0xf1] sm:$0xff]
        %v655 = vld [vmem:[#allocation2 + $0xf9] sm:$0xff]
        %v656 = vld [vmem:[#allocation2 + $0x109] sm:$0xff]
        %v657 = vld [vmem:[#allocation2 + $0x111] sm:$0xff]
        %v658 = vld [vmem:[#allocation2 + $0x121] sm:$0xff]
        %v659 = vld [vmem:[#allocation2 + $0x129] sm:$0xff]
        %v660 = vld [vmem:[#allocation2 + $0x139] sm:$0xff]
        %v661 = vld [vmem:[#allocation2 + $0x141] sm:$0xff]
        %v662 = vld [vmem:[#allocation2 + $0x151] sm:$0xff]
        %v663 = vld [vmem:[#allocation2 + $0x159] sm:$0xff]
        %v664 = vld [vmem:[#allocation2 + $0x169] sm:$0xff]
        %v665 = vld [vmem:[#allocation2 + $0x171] sm:$0xff]
        %v666 = vld [vmem:[#allocation2 + $0x181] sm:$0xff]
        %v667 = vld [vmem:[#allocation2 + $0x189] sm:$0xff]
        %v668 = vld [vmem:[#allocation2 + $0x199] sm:$0xff]
        %v669 = vld [vmem:[#allocation2 + $0x1a1] sm:$0xff]
        %v670 = vld [vmem:[#allocation2 + $0x2] sm:$0xff]
        %v671 = vld [vmem:[#allocation2 + $0xa] sm:$0xff]
        %v672 = vld [vmem:[#allocation2 + $0x1a] sm:$0xff]
        %v673 = vld [vmem:[#allocation2 + $0x22] sm:$0xff]
        %v674 = vld [vmem:[#allocation2 + $0x32] sm:$0xff]
        %v675 = vld [vmem:[#allocation2 + $0x3a] sm:$0xff]
        %v676 = vld [vmem:[#allocation2 + $0x4a] sm:$0xff]
        %v677 = vld [vmem:[#allocation2 + $0x52] sm:$0xff]
        %v678 = vld [vmem:[#allocation2 + $0x62] sm:$0xff]
        %v679 = vld [vmem:[#allocation2 + $0x6a] sm:$0xff]
        %v680 = vld [vmem:[#allocation2 + $0x7a] sm:$0xff]
        %v681 = vld [vmem:[#allocation2 + $0x82] sm:$0xff]
        %v682 = vld [vmem:[#allocation2 + $0x92] sm:$0xff]
        %v683 = vld [vmem:[#allocation2 + $0x9a] sm:$0xff]
        %v684 = vld [vmem:[#allocation2 + $0xaa] sm:$0xff]
        %v685 = vld [vmem:[#allocation2 + $0xb2] sm:$0xff]
        %v686 = vld [vmem:[#allocation2 + $0xc2] sm:$0xff]
        %v687 = vld [vmem:[#allocation2 + $0xca] sm:$0xff]
        %v688 = vld [vmem:[#allocation2 + $0xda] sm:$0xff]
        %v689 = vld [vmem:[#allocation2 + $0xe2] sm:$0xff]
        %v690 = vld [vmem:[#allocation2 + $0xf2] sm:$0xff]
        %v691 = vld [vmem:[#allocation2 + $0xfa] sm:$0xff]
        %v692 = vld [vmem:[#allocation2 + $0x10a] sm:$0xff]
        %v693 = vld [vmem:[#allocation2 + $0x112] sm:$0xff]
        %v694 = vld [vmem:[#allocation2 + $0x122] sm:$0xff]
        %v695 = vld [vmem:[#allocation2 + $0x12a] sm:$0xff]
        %v696 = vld [vmem:[#allocation2 + $0x13a] sm:$0xff]
        %v697 = vld [vmem:[#allocation2 + $0x142] sm:$0xff]
        %v698 = vld [vmem:[#allocation2 + $0x152] sm:$0xff]
        %v699 = vld [vmem:[#allocation2 + $0x15a] sm:$0xff]
        %v700 = vld [vmem:[#allocation2 + $0x16a] sm:$0xff]
        %v701 = vld [vmem:[#allocation2 + $0x172] sm:$0xff]
        %v702 = vld [vmem:[#allocation2 + $0x182] sm:$0xff]
        %v703 = vld [vmem:[#allocation2 + $0x18a] sm:$0xff]
        %v704 = vld [vmem:[#allocation2 + $0x19a] sm:$0xff]
        %v705 = vld [vmem:[#allocation2 + $0x1a2] sm:$0xff]
        %v706 = vld [vmem:[#allocation6] sm:$0xff]
        %v707 = vld [vmem:[#allocation6 + $0x8] sm:$0xff]
        %v708 = vld [vmem:[#allocation6 + $0x10] sm:$0xff]
        %v709 = vld [vmem:[#allocation6 + $0x18] sm:$0xff]
        %v710 = vld [vmem:[#allocation6 + $0x20] sm:$0xff]
        %v711 = vld [vmem:[#allocation6 + $0x28] sm:$0xff]
        %v712 = vld [vmem:[#allocation6 + $0x30] sm:$0xff]
        %v713 = vld [vmem:[#allocation6 + $0x38] sm:$0xff]
        %v714 = vld [vmem:[#allocation6 + $0x40] sm:$0xff]
        %v715 = vld [vmem:[#allocation6 + $0x48] sm:$0xff]
        %v716 = vld [vmem:[#allocation6 + $0x50] sm:$0xff]
        %v717 = vld [vmem:[#allocation6 + $0x58] sm:$0xff]
        %v718 = vld [vmem:[#allocation6 + $0x60] sm:$0xff]
        %v719 = vld [vmem:[#allocation6 + $0x68] sm:$0xff]
        %v720 = vld [vmem:[#allocation6 + $0x70] sm:$0xff]
        %v721 = vld [vmem:[#allocation6 + $0x78] sm:$0xff]
        %v722 = vld [vmem:[#allocation6 + $0x80] sm:$0xff]
        %v723 = vld [vmem:[#allocation6 + $0x88] sm:$0xff]
        %v724 = vld [vmem:[#allocation6 + $0x90] sm:$0xff]
        %v725 = vld [vmem:[#allocation6 + $0x98] sm:$0xff]
        %v726 = vld [vmem:[#allocation6 + $0xa0] sm:$0xff]
        %v727 = vld [vmem:[#allocation6 + $0xa8] sm:$0xff]
        %v728 = vld [vmem:[#allocation6 + $0xb0] sm:$0xff]
        %v729 = vld [vmem:[#allocation6 + $0xb8] sm:$0xff]
        %v730 = vld [vmem:[#allocation6 + $0xc0] sm:$0xff]
        %v731 = vld [vmem:[#allocation6 + $0xc8] sm:$0xff]
        %v732 = vld [vmem:[#allocation6 + $0xd0] sm:$0xff]
        %v733 = vld [vmem:[#allocation6 + $0xd8] sm:$0xff]
        %v734 = vld [vmem:[#allocation6 + $0xe0] sm:$0xff]
        %v735 = vld [vmem:[#allocation6 + $0xe8] sm:$0xff]
        %v736 = vld [vmem:[#allocation6 + $0xf0] sm:$0xff]
        %v737 = vld [vmem:[#allocation6 + $0xf8] sm:$0xff]
        %v738 = vld [vmem:[#allocation6 + $0x100] sm:$0xff]
        %v739 = vld [vmem:[#allocation6 + $0x108] sm:$0xff]
        %v740 = vld [vmem:[#allocation6 + $0x110] sm:$0xff]
        %v741 = vld [vmem:[#allocation6 + $0x118] sm:$0xff]
        %v742 = vld [vmem:[#allocation6 + $0x120] sm:$0xff]
        %v743 = vld [vmem:[#allocation6 + $0x128] sm:$0xff]
        %v744 = vld [vmem:[#allocation6 + $0x130] sm:$0xff]
        %v745 = vld [vmem:[#allocation6 + $0x138] sm:$0xff]
        %v746 = vld [vmem:[#allocation6 + $0x140] sm:$0xff]
        %v747 = vld [vmem:[#allocation6 + $0x148] sm:$0xff]
        %v748 = vld [vmem:[#allocation6 + $0x150] sm:$0xff]
        %v749 = vld [vmem:[#allocation6 + $0x158] sm:$0xff]
        %v750 = vld [vmem:[#allocation6 + $0x160] sm:$0xff]
        %v751 = vld [vmem:[#allocation6 + $0x168] sm:$0xff]
        %v752 = vld [vmem:[#allocation6 + $0x170] sm:$0xff]
        %v753 = vld [vmem:[#allocation6 + $0x178] sm:$0xff]
        %v754 = vld [vmem:[#allocation6 + $0x180] sm:$0xff]
        %v755 = vld [vmem:[#allocation6 + $0x188] sm:$0xff]
        %v756 = vld [vmem:[#allocation6 + $0x190] sm:$0xff]
        %v757 = vld [vmem:[#allocation6 + $0x198] sm:$0xff]
        %v758 = vld [vmem:[#allocation6 + $0x1a0] sm:$0xff]
        %v759 = vld [vmem:[#allocation6 + $0x1a8] sm:$0xff]
        %v760 = vld [vmem:[#allocation6 + $0x1b0] sm:$0xff]
        %v761 = vld [vmem:[#allocation6 + $0x1b8] sm:$0xff]
        %v762 = vld [vmem:[#allocation6 + $0x1c0] sm:$0xff]
        %v763 = vld [vmem:[#allocation6 + $0x1c8] sm:$0xff]
        %v764 = vld [vmem:[#allocation6 + $0x1d0] sm:$0xff]
        %v765 = vld [vmem:[#allocation6 + $0x1d8] sm:$0xff]
        %v766 = vld [vmem:[#allocation6 + $0x1e0] sm:$0xff]
        %v767 = vld [vmem:[#allocation6 + $0x1e8] sm:$0xff]
        %v768 = vld [vmem:[#allocation6 + $0x1f0] sm:$0xff]
        %v769 = vld [vmem:[#allocation6 + $0x1f8] sm:$0xff]
        %v770 = vld [vmem:[#allocation6 + $0x200] sm:$0xff]
        %v771 = vld [vmem:[#allocation6 + $0x208] sm:$0xff]
        %v772 = vld [vmem:[#allocation6 + $0x210] sm:$0xff]
        %v773 = vld [vmem:[#allocation6 + $0x218] sm:$0xff]
        %v774 = vld [vmem:[#allocation6 + $0x220] sm:$0xff]
        %v775 = vld [vmem:[#allocation6 + $0x228] sm:$0xff]
        %v776 = vld [vmem:[#allocation6 + $0x230] sm:$0xff]
        %v777 = vld [vmem:[#allocation6 + $0x238] sm:$0xff]
        %v778 = vld [vmem:[#allocation6 + $0x240] sm:$0xff]
        %v779 = vld [vmem:[#allocation6 + $0x248] sm:$0xff]
        %v780 = vld [vmem:[#allocation6 + $0x250] sm:$0xff]
        %v781 = vld [vmem:[#allocation6 + $0x258] sm:$0xff]
        %v782 = vld [vmem:[#allocation6 + $0x260] sm:$0xff]
        %v783 = vld [vmem:[#allocation6 + $0x268] sm:$0xff]
        %v784 = vld [vmem:[#allocation6 + $0x270] sm:$0xff]
        %v785 = vld [vmem:[#allocation6 + $0x278] sm:$0xff]
        %v786 = vld [vmem:[#allocation6 + $0x280] sm:$0xff]
        %v787 = vld [vmem:[#allocation6 + $0x288] sm:$0xff]
        %v788 = vld [vmem:[#allocation6 + $0x290] sm:$0xff]
        %v789 = vld [vmem:[#allocation6 + $0x298] sm:$0xff]
        %v790 = vld [vmem:[#allocation6 + $0x2a0] sm:$0xff]
        %v791 = vld [vmem:[#allocation6 + $0x2a8] sm:$0xff]
        %v792 = vld [vmem:[#allocation6 + $0x2b0] sm:$0xff]
        %v793 = vld [vmem:[#allocation6 + $0x2b8] sm:$0xff]
        %v794 = vld [vmem:[#allocation6 + $0x2c0] sm:$0xff]
        %v795 = vld [vmem:[#allocation6 + $0x2c8] sm:$0xff]
        %v796 = vld [vmem:[#allocation6 + $0x2d0] sm:$0xff]
        %v797 = vld [vmem:[#allocation6 + $0x2d8] sm:$0xff]
        %v798 = vld [vmem:[#allocation6 + $0x2e0] sm:$0xff]
        %v799 = vld [vmem:[#allocation6 + $0x2e8] sm:$0xff]
        %v800 = vld [vmem:[#allocation6 + $0x2f0] sm:$0xff]
        %v801 = vld [vmem:[#allocation6 + $0x2f8] sm:$0xff]
        %802 = vmatprep.subr.mxu0 0.0
        %803 = vmatpush1.msra.mxu0 %v754
        %804 = vmatprep.subr.mxu0 0.0
        %805 = vmatpush1.msra.mxu0 %v755
        %806 = vmatprep.subr.mxu0 0.0
        %807 = vmatpush1.msra.mxu0 %v756
        %808 = vmatprep.subr.mxu0 0.0
        %809 = vmatpush1.msra.mxu0 %v757
        %810 = vmatprep.subr.mxu0 0.0
        %811 = vmatpush1.msra.mxu0 %v758
        %812 = vmatprep.subr.mxu0 0.0
        %813 = vmatpush1.msra.mxu0 %v759
        %814 = vmatprep.subr.mxu0 0.0
        %815 = vmatpush1.msra.mxu0 %v760
        %816 = vmatprep.subr.mxu0 0.0
        %817 = vmatpush1.msra.mxu0 %v761
        %818 = vmatprep.subr.mxu0 0.0
        %819 = vmatpush1.msra.mxu0 %v762
        %820 = vmatprep.subr.mxu0 0.0
        %821 = vmatpush1.msra.mxu0 %v763
        %822 = vmatprep.subr.mxu0 0.0
        %823 = vmatpush1.msra.mxu0 %v764
        %824 = vmatprep.subr.mxu0 0.0
        %825 = vmatpush1.msra.mxu0 %v765
        %826 = vmatprep.subr.mxu0 0.0
        %827 = vmatpush1.msra.mxu0 %v766
        %828 = vmatprep.subr.mxu0 0.0
        %829 = vmatpush1.msra.mxu0 %v767
        %830 = vmatprep.subr.mxu0 0.0
        %831 = vmatpush1.msra.mxu0 %v768
        %832 = vmatprep.subr.mxu0 0.0
        %833 = vmatpush1.msra.mxu0 %v769
        %834 = vmatprep.subr.mxu0 0.0
        %835 = vmatpush1.msra.mxu0 %v770
        %836 = vmatprep.subr.mxu0 0.0
        %837 = vmatpush1.msra.mxu0 %v771
        %838 = vmatprep.subr.mxu0 0.0
        %839 = vmatpush1.msra.mxu0 %v772
        %840 = vmatprep.subr.mxu0 0.0
        %841 = vmatpush1.msra.mxu0 %v773
        %842 = vmatprep.subr.mxu0 0.0
        %843 = vmatpush1.msra.mxu0 %v774
        %844 = vmatprep.subr.mxu0 0.0
        %845 = vmatpush1.msra.mxu0 %v775
        %846 = vmatprep.subr.mxu0 0.0
        %847 = vmatpush1.msra.mxu0 %v776
        %848 = vmatprep.subr.mxu0 0.0
        %849 = vmatpush1.msra.mxu0 %v777
        %850 = vmatprep.subr.mxu0 0.0
        %851 = vmatpush1.msra.mxu0 %v778
        %852 = vmatprep.subr.mxu0 0.0
        %853 = vmatpush1.msra.mxu0 %v779
        %854 = vmatprep.subr.mxu0 0.0
        %855 = vmatpush1.msra.mxu0 %v780
        %856 = vmatprep.subr.mxu0 0.0
        %857 = vmatpush1.msra.mxu0 %v781
        %858 = vmatprep.subr.mxu0 0.0
        %859 = vmatpush1.msra.mxu0 %v782
        %860 = vmatprep.subr.mxu0 0.0
        %861 = vmatpush1.msra.mxu0 %v783
        %862 = vmatprep.subr.mxu0 0.0
        %863 = vmatpush1.msra.mxu0 %v784
        %864 = vmatprep.subr.mxu0 0.0
        %865 = vmatpush1.msra.mxu0 %v785
        %866 = vmatprep.mubr.f32.mxu0 %v636
        %867 = vmatmul.mubr.f32.gmra.mrb[0].mxu0 %v600
        %v868 = vpop.f32.mrb[0].mxu0
        %v869 = vadd.f32 0.0, %v868
        %v870 = vpop.f32.mrb[0].mxu0
        %871 = vmatprep.mubr.f32.mxu0 %v637
        %872 = vmatmul.mubr.f32.gmra.mrb[0].mxu0 %v601
        %v873 = vpop.f32.mrb[0].mxu0
        %v874 = vadd.f32 0.0, %v873
        %v875 = vpop.f32.mrb[0].mxu0
        %876 = vmatprep.mubr.f32.mxu0 %v638
        %877 = vmatmul.mubr.f32.gmra.mrb[0].mxu0 %v602
        %v878 = vpop.f32.mrb[0].mxu0
        %v879 = vadd.f32 0.0, %v878
        %v880 = vpop.f32.mrb[0].mxu0
        %881 = vmatprep.mubr.f32.mxu0 %v639
        %882 = vmatmul.mubr.f32.gmra.mrb[0].mxu0 %v603
        %v883 = vpop.f32.mrb[0].mxu0
        %v884 = vadd.f32 0.0, %v883
        %v885 = vpop.f32.mrb[0].mxu0
        %886 = vmatprep.mubr.f32.mxu0 %v640
        %887 = vmatmul.mubr.f32.gmra.mrb[0].mxu0 %v604
        %v888 = vpop.f32.mrb[0].mxu0
        %v889 = vadd.f32 0.0, %v888
        %v890 = vpop.f32.mrb[0].mxu0
        %891 = vmatprep.mubr.f32.mxu0 %v641
        %892 = vmatmul.mubr.f32.gmra.mrb[0].mxu0 %v605
        %v893 = vpop.f32.mrb[0].mxu0
        %v894 = vadd.f32 0.0, %v893
        %v895 = vpop.f32.mrb[0].mxu0
        %896 = vmatprep.mubr.f32.mxu0 %v642
        %897 = vmatmul.mubr.f32.gmra.mrb[0].mxu0 %v606
        %v898 = vpop.f32.mrb[0].mxu0
        %v899 = vadd.f32 0.0, %v898
        %v900 = vpop.f32.mrb[0].mxu0
        %901 = vmatprep.mubr.f32.mxu0 %v643
        %902 = vmatmul.mubr.f32.gmra.mrb[0].mxu0 %v607
        %v903 = vpop.f32.mrb[0].mxu0
        %v904 = vadd.f32 0.0, %v903
        %v905 = vpop.f32.mrb[0].mxu0
        %906 = vmatprep.mubr.f32.mxu0 %v644
        %907 = vmatmul.mubr.f32.gmra.mrb[0].mxu0 %v608
        %v908 = vpop.f32.mrb[0].mxu0
        %v909 = vadd.f32 0.0, %v908
        %v910 = vpop.f32.mrb[0].mxu0
        %911 = vmatprep.mubr.f32.mxu0 %v645
        %912 = vmatmul.mubr.f32.gmra.mrb[0].mxu0 %v609
        %v913 = vpop.f32.mrb[0].mxu0
        %v914 = vadd.f32 0.0, %v913
        %v915 = vpop.f32.mrb[0].mxu0
        %916 = vmatprep.mubr.f32.mxu0 %v646
        %917 = vmatmul.mubr.f32.gmra.mrb[0].mxu0 %v610
        %v918 = vpop.f32.mrb[0].mxu0
        %v919 = vadd.f32 0.0, %v918
        %v920 = vpop.f32.mrb[0].mxu0
        %921 = vmatprep.mubr.f32.mxu0 %v647
        %922 = vmatmul.mubr.f32.gmra.mrb[0].mxu0 %v611
        %v923 = vpop.f32.mrb[0].mxu0
        %v924 = vadd.f32 0.0, %v923
        %v925 = vpop.f32.mrb[0].mxu0
        %926 = vmatprep.mubr.f32.mxu0 %v648
        %927 = vmatmul.mubr.f32.gmra.mrb[0].mxu0 %v612
        %v928 = vpop.f32.mrb[0].mxu0
        %v929 = vadd.f32 0.0, %v928
        %v930 = vpop.f32.mrb[0].mxu0
        %931 = vmatprep.mubr.f32.mxu0 %v649
        %932 = vmatmul.mubr.f32.gmra.mrb[0].mxu0 %v613
        %v933 = vpop.f32.mrb[0].mxu0
        %v934 = vadd.f32 0.0, %v933
        %v935 = vpop.f32.mrb[0].mxu0
        %936 = vmatprep.mubr.f32.mxu0 %v650
        %937 = vmatmul.mubr.f32.gmra.mrb[0].mxu0 %v614
        %v938 = vpop.f32.mrb[0].mxu0
        %v939 = vadd.f32 0.0, %v938
        %v940 = vpop.f32.mrb[0].mxu0
        %941 = vmatprep.mubr.f32.mxu0 %v651
        %942 = vmatmul.mubr.f32.gmra.mrb[0].mxu0 %v615
        %v943 = vpop.f32.mrb[0].mxu0
        %v944 = vadd.f32 0.0, %v943
        %v945 = vpop.f32.mrb[0].mxu0
        %946 = vmatprep.mubr.f32.mxu0 %v652
        %947 = vmatmul.mubr.f32.gmra.mrb[0].mxu0 %v616
        %v948 = vpop.f32.mrb[0].mxu0
        %v949 = vadd.f32 0.0, %v948
        %v950 = vpop.f32.mrb[0].mxu0
        %951 = vmatprep.mubr.f32.mxu0 %v653
        %952 = vmatmul.mubr.f32.gmra.mrb[0].mxu0 %v617
        %v953 = vpop.f32.mrb[0].mxu0
        %v954 = vadd.f32 0.0, %v953
        %v955 = vpop.f32.mrb[0].mxu0
        %956 = vmatprep.mubr.f32.mxu0 %v654
        %957 = vmatmul.mubr.f32.gmra.mrb[0].mxu0 %v618
        %v958 = vpop.f32.mrb[0].mxu0
        %v959 = vadd.f32 0.0, %v958
        %v960 = vpop.f32.mrb[0].mxu0
        %961 = vmatprep.mubr.f32.mxu0 %v655
        %962 = vmatmul.mubr.f32.gmra.mrb[0].mxu0 %v619
        %v963 = vpop.f32.mrb[0].mxu0
        %v964 = vadd.f32 0.0, %v963
        %v965 = vpop.f32.mrb[0].mxu0
        %966 = vmatprep.mubr.f32.mxu0 %v656
        %967 = vmatmul.mubr.f32.gmra.mrb[0].mxu0 %v620
        %v968 = vpop.f32.mrb[0].mxu0
        %v969 = vadd.f32 0.0, %v968
        %v970 = vpop.f32.mrb[0].mxu0
        %971 = vmatprep.mubr.f32.mxu0 %v657
        %972 = vmatmul.mubr.f32.gmra.mrb[0].mxu0 %v621
        %v973 = vpop.f32.mrb[0].mxu0
        %v974 = vadd.f32 0.0, %v973
        %v975 = vpop.f32.mrb[0].mxu0
        %976 = vmatprep.mubr.f32.mxu0 %v658
        %977 = vmatmul.mubr.f32.gmra.mrb[0].mxu0 %v622
        %v978 = vpop.f32.mrb[0].mxu0
        %v979 = vadd.f32 0.0, %v978
        %v980 = vpop.f32.mrb[0].mxu0
        %981 = vmatprep.mubr.f32.mxu0 %v659
        %982 = vmatmul.mubr.f32.gmra.mrb[0].mxu0 %v623
        %v983 = vpop.f32.mrb[0].mxu0
        %v984 = vadd.f32 0.0, %v983
        %v985 = vpop.f32.mrb[0].mxu0
        %986 = vmatprep.mubr.f32.mxu0 %v660
        %987 = vmatmul.mubr.f32.gmra.mrb[0].mxu0 %v624
        %v988 = vpop.f32.mrb[0].mxu0
        %v989 = vadd.f32 0.0, %v988
        %v990 = vpop.f32.mrb[0].mxu0
        %991 = vmatprep.mubr.f32.mxu0 %v661
        %992 = vmatmul.mubr.f32.gmra.mrb[0].mxu0 %v625
        %v993 = vpop.f32.mrb[0].mxu0
        %v994 = vadd.f32 0.0, %v993
        %v995 = vpop.f32.mrb[0].mxu0
        %996 = vmatprep.mubr.f32.mxu0 %v662
        %997 = vmatmul.mubr.f32.gmra.mrb[0].mxu0 %v626
        %v998 = vpop.f32.mrb[0].mxu0
        %v999 = vadd.f32 0.0, %v998
        %v1000 = vpop.f32.mrb[0].mxu0
        %1001 = vmatprep.mubr.f32.mxu0 %v663
        %1002 = vmatmul.mubr.f32.gmra.mrb[0].mxu0 %v627
        %v1003 = vpop.f32.mrb[0].mxu0
        %v1004 = vadd.f32 0.0, %v1003
        %v1005 = vpop.f32.mrb[0].mxu0
        %1006 = vmatprep.mubr.f32.mxu0 %v664
        %1007 = vmatmul.mubr.f32.gmra.mrb[0].mxu0 %v628
        %v1008 = vpop.f32.mrb[0].mxu0
        %v1009 = vadd.f32 0.0, %v1008
        %v1010 = vpop.f32.mrb[0].mxu0
        %1011 = vmatprep.mubr.f32.mxu0 %v665
        %1012 = vmatmul.mubr.f32.gmra.mrb[0].mxu0 %v629
        %v1013 = vpop.f32.mrb[0].mxu0
        %v1014 = vadd.f32 0.0, %v1013
        %v1015 = vpop.f32.mrb[0].mxu0
        %1016 = vmatprep.mubr.f32.mxu0 %v666
        %1017 = vmatmul.mubr.f32.gmra.mrb[0].mxu0 %v630
        %v1018 = vpop.f32.mrb[0].mxu0
        %v1019 = vadd.f32 0.0, %v1018
        %v1020 = vpop.f32.mrb[0].mxu0
        %1021 = vmatprep.mubr.f32.mxu0 %v667
        %1022 = vmatmul.mubr.f32.gmra.mrb[0].mxu0 %v631
        %v1023 = vpop.f32.mrb[0].mxu0
        %v1024 = vadd.f32 0.0, %v1023
        %v1025 = vpop.f32.mrb[0].mxu0
        %1026 = vdwg.mxu0
        %1027 = vmatprep.subr.mxu0 0.0
        %1028 = vmatpush1.msra.mxu0 %v786
        %1029 = vmatprep.subr.mxu0 0.0
        %1030 = vmatpush1.msra.mxu0 %v787
        %1031 = vmatprep.subr.mxu0 0.0
        %1032 = vmatpush1.msra.mxu0 %v788
        %1033 = vmatprep.subr.mxu0 0.0
        %1034 = vmatpush1.msra.mxu0 %v789
        %1035 = vmatprep.subr.mxu0 0.0
        %1036 = vmatpush1.msra.mxu0 %v790
        %1037 = vmatprep.subr.mxu0 0.0
        %1038 = vmatpush1.msra.mxu0 %v791
        %1039 = vmatprep.subr.mxu0 0.0
        %1040 = vmatpush1.msra.mxu0 %v792
        %1041 = vmatprep.subr.mxu0 0.0
        %1042 = vmatpush1.msra.mxu0 %v793
        %1043 = vmatprep.subr.mxu0 0.0
        %1044 = vmatpush1.msra.mxu0 %v794
        %1045 = vmatprep.subr.mxu0 0.0
        %1046 = vmatpush1.msra.mxu0 %v795
        %1047 = vmatprep.subr.mxu0 0.0
        %1048 = vmatpush1.msra.mxu0 %v796
        %1049 = vmatprep.subr.mxu0 0.0
        %1050 = vmatpush1.msra.mxu0 %v797
        %1051 = vmatprep.subr.mxu0 0.0
        %1052 = vmatpush1.msra.mxu0 %v798
        %1053 = vmatprep.subr.mxu0 0.0
        %1054 = vmatpush1.msra.mxu0 %v799
        %1055 = vmatprep.subr.mxu0 0.0
        %1056 = vmatpush1.msra.mxu0 %v800
        %1057 = vmatprep.subr.mxu0 0.0
        %1058 = vmatpush1.msra.mxu0 %v801
        %1059 = vmatprep.subr.mxu0 0.0
        %1060 = vmatpush1.msra.mxu0 0.0
        %1061 = vmatprep.subr.mxu0 0.0
        %1062 = vmatpush1.msra.mxu0 0.0
        %1063 = vmatprep.subr.mxu0 0.0
        %1064 = vmatpush1.msra.mxu0 0.0
        %1065 = vmatprep.subr.mxu0 0.0
        %1066 = vmatpush1.msra.mxu0 0.0
        %1067 = vmatprep.subr.mxu0 0.0
        %1068 = vmatpush1.msra.mxu0 0.0
        %1069 = vmatprep.subr.mxu0 0.0
        %1070 = vmatpush1.msra.mxu0 0.0
        %1071 = vmatprep.subr.mxu0 0.0
        %1072 = vmatpush1.msra.mxu0 0.0
        %1073 = vmatprep.subr.mxu0 0.0
        %1074 = vmatpush1.msra.mxu0 0.0
        %1075 = vmatprep.subr.mxu0 0.0
        %1076 = vmatpush1.msra.mxu0 0.0
        %1077 = vmatprep.subr.mxu0 0.0
        %1078 = vmatpush1.msra.mxu0 0.0
        %1079 = vmatprep.subr.mxu0 0.0
        %1080 = vmatpush1.msra.mxu0 0.0
        %1081 = vmatprep.subr.mxu0 0.0
        %1082 = vmatpush1.msra.mxu0 0.0
        %1083 = vmatprep.subr.mxu0 0.0
        %1084 = vmatpush1.msra.mxu0 0.0
        %1085 = vmatprep.subr.mxu0 0.0
        %1086 = vmatpush1.msra.mxu0 0.0
        %1087 = vmatprep.subr.mxu0 0.0
        %1088 = vmatpush1.msra.mxu0 0.0
        %1089 = vmatprep.subr.mxu0 0.0
        %1090 = vmatpush1.msra.mxu0 0.0
        %1091 = vmatprep.mubr.f32.mxu0 0.0
        %1092 = vmatmul.mubr.f32.gmra.mrb[0].mxu0 %v672
        %v1093 = vpop.f32.mrb[0].mxu0
        %v1094 = vadd.f32 %v869, %v1093
        %v1095 = vpop.f32.mrb[0].mxu0
        %1096 = vmatprep.mubr.f32.mxu0 0.0
        %1097 = vmatmul.mubr.f32.gmra.mrb[0].mxu0 %v673
        %v1098 = vpop.f32.mrb[0].mxu0
        %v1099 = vadd.f32 %v874, %v1098
        %v1100 = vpop.f32.mrb[0].mxu0
        %1101 = vmatprep.mubr.f32.mxu0 0.0
        %1102 = vmatmul.mubr.f32.gmra.mrb[0].mxu0 %v674
        %v1103 = vpop.f32.mrb[0].mxu0
        %v1104 = vadd.f32 %v879, %v1103
        %v1105 = vpop.f32.mrb[0].mxu0
        %1106 = vmatprep.mubr.f32.mxu0 0.0
        %1107 = vmatmul.mubr.f32.gmra.mrb[0].mxu0 %v675
        %v1108 = vpop.f32.mrb[0].mxu0
        %v1109 = vadd.f32 %v884, %v1108
        %v1110 = vpop.f32.mrb[0].mxu0
        %1111 = vmatprep.mubr.f32.mxu0 0.0
        %1112 = vmatmul.mubr.f32.gmra.mrb[0].mxu0 %v676
        %v1113 = vpop.f32.mrb[0].mxu0
        %v1114 = vadd.f32 %v889, %v1113
        %v1115 = vpop.f32.mrb[0].mxu0
        %1116 = vmatprep.mubr.f32.mxu0 0.0
        %1117 = vmatmul.mubr.f32.gmra.mrb[0].mxu0 %v677
        %v1118 = vpop.f32.mrb[0].mxu0
        %v1119 = vadd.f32 %v894, %v1118
        %v1120 = vpop.f32.mrb[0].mxu0
        %1121 = vmatprep.mubr.f32.mxu0 0.0
        %1122 = vmatmul.mubr.f32.gmra.mrb[0].mxu0 %v678
        %v1123 = vpop.f32.mrb[0].mxu0
        %v1124 = vadd.f32 %v899, %v1123
        %v1125 = vpop.f32.mrb[0].mxu0
        %1126 = vmatprep.mubr.f32.mxu0 0.0
        %1127 = vmatmul.mubr.f32.gmra.mrb[0].mxu0 %v679
        %v1128 = vpop.f32.mrb[0].mxu0
        %v1129 = vadd.f32 %v904, %v1128
        %v1130 = vpop.f32.mrb[0].mxu0
        %1131 = vmatprep.mubr.f32.mxu0 0.0
        %1132 = vmatmul.mubr.f32.gmra.mrb[0].mxu0 %v680
        %v1133 = vpop.f32.mrb[0].mxu0
        %v1134 = vadd.f32 %v909, %v1133
        %v1135 = vpop.f32.mrb[0].mxu0
        %1136 = vmatprep.mubr.f32.mxu0 0.0
        %1137 = vmatmul.mubr.f32.gmra.mrb[0].mxu0 %v681
        %v1138 = vpop.f32.mrb[0].mxu0
        %v1139 = vadd.f32 %v914, %v1138
        %v1140 = vpop.f32.mrb[0].mxu0
        %1141 = vmatprep.mubr.f32.mxu0 0.0
        %1142 = vmatmul.mubr.f32.gmra.mrb[0].mxu0 %v682
        %v1143 = vpop.f32.mrb[0].mxu0
        %v1144 = vadd.f32 %v919, %v1143
        %v1145 = vpop.f32.mrb[0].mxu0
        %1146 = vmatprep.mubr.f32.mxu0 0.0
        %1147 = vmatmul.mubr.f32.gmra.mrb[0].mxu0 %v683
        %v1148 = vpop.f32.mrb[0].mxu0
        %v1149 = vadd.f32 %v924, %v1148
        %v1150 = vpop.f32.mrb[0].mxu0
        %1151 = vmatprep.mubr.f32.mxu0 0.0
        %1152 = vmatmul.mubr.f32.gmra.mrb[0].mxu0 %v684
        %v1153 = vpop.f32.mrb[0].mxu0
        %v1154 = vadd.f32 %v929, %v1153
        %v1155 = vpop.f32.mrb[0].mxu0
        %1156 = vmatprep.mubr.f32.mxu0 0.0
        %1157 = vmatmul.mubr.f32.gmra.mrb[0].mxu0 %v685
        %v1158 = vpop.f32.mrb[0].mxu0
        %v1159 = vadd.f32 %v934, %v1158
        %v1160 = vpop.f32.mrb[0].mxu0
        %1161 = vmatprep.mubr.f32.mxu0 0.0
        %1162 = vmatmul.mubr.f32.gmra.mrb[0].mxu0 %v686
        %v1163 = vpop.f32.mrb[0].mxu0
        %v1164 = vadd.f32 %v939, %v1163
        %v1165 = vpop.f32.mrb[0].mxu0
        %1166 = vmatprep.mubr.f32.mxu0 0.0
        %1167 = vmatmul.mubr.f32.gmra.mrb[0].mxu0 %v687
        %v1168 = vpop.f32.mrb[0].mxu0
        %v1169 = vadd.f32 %v944, %v1168
        %v1170 = vpop.f32.mrb[0].mxu0
        %1171 = vmatprep.mubr.f32.mxu0 0.0
        %1172 = vmatmul.mubr.f32.gmra.mrb[0].mxu0 %v688
        %v1173 = vpop.f32.mrb[0].mxu0
        %v1174 = vadd.f32 %v949, %v1173
        %v1175 = vpop.f32.mrb[0].mxu0
        %1176 = vmatprep.mubr.f32.mxu0 0.0
        %1177 = vmatmul.mubr.f32.gmra.mrb[0].mxu0 %v689
        %v1178 = vpop.f32.mrb[0].mxu0
        %v1179 = vadd.f32 %v954, %v1178
        %v1180 = vpop.f32.mrb[0].mxu0
        %1181 = vmatprep.mubr.f32.mxu0 0.0
        %1182 = vmatmul.mubr.f32.gmra.mrb[0].mxu0 %v690
        %v1183 = vpop.f32.mrb[0].mxu0
        %v1184 = vadd.f32 %v959, %v1183
        %v1185 = vpop.f32.mrb[0].mxu0
        %1186 = vmatprep.mubr.f32.mxu0 0.0
        %1187 = vmatmul.mubr.f32.gmra.mrb[0].mxu0 %v691
        %v1188 = vpop.f32.mrb[0].mxu0
        %v1189 = vadd.f32 %v964, %v1188
        %v1190 = vpop.f32.mrb[0].mxu0
        %1191 = vmatprep.mubr.f32.mxu0 0.0
        %1192 = vmatmul.mubr.f32.gmra.mrb[0].mxu0 %v692
        %v1193 = vpop.f32.mrb[0].mxu0
        %v1194 = vadd.f32 %v969, %v1193
        %v1195 = vpop.f32.mrb[0].mxu0
        %1196 = vmatprep.mubr.f32.mxu0 0.0
        %1197 = vmatmul.mubr.f32.gmra.mrb[0].mxu0 %v693
        %v1198 = vpop.f32.mrb[0].mxu0
        %v1199 = vadd.f32 %v974, %v1198
        %v1200 = vpop.f32.mrb[0].mxu0
        %1201 = vmatprep.mubr.f32.mxu0 0.0
        %1202 = vmatmul.mubr.f32.gmra.mrb[0].mxu0 %v694
        %v1203 = vpop.f32.mrb[0].mxu0
        %v1204 = vadd.f32 %v979, %v1203
        %v1205 = vpop.f32.mrb[0].mxu0
        %1206 = vmatprep.mubr.f32.mxu0 0.0
        %1207 = vmatmul.mubr.f32.gmra.mrb[0].mxu0 %v695
        %v1208 = vpop.f32.mrb[0].mxu0
        %v1209 = vadd.f32 %v984, %v1208
        %v1210 = vpop.f32.mrb[0].mxu0
        %1211 = vmatprep.mubr.f32.mxu0 0.0
        %1212 = vmatmul.mubr.f32.gmra.mrb[0].mxu0 %v696
        %v1213 = vpop.f32.mrb[0].mxu0
        %v1214 = vadd.f32 %v989, %v1213
        %v1215 = vpop.f32.mrb[0].mxu0
        %1216 = vmatprep.mubr.f32.mxu0 0.0
        %1217 = vmatmul.mubr.f32.gmra.mrb[0].mxu0 %v697
        %v1218 = vpop.f32.mrb[0].mxu0
        %v1219 = vadd.f32 %v994, %v1218
        %v1220 = vpop.f32.mrb[0].mxu0
        %1221 = vmatprep.mubr.f32.mxu0 0.0
        %1222 = vmatmul.mubr.f32.gmra.mrb[0].mxu0 %v698
        %v1223 = vpop.f32.mrb[0].mxu0
        %v1224 = vadd.f32 %v999, %v1223
        %v1225 = vpop.f32.mrb[0].mxu0
        %1226 = vmatprep.mubr.f32.mxu0 0.0
        %1227 = vmatmul.mubr.f32.gmra.mrb[0].mxu0 %v699
        %v1228 = vpop.f32.mrb[0].mxu0
        %v1229 = vadd.f32 %v1004, %v1228
        %v1230 = vpop.f32.mrb[0].mxu0
        %1231 = vmatprep.mubr.f32.mxu0 0.0
        %1232 = vmatmul.mubr.f32.gmra.mrb[0].mxu0 %v700
        %v1233 = vpop.f32.mrb[0].mxu0
        %v1234 = vadd.f32 %v1009, %v1233
        %v1235 = vpop.f32.mrb[0].mxu0
        %1236 = vmatprep.mubr.f32.mxu0 0.0
        %1237 = vmatmul.mubr.f32.gmra.mrb[0].mxu0 %v701
        %v1238 = vpop.f32.mrb[0].mxu0
        %v1239 = vadd.f32 %v1014, %v1238
        %v1240 = vpop.f32.mrb[0].mxu0
        %1241 = vmatprep.mubr.f32.mxu0 0.0
        %1242 = vmatmul.mubr.f32.gmra.mrb[0].mxu0 %v702
        %v1243 = vpop.f32.mrb[0].mxu0
        %v1244 = vadd.f32 %v1019, %v1243
        %v1245 = vpop.f32.mrb[0].mxu0
        %1246 = vmatprep.mubr.f32.mxu0 0.0
        %1247 = vmatmul.mubr.f32.gmra.mrb[0].mxu0 %v703
        %v1248 = vpop.f32.mrb[0].mxu0
        %v1249 = vadd.f32 %v1024, %v1248
        %v1250 = vpop.f32.mrb[0].mxu0
        %1251 = vdwg.mxu0
        %1252 = vmatprep.subr.mxu0 0.0
        %1253 = vmatpush1.msra.mxu0 %v706
        %1254 = vmatprep.subr.mxu0 0.0
        %1255 = vmatpush1.msra.mxu0 %v707
        %1256 = vmatprep.subr.mxu0 0.0
        %1257 = vmatpush1.msra.mxu0 %v708
        %1258 = vmatprep.subr.mxu0 0.0
        %1259 = vmatpush1.msra.mxu0 %v709
        %1260 = vmatprep.subr.mxu0 0.0
        %1261 = vmatpush1.msra.mxu0 %v710
        %1262 = vmatprep.subr.mxu0 0.0
        %1263 = vmatpush1.msra.mxu0 %v711
        %1264 = vmatprep.subr.mxu0 0.0
        %1265 = vmatpush1.msra.mxu0 %v712
        %1266 = vmatprep.subr.mxu0 0.0
        %1267 = vmatpush1.msra.mxu0 %v713
        %1268 = vmatprep.subr.mxu0 0.0
        %1269 = vmatpush1.msra.mxu0 %v714
        %1270 = vmatprep.subr.mxu0 0.0
        %1271 = vmatpush1.msra.mxu0 %v715
        %1272 = vmatprep.subr.mxu0 0.0
        %1273 = vmatpush1.msra.mxu0 %v716
        %1274 = vmatprep.subr.mxu0 0.0
        %1275 = vmatpush1.msra.mxu0 %v717
        %1276 = vmatprep.subr.mxu0 0.0
        %1277 = vmatpush1.msra.mxu0 %v718
        %1278 = vmatprep.subr.mxu0 0.0
        %1279 = vmatpush1.msra.mxu0 %v719
        %1280 = vmatprep.subr.mxu0 0.0
        %1281 = vmatpush1.msra.mxu0 %v720
        %1282 = vmatprep.subr.mxu0 0.0
        %1283 = vmatpush1.msra.mxu0 %v721
        %1284 = vmatprep.subr.mxu0 0.0
        %1285 = vmatpush1.msra.mxu0 %v722
        %1286 = vmatprep.subr.mxu0 0.0
        %1287 = vmatpush1.msra.mxu0 %v723
        %1288 = vmatprep.subr.mxu0 0.0
        %1289 = vmatpush1.msra.mxu0 %v724
        %1290 = vmatprep.subr.mxu0 0.0
        %1291 = vmatpush1.msra.mxu0 %v725
        %1292 = vmatprep.subr.mxu0 0.0
        %1293 = vmatpush1.msra.mxu0 %v726
        %1294 = vmatprep.subr.mxu0 0.0
        %1295 = vmatpush1.msra.mxu0 %v727
        %1296 = vmatprep.subr.mxu0 0.0
        %1297 = vmatpush1.msra.mxu0 %v728
        %1298 = vmatprep.subr.mxu0 0.0
        %1299 = vmatpush1.msra.mxu0 %v729
        %1300 = vmatprep.subr.mxu0 0.0
        %1301 = vmatpush1.msra.mxu0 %v730
        %1302 = vmatprep.subr.mxu0 0.0
        %1303 = vmatpush1.msra.mxu0 %v731
        %1304 = vmatprep.subr.mxu0 0.0
        %1305 = vmatpush1.msra.mxu0 %v732
        %1306 = vmatprep.subr.mxu0 0.0
        %1307 = vmatpush1.msra.mxu0 %v733
        %1308 = vmatprep.subr.mxu0 0.0
        %1309 = vmatpush1.msra.mxu0 %v734
        %1310 = vmatprep.subr.mxu0 0.0
        %1311 = vmatpush1.msra.mxu0 %v735
        %1312 = vmatprep.subr.mxu0 0.0
        %1313 = vmatpush1.msra.mxu0 %v736
        %1314 = vmatprep.subr.mxu0 0.0
        %1315 = vmatpush1.msra.mxu0 %v737
        %1316 = vmatprep.mubr.f32.mxu0 %v634
        %1317 = vmatmul.mubr.f32.gmra.mrb[0].mxu0 %v598
        %v1318 = vpop.f32.mrb[0].mxu0
        %v1319 = vadd.f32 %v1094, %v1318
        %v1320 = vpop.f32.mrb[0].mxu0
        %1321 = vmatprep.mubr.f32.mxu0 %v635
        %1322 = vmatmul.mubr.f32.gmra.mrb[0].mxu0 %v599
        %v1323 = vpop.f32.mrb[0].mxu0
        %v1324 = vadd.f32 %v1099, %v1323
        %v1325 = vpop.f32.mrb[0].mxu0
        %1326 = vmatprep.mubr.f32.mxu0 %v636
        %1327 = vmatmul.mubr.f32.gmra.mrb[0].mxu0 %v600
        %v1328 = vpop.f32.mrb[0].mxu0
        %v1329 = vadd.f32 %v1104, %v1328
        %v1330 = vpop.f32.mrb[0].mxu0
        %1331 = vmatprep.mubr.f32.mxu0 %v637
        %1332 = vmatmul.mubr.f32.gmra.mrb[0].mxu0 %v601
        %v1333 = vpop.f32.mrb[0].mxu0
        %v1334 = vadd.f32 %v1109, %v1333
        %v1335 = vpop.f32.mrb[0].mxu0
        %1336 = vmatprep.mubr.f32.mxu0 %v638
        %1337 = vmatmul.mubr.f32.gmra.mrb[0].mxu0 %v602
        %v1338 = vpop.f32.mrb[0].mxu0
        %v1339 = vadd.f32 %v1114, %v1338
        %v1340 = vpop.f32.mrb[0].mxu0
        %1341 = vmatprep.mubr.f32.mxu0 %v639
        %1342 = vmatmul.mubr.f32.gmra.mrb[0].mxu0 %v603
        %v1343 = vpop.f32.mrb[0].mxu0
        %v1344 = vadd.f32 %v1119, %v1343
        %v1345 = vpop.f32.mrb[0].mxu0
        %1346 = vmatprep.mubr.f32.mxu0 %v640
        %1347 = vmatmul.mubr.f32.gmra.mrb[0].mxu0 %v604
        %v1348 = vpop.f32.mrb[0].mxu0
        %v1349 = vadd.f32 %v1124, %v1348
        %v1350 = vpop.f32.mrb[0].mxu0
        %1351 = vmatprep.mubr.f32.mxu0 %v641
        %1352 = vmatmul.mubr.f32.gmra.mrb[0].mxu0 %v605
        %v1353 = vpop.f32.mrb[0].mxu0
        %v1354 = vadd.f32 %v1129, %v1353
        %v1355 = vpop.f32.mrb[0].mxu0
        %1356 = vmatprep.mubr.f32.mxu0 %v642
        %1357 = vmatmul.mubr.f32.gmra.mrb[0].mxu0 %v606
        %v1358 = vpop.f32.mrb[0].mxu0
        %v1359 = vadd.f32 %v1134, %v1358
        %v1360 = vpop.f32.mrb[0].mxu0
        %1361 = vmatprep.mubr.f32.mxu0 %v643
        %1362 = vmatmul.mubr.f32.gmra.mrb[0].mxu0 %v607
        %v1363 = vpop.f32.mrb[0].mxu0
        %v1364 = vadd.f32 %v1139, %v1363
        %v1365 = vpop.f32.mrb[0].mxu0
        %1366 = vmatprep.mubr.f32.mxu0 %v644
        %1367 = vmatmul.mubr.f32.gmra.mrb[0].mxu0 %v608
        %v1368 = vpop.f32.mrb[0].mxu0
        %v1369 = vadd.f32 %v1144, %v1368
        %v1370 = vpop.f32.mrb[0].mxu0
        %1371 = vmatprep.mubr.f32.mxu0 %v645
        %1372 = vmatmul.mubr.f32.gmra.mrb[0].mxu0 %v609
        %v1373 = vpop.f32.mrb[0].mxu0
        %v1374 = vadd.f32 %v1149, %v1373
        %v1375 = vpop.f32.mrb[0].mxu0
        %1376 = vmatprep.mubr.f32.mxu0 %v646
        %1377 = vmatmul.mubr.f32.gmra.mrb[0].mxu0 %v610
        %v1378 = vpop.f32.mrb[0].mxu0
        %v1379 = vadd.f32 %v1154, %v1378
        %v1380 = vpop.f32.mrb[0].mxu0
        %1381 = vmatprep.mubr.f32.mxu0 %v647
        %1382 = vmatmul.mubr.f32.gmra.mrb[0].mxu0 %v611
        %v1383 = vpop.f32.mrb[0].mxu0
        %v1384 = vadd.f32 %v1159, %v1383
        %v1385 = vpop.f32.mrb[0].mxu0
        %1386 = vmatprep.mubr.f32.mxu0 %v648
        %1387 = vmatmul.mubr.f32.gmra.mrb[0].mxu0 %v612
        %v1388 = vpop.f32.mrb[0].mxu0
        %v1389 = vadd.f32 %v1164, %v1388
        %v1390 = vpop.f32.mrb[0].mxu0
        %1391 = vmatprep.mubr.f32.mxu0 %v649
        %1392 = vmatmul.mubr.f32.gmra.mrb[0].mxu0 %v613
        %v1393 = vpop.f32.mrb[0].mxu0
        %v1394 = vadd.f32 %v1169, %v1393
        %v1395 = vpop.f32.mrb[0].mxu0
        %1396 = vmatprep.mubr.f32.mxu0 %v650
        %1397 = vmatmul.mubr.f32.gmra.mrb[0].mxu0 %v614
        %v1398 = vpop.f32.mrb[0].mxu0
        %v1399 = vadd.f32 %v1174, %v1398
        %v1400 = vpop.f32.mrb[0].mxu0
        %1401 = vmatprep.mubr.f32.mxu0 %v651
        %1402 = vmatmul.mubr.f32.gmra.mrb[0].mxu0 %v615
        %v1403 = vpop.f32.mrb[0].mxu0
        %v1404 = vadd.f32 %v1179, %v1403
        %v1405 = vpop.f32.mrb[0].mxu0
        %1406 = vmatprep.mubr.f32.mxu0 %v652
        %1407 = vmatmul.mubr.f32.gmra.mrb[0].mxu0 %v616
        %v1408 = vpop.f32.mrb[0].mxu0
        %v1409 = vadd.f32 %v1184, %v1408
        %v1410 = vpop.f32.mrb[0].mxu0
        %1411 = vmatprep.mubr.f32.mxu0 %v653
        %1412 = vmatmul.mubr.f32.gmra.mrb[0].mxu0 %v617
        %v1413 = vpop.f32.mrb[0].mxu0
        %v1414 = vadd.f32 %v1189, %v1413
        %v1415 = vpop.f32.mrb[0].mxu0
        %1416 = vmatprep.mubr.f32.mxu0 %v654
        %1417 = vmatmul.mubr.f32.gmra.mrb[0].mxu0 %v618
        %v1418 = vpop.f32.mrb[0].mxu0
        %v1419 = vadd.f32 %v1194, %v1418
        %v1420 = vpop.f32.mrb[0].mxu0
        %1421 = vmatprep.mubr.f32.mxu0 %v655
        %1422 = vmatmul.mubr.f32.gmra.mrb[0].mxu0 %v619
        %v1423 = vpop.f32.mrb[0].mxu0
        %v1424 = vadd.f32 %v1199, %v1423
        %v1425 = vpop.f32.mrb[0].mxu0
        %1426 = vmatprep.mubr.f32.mxu0 %v656
        %1427 = vmatmul.mubr.f32.gmra.mrb[0].mxu0 %v620
        %v1428 = vpop.f32.mrb[0].mxu0
        %v1429 = vadd.f32 %v1204, %v1428
        %v1430 = vpop.f32.mrb[0].mxu0
        %1431 = vmatprep.mubr.f32.mxu0 %v657
        %1432 = vmatmul.mubr.f32.gmra.mrb[0].mxu0 %v621
        %v1433 = vpop.f32.mrb[0].mxu0
        %v1434 = vadd.f32 %v1209, %v1433
        %v1435 = vpop.f32.mrb[0].mxu0
        %1436 = vmatprep.mubr.f32.mxu0 %v658
        %1437 = vmatmul.mubr.f32.gmra.mrb[0].mxu0 %v622
        %v1438 = vpop.f32.mrb[0].mxu0
        %v1439 = vadd.f32 %v1214, %v1438
        %v1440 = vpop.f32.mrb[0].mxu0
        %1441 = vmatprep.mubr.f32.mxu0 %v659
        %1442 = vmatmul.mubr.f32.gmra.mrb[0].mxu0 %v623
        %v1443 = vpop.f32.mrb[0].mxu0
        %v1444 = vadd.f32 %v1219, %v1443
        %v1445 = vpop.f32.mrb[0].mxu0
        %1446 = vmatprep.mubr.f32.mxu0 %v660
        %1447 = vmatmul.mubr.f32.gmra.mrb[0].mxu0 %v624
        %v1448 = vpop.f32.mrb[0].mxu0
        %v1449 = vadd.f32 %v1224, %v1448
        %v1450 = vpop.f32.mrb[0].mxu0
        %1451 = vmatprep.mubr.f32.mxu0 %v661
        %1452 = vmatmul.mubr.f32.gmra.mrb[0].mxu0 %v625
        %v1453 = vpop.f32.mrb[0].mxu0
        %v1454 = vadd.f32 %v1229, %v1453
        %v1455 = vpop.f32.mrb[0].mxu0
        %1456 = vmatprep.mubr.f32.mxu0 %v662
        %1457 = vmatmul.mubr.f32.gmra.mrb[0].mxu0 %v626
        %v1458 = vpop.f32.mrb[0].mxu0
        %v1459 = vadd.f32 %v1234, %v1458
        %v1460 = vpop.f32.mrb[0].mxu0
        %1461 = vmatprep.mubr.f32.mxu0 %v663
        %1462 = vmatmul.mubr.f32.gmra.mrb[0].mxu0 %v627
        %v1463 = vpop.f32.mrb[0].mxu0
        %v1464 = vadd.f32 %v1239, %v1463
        %v1465 = vpop.f32.mrb[0].mxu0
        %1466 = vmatprep.mubr.f32.mxu0 %v664
        %1467 = vmatmul.mubr.f32.gmra.mrb[0].mxu0 %v628
        %v1468 = vpop.f32.mrb[0].mxu0
        %v1469 = vadd.f32 %v1244, %v1468
        %v1470 = vpop.f32.mrb[0].mxu0
        %1471 = vmatprep.mubr.f32.mxu0 %v665
        %1472 = vmatmul.mubr.f32.gmra.mrb[0].mxu0 %v629
        %v1473 = vpop.f32.mrb[0].mxu0
        %v1474 = vadd.f32 %v1249, %v1473
        %v1475 = vpop.f32.mrb[0].mxu0
        %1476 = vdwg.mxu0
        %1477 = vmatprep.subr.mxu0 0.0
        %1478 = vmatpush1.msra.mxu0 %v738
        %1479 = vmatprep.subr.mxu0 0.0
        %1480 = vmatpush1.msra.mxu0 %v739
        %1481 = vmatprep.subr.mxu0 0.0
        %1482 = vmatpush1.msra.mxu0 %v740
        %1483 = vmatprep.subr.mxu0 0.0
        %1484 = vmatpush1.msra.mxu0 %v741
        %1485 = vmatprep.subr.mxu0 0.0
        %1486 = vmatpush1.msra.mxu0 %v742
        %1487 = vmatprep.subr.mxu0 0.0
        %1488 = vmatpush1.msra.mxu0 %v743
        %1489 = vmatprep.subr.mxu0 0.0
        %1490 = vmatpush1.msra.mxu0 %v744
        %1491 = vmatprep.subr.mxu0 0.0
        %1492 = vmatpush1.msra.mxu0 %v745
        %1493 = vmatprep.subr.mxu0 0.0
        %1494 = vmatpush1.msra.mxu0 %v746
        %1495 = vmatprep.subr.mxu0 0.0
        %1496 = vmatpush1.msra.mxu0 %v747
        %1497 = vmatprep.subr.mxu0 0.0
        %1498 = vmatpush1.msra.mxu0 %v748
        %1499 = vmatprep.subr.mxu0 0.0
        %1500 = vmatpush1.msra.mxu0 %v749
        %1501 = vmatprep.subr.mxu0 0.0
        %1502 = vmatpush1.msra.mxu0 %v750
        %1503 = vmatprep.subr.mxu0 0.0
        %1504 = vmatpush1.msra.mxu0 %v751
        %1505 = vmatprep.subr.mxu0 0.0
        %1506 = vmatpush1.msra.mxu0 %v752
        %1507 = vmatprep.subr.mxu0 0.0
        %1508 = vmatpush1.msra.mxu0 %v753
        %1509 = vmatprep.subr.mxu0 0.0
        %1510 = vmatpush1.msra.mxu0 0.0
        %1511 = vmatprep.subr.mxu0 0.0
        %1512 = vmatpush1.msra.mxu0 0.0
        %1513 = vmatprep.subr.mxu0 0.0
        %1514 = vmatpush1.msra.mxu0 0.0
        %1515 = vmatprep.subr.mxu0 0.0
        %1516 = vmatpush1.msra.mxu0 0.0
        %1517 = vmatprep.subr.mxu0 0.0
        %1518 = vmatpush1.msra.mxu0 0.0
        %1519 = vmatprep.subr.mxu0 0.0
        %1520 = vmatpush1.msra.mxu0 0.0
        %1521 = vmatprep.subr.mxu0 0.0
        %1522 = vmatpush1.msra.mxu0 0.0
        %1523 = vmatprep.subr.mxu0 0.0
        %1524 = vmatpush1.msra.mxu0 0.0
        %1525 = vmatprep.subr.mxu0 0.0
        %1526 = vmatpush1.msra.mxu0 0.0
        %1527 = vmatprep.subr.mxu0 0.0
        %1528 = vmatpush1.msra.mxu0 0.0
        %1529 = vmatprep.subr.mxu0 0.0
        %1530 = vmatpush1.msra.mxu0 0.0
        %1531 = vmatprep.subr.mxu0 0.0
        %1532 = vmatpush1.msra.mxu0 0.0
        %1533 = vmatprep.subr.mxu0 0.0
        %1534 = vmatpush1.msra.mxu0 0.0
        %1535 = vmatprep.subr.mxu0 0.0
        %1536 = vmatpush1.msra.mxu0 0.0
        %1537 = vmatprep.subr.mxu0 0.0
        %1538 = vmatpush1.msra.mxu0 0.0
        %1539 = vmatprep.subr.mxu0 0.0
        %1540 = vmatpush1.msra.mxu0 0.0
        %1541 = vmatprep.mubr.f32.mxu0 0.0
        %1542 = vmatmul.mubr.f32.gmra.mrb[0].mxu0 %v670
        %v1543 = vpop.f32.mrb[0].mxu0
        %v1544 = vadd.f32 %v1319, %v1543
        %v1545 = vpop.f32.mrb[0].mxu0
        %1546 = vmatprep.mubr.f32.mxu0 0.0
        %1547 = vmatmul.mubr.f32.gmra.mrb[0].mxu0 %v671
        %v1548 = vpop.f32.mrb[0].mxu0
        %v1549 = vadd.f32 %v1324, %v1548
        %v1550 = vpop.f32.mrb[0].mxu0
        %1551 = vmatprep.mubr.f32.mxu0 0.0
        %1552 = vmatmul.mubr.f32.gmra.mrb[0].mxu0 %v672
        %v1553 = vpop.f32.mrb[0].mxu0
        %v1554 = vadd.f32 %v1329, %v1553
        %v1555 = vpop.f32.mrb[0].mxu0
        %1556 = vmatprep.mubr.f32.mxu0 0.0
        %1557 = vmatmul.mubr.f32.gmra.mrb[0].mxu0 %v673
        %v1558 = vpop.f32.mrb[0].mxu0
        %v1559 = vadd.f32 %v1334, %v1558
        %v1560 = vpop.f32.mrb[0].mxu0
        %1561 = vmatprep.mubr.f32.mxu0 0.0
        %1562 = vmatmul.mubr.f32.gmra.mrb[0].mxu0 %v674
        %v1563 = vpop.f32.mrb[0].mxu0
        %v1564 = vadd.f32 %v1339, %v1563
        %v1565 = vpop.f32.mrb[0].mxu0
        %1566 = vmatprep.mubr.f32.mxu0 0.0
        %1567 = vmatmul.mubr.f32.gmra.mrb[0].mxu0 %v675
        %v1568 = vpop.f32.mrb[0].mxu0
        %v1569 = vadd.f32 %v1344, %v1568
        %v1570 = vpop.f32.mrb[0].mxu0
        %1571 = vmatprep.mubr.f32.mxu0 0.0
        %1572 = vmatmul.mubr.f32.gmra.mrb[0].mxu0 %v676
        %v1573 = vpop.f32.mrb[0].mxu0
        %v1574 = vadd.f32 %v1349, %v1573
        %v1575 = vpop.f32.mrb[0].mxu0
        %1576 = vmatprep.mubr.f32.mxu0 0.0
        %1577 = vmatmul.mubr.f32.gmra.mrb[0].mxu0 %v677
        %v1578 = vpop.f32.mrb[0].mxu0
        %v1579 = vadd.f32 %v1354, %v1578
        %v1580 = vpop.f32.mrb[0].mxu0
        %1581 = vmatprep.mubr.f32.mxu0 0.0
        %1582 = vmatmul.mubr.f32.gmra.mrb[0].mxu0 %v678
        %v1583 = vpop.f32.mrb[0].mxu0
        %v1584 = vadd.f32 %v1359, %v1583
        %v1585 = vpop.f32.mrb[0].mxu0
        %1586 = vmatprep.mubr.f32.mxu0 0.0
        %1587 = vmatmul.mubr.f32.gmra.mrb[0].mxu0 %v679
        %v1588 = vpop.f32.mrb[0].mxu0
        %v1589 = vadd.f32 %v1364, %v1588
        %v1590 = vpop.f32.mrb[0].mxu0
        %1591 = vmatprep.mubr.f32.mxu0 0.0
        %1592 = vmatmul.mubr.f32.gmra.mrb[0].mxu0 %v680
        %v1593 = vpop.f32.mrb[0].mxu0
        %v1594 = vadd.f32 %v1369, %v1593
        %v1595 = vpop.f32.mrb[0].mxu0
        %1596 = vmatprep.mubr.f32.mxu0 0.0
        %1597 = vmatmul.mubr.f32.gmra.mrb[0].mxu0 %v681
        %v1598 = vpop.f32.mrb[0].mxu0
        %v1599 = vadd.f32 %v1374, %v1598
        %v1600 = vpop.f32.mrb[0].mxu0
        %1601 = vmatprep.mubr.f32.mxu0 0.0
        %1602 = vmatmul.mubr.f32.gmra.mrb[0].mxu0 %v682
        %v1603 = vpop.f32.mrb[0].mxu0
        %v1604 = vadd.f32 %v1379, %v1603
        %v1605 = vpop.f32.mrb[0].mxu0
        %1606 = vmatprep.mubr.f32.mxu0 0.0
        %1607 = vmatmul.mubr.f32.gmra.mrb[0].mxu0 %v683
        %v1608 = vpop.f32.mrb[0].mxu0
        %v1609 = vadd.f32 %v1384, %v1608
        %v1610 = vpop.f32.mrb[0].mxu0
        %1611 = vmatprep.mubr.f32.mxu0 0.0
        %1612 = vmatmul.mubr.f32.gmra.mrb[0].mxu0 %v684
        %v1613 = vpop.f32.mrb[0].mxu0
        %v1614 = vadd.f32 %v1389, %v1613
        %v1615 = vpop.f32.mrb[0].mxu0
        %1616 = vmatprep.mubr.f32.mxu0 0.0
        %1617 = vmatmul.mubr.f32.gmra.mrb[0].mxu0 %v685
        %v1618 = vpop.f32.mrb[0].mxu0
        %v1619 = vadd.f32 %v1394, %v1618
        %v1620 = vpop.f32.mrb[0].mxu0
        %1621 = vmatprep.mubr.f32.mxu0 0.0
        %1622 = vmatmul.mubr.f32.gmra.mrb[0].mxu0 %v686
        %v1623 = vpop.f32.mrb[0].mxu0
        %v1624 = vadd.f32 %v1399, %v1623
        %v1625 = vpop.f32.mrb[0].mxu0
        %1626 = vmatprep.mubr.f32.mxu0 0.0
        %1627 = vmatmul.mubr.f32.gmra.mrb[0].mxu0 %v687
        %v1628 = vpop.f32.mrb[0].mxu0
        %v1629 = vadd.f32 %v1404, %v1628
        %v1630 = vpop.f32.mrb[0].mxu0
        %1631 = vmatprep.mubr.f32.mxu0 0.0
        %1632 = vmatmul.mubr.f32.gmra.mrb[0].mxu0 %v688
        %v1633 = vpop.f32.mrb[0].mxu0
        %v1634 = vadd.f32 %v1409, %v1633
        %v1635 = vpop.f32.mrb[0].mxu0
        %1636 = vmatprep.mubr.f32.mxu0 0.0
        %1637 = vmatmul.mubr.f32.gmra.mrb[0].mxu0 %v689
        %v1638 = vpop.f32.mrb[0].mxu0
        %v1639 = vadd.f32 %v1414, %v1638
        %v1640 = vpop.f32.mrb[0].mxu0
        %1641 = vmatprep.mubr.f32.mxu0 0.0
        %1642 = vmatmul.mubr.f32.gmra.mrb[0].mxu0 %v690
        %v1643 = vpop.f32.mrb[0].mxu0
        %v1644 = vadd.f32 %v1419, %v1643
        %v1645 = vpop.f32.mrb[0].mxu0
        %1646 = vmatprep.mubr.f32.mxu0 0.0
        %1647 = vmatmul.mubr.f32.gmra.mrb[0].mxu0 %v691
        %v1648 = vpop.f32.mrb[0].mxu0
        %v1649 = vadd.f32 %v1424, %v1648
        %v1650 = vpop.f32.mrb[0].mxu0
        %1651 = vmatprep.mubr.f32.mxu0 0.0
        %1652 = vmatmul.mubr.f32.gmra.mrb[0].mxu0 %v692
        %v1653 = vpop.f32.mrb[0].mxu0
        %v1654 = vadd.f32 %v1429, %v1653
        %v1655 = vpop.f32.mrb[0].mxu0
        %1656 = vmatprep.mubr.f32.mxu0 0.0
        %1657 = vmatmul.mubr.f32.gmra.mrb[0].mxu0 %v693
        %v1658 = vpop.f32.mrb[0].mxu0
        %v1659 = vadd.f32 %v1434, %v1658
        %v1660 = vpop.f32.mrb[0].mxu0
        %1661 = vmatprep.mubr.f32.mxu0 0.0
        %1662 = vmatmul.mubr.f32.gmra.mrb[0].mxu0 %v694
        %v1663 = vpop.f32.mrb[0].mxu0
        %v1664 = vadd.f32 %v1439, %v1663
        %v1665 = vpop.f32.mrb[0].mxu0
        %1666 = vmatprep.mubr.f32.mxu0 0.0
        %1667 = vmatmul.mubr.f32.gmra.mrb[0].mxu0 %v695
        %v1668 = vpop.f32.mrb[0].mxu0
        %v1669 = vadd.f32 %v1444, %v1668
        %v1670 = vpop.f32.mrb[0].mxu0
        %1671 = vmatprep.mubr.f32.mxu0 0.0
        %1672 = vmatmul.mubr.f32.gmra.mrb[0].mxu0 %v696
        %v1673 = vpop.f32.mrb[0].mxu0
        %v1674 = vadd.f32 %v1449, %v1673
        %v1675 = vpop.f32.mrb[0].mxu0
        %1676 = vmatprep.mubr.f32.mxu0 0.0
        %1677 = vmatmul.mubr.f32.gmra.mrb[0].mxu0 %v697
        %v1678 = vpop.f32.mrb[0].mxu0
        %v1679 = vadd.f32 %v1454, %v1678
        %v1680 = vpop.f32.mrb[0].mxu0
        %1681 = vmatprep.mubr.f32.mxu0 0.0
        %1682 = vmatmul.mubr.f32.gmra.mrb[0].mxu0 %v698
        %v1683 = vpop.f32.mrb[0].mxu0
        %v1684 = vadd.f32 %v1459, %v1683
        %v1685 = vpop.f32.mrb[0].mxu0
        %1686 = vmatprep.mubr.f32.mxu0 0.0
        %1687 = vmatmul.mubr.f32.gmra.mrb[0].mxu0 %v699
        %v1688 = vpop.f32.mrb[0].mxu0
        %v1689 = vadd.f32 %v1464, %v1688
        %v1690 = vpop.f32.mrb[0].mxu0
        %1691 = vmatprep.mubr.f32.mxu0 0.0
        %1692 = vmatmul.mubr.f32.gmra.mrb[0].mxu0 %v700
        %v1693 = vpop.f32.mrb[0].mxu0
        %v1694 = vadd.f32 %v1469, %v1693
        %v1695 = vpop.f32.mrb[0].mxu0
        %1696 = vmatprep.mubr.f32.mxu0 0.0
        %1697 = vmatmul.mubr.f32.gmra.mrb[0].mxu0 %v701
        %v1698 = vpop.f32.mrb[0].mxu0
        %v1699 = vadd.f32 %v1474, %v1698
        %v1700 = vpop.f32.mrb[0].mxu0
        %1701 = vdwg.mxu0
        %v1702 = vld [vmem:[#allocation6 + $0x300] sm:$0xff]
        %v1703 = vld [vmem:[#allocation6 + $0x308] sm:$0xff]
        %v1704 = vld [vmem:[#allocation6 + $0x310] sm:$0xff]
        %v1705 = vld [vmem:[#allocation6 + $0x318] sm:$0xff]
        %v1706 = vld [vmem:[#allocation6 + $0x320] sm:$0xff]
        %v1707 = vld [vmem:[#allocation6 + $0x328] sm:$0xff]
        %v1708 = vld [vmem:[#allocation6 + $0x330] sm:$0xff]
        %v1709 = vld [vmem:[#allocation6 + $0x338] sm:$0xff]
        %v1710 = vld [vmem:[#allocation6 + $0x340] sm:$0xff]
        %v1711 = vld [vmem:[#allocation6 + $0x348] sm:$0xff]
        %v1712 = vld [vmem:[#allocation6 + $0x350] sm:$0xff]
        %v1713 = vld [vmem:[#allocation6 + $0x358] sm:$0xff]
        %v1714 = vld [vmem:[#allocation6 + $0x360] sm:$0xff]
        %v1715 = vld [vmem:[#allocation6 + $0x368] sm:$0xff]
        %v1716 = vld [vmem:[#allocation6 + $0x370] sm:$0xff]
        %v1717 = vld [vmem:[#allocation6 + $0x378] sm:$0xff]
        %v1718 = vld [vmem:[#allocation6 + $0x380] sm:$0xff]
        %v1719 = vld [vmem:[#allocation6 + $0x388] sm:$0xff]
        %v1720 = vld [vmem:[#allocation6 + $0x390] sm:$0xff]
        %v1721 = vld [vmem:[#allocation6 + $0x398] sm:$0xff]
        %v1722 = vld [vmem:[#allocation6 + $0x3a0] sm:$0xff]
        %v1723 = vld [vmem:[#allocation6 + $0x3a8] sm:$0xff]
        %v1724 = vld [vmem:[#allocation6 + $0x3b0] sm:$0xff]
        %v1725 = vld [vmem:[#allocation6 + $0x3b8] sm:$0xff]
        %v1726 = vld [vmem:[#allocation6 + $0x3c0] sm:$0xff]
        %v1727 = vld [vmem:[#allocation6 + $0x3c8] sm:$0xff]
        %v1728 = vld [vmem:[#allocation6 + $0x3d0] sm:$0xff]
        %v1729 = vld [vmem:[#allocation6 + $0x3d8] sm:$0xff]
        %v1730 = vld [vmem:[#allocation6 + $0x3e0] sm:$0xff]
        %v1731 = vld [vmem:[#allocation6 + $0x3e8] sm:$0xff]
        %v1732 = vld [vmem:[#allocation6 + $0x3f0] sm:$0xff]
        %v1733 = vld [vmem:[#allocation6 + $0x3f8] sm:$0xff]
        %v1734 = vld [vmem:[#allocation6 + $0x400] sm:$0xff]
        %v1735 = vld [vmem:[#allocation6 + $0x408] sm:$0xff]
        %v1736 = vld [vmem:[#allocation6 + $0x410] sm:$0xff]
        %v1737 = vld [vmem:[#allocation6 + $0x418] sm:$0xff]
        %v1738 = vld [vmem:[#allocation6 + $0x420] sm:$0xff]
        %v1739 = vld [vmem:[#allocation6 + $0x428] sm:$0xff]
        %v1740 = vld [vmem:[#allocation6 + $0x430] sm:$0xff]
        %v1741 = vld [vmem:[#allocation6 + $0x438] sm:$0xff]
        %v1742 = vld [vmem:[#allocation6 + $0x440] sm:$0xff]
        %v1743 = vld [vmem:[#allocation6 + $0x448] sm:$0xff]
        %v1744 = vld [vmem:[#allocation6 + $0x450] sm:$0xff]
        %v1745 = vld [vmem:[#allocation6 + $0x458] sm:$0xff]
        %v1746 = vld [vmem:[#allocation6 + $0x460] sm:$0xff]
        %v1747 = vld [vmem:[#allocation6 + $0x468] sm:$0xff]
        %v1748 = vld [vmem:[#allocation6 + $0x470] sm:$0xff]
        %v1749 = vld [vmem:[#allocation6 + $0x478] sm:$0xff]
        %1750 = vmatprep.subr.mxu0 0.0
        %1751 = vmatpush1.msra.mxu0 %v1702
        %1752 = vmatprep.subr.mxu0 0.0
        %1753 = vmatpush1.msra.mxu0 %v1703
        %1754 = vmatprep.subr.mxu0 0.0
        %1755 = vmatpush1.msra.mxu0 %v1704
        %1756 = vmatprep.subr.mxu0 0.0
        %1757 = vmatpush1.msra.mxu0 %v1705
        %1758 = vmatprep.subr.mxu0 0.0
        %1759 = vmatpush1.msra.mxu0 %v1706
        %1760 = vmatprep.subr.mxu0 0.0
        %1761 = vmatpush1.msra.mxu0 %v1707
        %1762 = vmatprep.subr.mxu0 0.0
        %1763 = vmatpush1.msra.mxu0 %v1708
        %1764 = vmatprep.subr.mxu0 0.0
        %1765 = vmatpush1.msra.mxu0 %v1709
        %1766 = vmatprep.subr.mxu0 0.0
        %1767 = vmatpush1.msra.mxu0 %v1710
        %1768 = vmatprep.subr.mxu0 0.0
        %1769 = vmatpush1.msra.mxu0 %v1711
        %1770 = vmatprep.subr.mxu0 0.0
        %1771 = vmatpush1.msra.mxu0 %v1712
        %1772 = vmatprep.subr.mxu0 0.0
        %1773 = vmatpush1.msra.mxu0 %v1713
        %1774 = vmatprep.subr.mxu0 0.0
        %1775 = vmatpush1.msra.mxu0 %v1714
        %1776 = vmatprep.subr.mxu0 0.0
        %1777 = vmatpush1.msra.mxu0 %v1715
        %1778 = vmatprep.subr.mxu0 0.0
        %1779 = vmatpush1.msra.mxu0 %v1716
        %1780 = vmatprep.subr.mxu0 0.0
        %1781 = vmatpush1.msra.mxu0 %v1717
        %1782 = vmatprep.subr.mxu0 0.0
        %1783 = vmatpush1.msra.mxu0 %v1718
        %1784 = vmatprep.subr.mxu0 0.0
        %1785 = vmatpush1.msra.mxu0 %v1719
        %1786 = vmatprep.subr.mxu0 0.0
        %1787 = vmatpush1.msra.mxu0 %v1720
        %1788 = vmatprep.subr.mxu0 0.0
        %1789 = vmatpush1.msra.mxu0 %v1721
        %1790 = vmatprep.subr.mxu0 0.0
        %1791 = vmatpush1.msra.mxu0 %v1722
        %1792 = vmatprep.subr.mxu0 0.0
        %1793 = vmatpush1.msra.mxu0 %v1723
        %1794 = vmatprep.subr.mxu0 0.0
        %1795 = vmatpush1.msra.mxu0 %v1724
        %1796 = vmatprep.subr.mxu0 0.0
        %1797 = vmatpush1.msra.mxu0 %v1725
        %1798 = vmatprep.subr.mxu0 0.0
        %1799 = vmatpush1.msra.mxu0 %v1726
        %1800 = vmatprep.subr.mxu0 0.0
        %1801 = vmatpush1.msra.mxu0 %v1727
        %1802 = vmatprep.subr.mxu0 0.0
        %1803 = vmatpush1.msra.mxu0 %v1728
        %1804 = vmatprep.subr.mxu0 0.0
        %1805 = vmatpush1.msra.mxu0 %v1729
        %1806 = vmatprep.subr.mxu0 0.0
        %1807 = vmatpush1.msra.mxu0 %v1730
        %1808 = vmatprep.subr.mxu0 0.0
        %1809 = vmatpush1.msra.mxu0 %v1731
        %1810 = vmatprep.subr.mxu0 0.0
        %1811 = vmatpush1.msra.mxu0 %v1732
        %1812 = vmatprep.subr.mxu0 0.0
        %1813 = vmatpush1.msra.mxu0 %v1733
        %1814 = vmatprep.mubr.f32.mxu0 %v638
        %1815 = vmatmul.mubr.f32.gmra.mrb[0].mxu0 %v602
        %v1816 = vpop.f32.mrb[0].mxu0
        %v1817 = vadd.f32 0.0, %v1816
        %v1818 = vpop.f32.mrb[0].mxu0
        %1819 = vmatprep.mubr.f32.mxu0 %v639
        %1820 = vmatmul.mubr.f32.gmra.mrb[0].mxu0 %v603
        %v1821 = vpop.f32.mrb[0].mxu0
        %v1822 = vadd.f32 0.0, %v1821
        %v1823 = vpop.f32.mrb[0].mxu0
        %1824 = vmatprep.mubr.f32.mxu0 %v640
        %1825 = vmatmul.mubr.f32.gmra.mrb[0].mxu0 %v604
        %v1826 = vpop.f32.mrb[0].mxu0
        %v1827 = vadd.f32 0.0, %v1826
        %v1828 = vpop.f32.mrb[0].mxu0
        %1829 = vmatprep.mubr.f32.mxu0 %v641
        %1830 = vmatmul.mubr.f32.gmra.mrb[0].mxu0 %v605
        %v1831 = vpop.f32.mrb[0].mxu0
        %v1832 = vadd.f32 0.0, %v1831
        %v1833 = vpop.f32.mrb[0].mxu0
        %1834 = vmatprep.mubr.f32.mxu0 %v642
        %1835 = vmatmul.mubr.f32.gmra.mrb[0].mxu0 %v606
        %v1836 = vpop.f32.mrb[0].mxu0
        %v1837 = vadd.f32 0.0, %v1836
        %v1838 = vpop.f32.mrb[0].mxu0
        %1839 = vmatprep.mubr.f32.mxu0 %v643
        %1840 = vmatmul.mubr.f32.gmra.mrb[0].mxu0 %v607
        %v1841 = vpop.f32.mrb[0].mxu0
        %v1842 = vadd.f32 0.0, %v1841
        %v1843 = vpop.f32.mrb[0].mxu0
        %1844 = vmatprep.mubr.f32.mxu0 %v644
        %1845 = vmatmul.mubr.f32.gmra.mrb[0].mxu0 %v608
        %v1846 = vpop.f32.mrb[0].mxu0
        %v1847 = vadd.f32 0.0, %v1846
        %v1848 = vpop.f32.mrb[0].mxu0
        %1849 = vmatprep.mubr.f32.mxu0 %v645
        %1850 = vmatmul.mubr.f32.gmra.mrb[0].mxu0 %v609
        %v1851 = vpop.f32.mrb[0].mxu0
        %v1852 = vadd.f32 0.0, %v1851
        %v1853 = vpop.f32.mrb[0].mxu0
        %1854 = vmatprep.mubr.f32.mxu0 %v646
        %1855 = vmatmul.mubr.f32.gmra.mrb[0].mxu0 %v610
        %v1856 = vpop.f32.mrb[0].mxu0
        %v1857 = vadd.f32 0.0, %v1856
        %v1858 = vpop.f32.mrb[0].mxu0
        %1859 = vmatprep.mubr.f32.mxu0 %v647
        %1860 = vmatmul.mubr.f32.gmra.mrb[0].mxu0 %v611
        %v1861 = vpop.f32.mrb[0].mxu0
        %v1862 = vadd.f32 0.0, %v1861
        %v1863 = vpop.f32.mrb[0].mxu0
        %1864 = vmatprep.mubr.f32.mxu0 %v648
        %1865 = vmatmul.mubr.f32.gmra.mrb[0].mxu0 %v612
        %v1866 = vpop.f32.mrb[0].mxu0
        %v1867 = vadd.f32 0.0, %v1866
        %v1868 = vpop.f32.mrb[0].mxu0
        %1869 = vmatprep.mubr.f32.mxu0 %v649
        %1870 = vmatmul.mubr.f32.gmra.mrb[0].mxu0 %v613
        %v1871 = vpop.f32.mrb[0].mxu0
        %v1872 = vadd.f32 0.0, %v1871
        %v1873 = vpop.f32.mrb[0].mxu0
        %1874 = vmatprep.mubr.f32.mxu0 %v650
        %1875 = vmatmul.mubr.f32.gmra.mrb[0].mxu0 %v614
        %v1876 = vpop.f32.mrb[0].mxu0
        %v1877 = vadd.f32 0.0, %v1876
        %v1878 = vpop.f32.mrb[0].mxu0
        %1879 = vmatprep.mubr.f32.mxu0 %v651
        %1880 = vmatmul.mubr.f32.gmra.mrb[0].mxu0 %v615
        %v1881 = vpop.f32.mrb[0].mxu0
        %v1882 = vadd.f32 0.0, %v1881
        %v1883 = vpop.f32.mrb[0].mxu0
        %1884 = vmatprep.mubr.f32.mxu0 %v652
        %1885 = vmatmul.mubr.f32.gmra.mrb[0].mxu0 %v616
        %v1886 = vpop.f32.mrb[0].mxu0
        %v1887 = vadd.f32 0.0, %v1886
        %v1888 = vpop.f32.mrb[0].mxu0
        %1889 = vmatprep.mubr.f32.mxu0 %v653
        %1890 = vmatmul.mubr.f32.gmra.mrb[0].mxu0 %v617
        %v1891 = vpop.f32.mrb[0].mxu0
        %v1892 = vadd.f32 0.0, %v1891
        %v1893 = vpop.f32.mrb[0].mxu0
        %1894 = vmatprep.mubr.f32.mxu0 %v654
        %1895 = vmatmul.mubr.f32.gmra.mrb[0].mxu0 %v618
        %v1896 = vpop.f32.mrb[0].mxu0
        %v1897 = vadd.f32 0.0, %v1896
        %v1898 = vpop.f32.mrb[0].mxu0
        %1899 = vmatprep.mubr.f32.mxu0 %v655
        %1900 = vmatmul.mubr.f32.gmra.mrb[0].mxu0 %v619
        %v1901 = vpop.f32.mrb[0].mxu0
        %v1902 = vadd.f32 0.0, %v1901
        %v1903 = vpop.f32.mrb[0].mxu0
        %1904 = vmatprep.mubr.f32.mxu0 %v656
        %1905 = vmatmul.mubr.f32.gmra.mrb[0].mxu0 %v620
        %v1906 = vpop.f32.mrb[0].mxu0
        %v1907 = vadd.f32 0.0, %v1906
        %v1908 = vpop.f32.mrb[0].mxu0
        %1909 = vmatprep.mubr.f32.mxu0 %v657
        %1910 = vmatmul.mubr.f32.gmra.mrb[0].mxu0 %v621
        %v1911 = vpop.f32.mrb[0].mxu0
        %v1912 = vadd.f32 0.0, %v1911
        %v1913 = vpop.f32.mrb[0].mxu0
        %1914 = vmatprep.mubr.f32.mxu0 %v658
        %1915 = vmatmul.mubr.f32.gmra.mrb[0].mxu0 %v622
        %v1916 = vpop.f32.mrb[0].mxu0
        %v1917 = vadd.f32 0.0, %v1916
        %v1918 = vpop.f32.mrb[0].mxu0
        %1919 = vmatprep.mubr.f32.mxu0 %v659
        %1920 = vmatmul.mubr.f32.gmra.mrb[0].mxu0 %v623
        %v1921 = vpop.f32.mrb[0].mxu0
        %v1922 = vadd.f32 0.0, %v1921
        %v1923 = vpop.f32.mrb[0].mxu0
        %1924 = vmatprep.mubr.f32.mxu0 %v660
        %1925 = vmatmul.mubr.f32.gmra.mrb[0].mxu0 %v624
        %v1926 = vpop.f32.mrb[0].mxu0
        %v1927 = vadd.f32 0.0, %v1926
        %v1928 = vpop.f32.mrb[0].mxu0
        %1929 = vmatprep.mubr.f32.mxu0 %v661
        %1930 = vmatmul.mubr.f32.gmra.mrb[0].mxu0 %v625
        %v1931 = vpop.f32.mrb[0].mxu0
        %v1932 = vadd.f32 0.0, %v1931
        %v1933 = vpop.f32.mrb[0].mxu0
        %1934 = vmatprep.mubr.f32.mxu0 %v662
        %1935 = vmatmul.mubr.f32.gmra.mrb[0].mxu0 %v626
        %v1936 = vpop.f32.mrb[0].mxu0
        %v1937 = vadd.f32 0.0, %v1936
        %v1938 = vpop.f32.mrb[0].mxu0
        %1939 = vmatprep.mubr.f32.mxu0 %v663
        %1940 = vmatmul.mubr.f32.gmra.mrb[0].mxu0 %v627
        %v1941 = vpop.f32.mrb[0].mxu0
        %v1942 = vadd.f32 0.0, %v1941
        %v1943 = vpop.f32.mrb[0].mxu0
        %1944 = vmatprep.mubr.f32.mxu0 %v664
        %1945 = vmatmul.mubr.f32.gmra.mrb[0].mxu0 %v628
        %v1946 = vpop.f32.mrb[0].mxu0
        %v1947 = vadd.f32 0.0, %v1946
        %v1948 = vpop.f32.mrb[0].mxu0
        %1949 = vmatprep.mubr.f32.mxu0 %v665
        %1950 = vmatmul.mubr.f32.gmra.mrb[0].mxu0 %v629
        %v1951 = vpop.f32.mrb[0].mxu0
        %v1952 = vadd.f32 0.0, %v1951
        %v1953 = vpop.f32.mrb[0].mxu0
        %1954 = vmatprep.mubr.f32.mxu0 %v666
        %1955 = vmatmul.mubr.f32.gmra.mrb[0].mxu0 %v630
        %v1956 = vpop.f32.mrb[0].mxu0
        %v1957 = vadd.f32 0.0, %v1956
        %v1958 = vpop.f32.mrb[0].mxu0
        %1959 = vmatprep.mubr.f32.mxu0 %v667
        %1960 = vmatmul.mubr.f32.gmra.mrb[0].mxu0 %v631
        %v1961 = vpop.f32.mrb[0].mxu0
        %v1962 = vadd.f32 0.0, %v1961
        %v1963 = vpop.f32.mrb[0].mxu0
        %1964 = vmatprep.mubr.f32.mxu0 %v668
        %1965 = vmatmul.mubr.f32.gmra.mrb[0].mxu0 %v632
        %v1966 = vpop.f32.mrb[0].mxu0
        %v1967 = vadd.f32 0.0, %v1966
        %v1968 = vpop.f32.mrb[0].mxu0
        %1969 = vmatprep.mubr.f32.mxu0 %v669
        %1970 = vmatmul.mubr.f32.gmra.mrb[0].mxu0 %v633
        %v1971 = vpop.f32.mrb[0].mxu0
        %v1972 = vadd.f32 0.0, %v1971
        %v1973 = vpop.f32.mrb[0].mxu0
        %1974 = vdwg.mxu0
        %1975 = vmatprep.subr.mxu0 0.0
        %1976 = vmatpush1.msra.mxu0 %v1734
        %1977 = vmatprep.subr.mxu0 0.0
        %1978 = vmatpush1.msra.mxu0 %v1735
        %1979 = vmatprep.subr.mxu0 0.0
        %1980 = vmatpush1.msra.mxu0 %v1736
        %1981 = vmatprep.subr.mxu0 0.0
        %1982 = vmatpush1.msra.mxu0 %v1737
        %1983 = vmatprep.subr.mxu0 0.0
        %1984 = vmatpush1.msra.mxu0 %v1738
        %1985 = vmatprep.subr.mxu0 0.0
        %1986 = vmatpush1.msra.mxu0 %v1739
        %1987 = vmatprep.subr.mxu0 0.0
        %1988 = vmatpush1.msra.mxu0 %v1740
        %1989 = vmatprep.subr.mxu0 0.0
        %1990 = vmatpush1.msra.mxu0 %v1741
        %1991 = vmatprep.subr.mxu0 0.0
        %1992 = vmatpush1.msra.mxu0 %v1742
        %1993 = vmatprep.subr.mxu0 0.0
        %1994 = vmatpush1.msra.mxu0 %v1743
        %1995 = vmatprep.subr.mxu0 0.0
        %1996 = vmatpush1.msra.mxu0 %v1744
        %1997 = vmatprep.subr.mxu0 0.0
        %1998 = vmatpush1.msra.mxu0 %v1745
        %1999 = vmatprep.subr.mxu0 0.0
        %2000 = vmatpush1.msra.mxu0 %v1746
        %2001 = vmatprep.subr.mxu0 0.0
        %2002 = vmatpush1.msra.mxu0 %v1747
        %2003 = vmatprep.subr.mxu0 0.0
        %2004 = vmatpush1.msra.mxu0 %v1748
        %2005 = vmatprep.subr.mxu0 0.0
        %2006 = vmatpush1.msra.mxu0 %v1749
        %2007 = vmatprep.subr.mxu0 0.0
        %2008 = vmatpush1.msra.mxu0 0.0
        %2009 = vmatprep.subr.mxu0 0.0
        %2010 = vmatpush1.msra.mxu0 0.0
        %2011 = vmatprep.subr.mxu0 0.0
        %2012 = vmatpush1.msra.mxu0 0.0
        %2013 = vmatprep.subr.mxu0 0.0
        %2014 = vmatpush1.msra.mxu0 0.0
        %2015 = vmatprep.subr.mxu0 0.0
        %2016 = vmatpush1.msra.mxu0 0.0
        %2017 = vmatprep.subr.mxu0 0.0
        %2018 = vmatpush1.msra.mxu0 0.0
        %2019 = vmatprep.subr.mxu0 0.0
        %2020 = vmatpush1.msra.mxu0 0.0
        %2021 = vmatprep.subr.mxu0 0.0
        %2022 = vmatpush1.msra.mxu0 0.0
        %2023 = vmatprep.subr.mxu0 0.0
        %2024 = vmatpush1.msra.mxu0 0.0
        %2025 = vmatprep.subr.mxu0 0.0
        %2026 = vmatpush1.msra.mxu0 0.0
        %2027 = vmatprep.subr.mxu0 0.0
        %2028 = vmatpush1.msra.mxu0 0.0
        %2029 = vmatprep.subr.mxu0 0.0
        %2030 = vmatpush1.msra.mxu0 0.0
        %2031 = vmatprep.subr.mxu0 0.0
        %2032 = vmatpush1.msra.mxu0 0.0
        %2033 = vmatprep.subr.mxu0 0.0
        %2034 = vmatpush1.msra.mxu0 0.0
        %2035 = vmatprep.subr.mxu0 0.0
        %2036 = vmatpush1.msra.mxu0 0.0
        %2037 = vmatprep.subr.mxu0 0.0
        %2038 = vmatpush1.msra.mxu0 0.0
        %2039 = vmatprep.mubr.f32.mxu0 0.0
        %2040 = vmatmul.mubr.f32.gmra.mrb[0].mxu0 %v674
        %v2041 = vpop.f32.mrb[0].mxu0
        %v2042 = vadd.f32 %v1817, %v2041
        %v2043 = vpop.f32.mrb[0].mxu0
        %2044 = vmatprep.mubr.f32.mxu0 0.0
        %2045 = vmatmul.mubr.f32.gmra.mrb[0].mxu0 %v675
        %v2046 = vpop.f32.mrb[0].mxu0
        %v2047 = vadd.f32 %v1822, %v2046
        %v2048 = vpop.f32.mrb[0].mxu0
        %2049 = vmatprep.mubr.f32.mxu0 0.0
        %2050 = vmatmul.mubr.f32.gmra.mrb[0].mxu0 %v676
        %v2051 = vpop.f32.mrb[0].mxu0
        %v2052 = vadd.f32 %v1827, %v2051
        %v2053 = vpop.f32.mrb[0].mxu0
        %2054 = vmatprep.mubr.f32.mxu0 0.0
        %2055 = vmatmul.mubr.f32.gmra.mrb[0].mxu0 %v677
        %v2056 = vpop.f32.mrb[0].mxu0
        %v2057 = vadd.f32 %v1832, %v2056
        %v2058 = vpop.f32.mrb[0].mxu0
        %2059 = vmatprep.mubr.f32.mxu0 0.0
        %2060 = vmatmul.mubr.f32.gmra.mrb[0].mxu0 %v678
        %v2061 = vpop.f32.mrb[0].mxu0
        %v2062 = vadd.f32 %v1837, %v2061
        %v2063 = vpop.f32.mrb[0].mxu0
        %2064 = vmatprep.mubr.f32.mxu0 0.0
        %2065 = vmatmul.mubr.f32.gmra.mrb[0].mxu0 %v679
        %v2066 = vpop.f32.mrb[0].mxu0
        %v2067 = vadd.f32 %v1842, %v2066
        %v2068 = vpop.f32.mrb[0].mxu0
        %2069 = vmatprep.mubr.f32.mxu0 0.0
        %2070 = vmatmul.mubr.f32.gmra.mrb[0].mxu0 %v680
        %v2071 = vpop.f32.mrb[0].mxu0
        %v2072 = vadd.f32 %v1847, %v2071
        %v2073 = vpop.f32.mrb[0].mxu0
        %2074 = vmatprep.mubr.f32.mxu0 0.0
        %2075 = vmatmul.mubr.f32.gmra.mrb[0].mxu0 %v681
        %v2076 = vpop.f32.mrb[0].mxu0
        %v2077 = vadd.f32 %v1852, %v2076
        %v2078 = vpop.f32.mrb[0].mxu0
        %2079 = vmatprep.mubr.f32.mxu0 0.0
        %2080 = vmatmul.mubr.f32.gmra.mrb[0].mxu0 %v682
        %v2081 = vpop.f32.mrb[0].mxu0
        %v2082 = vadd.f32 %v1857, %v2081
        %v2083 = vpop.f32.mrb[0].mxu0
        %2084 = vmatprep.mubr.f32.mxu0 0.0
        %2085 = vmatmul.mubr.f32.gmra.mrb[0].mxu0 %v683
        %v2086 = vpop.f32.mrb[0].mxu0
        %v2087 = vadd.f32 %v1862, %v2086
        %v2088 = vpop.f32.mrb[0].mxu0
        %2089 = vmatprep.mubr.f32.mxu0 0.0
        %2090 = vmatmul.mubr.f32.gmra.mrb[0].mxu0 %v684
        %v2091 = vpop.f32.mrb[0].mxu0
        %v2092 = vadd.f32 %v1867, %v2091
        %v2093 = vpop.f32.mrb[0].mxu0
        %2094 = vmatprep.mubr.f32.mxu0 0.0
        %2095 = vmatmul.mubr.f32.gmra.mrb[0].mxu0 %v685
        %v2096 = vpop.f32.mrb[0].mxu0
        %v2097 = vadd.f32 %v1872, %v2096
        %v2098 = vpop.f32.mrb[0].mxu0
        %2099 = vmatprep.mubr.f32.mxu0 0.0
        %2100 = vmatmul.mubr.f32.gmra.mrb[0].mxu0 %v686
        %v2101 = vpop.f32.mrb[0].mxu0
        %v2102 = vadd.f32 %v1877, %v2101
        %v2103 = vpop.f32.mrb[0].mxu0
        %2104 = vmatprep.mubr.f32.mxu0 0.0
        %2105 = vmatmul.mubr.f32.gmra.mrb[0].mxu0 %v687
        %v2106 = vpop.f32.mrb[0].mxu0
        %v2107 = vadd.f32 %v1882, %v2106
        %v2108 = vpop.f32.mrb[0].mxu0
        %2109 = vmatprep.mubr.f32.mxu0 0.0
        %2110 = vmatmul.mubr.f32.gmra.mrb[0].mxu0 %v688
        %v2111 = vpop.f32.mrb[0].mxu0
        %v2112 = vadd.f32 %v1887, %v2111
        %v2113 = vpop.f32.mrb[0].mxu0
        %2114 = vmatprep.mubr.f32.mxu0 0.0
        %2115 = vmatmul.mubr.f32.gmra.mrb[0].mxu0 %v689
        %v2116 = vpop.f32.mrb[0].mxu0
        %v2117 = vadd.f32 %v1892, %v2116
        %v2118 = vpop.f32.mrb[0].mxu0
        %2119 = vmatprep.mubr.f32.mxu0 0.0
        %2120 = vmatmul.mubr.f32.gmra.mrb[0].mxu0 %v690
        %v2121 = vpop.f32.mrb[0].mxu0
        %v2122 = vadd.f32 %v1897, %v2121
        %v2123 = vpop.f32.mrb[0].mxu0
        %2124 = vmatprep.mubr.f32.mxu0 0.0
        %2125 = vmatmul.mubr.f32.gmra.mrb[0].mxu0 %v691
        %v2126 = vpop.f32.mrb[0].mxu0
        %v2127 = vadd.f32 %v1902, %v2126
        %v2128 = vpop.f32.mrb[0].mxu0
        %2129 = vmatprep.mubr.f32.mxu0 0.0
        %2130 = vmatmul.mubr.f32.gmra.mrb[0].mxu0 %v692
        %v2131 = vpop.f32.mrb[0].mxu0
        %v2132 = vadd.f32 %v1907, %v2131
        %v2133 = vpop.f32.mrb[0].mxu0
        %2134 = vmatprep.mubr.f32.mxu0 0.0
        %2135 = vmatmul.mubr.f32.gmra.mrb[0].mxu0 %v693
        %v2136 = vpop.f32.mrb[0].mxu0
        %v2137 = vadd.f32 %v1912, %v2136
        %v2138 = vpop.f32.mrb[0].mxu0
        %2139 = vmatprep.mubr.f32.mxu0 0.0
        %2140 = vmatmul.mubr.f32.gmra.mrb[0].mxu0 %v694
        %v2141 = vpop.f32.mrb[0].mxu0
        %v2142 = vadd.f32 %v1917, %v2141
        %v2143 = vpop.f32.mrb[0].mxu0
        %2144 = vmatprep.mubr.f32.mxu0 0.0
        %2145 = vmatmul.mubr.f32.gmra.mrb[0].mxu0 %v695
        %v2146 = vpop.f32.mrb[0].mxu0
        %v2147 = vadd.f32 %v1922, %v2146
        %v2148 = vpop.f32.mrb[0].mxu0
        %2149 = vmatprep.mubr.f32.mxu0 0.0
        %2150 = vmatmul.mubr.f32.gmra.mrb[0].mxu0 %v696
        %v2151 = vpop.f32.mrb[0].mxu0
        %v2152 = vadd.f32 %v1927, %v2151
        %v2153 = vpop.f32.mrb[0].mxu0
        %2154 = vmatprep.mubr.f32.mxu0 0.0
        %2155 = vmatmul.mubr.f32.gmra.mrb[0].mxu0 %v697
        %v2156 = vpop.f32.mrb[0].mxu0
        %v2157 = vadd.f32 %v1932, %v2156
        %v2158 = vpop.f32.mrb[0].mxu0
        %2159 = vmatprep.mubr.f32.mxu0 0.0
        %2160 = vmatmul.mubr.f32.gmra.mrb[0].mxu0 %v698
        %v2161 = vpop.f32.mrb[0].mxu0
        %v2162 = vadd.f32 %v1937, %v2161
        %v2163 = vpop.f32.mrb[0].mxu0
        %2164 = vmatprep.mubr.f32.mxu0 0.0
        %2165 = vmatmul.mubr.f32.gmra.mrb[0].mxu0 %v699
        %v2166 = vpop.f32.mrb[0].mxu0
        %v2167 = vadd.f32 %v1942, %v2166
        %v2168 = vpop.f32.mrb[0].mxu0
        %2169 = vmatprep.mubr.f32.mxu0 0.0
        %2170 = vmatmul.mubr.f32.gmra.mrb[0].mxu0 %v700
        %v2171 = vpop.f32.mrb[0].mxu0
        %v2172 = vadd.f32 %v1947, %v2171
        %v2173 = vpop.f32.mrb[0].mxu0
        %2174 = vmatprep.mubr.f32.mxu0 0.0
        %2175 = vmatmul.mubr.f32.gmra.mrb[0].mxu0 %v701
        %v2176 = vpop.f32.mrb[0].mxu0
        %v2177 = vadd.f32 %v1952, %v2176
        %v2178 = vpop.f32.mrb[0].mxu0
        %2179 = vmatprep.mubr.f32.mxu0 0.0
        %2180 = vmatmul.mubr.f32.gmra.mrb[0].mxu0 %v702
        %v2181 = vpop.f32.mrb[0].mxu0
        %v2182 = vadd.f32 %v1957, %v2181
        %v2183 = vpop.f32.mrb[0].mxu0
        %2184 = vmatprep.mubr.f32.mxu0 0.0
        %2185 = vmatmul.mubr.f32.gmra.mrb[0].mxu0 %v703
        %v2186 = vpop.f32.mrb[0].mxu0
        %v2187 = vadd.f32 %v1962, %v2186
        %v2188 = vpop.f32.mrb[0].mxu0
        %2189 = vmatprep.mubr.f32.mxu0 0.0
        %2190 = vmatmul.mubr.f32.gmra.mrb[0].mxu0 %v704
        %v2191 = vpop.f32.mrb[0].mxu0
        %v2192 = vadd.f32 %v1967, %v2191
        %v2193 = vpop.f32.mrb[0].mxu0
        %2194 = vmatprep.mubr.f32.mxu0 0.0
        %2195 = vmatmul.mubr.f32.gmra.mrb[0].mxu0 %v705
        %v2196 = vpop.f32.mrb[0].mxu0
        %v2197 = vadd.f32 %v1972, %v2196
        %v2198 = vpop.f32.mrb[0].mxu0
        %2199 = vdwg.mxu0
        %v2200 = vadd.f32 %v1544, %v2042
        %v2201 = vadd.f32 %v1549, %v2047
        %v2202 = vadd.f32 %v1554, %v2052
        %v2203 = vadd.f32 %v1559, %v2057
        %v2204 = vadd.f32 %v1564, %v2062
        %v2205 = vadd.f32 %v1569, %v2067
        %v2206 = vadd.f32 %v1574, %v2072
        %v2207 = vadd.f32 %v1579, %v2077
        %v2208 = vadd.f32 %v1584, %v2082
        %v2209 = vadd.f32 %v1589, %v2087
        %v2210 = vadd.f32 %v1594, %v2092
        %v2211 = vadd.f32 %v1599, %v2097
        %v2212 = vadd.f32 %v1604, %v2102
        %v2213 = vadd.f32 %v1609, %v2107
        %v2214 = vadd.f32 %v1614, %v2112
        %v2215 = vadd.f32 %v1619, %v2117
        %v2216 = vadd.f32 %v1624, %v2122
        %v2217 = vadd.f32 %v1629, %v2127
        %v2218 = vadd.f32 %v1634, %v2132
        %v2219 = vadd.f32 %v1639, %v2137
        %v2220 = vadd.f32 %v1644, %v2142
        %v2221 = vadd.f32 %v1649, %v2147
        %v2222 = vadd.f32 %v1654, %v2152
        %v2223 = vadd.f32 %v1659, %v2157
        %v2224 = vadd.f32 %v1664, %v2162
        %v2225 = vadd.f32 %v1669, %v2167
        %v2226 = vadd.f32 %v1674, %v2172
        %v2227 = vadd.f32 %v1679, %v2177
        %v2228 = vadd.f32 %v1684, %v2182
        %v2229 = vadd.f32 %v1689, %v2187
        %v2230 = vadd.f32 %v1694, %v2192
        %v2231 = vadd.f32 %v1699, %v2197
        %v2232 = vld [vmem:[#allocation12] sm:$0x1]
        %v2234 = vlaneseq
        %v2235 = vshrl.u32 %v2234, 7
        %v2236 = vsub.s32 0, %v2235
        %v2237 = vrot.slane %v2232, %v2236
        %v2239 = vadd.f32 %v2200, %v2237
        %v2240 = vadd.f32 %v2201, %v2237
        %v2241 = vadd.f32 %v2202, %v2237
        %v2242 = vadd.f32 %v2203, %v2237
        %v2243 = vadd.f32 %v2204, %v2237
        %v2244 = vadd.f32 %v2205, %v2237
        %v2245 = vadd.f32 %v2206, %v2237
        %v2246 = vadd.f32 %v2207, %v2237
        %v2247 = vadd.f32 %v2208, %v2237
        %v2248 = vadd.f32 %v2209, %v2237
        %v2249 = vadd.f32 %v2210, %v2237
        %v2250 = vadd.f32 %v2211, %v2237
        %v2251 = vadd.f32 %v2212, %v2237
        %v2252 = vadd.f32 %v2213, %v2237
        %v2253 = vadd.f32 %v2214, %v2237
        %v2254 = vadd.f32 %v2215, %v2237
        %v2255 = vadd.f32 %v2216, %v2237
        %v2256 = vadd.f32 %v2217, %v2237
        %v2257 = vadd.f32 %v2218, %v2237
        %v2258 = vadd.f32 %v2219, %v2237
        %v2259 = vadd.f32 %v2220, %v2237
        %v2260 = vadd.f32 %v2221, %v2237
        %v2261 = vadd.f32 %v2222, %v2237
        %v2262 = vadd.f32 %v2223, %v2237
        %v2263 = vadd.f32 %v2224, %v2237
        %v2264 = vadd.f32 %v2225, %v2237
        %v2265 = vadd.f32 %v2226, %v2237
        %v2266 = vadd.f32 %v2227, %v2237
        %v2267 = vadd.f32 %v2228, %v2237
        %v2268 = vadd.f32 %v2229, %v2237
        %v2269 = vadd.f32 %v2230, %v2237
        %v2270 = vadd.f32 %v2231, %v2237
        %vm2271 = vcmp.ge.f32.partialorder %v2239, 0.0
        %vm2272 = vcmp.ge.f32.partialorder %v2240, 0.0
        %vm2273 = vcmp.ge.f32.partialorder %v2241, 0.0
        %vm2274 = vcmp.ge.f32.partialorder %v2242, 0.0
        %vm2275 = vcmp.ge.f32.partialorder %v2243, 0.0
        %vm2276 = vcmp.ge.f32.partialorder %v2244, 0.0
        %vm2277 = vcmp.ge.f32.partialorder %v2245, 0.0
        %vm2278 = vcmp.ge.f32.partialorder %v2246, 0.0
        %vm2279 = vcmp.ge.f32.partialorder %v2247, 0.0
        %vm2280 = vcmp.ge.f32.partialorder %v2248, 0.0
        %vm2281 = vcmp.ge.f32.partialorder %v2249, 0.0
        %vm2282 = vcmp.ge.f32.partialorder %v2250, 0.0
        %vm2283 = vcmp.ge.f32.partialorder %v2251, 0.0
        %vm2284 = vcmp.ge.f32.partialorder %v2252, 0.0
        %vm2285 = vcmp.ge.f32.partialorder %v2253, 0.0
        %vm2286 = vcmp.ge.f32.partialorder %v2254, 0.0
        %vm2287 = vcmp.ge.f32.partialorder %v2255, 0.0
        %vm2288 = vcmp.ge.f32.partialorder %v2256, 0.0
        %vm2289 = vcmp.ge.f32.partialorder %v2257, 0.0
        %vm2290 = vcmp.ge.f32.partialorder %v2258, 0.0
        %vm2291 = vcmp.ge.f32.partialorder %v2259, 0.0
        %vm2292 = vcmp.ge.f32.partialorder %v2260, 0.0
        %vm2293 = vcmp.ge.f32.partialorder %v2261, 0.0
        %vm2294 = vcmp.ge.f32.partialorder %v2262, 0.0
        %vm2295 = vcmp.ge.f32.partialorder %v2263, 0.0
        %vm2296 = vcmp.ge.f32.partialorder %v2264, 0.0
        %vm2297 = vcmp.ge.f32.partialorder %v2265, 0.0
        %vm2298 = vcmp.ge.f32.partialorder %v2266, 0.0
        %vm2299 = vcmp.ge.f32.partialorder %v2267, 0.0
        %vm2300 = vcmp.ge.f32.partialorder %v2268, 0.0
        %vm2301 = vcmp.ge.f32.partialorder %v2269, 0.0
        %vm2302 = vcmp.ge.f32.partialorder %v2270, 0.0
        %v2303 = vld [vmem:[#allocation14] sm:$0x1]
        %v2305 = vlaneseq
        %v2306 = vshrl.u32 %v2305, 7
        %v2307 = vsub.s32 0, %v2306
        %v2308 = vrot.slane %v2303, %v2307
        %v2310 = vmul.f32 %v2308, %v2239
        %v2311 = vmul.f32 %v2308, %v2240
        %v2312 = vmul.f32 %v2308, %v2241
        %v2313 = vmul.f32 %v2308, %v2242
        %v2314 = vmul.f32 %v2308, %v2243
        %v2315 = vmul.f32 %v2308, %v2244
        %v2316 = vmul.f32 %v2308, %v2245
        %v2317 = vmul.f32 %v2308, %v2246
        %v2318 = vmul.f32 %v2308, %v2247
        %v2319 = vmul.f32 %v2308, %v2248
        %v2320 = vmul.f32 %v2308, %v2249
        %v2321 = vmul.f32 %v2308, %v2250
        %v2322 = vmul.f32 %v2308, %v2251
        %v2323 = vmul.f32 %v2308, %v2252
        %v2324 = vmul.f32 %v2308, %v2253
        %v2325 = vmul.f32 %v2308, %v2254
        %v2326 = vmul.f32 %v2308, %v2255
        %v2327 = vmul.f32 %v2308, %v2256
        %v2328 = vmul.f32 %v2308, %v2257
        %v2329 = vmul.f32 %v2308, %v2258
        %v2330 = vmul.f32 %v2308, %v2259
        %v2331 = vmul.f32 %v2308, %v2260
        %v2332 = vmul.f32 %v2308, %v2261
        %v2333 = vmul.f32 %v2308, %v2262
        %v2334 = vmul.f32 %v2308, %v2263
        %v2335 = vmul.f32 %v2308, %v2264
        %v2336 = vmul.f32 %v2308, %v2265
        %v2337 = vmul.f32 %v2308, %v2266
        %v2338 = vmul.f32 %v2308, %v2267
        %v2339 = vmul.f32 %v2308, %v2268
        %v2340 = vmul.f32 %v2308, %v2269
        %v2341 = vmul.f32 %v2308, %v2270
        %v2342 = vsel %vm2271, %v2239, %v2310
        %v2343 = vsel %vm2272, %v2240, %v2311
        %v2344 = vsel %vm2273, %v2241, %v2312
        %v2345 = vsel %vm2274, %v2242, %v2313
        %v2346 = vsel %vm2275, %v2243, %v2314
        %v2347 = vsel %vm2276, %v2244, %v2315
        %v2348 = vsel %vm2277, %v2245, %v2316
        %v2349 = vsel %vm2278, %v2246, %v2317
        %v2350 = vsel %vm2279, %v2247, %v2318
        %v2351 = vsel %vm2280, %v2248, %v2319
        %v2352 = vsel %vm2281, %v2249, %v2320
        %v2353 = vsel %vm2282, %v2250, %v2321
        %v2354 = vsel %vm2283, %v2251, %v2322
        %v2355 = vsel %vm2284, %v2252, %v2323
        %v2356 = vsel %vm2285, %v2253, %v2324
        %v2357 = vsel %vm2286, %v2254, %v2325
        %v2358 = vsel %vm2287, %v2255, %v2326
        %v2359 = vsel %vm2288, %v2256, %v2327
        %v2360 = vsel %vm2289, %v2257, %v2328
        %v2361 = vsel %vm2290, %v2258, %v2329
        %v2362 = vsel %vm2291, %v2259, %v2330
        %v2363 = vsel %vm2292, %v2260, %v2331
        %v2364 = vsel %vm2293, %v2261, %v2332
        %v2365 = vsel %vm2294, %v2262, %v2333
        %v2366 = vsel %vm2295, %v2263, %v2334
        %v2367 = vsel %vm2296, %v2264, %v2335
        %v2368 = vsel %vm2297, %v2265, %v2336
        %v2369 = vsel %vm2298, %v2266, %v2337
        %v2370 = vsel %vm2299, %v2267, %v2338
        %v2371 = vsel %vm2300, %v2268, %v2339
        %v2372 = vsel %vm2301, %v2269, %v2340
        %v2373 = vsel %vm2302, %v2270, %v2341
        %2374 = vst [vmem:[%s423 + $0x1] sm:$0xff] %v2342
        %2375 = vst [vmem:[%s423 + $0x9] sm:$0xff] %v2343
        %2376 = vst [vmem:[%s423 + $0x19] sm:$0xff] %v2344
        %2377 = vst [vmem:[%s423 + $0x21] sm:$0xff] %v2345
        %2378 = vst [vmem:[%s423 + $0x31] sm:$0xff] %v2346
        %2379 = vst [vmem:[%s423 + $0x39] sm:$0xff] %v2347
        %2380 = vst [vmem:[%s423 + $0x49] sm:$0xff] %v2348
        %2381 = vst [vmem:[%s423 + $0x51] sm:$0xff] %v2349
        %2382 = vst [vmem:[%s423 + $0x61] sm:$0xff] %v2350
        %2383 = vst [vmem:[%s423 + $0x69] sm:$0xff] %v2351
        %2384 = vst [vmem:[%s423 + $0x79] sm:$0xff] %v2352
        %2385 = vst [vmem:[%s423 + $0x81] sm:$0xff] %v2353
        %2386 = vst [vmem:[%s423 + $0x91] sm:$0xff] %v2354
        %2387 = vst [vmem:[%s423 + $0x99] sm:$0xff] %v2355
        %2388 = vst [vmem:[%s423 + $0xa9] sm:$0xff] %v2356
        %2389 = vst [vmem:[%s423 + $0xb1] sm:$0xff] %v2357
        %2390 = vst [vmem:[%s423 + $0xc1] sm:$0xff] %v2358
        %2391 = vst [vmem:[%s423 + $0xc9] sm:$0xff] %v2359
        %2392 = vst [vmem:[%s423 + $0xd9] sm:$0xff] %v2360
        %2393 = vst [vmem:[%s423 + $0xe1] sm:$0xff] %v2361
        %2394 = vst [vmem:[%s423 + $0xf1] sm:$0xff] %v2362
        %2395 = vst [vmem:[%s423 + $0xf9] sm:$0xff] %v2363
        %2396 = vst [vmem:[%s423 + $0x109] sm:$0xff] %v2364
        %2397 = vst [vmem:[%s423 + $0x111] sm:$0xff] %v2365
        %2398 = vst [vmem:[%s423 + $0x121] sm:$0xff] %v2366
        %2399 = vst [vmem:[%s423 + $0x129] sm:$0xff] %v2367
        %2400 = vst [vmem:[%s423 + $0x139] sm:$0xff] %v2368
        %2401 = vst [vmem:[%s423 + $0x141] sm:$0xff] %v2369
        %2402 = vst [vmem:[%s423 + $0x151] sm:$0xff] %v2370
        %2403 = vst [vmem:[%s423 + $0x159] sm:$0xff] %v2371
        %2404 = vst [vmem:[%s423 + $0x169] sm:$0xff] %v2372
        %2405 = vst [vmem:[%s423 + $0x171] sm:$0xff] %v2373
        %v2406 = vld [vmem:[#allocation2] sm:$0xff]
        %v2407 = vld [vmem:[#allocation2 + $0x8] sm:$0xff]
        %v2408 = vld [vmem:[#allocation2 + $0x18] sm:$0xff]
        %v2409 = vld [vmem:[#allocation2 + $0x20] sm:$0xff]
        %v2410 = vld [vmem:[#allocation2 + $0x30] sm:$0xff]
        %v2411 = vld [vmem:[#allocation2 + $0x38] sm:$0xff]
        %v2412 = vld [vmem:[#allocation2 + $0x48] sm:$0xff]
        %v2413 = vld [vmem:[#allocation2 + $0x50] sm:$0xff]
        %v2414 = vld [vmem:[#allocation2 + $0x60] sm:$0xff]
        %v2415 = vld [vmem:[#allocation2 + $0x68] sm:$0xff]
        %v2416 = vld [vmem:[#allocation2 + $0x78] sm:$0xff]
        %v2417 = vld [vmem:[#allocation2 + $0x80] sm:$0xff]
        %v2418 = vld [vmem:[#allocation2 + $0x90] sm:$0xff]
        %v2419 = vld [vmem:[#allocation2 + $0x98] sm:$0xff]
        %v2420 = vld [vmem:[#allocation2 + $0xa8] sm:$0xff]
        %v2421 = vld [vmem:[#allocation2 + $0xb0] sm:$0xff]
        %v2422 = vld [vmem:[#allocation2 + $0xc0] sm:$0xff]
        %v2423 = vld [vmem:[#allocation2 + $0xc8] sm:$0xff]
        %v2424 = vld [vmem:[#allocation2 + $0xd8] sm:$0xff]
        %v2425 = vld [vmem:[#allocation2 + $0xe0] sm:$0xff]
        %v2426 = vld [vmem:[#allocation2 + $0xf0] sm:$0xff]
        %v2427 = vld [vmem:[#allocation2 + $0xf8] sm:$0xff]
        %v2428 = vld [vmem:[#allocation2 + $0x108] sm:$0xff]
        %v2429 = vld [vmem:[#allocation2 + $0x110] sm:$0xff]
        %v2430 = vld [vmem:[#allocation2 + $0x120] sm:$0xff]
        %v2431 = vld [vmem:[#allocation2 + $0x128] sm:$0xff]
        %v2432 = vld [vmem:[#allocation2 + $0x138] sm:$0xff]
        %v2433 = vld [vmem:[#allocation2 + $0x140] sm:$0xff]
        %v2434 = vld [vmem:[#allocation2 + $0x150] sm:$0xff]
        %v2435 = vld [vmem:[#allocation2 + $0x158] sm:$0xff]
        %v2436 = vld [vmem:[#allocation2 + $0x168] sm:$0xff]
        %v2437 = vld [vmem:[#allocation2 + $0x170] sm:$0xff]
        %v2438 = vld [vmem:[#allocation2 + $0x180] sm:$0xff]
        %v2439 = vld [vmem:[#allocation2 + $0x188] sm:$0xff]
        %v2440 = vld [vmem:[#allocation2 + $0x198] sm:$0xff]
        %v2441 = vld [vmem:[#allocation2 + $0x1a0] sm:$0xff]
        %v2442 = vld [vmem:[#allocation2 + $0x1] sm:$0xff]
        %v2443 = vld [vmem:[#allocation2 + $0x9] sm:$0xff]
        %v2444 = vld [vmem:[#allocation2 + $0x19] sm:$0xff]
        %v2445 = vld [vmem:[#allocation2 + $0x21] sm:$0xff]
        %v2446 = vld [vmem:[#allocation2 + $0x31] sm:$0xff]
        %v2447 = vld [vmem:[#allocation2 + $0x39] sm:$0xff]
        %v2448 = vld [vmem:[#allocation2 + $0x49] sm:$0xff]
        %v2449 = vld [vmem:[#allocation2 + $0x51] sm:$0xff]
        %v2450 = vld [vmem:[#allocation2 + $0x61] sm:$0xff]
        %v2451 = vld [vmem:[#allocation2 + $0x69] sm:$0xff]
        %v2452 = vld [vmem:[#allocation2 + $0x79] sm:$0xff]
        %v2453 = vld [vmem:[#allocation2 + $0x81] sm:$0xff]
        %v2454 = vld [vmem:[#allocation2 + $0x91] sm:$0xff]
        %v2455 = vld [vmem:[#allocation2 + $0x99] sm:$0xff]
        %v2456 = vld [vmem:[#allocation2 + $0xa9] sm:$0xff]
        %v2457 = vld [vmem:[#allocation2 + $0xb1] sm:$0xff]
        %v2458 = vld [vmem:[#allocation2 + $0xc1] sm:$0xff]
        %v2459 = vld [vmem:[#allocation2 + $0xc9] sm:$0xff]
        %v2460 = vld [vmem:[#allocation2 + $0xd9] sm:$0xff]
        %v2461 = vld [vmem:[#allocation2 + $0xe1] sm:$0xff]
        %v2462 = vld [vmem:[#allocation2 + $0xf1] sm:$0xff]
        %v2463 = vld [vmem:[#allocation2 + $0xf9] sm:$0xff]
        %v2464 = vld [vmem:[#allocation2 + $0x109] sm:$0xff]
        %v2465 = vld [vmem:[#allocation2 + $0x111] sm:$0xff]
        %v2466 = vld [vmem:[#allocation2 + $0x121] sm:$0xff]
        %v2467 = vld [vmem:[#allocation2 + $0x129] sm:$0xff]
        %v2468 = vld [vmem:[#allocation2 + $0x139] sm:$0xff]
        %v2469 = vld [vmem:[#allocation2 + $0x141] sm:$0xff]
        %v2470 = vld [vmem:[#allocation2 + $0x151] sm:$0xff]
        %v2471 = vld [vmem:[#allocation2 + $0x159] sm:$0xff]
        %v2472 = vld [vmem:[#allocation2 + $0x169] sm:$0xff]
        %v2473 = vld [vmem:[#allocation2 + $0x171] sm:$0xff]
        %v2474 = vld [vmem:[#allocation2 + $0x181] sm:$0xff]
        %v2475 = vld [vmem:[#allocation2 + $0x189] sm:$0xff]
        %v2476 = vld [vmem:[#allocation2 + $0x199] sm:$0xff]
        %v2477 = vld [vmem:[#allocation2 + $0x1a1] sm:$0xff]
        %v2478 = vld [vmem:[#allocation2 + $0x2] sm:$0xff]
        %v2479 = vld [vmem:[#allocation2 + $0xa] sm:$0xff]
        %v2480 = vld [vmem:[#allocation2 + $0x1a] sm:$0xff]
        %v2481 = vld [vmem:[#allocation2 + $0x22] sm:$0xff]
        %v2482 = vld [vmem:[#allocation2 + $0x32] sm:$0xff]
        %v2483 = vld [vmem:[#allocation2 + $0x3a] sm:$0xff]
        %v2484 = vld [vmem:[#allocation2 + $0x4a] sm:$0xff]
        %v2485 = vld [vmem:[#allocation2 + $0x52] sm:$0xff]
        %v2486 = vld [vmem:[#allocation2 + $0x62] sm:$0xff]
        %v2487 = vld [vmem:[#allocation2 + $0x6a] sm:$0xff]
        %v2488 = vld [vmem:[#allocation2 + $0x7a] sm:$0xff]
        %v2489 = vld [vmem:[#allocation2 + $0x82] sm:$0xff]
        %v2490 = vld [vmem:[#allocation2 + $0x92] sm:$0xff]
        %v2491 = vld [vmem:[#allocation2 + $0x9a] sm:$0xff]
        %v2492 = vld [vmem:[#allocation2 + $0xaa] sm:$0xff]
        %v2493 = vld [vmem:[#allocation2 + $0xb2] sm:$0xff]
        %v2494 = vld [vmem:[#allocation2 + $0xc2] sm:$0xff]
        %v2495 = vld [vmem:[#allocation2 + $0xca] sm:$0xff]
        %v2496 = vld [vmem:[#allocation2 + $0xda] sm:$0xff]
        %v2497 = vld [vmem:[#allocation2 + $0xe2] sm:$0xff]
        %v2498 = vld [vmem:[#allocation2 + $0xf2] sm:$0xff]
        %v2499 = vld [vmem:[#allocation2 + $0xfa] sm:$0xff]
        %v2500 = vld [vmem:[#allocation2 + $0x10a] sm:$0xff]
        %v2501 = vld [vmem:[#allocation2 + $0x112] sm:$0xff]
        %v2502 = vld [vmem:[#allocation2 + $0x122] sm:$0xff]
        %v2503 = vld [vmem:[#allocation2 + $0x12a] sm:$0xff]
        %v2504 = vld [vmem:[#allocation2 + $0x13a] sm:$0xff]
        %v2505 = vld [vmem:[#allocation2 + $0x142] sm:$0xff]
        %v2506 = vld [vmem:[#allocation2 + $0x152] sm:$0xff]
        %v2507 = vld [vmem:[#allocation2 + $0x15a] sm:$0xff]
        %v2508 = vld [vmem:[#allocation2 + $0x16a] sm:$0xff]
        %v2509 = vld [vmem:[#allocation2 + $0x172] sm:$0xff]
        %v2510 = vld [vmem:[#allocation2 + $0x182] sm:$0xff]
        %v2511 = vld [vmem:[#allocation2 + $0x18a] sm:$0xff]
        %v2512 = vld [vmem:[#allocation2 + $0x19a] sm:$0xff]
        %v2513 = vld [vmem:[#allocation2 + $0x1a2] sm:$0xff]
        %v2514 = vld [vmem:[#allocation8] sm:$0xff]
        %v2515 = vld [vmem:[#allocation8 + $0x8] sm:$0xff]
        %v2516 = vld [vmem:[#allocation8 + $0x10] sm:$0xff]
        %v2517 = vld [vmem:[#allocation8 + $0x18] sm:$0xff]
        %v2518 = vld [vmem:[#allocation8 + $0x20] sm:$0xff]
        %v2519 = vld [vmem:[#allocation8 + $0x28] sm:$0xff]
        %v2520 = vld [vmem:[#allocation8 + $0x30] sm:$0xff]
        %v2521 = vld [vmem:[#allocation8 + $0x38] sm:$0xff]
        %v2522 = vld [vmem:[#allocation8 + $0x40] sm:$0xff]
        %v2523 = vld [vmem:[#allocation8 + $0x48] sm:$0xff]
        %v2524 = vld [vmem:[#allocation8 + $0x50] sm:$0xff]
        %v2525 = vld [vmem:[#allocation8 + $0x58] sm:$0xff]
        %v2526 = vld [vmem:[#allocation8 + $0x60] sm:$0xff]
        %v2527 = vld [vmem:[#allocation8 + $0x68] sm:$0xff]
        %v2528 = vld [vmem:[#allocation8 + $0x70] sm:$0xff]
        %v2529 = vld [vmem:[#allocation8 + $0x78] sm:$0xff]
        %v2530 = vld [vmem:[#allocation8 + $0x80] sm:$0xff]
        %v2531 = vld [vmem:[#allocation8 + $0x88] sm:$0xff]
        %v2532 = vld [vmem:[#allocation8 + $0x90] sm:$0xff]
        %v2533 = vld [vmem:[#allocation8 + $0x98] sm:$0xff]
        %v2534 = vld [vmem:[#allocation8 + $0xa0] sm:$0xff]
        %v2535 = vld [vmem:[#allocation8 + $0xa8] sm:$0xff]
        %v2536 = vld [vmem:[#allocation8 + $0xb0] sm:$0xff]
        %v2537 = vld [vmem:[#allocation8 + $0xb8] sm:$0xff]
        %v2538 = vld [vmem:[#allocation8 + $0xc0] sm:$0xff]
        %v2539 = vld [vmem:[#allocation8 + $0xc8] sm:$0xff]
        %v2540 = vld [vmem:[#allocation8 + $0xd0] sm:$0xff]
        %v2541 = vld [vmem:[#allocation8 + $0xd8] sm:$0xff]
        %v2542 = vld [vmem:[#allocation8 + $0xe0] sm:$0xff]
        %v2543 = vld [vmem:[#allocation8 + $0xe8] sm:$0xff]
        %v2544 = vld [vmem:[#allocation8 + $0xf0] sm:$0xff]
        %v2545 = vld [vmem:[#allocation8 + $0xf8] sm:$0xff]
        %v2546 = vld [vmem:[#allocation8 + $0x100] sm:$0xff]
        %v2547 = vld [vmem:[#allocation8 + $0x108] sm:$0xff]
        %v2548 = vld [vmem:[#allocation8 + $0x110] sm:$0xff]
        %v2549 = vld [vmem:[#allocation8 + $0x118] sm:$0xff]
        %v2550 = vld [vmem:[#allocation8 + $0x120] sm:$0xff]
        %v2551 = vld [vmem:[#allocation8 + $0x128] sm:$0xff]
        %v2552 = vld [vmem:[#allocation8 + $0x130] sm:$0xff]
        %v2553 = vld [vmem:[#allocation8 + $0x138] sm:$0xff]
        %v2554 = vld [vmem:[#allocation8 + $0x140] sm:$0xff]
        %v2555 = vld [vmem:[#allocation8 + $0x148] sm:$0xff]
        %v2556 = vld [vmem:[#allocation8 + $0x150] sm:$0xff]
        %v2557 = vld [vmem:[#allocation8 + $0x158] sm:$0xff]
        %v2558 = vld [vmem:[#allocation8 + $0x160] sm:$0xff]
        %v2559 = vld [vmem:[#allocation8 + $0x168] sm:$0xff]
        %v2560 = vld [vmem:[#allocation8 + $0x170] sm:$0xff]
        %v2561 = vld [vmem:[#allocation8 + $0x178] sm:$0xff]
        %v2562 = vld [vmem:[#allocation8 + $0x180] sm:$0xff]
        %v2563 = vld [vmem:[#allocation8 + $0x188] sm:$0xff]
        %v2564 = vld [vmem:[#allocation8 + $0x190] sm:$0xff]
        %v2565 = vld [vmem:[#allocation8 + $0x198] sm:$0xff]
        %v2566 = vld [vmem:[#allocation8 + $0x1a0] sm:$0xff]
        %v2567 = vld [vmem:[#allocation8 + $0x1a8] sm:$0xff]
        %v2568 = vld [vmem:[#allocation8 + $0x1b0] sm:$0xff]
        %v2569 = vld [vmem:[#allocation8 + $0x1b8] sm:$0xff]
        %v2570 = vld [vmem:[#allocation8 + $0x1c0] sm:$0xff]
        %v2571 = vld [vmem:[#allocation8 + $0x1c8] sm:$0xff]
        %v2572 = vld [vmem:[#allocation8 + $0x1d0] sm:$0xff]
        %v2573 = vld [vmem:[#allocation8 + $0x1d8] sm:$0xff]
        %v2574 = vld [vmem:[#allocation8 + $0x1e0] sm:$0xff]
        %v2575 = vld [vmem:[#allocation8 + $0x1e8] sm:$0xff]
        %v2576 = vld [vmem:[#allocation8 + $0x1f0] sm:$0xff]
        %v2577 = vld [vmem:[#allocation8 + $0x1f8] sm:$0xff]
        %v2578 = vld [vmem:[#allocation8 + $0x200] sm:$0xff]
        %v2579 = vld [vmem:[#allocation8 + $0x208] sm:$0xff]
        %v2580 = vld [vmem:[#allocation8 + $0x210] sm:$0xff]
        %v2581 = vld [vmem:[#allocation8 + $0x218] sm:$0xff]
        %v2582 = vld [vmem:[#allocation8 + $0x220] sm:$0xff]
        %v2583 = vld [vmem:[#allocation8 + $0x228] sm:$0xff]
        %v2584 = vld [vmem:[#allocation8 + $0x230] sm:$0xff]
        %v2585 = vld [vmem:[#allocation8 + $0x238] sm:$0xff]
        %v2586 = vld [vmem:[#allocation8 + $0x240] sm:$0xff]
        %v2587 = vld [vmem:[#allocation8 + $0x248] sm:$0xff]
        %v2588 = vld [vmem:[#allocation8 + $0x250] sm:$0xff]
        %v2589 = vld [vmem:[#allocation8 + $0x258] sm:$0xff]
        %v2590 = vld [vmem:[#allocation8 + $0x260] sm:$0xff]
        %v2591 = vld [vmem:[#allocation8 + $0x268] sm:$0xff]
        %v2592 = vld [vmem:[#allocation8 + $0x270] sm:$0xff]
        %v2593 = vld [vmem:[#allocation8 + $0x278] sm:$0xff]
        %v2594 = vld [vmem:[#allocation8 + $0x280] sm:$0xff]
        %v2595 = vld [vmem:[#allocation8 + $0x288] sm:$0xff]
        %v2596 = vld [vmem:[#allocation8 + $0x290] sm:$0xff]
        %v2597 = vld [vmem:[#allocation8 + $0x298] sm:$0xff]
        %v2598 = vld [vmem:[#allocation8 + $0x2a0] sm:$0xff]
        %v2599 = vld [vmem:[#allocation8 + $0x2a8] sm:$0xff]
        %v2600 = vld [vmem:[#allocation8 + $0x2b0] sm:$0xff]
        %v2601 = vld [vmem:[#allocation8 + $0x2b8] sm:$0xff]
        %v2602 = vld [vmem:[#allocation8 + $0x2c0] sm:$0xff]
        %v2603 = vld [vmem:[#allocation8 + $0x2c8] sm:$0xff]
        %v2604 = vld [vmem:[#allocation8 + $0x2d0] sm:$0xff]
        %v2605 = vld [vmem:[#allocation8 + $0x2d8] sm:$0xff]
        %v2606 = vld [vmem:[#allocation8 + $0x2e0] sm:$0xff]
        %v2607 = vld [vmem:[#allocation8 + $0x2e8] sm:$0xff]
        %v2608 = vld [vmem:[#allocation8 + $0x2f0] sm:$0xff]
        %v2609 = vld [vmem:[#allocation8 + $0x2f8] sm:$0xff]
        %2610 = vmatprep.subr.mxu0 0.0
        %2611 = vmatpush1.msra.mxu0 %v2562
        %2612 = vmatprep.subr.mxu0 0.0
        %2613 = vmatpush1.msra.mxu0 %v2563
        %2614 = vmatprep.subr.mxu0 0.0
        %2615 = vmatpush1.msra.mxu0 %v2564
        %2616 = vmatprep.subr.mxu0 0.0
        %2617 = vmatpush1.msra.mxu0 %v2565
        %2618 = vmatprep.subr.mxu0 0.0
        %2619 = vmatpush1.msra.mxu0 %v2566
        %2620 = vmatprep.subr.mxu0 0.0
        %2621 = vmatpush1.msra.mxu0 %v2567
        %2622 = vmatprep.subr.mxu0 0.0
        %2623 = vmatpush1.msra.mxu0 %v2568
        %2624 = vmatprep.subr.mxu0 0.0
        %2625 = vmatpush1.msra.mxu0 %v2569
        %2626 = vmatprep.subr.mxu0 0.0
        %2627 = vmatpush1.msra.mxu0 %v2570
        %2628 = vmatprep.subr.mxu0 0.0
        %2629 = vmatpush1.msra.mxu0 %v2571
        %2630 = vmatprep.subr.mxu0 0.0
        %2631 = vmatpush1.msra.mxu0 %v2572
        %2632 = vmatprep.subr.mxu0 0.0
        %2633 = vmatpush1.msra.mxu0 %v2573
        %2634 = vmatprep.subr.mxu0 0.0
        %2635 = vmatpush1.msra.mxu0 %v2574
        %2636 = vmatprep.subr.mxu0 0.0
        %2637 = vmatpush1.msra.mxu0 %v2575
        %2638 = vmatprep.subr.mxu0 0.0
        %2639 = vmatpush1.msra.mxu0 %v2576
        %2640 = vmatprep.subr.mxu0 0.0
        %2641 = vmatpush1.msra.mxu0 %v2577
        %2642 = vmatprep.subr.mxu0 0.0
        %2643 = vmatpush1.msra.mxu0 %v2578
        %2644 = vmatprep.subr.mxu0 0.0
        %2645 = vmatpush1.msra.mxu0 %v2579
        %2646 = vmatprep.subr.mxu0 0.0
        %2647 = vmatpush1.msra.mxu0 %v2580
        %2648 = vmatprep.subr.mxu0 0.0
        %2649 = vmatpush1.msra.mxu0 %v2581
        %2650 = vmatprep.subr.mxu0 0.0
        %2651 = vmatpush1.msra.mxu0 %v2582
        %2652 = vmatprep.subr.mxu0 0.0
        %2653 = vmatpush1.msra.mxu0 %v2583
        %2654 = vmatprep.subr.mxu0 0.0
        %2655 = vmatpush1.msra.mxu0 %v2584
        %2656 = vmatprep.subr.mxu0 0.0
        %2657 = vmatpush1.msra.mxu0 %v2585
        %2658 = vmatprep.subr.mxu0 0.0
        %2659 = vmatpush1.msra.mxu0 %v2586
        %2660 = vmatprep.subr.mxu0 0.0
        %2661 = vmatpush1.msra.mxu0 %v2587
        %2662 = vmatprep.subr.mxu0 0.0
        %2663 = vmatpush1.msra.mxu0 %v2588
        %2664 = vmatprep.subr.mxu0 0.0
        %2665 = vmatpush1.msra.mxu0 %v2589
        %2666 = vmatprep.subr.mxu0 0.0
        %2667 = vmatpush1.msra.mxu0 %v2590
        %2668 = vmatprep.subr.mxu0 0.0
        %2669 = vmatpush1.msra.mxu0 %v2591
        %2670 = vmatprep.subr.mxu0 0.0
        %2671 = vmatpush1.msra.mxu0 %v2592
        %2672 = vmatprep.subr.mxu0 0.0
        %2673 = vmatpush1.msra.mxu0 %v2593
        %2674 = vmatprep.mubr.f32.mxu0 %v2444
        %2675 = vmatmul.mubr.f32.gmra.mrb[0].mxu0 %v2408
        %v2676 = vpop.f32.mrb[0].mxu0
        %v2677 = vadd.f32 0.0, %v2676
        %v2678 = vpop.f32.mrb[0].mxu0
        %2679 = vmatprep.mubr.f32.mxu0 %v2445
        %2680 = vmatmul.mubr.f32.gmra.mrb[0].mxu0 %v2409
        %v2681 = vpop.f32.mrb[0].mxu0
        %v2682 = vadd.f32 0.0, %v2681
        %v2683 = vpop.f32.mrb[0].mxu0
        %2684 = vmatprep.mubr.f32.mxu0 %v2446
        %2685 = vmatmul.mubr.f32.gmra.mrb[0].mxu0 %v2410
        %v2686 = vpop.f32.mrb[0].mxu0
        %v2687 = vadd.f32 0.0, %v2686
        %v2688 = vpop.f32.mrb[0].mxu0
        %2689 = vmatprep.mubr.f32.mxu0 %v2447
        %2690 = vmatmul.mubr.f32.gmra.mrb[0].mxu0 %v2411
        %v2691 = vpop.f32.mrb[0].mxu0
        %v2692 = vadd.f32 0.0, %v2691
        %v2693 = vpop.f32.mrb[0].mxu0
        %2694 = vmatprep.mubr.f32.mxu0 %v2448
        %2695 = vmatmul.mubr.f32.gmra.mrb[0].mxu0 %v2412
        %v2696 = vpop.f32.mrb[0].mxu0
        %v2697 = vadd.f32 0.0, %v2696
        %v2698 = vpop.f32.mrb[0].mxu0
        %2699 = vmatprep.mubr.f32.mxu0 %v2449
        %2700 = vmatmul.mubr.f32.gmra.mrb[0].mxu0 %v2413
        %v2701 = vpop.f32.mrb[0].mxu0
        %v2702 = vadd.f32 0.0, %v2701
        %v2703 = vpop.f32.mrb[0].mxu0
        %2704 = vmatprep.mubr.f32.mxu0 %v2450
        %2705 = vmatmul.mubr.f32.gmra.mrb[0].mxu0 %v2414
        %v2706 = vpop.f32.mrb[0].mxu0
        %v2707 = vadd.f32 0.0, %v2706
        %v2708 = vpop.f32.mrb[0].mxu0
        %2709 = vmatprep.mubr.f32.mxu0 %v2451
        %2710 = vmatmul.mubr.f32.gmra.mrb[0].mxu0 %v2415
        %v2711 = vpop.f32.mrb[0].mxu0
        %v2712 = vadd.f32 0.0, %v2711
        %v2713 = vpop.f32.mrb[0].mxu0
        %2714 = vmatprep.mubr.f32.mxu0 %v2452
        %2715 = vmatmul.mubr.f32.gmra.mrb[0].mxu0 %v2416
        %v2716 = vpop.f32.mrb[0].mxu0
        %v2717 = vadd.f32 0.0, %v2716
        %v2718 = vpop.f32.mrb[0].mxu0
        %2719 = vmatprep.mubr.f32.mxu0 %v2453
        %2720 = vmatmul.mubr.f32.gmra.mrb[0].mxu0 %v2417
        %v2721 = vpop.f32.mrb[0].mxu0
        %v2722 = vadd.f32 0.0, %v2721
        %v2723 = vpop.f32.mrb[0].mxu0
        %2724 = vmatprep.mubr.f32.mxu0 %v2454
        %2725 = vmatmul.mubr.f32.gmra.mrb[0].mxu0 %v2418
        %v2726 = vpop.f32.mrb[0].mxu0
        %v2727 = vadd.f32 0.0, %v2726
        %v2728 = vpop.f32.mrb[0].mxu0
        %2729 = vmatprep.mubr.f32.mxu0 %v2455
        %2730 = vmatmul.mubr.f32.gmra.mrb[0].mxu0 %v2419
        %v2731 = vpop.f32.mrb[0].mxu0
        %v2732 = vadd.f32 0.0, %v2731
        %v2733 = vpop.f32.mrb[0].mxu0
        %2734 = vmatprep.mubr.f32.mxu0 %v2456
        %2735 = vmatmul.mubr.f32.gmra.mrb[0].mxu0 %v2420
        %v2736 = vpop.f32.mrb[0].mxu0
        %v2737 = vadd.f32 0.0, %v2736
        %v2738 = vpop.f32.mrb[0].mxu0
        %2739 = vmatprep.mubr.f32.mxu0 %v2457
        %2740 = vmatmul.mubr.f32.gmra.mrb[0].mxu0 %v2421
        %v2741 = vpop.f32.mrb[0].mxu0
        %v2742 = vadd.f32 0.0, %v2741
        %v2743 = vpop.f32.mrb[0].mxu0
        %2744 = vmatprep.mubr.f32.mxu0 %v2458
        %2745 = vmatmul.mubr.f32.gmra.mrb[0].mxu0 %v2422
        %v2746 = vpop.f32.mrb[0].mxu0
        %v2747 = vadd.f32 0.0, %v2746
        %v2748 = vpop.f32.mrb[0].mxu0
        %2749 = vmatprep.mubr.f32.mxu0 %v2459
        %2750 = vmatmul.mubr.f32.gmra.mrb[0].mxu0 %v2423
        %v2751 = vpop.f32.mrb[0].mxu0
        %v2752 = vadd.f32 0.0, %v2751
        %v2753 = vpop.f32.mrb[0].mxu0
        %2754 = vmatprep.mubr.f32.mxu0 %v2460
        %2755 = vmatmul.mubr.f32.gmra.mrb[0].mxu0 %v2424
        %v2756 = vpop.f32.mrb[0].mxu0
        %v2757 = vadd.f32 0.0, %v2756
        %v2758 = vpop.f32.mrb[0].mxu0
        %2759 = vmatprep.mubr.f32.mxu0 %v2461
        %2760 = vmatmul.mubr.f32.gmra.mrb[0].mxu0 %v2425
        %v2761 = vpop.f32.mrb[0].mxu0
        %v2762 = vadd.f32 0.0, %v2761
        %v2763 = vpop.f32.mrb[0].mxu0
        %2764 = vmatprep.mubr.f32.mxu0 %v2462
        %2765 = vmatmul.mubr.f32.gmra.mrb[0].mxu0 %v2426
        %v2766 = vpop.f32.mrb[0].mxu0
        %v2767 = vadd.f32 0.0, %v2766
        %v2768 = vpop.f32.mrb[0].mxu0
        %2769 = vmatprep.mubr.f32.mxu0 %v2463
        %2770 = vmatmul.mubr.f32.gmra.mrb[0].mxu0 %v2427
        %v2771 = vpop.f32.mrb[0].mxu0
        %v2772 = vadd.f32 0.0, %v2771
        %v2773 = vpop.f32.mrb[0].mxu0
        %2774 = vmatprep.mubr.f32.mxu0 %v2464
        %2775 = vmatmul.mubr.f32.gmra.mrb[0].mxu0 %v2428
        %v2776 = vpop.f32.mrb[0].mxu0
        %v2777 = vadd.f32 0.0, %v2776
        %v2778 = vpop.f32.mrb[0].mxu0
        %2779 = vmatprep.mubr.f32.mxu0 %v2465
        %2780 = vmatmul.mubr.f32.gmra.mrb[0].mxu0 %v2429
        %v2781 = vpop.f32.mrb[0].mxu0
        %v2782 = vadd.f32 0.0, %v2781
        %v2783 = vpop.f32.mrb[0].mxu0
        %2784 = vmatprep.mubr.f32.mxu0 %v2466
        %2785 = vmatmul.mubr.f32.gmra.mrb[0].mxu0 %v2430
        %v2786 = vpop.f32.mrb[0].mxu0
        %v2787 = vadd.f32 0.0, %v2786
        %v2788 = vpop.f32.mrb[0].mxu0
        %2789 = vmatprep.mubr.f32.mxu0 %v2467
        %2790 = vmatmul.mubr.f32.gmra.mrb[0].mxu0 %v2431
        %v2791 = vpop.f32.mrb[0].mxu0
        %v2792 = vadd.f32 0.0, %v2791
        %v2793 = vpop.f32.mrb[0].mxu0
        %2794 = vmatprep.mubr.f32.mxu0 %v2468
        %2795 = vmatmul.mubr.f32.gmra.mrb[0].mxu0 %v2432
        %v2796 = vpop.f32.mrb[0].mxu0
        %v2797 = vadd.f32 0.0, %v2796
        %v2798 = vpop.f32.mrb[0].mxu0
        %2799 = vmatprep.mubr.f32.mxu0 %v2469
        %2800 = vmatmul.mubr.f32.gmra.mrb[0].mxu0 %v2433
        %v2801 = vpop.f32.mrb[0].mxu0
        %v2802 = vadd.f32 0.0, %v2801
        %v2803 = vpop.f32.mrb[0].mxu0
        %2804 = vmatprep.mubr.f32.mxu0 %v2470
        %2805 = vmatmul.mubr.f32.gmra.mrb[0].mxu0 %v2434
        %v2806 = vpop.f32.mrb[0].mxu0
        %v2807 = vadd.f32 0.0, %v2806
        %v2808 = vpop.f32.mrb[0].mxu0
        %2809 = vmatprep.mubr.f32.mxu0 %v2471
        %2810 = vmatmul.mubr.f32.gmra.mrb[0].mxu0 %v2435
        %v2811 = vpop.f32.mrb[0].mxu0
        %v2812 = vadd.f32 0.0, %v2811
        %v2813 = vpop.f32.mrb[0].mxu0
        %2814 = vmatprep.mubr.f32.mxu0 %v2472
        %2815 = vmatmul.mubr.f32.gmra.mrb[0].mxu0 %v2436
        %v2816 = vpop.f32.mrb[0].mxu0
        %v2817 = vadd.f32 0.0, %v2816
        %v2818 = vpop.f32.mrb[0].mxu0
        %2819 = vmatprep.mubr.f32.mxu0 %v2473
        %2820 = vmatmul.mubr.f32.gmra.mrb[0].mxu0 %v2437
        %v2821 = vpop.f32.mrb[0].mxu0
        %v2822 = vadd.f32 0.0, %v2821
        %v2823 = vpop.f32.mrb[0].mxu0
        %2824 = vmatprep.mubr.f32.mxu0 %v2474
        %2825 = vmatmul.mubr.f32.gmra.mrb[0].mxu0 %v2438
        %v2826 = vpop.f32.mrb[0].mxu0
        %v2827 = vadd.f32 0.0, %v2826
        %v2828 = vpop.f32.mrb[0].mxu0
        %2829 = vmatprep.mubr.f32.mxu0 %v2475
        %2830 = vmatmul.mubr.f32.gmra.mrb[0].mxu0 %v2439
        %v2831 = vpop.f32.mrb[0].mxu0
        %v2832 = vadd.f32 0.0, %v2831
        %v2833 = vpop.f32.mrb[0].mxu0
        %2834 = vdwg.mxu0
        %2835 = vmatprep.subr.mxu0 0.0
        %2836 = vmatpush1.msra.mxu0 %v2594
        %2837 = vmatprep.subr.mxu0 0.0
        %2838 = vmatpush1.msra.mxu0 %v2595
        %2839 = vmatprep.subr.mxu0 0.0
        %2840 = vmatpush1.msra.mxu0 %v2596
        %2841 = vmatprep.subr.mxu0 0.0
        %2842 = vmatpush1.msra.mxu0 %v2597
        %2843 = vmatprep.subr.mxu0 0.0
        %2844 = vmatpush1.msra.mxu0 %v2598
        %2845 = vmatprep.subr.mxu0 0.0
        %2846 = vmatpush1.msra.mxu0 %v2599
        %2847 = vmatprep.subr.mxu0 0.0
        %2848 = vmatpush1.msra.mxu0 %v2600
        %2849 = vmatprep.subr.mxu0 0.0
        %2850 = vmatpush1.msra.mxu0 %v2601
        %2851 = vmatprep.subr.mxu0 0.0
        %2852 = vmatpush1.msra.mxu0 %v2602
        %2853 = vmatprep.subr.mxu0 0.0
        %2854 = vmatpush1.msra.mxu0 %v2603
        %2855 = vmatprep.subr.mxu0 0.0
        %2856 = vmatpush1.msra.mxu0 %v2604
        %2857 = vmatprep.subr.mxu0 0.0
        %2858 = vmatpush1.msra.mxu0 %v2605
        %2859 = vmatprep.subr.mxu0 0.0
        %2860 = vmatpush1.msra.mxu0 %v2606
        %2861 = vmatprep.subr.mxu0 0.0
        %2862 = vmatpush1.msra.mxu0 %v2607
        %2863 = vmatprep.subr.mxu0 0.0
        %2864 = vmatpush1.msra.mxu0 %v2608
        %2865 = vmatprep.subr.mxu0 0.0
        %2866 = vmatpush1.msra.mxu0 %v2609
        %2867 = vmatprep.subr.mxu0 0.0
        %2868 = vmatpush1.msra.mxu0 0.0
        %2869 = vmatprep.subr.mxu0 0.0
        %2870 = vmatpush1.msra.mxu0 0.0
        %2871 = vmatprep.subr.mxu0 0.0
        %2872 = vmatpush1.msra.mxu0 0.0
        %2873 = vmatprep.subr.mxu0 0.0
        %2874 = vmatpush1.msra.mxu0 0.0
        %2875 = vmatprep.subr.mxu0 0.0
        %2876 = vmatpush1.msra.mxu0 0.0
        %2877 = vmatprep.subr.mxu0 0.0
        %2878 = vmatpush1.msra.mxu0 0.0
        %2879 = vmatprep.subr.mxu0 0.0
        %2880 = vmatpush1.msra.mxu0 0.0
        %2881 = vmatprep.subr.mxu0 0.0
        %2882 = vmatpush1.msra.mxu0 0.0
        %2883 = vmatprep.subr.mxu0 0.0
        %2884 = vmatpush1.msra.mxu0 0.0
        %2885 = vmatprep.subr.mxu0 0.0
        %2886 = vmatpush1.msra.mxu0 0.0
        %2887 = vmatprep.subr.mxu0 0.0
        %2888 = vmatpush1.msra.mxu0 0.0
        %2889 = vmatprep.subr.mxu0 0.0
        %2890 = vmatpush1.msra.mxu0 0.0
        %2891 = vmatprep.subr.mxu0 0.0
        %2892 = vmatpush1.msra.mxu0 0.0
        %2893 = vmatprep.subr.mxu0 0.0
        %2894 = vmatpush1.msra.mxu0 0.0
        %2895 = vmatprep.subr.mxu0 0.0
        %2896 = vmatpush1.msra.mxu0 0.0
        %2897 = vmatprep.subr.mxu0 0.0
        %2898 = vmatpush1.msra.mxu0 0.0
        %2899 = vmatprep.mubr.f32.mxu0 0.0
        %2900 = vmatmul.mubr.f32.gmra.mrb[0].mxu0 %v2480
        %v2901 = vpop.f32.mrb[0].mxu0
        %v2902 = vadd.f32 %v2677, %v2901
        %v2903 = vpop.f32.mrb[0].mxu0
        %2904 = vmatprep.mubr.f32.mxu0 0.0
        %2905 = vmatmul.mubr.f32.gmra.mrb[0].mxu0 %v2481
        %v2906 = vpop.f32.mrb[0].mxu0
        %v2907 = vadd.f32 %v2682, %v2906
        %v2908 = vpop.f32.mrb[0].mxu0
        %2909 = vmatprep.mubr.f32.mxu0 0.0
        %2910 = vmatmul.mubr.f32.gmra.mrb[0].mxu0 %v2482
        %v2911 = vpop.f32.mrb[0].mxu0
        %v2912 = vadd.f32 %v2687, %v2911
        %v2913 = vpop.f32.mrb[0].mxu0
        %2914 = vmatprep.mubr.f32.mxu0 0.0
        %2915 = vmatmul.mubr.f32.gmra.mrb[0].mxu0 %v2483
        %v2916 = vpop.f32.mrb[0].mxu0
        %v2917 = vadd.f32 %v2692, %v2916
        %v2918 = vpop.f32.mrb[0].mxu0
        %2919 = vmatprep.mubr.f32.mxu0 0.0
        %2920 = vmatmul.mubr.f32.gmra.mrb[0].mxu0 %v2484
        %v2921 = vpop.f32.mrb[0].mxu0
        %v2922 = vadd.f32 %v2697, %v2921
        %v2923 = vpop.f32.mrb[0].mxu0
        %2924 = vmatprep.mubr.f32.mxu0 0.0
        %2925 = vmatmul.mubr.f32.gmra.mrb[0].mxu0 %v2485
        %v2926 = vpop.f32.mrb[0].mxu0
        %v2927 = vadd.f32 %v2702, %v2926
        %v2928 = vpop.f32.mrb[0].mxu0
        %2929 = vmatprep.mubr.f32.mxu0 0.0
        %2930 = vmatmul.mubr.f32.gmra.mrb[0].mxu0 %v2486
        %v2931 = vpop.f32.mrb[0].mxu0
        %v2932 = vadd.f32 %v2707, %v2931
        %v2933 = vpop.f32.mrb[0].mxu0
        %2934 = vmatprep.mubr.f32.mxu0 0.0
        %2935 = vmatmul.mubr.f32.gmra.mrb[0].mxu0 %v2487
        %v2936 = vpop.f32.mrb[0].mxu0
        %v2937 = vadd.f32 %v2712, %v2936
        %v2938 = vpop.f32.mrb[0].mxu0
        %2939 = vmatprep.mubr.f32.mxu0 0.0
        %2940 = vmatmul.mubr.f32.gmra.mrb[0].mxu0 %v2488
        %v2941 = vpop.f32.mrb[0].mxu0
        %v2942 = vadd.f32 %v2717, %v2941
        %v2943 = vpop.f32.mrb[0].mxu0
        %2944 = vmatprep.mubr.f32.mxu0 0.0
        %2945 = vmatmul.mubr.f32.gmra.mrb[0].mxu0 %v2489
        %v2946 = vpop.f32.mrb[0].mxu0
        %v2947 = vadd.f32 %v2722, %v2946
        %v2948 = vpop.f32.mrb[0].mxu0
        %2949 = vmatprep.mubr.f32.mxu0 0.0
        %2950 = vmatmul.mubr.f32.gmra.mrb[0].mxu0 %v2490
        %v2951 = vpop.f32.mrb[0].mxu0
        %v2952 = vadd.f32 %v2727, %v2951
        %v2953 = vpop.f32.mrb[0].mxu0
        %2954 = vmatprep.mubr.f32.mxu0 0.0
        %2955 = vmatmul.mubr.f32.gmra.mrb[0].mxu0 %v2491
        %v2956 = vpop.f32.mrb[0].mxu0
        %v2957 = vadd.f32 %v2732, %v2956
        %v2958 = vpop.f32.mrb[0].mxu0
        %2959 = vmatprep.mubr.f32.mxu0 0.0
        %2960 = vmatmul.mubr.f32.gmra.mrb[0].mxu0 %v2492
        %v2961 = vpop.f32.mrb[0].mxu0
        %v2962 = vadd.f32 %v2737, %v2961
        %v2963 = vpop.f32.mrb[0].mxu0
        %2964 = vmatprep.mubr.f32.mxu0 0.0
        %2965 = vmatmul.mubr.f32.gmra.mrb[0].mxu0 %v2493
        %v2966 = vpop.f32.mrb[0].mxu0
        %v2967 = vadd.f32 %v2742, %v2966
        %v2968 = vpop.f32.mrb[0].mxu0
        %2969 = vmatprep.mubr.f32.mxu0 0.0
        %2970 = vmatmul.mubr.f32.gmra.mrb[0].mxu0 %v2494
        %v2971 = vpop.f32.mrb[0].mxu0
        %v2972 = vadd.f32 %v2747, %v2971
        %v2973 = vpop.f32.mrb[0].mxu0
        %2974 = vmatprep.mubr.f32.mxu0 0.0
        %2975 = vmatmul.mubr.f32.gmra.mrb[0].mxu0 %v2495
        %v2976 = vpop.f32.mrb[0].mxu0
        %v2977 = vadd.f32 %v2752, %v2976
        %v2978 = vpop.f32.mrb[0].mxu0
        %2979 = vmatprep.mubr.f32.mxu0 0.0
        %2980 = vmatmul.mubr.f32.gmra.mrb[0].mxu0 %v2496
        %v2981 = vpop.f32.mrb[0].mxu0
        %v2982 = vadd.f32 %v2757, %v2981
        %v2983 = vpop.f32.mrb[0].mxu0
        %2984 = vmatprep.mubr.f32.mxu0 0.0
        %2985 = vmatmul.mubr.f32.gmra.mrb[0].mxu0 %v2497
        %v2986 = vpop.f32.mrb[0].mxu0
        %v2987 = vadd.f32 %v2762, %v2986
        %v2988 = vpop.f32.mrb[0].mxu0
        %2989 = vmatprep.mubr.f32.mxu0 0.0
        %2990 = vmatmul.mubr.f32.gmra.mrb[0].mxu0 %v2498
        %v2991 = vpop.f32.mrb[0].mxu0
        %v2992 = vadd.f32 %v2767, %v2991
        %v2993 = vpop.f32.mrb[0].mxu0
        %2994 = vmatprep.mubr.f32.mxu0 0.0
        %2995 = vmatmul.mubr.f32.gmra.mrb[0].mxu0 %v2499
        %v2996 = vpop.f32.mrb[0].mxu0
        %v2997 = vadd.f32 %v2772, %v2996
        %v2998 = vpop.f32.mrb[0].mxu0
        %2999 = vmatprep.mubr.f32.mxu0 0.0
        %3000 = vmatmul.mubr.f32.gmra.mrb[0].mxu0 %v2500
        %v3001 = vpop.f32.mrb[0].mxu0
        %v3002 = vadd.f32 %v2777, %v3001
        %v3003 = vpop.f32.mrb[0].mxu0
        %3004 = vmatprep.mubr.f32.mxu0 0.0
        %3005 = vmatmul.mubr.f32.gmra.mrb[0].mxu0 %v2501
        %v3006 = vpop.f32.mrb[0].mxu0
        %v3007 = vadd.f32 %v2782, %v3006
        %v3008 = vpop.f32.mrb[0].mxu0
        %3009 = vmatprep.mubr.f32.mxu0 0.0
        %3010 = vmatmul.mubr.f32.gmra.mrb[0].mxu0 %v2502
        %v3011 = vpop.f32.mrb[0].mxu0
        %v3012 = vadd.f32 %v2787, %v3011
        %v3013 = vpop.f32.mrb[0].mxu0
        %3014 = vmatprep.mubr.f32.mxu0 0.0
        %3015 = vmatmul.mubr.f32.gmra.mrb[0].mxu0 %v2503
        %v3016 = vpop.f32.mrb[0].mxu0
        %v3017 = vadd.f32 %v2792, %v3016
        %v3018 = vpop.f32.mrb[0].mxu0
        %3019 = vmatprep.mubr.f32.mxu0 0.0
        %3020 = vmatmul.mubr.f32.gmra.mrb[0].mxu0 %v2504
        %v3021 = vpop.f32.mrb[0].mxu0
        %v3022 = vadd.f32 %v2797, %v3021
        %v3023 = vpop.f32.mrb[0].mxu0
        %3024 = vmatprep.mubr.f32.mxu0 0.0
        %3025 = vmatmul.mubr.f32.gmra.mrb[0].mxu0 %v2505
        %v3026 = vpop.f32.mrb[0].mxu0
        %v3027 = vadd.f32 %v2802, %v3026
        %v3028 = vpop.f32.mrb[0].mxu0
        %3029 = vmatprep.mubr.f32.mxu0 0.0
        %3030 = vmatmul.mubr.f32.gmra.mrb[0].mxu0 %v2506
        %v3031 = vpop.f32.mrb[0].mxu0
        %v3032 = vadd.f32 %v2807, %v3031
        %v3033 = vpop.f32.mrb[0].mxu0
        %3034 = vmatprep.mubr.f32.mxu0 0.0
        %3035 = vmatmul.mubr.f32.gmra.mrb[0].mxu0 %v2507
        %v3036 = vpop.f32.mrb[0].mxu0
        %v3037 = vadd.f32 %v2812, %v3036
        %v3038 = vpop.f32.mrb[0].mxu0
        %3039 = vmatprep.mubr.f32.mxu0 0.0
        %3040 = vmatmul.mubr.f32.gmra.mrb[0].mxu0 %v2508
        %v3041 = vpop.f32.mrb[0].mxu0
        %v3042 = vadd.f32 %v2817, %v3041
        %v3043 = vpop.f32.mrb[0].mxu0
        %3044 = vmatprep.mubr.f32.mxu0 0.0
        %3045 = vmatmul.mubr.f32.gmra.mrb[0].mxu0 %v2509
        %v3046 = vpop.f32.mrb[0].mxu0
        %v3047 = vadd.f32 %v2822, %v3046
        %v3048 = vpop.f32.mrb[0].mxu0
        %3049 = vmatprep.mubr.f32.mxu0 0.0
        %3050 = vmatmul.mubr.f32.gmra.mrb[0].mxu0 %v2510
        %v3051 = vpop.f32.mrb[0].mxu0
        %v3052 = vadd.f32 %v2827, %v3051
        %v3053 = vpop.f32.mrb[0].mxu0
        %3054 = vmatprep.mubr.f32.mxu0 0.0
        %3055 = vmatmul.mubr.f32.gmra.mrb[0].mxu0 %v2511
        %v3056 = vpop.f32.mrb[0].mxu0
        %v3057 = vadd.f32 %v2832, %v3056
        %v3058 = vpop.f32.mrb[0].mxu0
        %3059 = vdwg.mxu0
        %3060 = vmatprep.subr.mxu0 0.0
        %3061 = vmatpush1.msra.mxu0 %v2514
        %3062 = vmatprep.subr.mxu0 0.0
        %3063 = vmatpush1.msra.mxu0 %v2515
        %3064 = vmatprep.subr.mxu0 0.0
        %3065 = vmatpush1.msra.mxu0 %v2516
        %3066 = vmatprep.subr.mxu0 0.0
        %3067 = vmatpush1.msra.mxu0 %v2517
        %3068 = vmatprep.subr.mxu0 0.0
        %3069 = vmatpush1.msra.mxu0 %v2518
        %3070 = vmatprep.subr.mxu0 0.0
        %3071 = vmatpush1.msra.mxu0 %v2519
        %3072 = vmatprep.subr.mxu0 0.0
        %3073 = vmatpush1.msra.mxu0 %v2520
        %3074 = vmatprep.subr.mxu0 0.0
        %3075 = vmatpush1.msra.mxu0 %v2521
        %3076 = vmatprep.subr.mxu0 0.0
        %3077 = vmatpush1.msra.mxu0 %v2522
        %3078 = vmatprep.subr.mxu0 0.0
        %3079 = vmatpush1.msra.mxu0 %v2523
        %3080 = vmatprep.subr.mxu0 0.0
        %3081 = vmatpush1.msra.mxu0 %v2524
        %3082 = vmatprep.subr.mxu0 0.0
        %3083 = vmatpush1.msra.mxu0 %v2525
        %3084 = vmatprep.subr.mxu0 0.0
        %3085 = vmatpush1.msra.mxu0 %v2526
        %3086 = vmatprep.subr.mxu0 0.0
        %3087 = vmatpush1.msra.mxu0 %v2527
        %3088 = vmatprep.subr.mxu0 0.0
        %3089 = vmatpush1.msra.mxu0 %v2528
        %3090 = vmatprep.subr.mxu0 0.0
        %3091 = vmatpush1.msra.mxu0 %v2529
        %3092 = vmatprep.subr.mxu0 0.0
        %3093 = vmatpush1.msra.mxu0 %v2530
        %3094 = vmatprep.subr.mxu0 0.0
        %3095 = vmatpush1.msra.mxu0 %v2531
        %3096 = vmatprep.subr.mxu0 0.0
        %3097 = vmatpush1.msra.mxu0 %v2532
        %3098 = vmatprep.subr.mxu0 0.0
        %3099 = vmatpush1.msra.mxu0 %v2533
        %3100 = vmatprep.subr.mxu0 0.0
        %3101 = vmatpush1.msra.mxu0 %v2534
        %3102 = vmatprep.subr.mxu0 0.0
        %3103 = vmatpush1.msra.mxu0 %v2535
        %3104 = vmatprep.subr.mxu0 0.0
        %3105 = vmatpush1.msra.mxu0 %v2536
        %3106 = vmatprep.subr.mxu0 0.0
        %3107 = vmatpush1.msra.mxu0 %v2537
        %3108 = vmatprep.subr.mxu0 0.0
        %3109 = vmatpush1.msra.mxu0 %v2538
        %3110 = vmatprep.subr.mxu0 0.0
        %3111 = vmatpush1.msra.mxu0 %v2539
        %3112 = vmatprep.subr.mxu0 0.0
        %3113 = vmatpush1.msra.mxu0 %v2540
        %3114 = vmatprep.subr.mxu0 0.0
        %3115 = vmatpush1.msra.mxu0 %v2541
        %3116 = vmatprep.subr.mxu0 0.0
        %3117 = vmatpush1.msra.mxu0 %v2542
        %3118 = vmatprep.subr.mxu0 0.0
        %3119 = vmatpush1.msra.mxu0 %v2543
        %3120 = vmatprep.subr.mxu0 0.0
        %3121 = vmatpush1.msra.mxu0 %v2544
        %3122 = vmatprep.subr.mxu0 0.0
        %3123 = vmatpush1.msra.mxu0 %v2545
        %3124 = vmatprep.mubr.f32.mxu0 %v2442
        %3125 = vmatmul.mubr.f32.gmra.mrb[0].mxu0 %v2406
        %v3126 = vpop.f32.mrb[0].mxu0
        %v3127 = vadd.f32 %v2902, %v3126
        %v3128 = vpop.f32.mrb[0].mxu0
        %3129 = vmatprep.mubr.f32.mxu0 %v2443
        %3130 = vmatmul.mubr.f32.gmra.mrb[0].mxu0 %v2407
        %v3131 = vpop.f32.mrb[0].mxu0
        %v3132 = vadd.f32 %v2907, %v3131
        %v3133 = vpop.f32.mrb[0].mxu0
        %3134 = vmatprep.mubr.f32.mxu0 %v2444
        %3135 = vmatmul.mubr.f32.gmra.mrb[0].mxu0 %v2408
        %v3136 = vpop.f32.mrb[0].mxu0
        %v3137 = vadd.f32 %v2912, %v3136
        %v3138 = vpop.f32.mrb[0].mxu0
        %3139 = vmatprep.mubr.f32.mxu0 %v2445
        %3140 = vmatmul.mubr.f32.gmra.mrb[0].mxu0 %v2409
        %v3141 = vpop.f32.mrb[0].mxu0
        %v3142 = vadd.f32 %v2917, %v3141
        %v3143 = vpop.f32.mrb[0].mxu0
        %3144 = vmatprep.mubr.f32.mxu0 %v2446
        %3145 = vmatmul.mubr.f32.gmra.mrb[0].mxu0 %v2410
        %v3146 = vpop.f32.mrb[0].mxu0
        %v3147 = vadd.f32 %v2922, %v3146
        %v3148 = vpop.f32.mrb[0].mxu0
        %3149 = vmatprep.mubr.f32.mxu0 %v2447
        %3150 = vmatmul.mubr.f32.gmra.mrb[0].mxu0 %v2411
        %v3151 = vpop.f32.mrb[0].mxu0
        %v3152 = vadd.f32 %v2927, %v3151
        %v3153 = vpop.f32.mrb[0].mxu0
        %3154 = vmatprep.mubr.f32.mxu0 %v2448
        %3155 = vmatmul.mubr.f32.gmra.mrb[0].mxu0 %v2412
        %v3156 = vpop.f32.mrb[0].mxu0
        %v3157 = vadd.f32 %v2932, %v3156
        %v3158 = vpop.f32.mrb[0].mxu0
        %3159 = vmatprep.mubr.f32.mxu0 %v2449
        %3160 = vmatmul.mubr.f32.gmra.mrb[0].mxu0 %v2413
        %v3161 = vpop.f32.mrb[0].mxu0
        %v3162 = vadd.f32 %v2937, %v3161
        %v3163 = vpop.f32.mrb[0].mxu0
        %3164 = vmatprep.mubr.f32.mxu0 %v2450
        %3165 = vmatmul.mubr.f32.gmra.mrb[0].mxu0 %v2414
        %v3166 = vpop.f32.mrb[0].mxu0
        %v3167 = vadd.f32 %v2942, %v3166
        %v3168 = vpop.f32.mrb[0].mxu0
        %3169 = vmatprep.mubr.f32.mxu0 %v2451
        %3170 = vmatmul.mubr.f32.gmra.mrb[0].mxu0 %v2415
        %v3171 = vpop.f32.mrb[0].mxu0
        %v3172 = vadd.f32 %v2947, %v3171
        %v3173 = vpop.f32.mrb[0].mxu0
        %3174 = vmatprep.mubr.f32.mxu0 %v2452
        %3175 = vmatmul.mubr.f32.gmra.mrb[0].mxu0 %v2416
        %v3176 = vpop.f32.mrb[0].mxu0
        %v3177 = vadd.f32 %v2952, %v3176
        %v3178 = vpop.f32.mrb[0].mxu0
        %3179 = vmatprep.mubr.f32.mxu0 %v2453
        %3180 = vmatmul.mubr.f32.gmra.mrb[0].mxu0 %v2417
        %v3181 = vpop.f32.mrb[0].mxu0
        %v3182 = vadd.f32 %v2957, %v3181
        %v3183 = vpop.f32.mrb[0].mxu0
        %3184 = vmatprep.mubr.f32.mxu0 %v2454
        %3185 = vmatmul.mubr.f32.gmra.mrb[0].mxu0 %v2418
        %v3186 = vpop.f32.mrb[0].mxu0
        %v3187 = vadd.f32 %v2962, %v3186
        %v3188 = vpop.f32.mrb[0].mxu0
        %3189 = vmatprep.mubr.f32.mxu0 %v2455
        %3190 = vmatmul.mubr.f32.gmra.mrb[0].mxu0 %v2419
        %v3191 = vpop.f32.mrb[0].mxu0
        %v3192 = vadd.f32 %v2967, %v3191
        %v3193 = vpop.f32.mrb[0].mxu0
        %3194 = vmatprep.mubr.f32.mxu0 %v2456
        %3195 = vmatmul.mubr.f32.gmra.mrb[0].mxu0 %v2420
        %v3196 = vpop.f32.mrb[0].mxu0
        %v3197 = vadd.f32 %v2972, %v3196
        %v3198 = vpop.f32.mrb[0].mxu0
        %3199 = vmatprep.mubr.f32.mxu0 %v2457
        %3200 = vmatmul.mubr.f32.gmra.mrb[0].mxu0 %v2421
        %v3201 = vpop.f32.mrb[0].mxu0
        %v3202 = vadd.f32 %v2977, %v3201
        %v3203 = vpop.f32.mrb[0].mxu0
        %3204 = vmatprep.mubr.f32.mxu0 %v2458
        %3205 = vmatmul.mubr.f32.gmra.mrb[0].mxu0 %v2422
        %v3206 = vpop.f32.mrb[0].mxu0
        %v3207 = vadd.f32 %v2982, %v3206
        %v3208 = vpop.f32.mrb[0].mxu0
        %3209 = vmatprep.mubr.f32.mxu0 %v2459
        %3210 = vmatmul.mubr.f32.gmra.mrb[0].mxu0 %v2423
        %v3211 = vpop.f32.mrb[0].mxu0
        %v3212 = vadd.f32 %v2987, %v3211
        %v3213 = vpop.f32.mrb[0].mxu0
        %3214 = vmatprep.mubr.f32.mxu0 %v2460
        %3215 = vmatmul.mubr.f32.gmra.mrb[0].mxu0 %v2424
        %v3216 = vpop.f32.mrb[0].mxu0
        %v3217 = vadd.f32 %v2992, %v3216
        %v3218 = vpop.f32.mrb[0].mxu0
        %3219 = vmatprep.mubr.f32.mxu0 %v2461
        %3220 = vmatmul.mubr.f32.gmra.mrb[0].mxu0 %v2425
        %v3221 = vpop.f32.mrb[0].mxu0
        %v3222 = vadd.f32 %v2997, %v3221
        %v3223 = vpop.f32.mrb[0].mxu0
        %3224 = vmatprep.mubr.f32.mxu0 %v2462
        %3225 = vmatmul.mubr.f32.gmra.mrb[0].mxu0 %v2426
        %v3226 = vpop.f32.mrb[0].mxu0
        %v3227 = vadd.f32 %v3002, %v3226
        %v3228 = vpop.f32.mrb[0].mxu0
        %3229 = vmatprep.mubr.f32.mxu0 %v2463
        %3230 = vmatmul.mubr.f32.gmra.mrb[0].mxu0 %v2427
        %v3231 = vpop.f32.mrb[0].mxu0
        %v3232 = vadd.f32 %v3007, %v3231
        %v3233 = vpop.f32.mrb[0].mxu0
        %3234 = vmatprep.mubr.f32.mxu0 %v2464
        %3235 = vmatmul.mubr.f32.gmra.mrb[0].mxu0 %v2428
        %v3236 = vpop.f32.mrb[0].mxu0
        %v3237 = vadd.f32 %v3012, %v3236
        %v3238 = vpop.f32.mrb[0].mxu0
        %3239 = vmatprep.mubr.f32.mxu0 %v2465
        %3240 = vmatmul.mubr.f32.gmra.mrb[0].mxu0 %v2429
        %v3241 = vpop.f32.mrb[0].mxu0
        %v3242 = vadd.f32 %v3017, %v3241
        %v3243 = vpop.f32.mrb[0].mxu0
        %3244 = vmatprep.mubr.f32.mxu0 %v2466
        %3245 = vmatmul.mubr.f32.gmra.mrb[0].mxu0 %v2430
        %v3246 = vpop.f32.mrb[0].mxu0
        %v3247 = vadd.f32 %v3022, %v3246
        %v3248 = vpop.f32.mrb[0].mxu0
        %3249 = vmatprep.mubr.f32.mxu0 %v2467
        %3250 = vmatmul.mubr.f32.gmra.mrb[0].mxu0 %v2431
        %v3251 = vpop.f32.mrb[0].mxu0
        %v3252 = vadd.f32 %v3027, %v3251
        %v3253 = vpop.f32.mrb[0].mxu0
        %3254 = vmatprep.mubr.f32.mxu0 %v2468
        %3255 = vmatmul.mubr.f32.gmra.mrb[0].mxu0 %v2432
        %v3256 = vpop.f32.mrb[0].mxu0
        %v3257 = vadd.f32 %v3032, %v3256
        %v3258 = vpop.f32.mrb[0].mxu0
        %3259 = vmatprep.mubr.f32.mxu0 %v2469
        %3260 = vmatmul.mubr.f32.gmra.mrb[0].mxu0 %v2433
        %v3261 = vpop.f32.mrb[0].mxu0
        %v3262 = vadd.f32 %v3037, %v3261
        %v3263 = vpop.f32.mrb[0].mxu0
        %3264 = vmatprep.mubr.f32.mxu0 %v2470
        %3265 = vmatmul.mubr.f32.gmra.mrb[0].mxu0 %v2434
        %v3266 = vpop.f32.mrb[0].mxu0
        %v3267 = vadd.f32 %v3042, %v3266
        %v3268 = vpop.f32.mrb[0].mxu0
        %3269 = vmatprep.mubr.f32.mxu0 %v2471
        %3270 = vmatmul.mubr.f32.gmra.mrb[0].mxu0 %v2435
        %v3271 = vpop.f32.mrb[0].mxu0
        %v3272 = vadd.f32 %v3047, %v3271
        %v3273 = vpop.f32.mrb[0].mxu0
        %3274 = vmatprep.mubr.f32.mxu0 %v2472
        %3275 = vmatmul.mubr.f32.gmra.mrb[0].mxu0 %v2436
        %v3276 = vpop.f32.mrb[0].mxu0
        %v3277 = vadd.f32 %v3052, %v3276
        %v3278 = vpop.f32.mrb[0].mxu0
        %3279 = vmatprep.mubr.f32.mxu0 %v2473
        %3280 = vmatmul.mubr.f32.gmra.mrb[0].mxu0 %v2437
        %v3281 = vpop.f32.mrb[0].mxu0
        %v3282 = vadd.f32 %v3057, %v3281
        %v3283 = vpop.f32.mrb[0].mxu0
        %3284 = vdwg.mxu0
        %3285 = vmatprep.subr.mxu0 0.0
        %3286 = vmatpush1.msra.mxu0 %v2546
        %3287 = vmatprep.subr.mxu0 0.0
        %3288 = vmatpush1.msra.mxu0 %v2547
        %3289 = vmatprep.subr.mxu0 0.0
        %3290 = vmatpush1.msra.mxu0 %v2548
        %3291 = vmatprep.subr.mxu0 0.0
        %3292 = vmatpush1.msra.mxu0 %v2549
        %3293 = vmatprep.subr.mxu0 0.0
        %3294 = vmatpush1.msra.mxu0 %v2550
        %3295 = vmatprep.subr.mxu0 0.0
        %3296 = vmatpush1.msra.mxu0 %v2551
        %3297 = vmatprep.subr.mxu0 0.0
        %3298 = vmatpush1.msra.mxu0 %v2552
        %3299 = vmatprep.subr.mxu0 0.0
        %3300 = vmatpush1.msra.mxu0 %v2553
        %3301 = vmatprep.subr.mxu0 0.0
        %3302 = vmatpush1.msra.mxu0 %v2554
        %3303 = vmatprep.subr.mxu0 0.0
        %3304 = vmatpush1.msra.mxu0 %v2555
        %3305 = vmatprep.subr.mxu0 0.0
        %3306 = vmatpush1.msra.mxu0 %v2556
        %3307 = vmatprep.subr.mxu0 0.0
        %3308 = vmatpush1.msra.mxu0 %v2557
        %3309 = vmatprep.subr.mxu0 0.0
        %3310 = vmatpush1.msra.mxu0 %v2558
        %3311 = vmatprep.subr.mxu0 0.0
        %3312 = vmatpush1.msra.mxu0 %v2559
        %3313 = vmatprep.subr.mxu0 0.0
        %3314 = vmatpush1.msra.mxu0 %v2560
        %3315 = vmatprep.subr.mxu0 0.0
        %3316 = vmatpush1.msra.mxu0 %v2561
        %3317 = vmatprep.subr.mxu0 0.0
        %3318 = vmatpush1.msra.mxu0 0.0
        %3319 = vmatprep.subr.mxu0 0.0
        %3320 = vmatpush1.msra.mxu0 0.0
        %3321 = vmatprep.subr.mxu0 0.0
        %3322 = vmatpush1.msra.mxu0 0.0
        %3323 = vmatprep.subr.mxu0 0.0
        %3324 = vmatpush1.msra.mxu0 0.0
        %3325 = vmatprep.subr.mxu0 0.0
        %3326 = vmatpush1.msra.mxu0 0.0
        %3327 = vmatprep.subr.mxu0 0.0
        %3328 = vmatpush1.msra.mxu0 0.0
        %3329 = vmatprep.subr.mxu0 0.0
        %3330 = vmatpush1.msra.mxu0 0.0
        %3331 = vmatprep.subr.mxu0 0.0
        %3332 = vmatpush1.msra.mxu0 0.0
        %3333 = vmatprep.subr.mxu0 0.0
        %3334 = vmatpush1.msra.mxu0 0.0
        %3335 = vmatprep.subr.mxu0 0.0
        %3336 = vmatpush1.msra.mxu0 0.0
        %3337 = vmatprep.subr.mxu0 0.0
        %3338 = vmatpush1.msra.mxu0 0.0
        %3339 = vmatprep.subr.mxu0 0.0
        %3340 = vmatpush1.msra.mxu0 0.0
        %3341 = vmatprep.subr.mxu0 0.0
        %3342 = vmatpush1.msra.mxu0 0.0
        %3343 = vmatprep.subr.mxu0 0.0
        %3344 = vmatpush1.msra.mxu0 0.0
        %3345 = vmatprep.subr.mxu0 0.0
        %3346 = vmatpush1.msra.mxu0 0.0
        %3347 = vmatprep.subr.mxu0 0.0
        %3348 = vmatpush1.msra.mxu0 0.0
        %3349 = vmatprep.mubr.f32.mxu0 0.0
        %3350 = vmatmul.mubr.f32.gmra.mrb[0].mxu0 %v2478
        %v3351 = vpop.f32.mrb[0].mxu0
        %v3352 = vadd.f32 %v3127, %v3351
        %v3353 = vpop.f32.mrb[0].mxu0
        %3354 = vmatprep.mubr.f32.mxu0 0.0
        %3355 = vmatmul.mubr.f32.gmra.mrb[0].mxu0 %v2479
        %v3356 = vpop.f32.mrb[0].mxu0
        %v3357 = vadd.f32 %v3132, %v3356
        %v3358 = vpop.f32.mrb[0].mxu0
        %3359 = vmatprep.mubr.f32.mxu0 0.0
        %3360 = vmatmul.mubr.f32.gmra.mrb[0].mxu0 %v2480
        %v3361 = vpop.f32.mrb[0].mxu0
        %v3362 = vadd.f32 %v3137, %v3361
        %v3363 = vpop.f32.mrb[0].mxu0
        %3364 = vmatprep.mubr.f32.mxu0 0.0
        %3365 = vmatmul.mubr.f32.gmra.mrb[0].mxu0 %v2481
        %v3366 = vpop.f32.mrb[0].mxu0
        %v3367 = vadd.f32 %v3142, %v3366
        %v3368 = vpop.f32.mrb[0].mxu0
        %3369 = vmatprep.mubr.f32.mxu0 0.0
        %3370 = vmatmul.mubr.f32.gmra.mrb[0].mxu0 %v2482
        %v3371 = vpop.f32.mrb[0].mxu0
        %v3372 = vadd.f32 %v3147, %v3371
        %v3373 = vpop.f32.mrb[0].mxu0
        %3374 = vmatprep.mubr.f32.mxu0 0.0
        %3375 = vmatmul.mubr.f32.gmra.mrb[0].mxu0 %v2483
        %v3376 = vpop.f32.mrb[0].mxu0
        %v3377 = vadd.f32 %v3152, %v3376
        %v3378 = vpop.f32.mrb[0].mxu0
        %3379 = vmatprep.mubr.f32.mxu0 0.0
        %3380 = vmatmul.mubr.f32.gmra.mrb[0].mxu0 %v2484
        %v3381 = vpop.f32.mrb[0].mxu0
        %v3382 = vadd.f32 %v3157, %v3381
        %v3383 = vpop.f32.mrb[0].mxu0
        %3384 = vmatprep.mubr.f32.mxu0 0.0
        %3385 = vmatmul.mubr.f32.gmra.mrb[0].mxu0 %v2485
        %v3386 = vpop.f32.mrb[0].mxu0
        %v3387 = vadd.f32 %v3162, %v3386
        %v3388 = vpop.f32.mrb[0].mxu0
        %3389 = vmatprep.mubr.f32.mxu0 0.0
        %3390 = vmatmul.mubr.f32.gmra.mrb[0].mxu0 %v2486
        %v3391 = vpop.f32.mrb[0].mxu0
        %v3392 = vadd.f32 %v3167, %v3391
        %v3393 = vpop.f32.mrb[0].mxu0
        %3394 = vmatprep.mubr.f32.mxu0 0.0
        %3395 = vmatmul.mubr.f32.gmra.mrb[0].mxu0 %v2487
        %v3396 = vpop.f32.mrb[0].mxu0
        %v3397 = vadd.f32 %v3172, %v3396
        %v3398 = vpop.f32.mrb[0].mxu0
        %3399 = vmatprep.mubr.f32.mxu0 0.0
        %3400 = vmatmul.mubr.f32.gmra.mrb[0].mxu0 %v2488
        %v3401 = vpop.f32.mrb[0].mxu0
        %v3402 = vadd.f32 %v3177, %v3401
        %v3403 = vpop.f32.mrb[0].mxu0
        %3404 = vmatprep.mubr.f32.mxu0 0.0
        %3405 = vmatmul.mubr.f32.gmra.mrb[0].mxu0 %v2489
        %v3406 = vpop.f32.mrb[0].mxu0
        %v3407 = vadd.f32 %v3182, %v3406
        %v3408 = vpop.f32.mrb[0].mxu0
        %3409 = vmatprep.mubr.f32.mxu0 0.0
        %3410 = vmatmul.mubr.f32.gmra.mrb[0].mxu0 %v2490
        %v3411 = vpop.f32.mrb[0].mxu0
        %v3412 = vadd.f32 %v3187, %v3411
        %v3413 = vpop.f32.mrb[0].mxu0
        %3414 = vmatprep.mubr.f32.mxu0 0.0
        %3415 = vmatmul.mubr.f32.gmra.mrb[0].mxu0 %v2491
        %v3416 = vpop.f32.mrb[0].mxu0
        %v3417 = vadd.f32 %v3192, %v3416
        %v3418 = vpop.f32.mrb[0].mxu0
        %3419 = vmatprep.mubr.f32.mxu0 0.0
        %3420 = vmatmul.mubr.f32.gmra.mrb[0].mxu0 %v2492
        %v3421 = vpop.f32.mrb[0].mxu0
        %v3422 = vadd.f32 %v3197, %v3421
        %v3423 = vpop.f32.mrb[0].mxu0
        %3424 = vmatprep.mubr.f32.mxu0 0.0
        %3425 = vmatmul.mubr.f32.gmra.mrb[0].mxu0 %v2493
        %v3426 = vpop.f32.mrb[0].mxu0
        %v3427 = vadd.f32 %v3202, %v3426
        %v3428 = vpop.f32.mrb[0].mxu0
        %3429 = vmatprep.mubr.f32.mxu0 0.0
        %3430 = vmatmul.mubr.f32.gmra.mrb[0].mxu0 %v2494
        %v3431 = vpop.f32.mrb[0].mxu0
        %v3432 = vadd.f32 %v3207, %v3431
        %v3433 = vpop.f32.mrb[0].mxu0
        %3434 = vmatprep.mubr.f32.mxu0 0.0
        %3435 = vmatmul.mubr.f32.gmra.mrb[0].mxu0 %v2495
        %v3436 = vpop.f32.mrb[0].mxu0
        %v3437 = vadd.f32 %v3212, %v3436
        %v3438 = vpop.f32.mrb[0].mxu0
        %3439 = vmatprep.mubr.f32.mxu0 0.0
        %3440 = vmatmul.mubr.f32.gmra.mrb[0].mxu0 %v2496
        %v3441 = vpop.f32.mrb[0].mxu0
        %v3442 = vadd.f32 %v3217, %v3441
        %v3443 = vpop.f32.mrb[0].mxu0
        %3444 = vmatprep.mubr.f32.mxu0 0.0
        %3445 = vmatmul.mubr.f32.gmra.mrb[0].mxu0 %v2497
        %v3446 = vpop.f32.mrb[0].mxu0
        %v3447 = vadd.f32 %v3222, %v3446
        %v3448 = vpop.f32.mrb[0].mxu0
        %3449 = vmatprep.mubr.f32.mxu0 0.0
        %3450 = vmatmul.mubr.f32.gmra.mrb[0].mxu0 %v2498
        %v3451 = vpop.f32.mrb[0].mxu0
        %v3452 = vadd.f32 %v3227, %v3451
        %v3453 = vpop.f32.mrb[0].mxu0
        %3454 = vmatprep.mubr.f32.mxu0 0.0
        %3455 = vmatmul.mubr.f32.gmra.mrb[0].mxu0 %v2499
        %v3456 = vpop.f32.mrb[0].mxu0
        %v3457 = vadd.f32 %v3232, %v3456
        %v3458 = vpop.f32.mrb[0].mxu0
        %3459 = vmatprep.mubr.f32.mxu0 0.0
        %3460 = vmatmul.mubr.f32.gmra.mrb[0].mxu0 %v2500
        %v3461 = vpop.f32.mrb[0].mxu0
        %v3462 = vadd.f32 %v3237, %v3461
        %v3463 = vpop.f32.mrb[0].mxu0
        %3464 = vmatprep.mubr.f32.mxu0 0.0
        %3465 = vmatmul.mubr.f32.gmra.mrb[0].mxu0 %v2501
        %v3466 = vpop.f32.mrb[0].mxu0
        %v3467 = vadd.f32 %v3242, %v3466
        %v3468 = vpop.f32.mrb[0].mxu0
        %3469 = vmatprep.mubr.f32.mxu0 0.0
        %3470 = vmatmul.mubr.f32.gmra.mrb[0].mxu0 %v2502
        %v3471 = vpop.f32.mrb[0].mxu0
        %v3472 = vadd.f32 %v3247, %v3471
        %v3473 = vpop.f32.mrb[0].mxu0
        %3474 = vmatprep.mubr.f32.mxu0 0.0
        %3475 = vmatmul.mubr.f32.gmra.mrb[0].mxu0 %v2503
        %v3476 = vpop.f32.mrb[0].mxu0
        %v3477 = vadd.f32 %v3252, %v3476
        %v3478 = vpop.f32.mrb[0].mxu0
        %3479 = vmatprep.mubr.f32.mxu0 0.0
        %3480 = vmatmul.mubr.f32.gmra.mrb[0].mxu0 %v2504
        %v3481 = vpop.f32.mrb[0].mxu0
        %v3482 = vadd.f32 %v3257, %v3481
        %v3483 = vpop.f32.mrb[0].mxu0
        %3484 = vmatprep.mubr.f32.mxu0 0.0
        %3485 = vmatmul.mubr.f32.gmra.mrb[0].mxu0 %v2505
        %v3486 = vpop.f32.mrb[0].mxu0
        %v3487 = vadd.f32 %v3262, %v3486
        %v3488 = vpop.f32.mrb[0].mxu0
        %3489 = vmatprep.mubr.f32.mxu0 0.0
        %3490 = vmatmul.mubr.f32.gmra.mrb[0].mxu0 %v2506
        %v3491 = vpop.f32.mrb[0].mxu0
        %v3492 = vadd.f32 %v3267, %v3491
        %v3493 = vpop.f32.mrb[0].mxu0
        %3494 = vmatprep.mubr.f32.mxu0 0.0
        %3495 = vmatmul.mubr.f32.gmra.mrb[0].mxu0 %v2507
        %v3496 = vpop.f32.mrb[0].mxu0
        %v3497 = vadd.f32 %v3272, %v3496
        %v3498 = vpop.f32.mrb[0].mxu0
        %3499 = vmatprep.mubr.f32.mxu0 0.0
        %3500 = vmatmul.mubr.f32.gmra.mrb[0].mxu0 %v2508
        %v3501 = vpop.f32.mrb[0].mxu0
        %v3502 = vadd.f32 %v3277, %v3501
        %v3503 = vpop.f32.mrb[0].mxu0
        %3504 = vmatprep.mubr.f32.mxu0 0.0
        %3505 = vmatmul.mubr.f32.gmra.mrb[0].mxu0 %v2509
        %v3506 = vpop.f32.mrb[0].mxu0
        %v3507 = vadd.f32 %v3282, %v3506
        %v3508 = vpop.f32.mrb[0].mxu0
        %3509 = vdwg.mxu0
        %v3510 = vld [vmem:[#allocation8 + $0x300] sm:$0xff]
        %v3511 = vld [vmem:[#allocation8 + $0x308] sm:$0xff]
        %v3512 = vld [vmem:[#allocation8 + $0x310] sm:$0xff]
        %v3513 = vld [vmem:[#allocation8 + $0x318] sm:$0xff]
        %v3514 = vld [vmem:[#allocation8 + $0x320] sm:$0xff]
        %v3515 = vld [vmem:[#allocation8 + $0x328] sm:$0xff]
        %v3516 = vld [vmem:[#allocation8 + $0x330] sm:$0xff]
        %v3517 = vld [vmem:[#allocation8 + $0x338] sm:$0xff]
        %v3518 = vld [vmem:[#allocation8 + $0x340] sm:$0xff]
        %v3519 = vld [vmem:[#allocation8 + $0x348] sm:$0xff]
        %v3520 = vld [vmem:[#allocation8 + $0x350] sm:$0xff]
        %v3521 = vld [vmem:[#allocation8 + $0x358] sm:$0xff]
        %v3522 = vld [vmem:[#allocation8 + $0x360] sm:$0xff]
        %v3523 = vld [vmem:[#allocation8 + $0x368] sm:$0xff]
        %v3524 = vld [vmem:[#allocation8 + $0x370] sm:$0xff]
        %v3525 = vld [vmem:[#allocation8 + $0x378] sm:$0xff]
        %v3526 = vld [vmem:[#allocation8 + $0x380] sm:$0xff]
        %v3527 = vld [vmem:[#allocation8 + $0x388] sm:$0xff]
        %v3528 = vld [vmem:[#allocation8 + $0x390] sm:$0xff]
        %v3529 = vld [vmem:[#allocation8 + $0x398] sm:$0xff]
        %v3530 = vld [vmem:[#allocation8 + $0x3a0] sm:$0xff]
        %v3531 = vld [vmem:[#allocation8 + $0x3a8] sm:$0xff]
        %v3532 = vld [vmem:[#allocation8 + $0x3b0] sm:$0xff]
        %v3533 = vld [vmem:[#allocation8 + $0x3b8] sm:$0xff]
        %v3534 = vld [vmem:[#allocation8 + $0x3c0] sm:$0xff]
        %v3535 = vld [vmem:[#allocation8 + $0x3c8] sm:$0xff]
        %v3536 = vld [vmem:[#allocation8 + $0x3d0] sm:$0xff]
        %v3537 = vld [vmem:[#allocation8 + $0x3d8] sm:$0xff]
        %v3538 = vld [vmem:[#allocation8 + $0x3e0] sm:$0xff]
        %v3539 = vld [vmem:[#allocation8 + $0x3e8] sm:$0xff]
        %v3540 = vld [vmem:[#allocation8 + $0x3f0] sm:$0xff]
        %v3541 = vld [vmem:[#allocation8 + $0x3f8] sm:$0xff]
        %v3542 = vld [vmem:[#allocation8 + $0x400] sm:$0xff]
        %v3543 = vld [vmem:[#allocation8 + $0x408] sm:$0xff]
        %v3544 = vld [vmem:[#allocation8 + $0x410] sm:$0xff]
        %v3545 = vld [vmem:[#allocation8 + $0x418] sm:$0xff]
        %v3546 = vld [vmem:[#allocation8 + $0x420] sm:$0xff]
        %v3547 = vld [vmem:[#allocation8 + $0x428] sm:$0xff]
        %v3548 = vld [vmem:[#allocation8 + $0x430] sm:$0xff]
        %v3549 = vld [vmem:[#allocation8 + $0x438] sm:$0xff]
        %v3550 = vld [vmem:[#allocation8 + $0x440] sm:$0xff]
        %v3551 = vld [vmem:[#allocation8 + $0x448] sm:$0xff]
        %v3552 = vld [vmem:[#allocation8 + $0x450] sm:$0xff]
        %v3553 = vld [vmem:[#allocation8 + $0x458] sm:$0xff]
        %v3554 = vld [vmem:[#allocation8 + $0x460] sm:$0xff]
        %v3555 = vld [vmem:[#allocation8 + $0x468] sm:$0xff]
        %v3556 = vld [vmem:[#allocation8 + $0x470] sm:$0xff]
        %v3557 = vld [vmem:[#allocation8 + $0x478] sm:$0xff]
        %3558 = vmatprep.subr.mxu0 0.0
        %3559 = vmatpush1.msra.mxu0 %v3510
        %3560 = vmatprep.subr.mxu0 0.0
        %3561 = vmatpush1.msra.mxu0 %v3511
        %3562 = vmatprep.subr.mxu0 0.0
        %3563 = vmatpush1.msra.mxu0 %v3512
        %3564 = vmatprep.subr.mxu0 0.0
        %3565 = vmatpush1.msra.mxu0 %v3513
        %3566 = vmatprep.subr.mxu0 0.0
        %3567 = vmatpush1.msra.mxu0 %v3514
        %3568 = vmatprep.subr.mxu0 0.0
        %3569 = vmatpush1.msra.mxu0 %v3515
        %3570 = vmatprep.subr.mxu0 0.0
        %3571 = vmatpush1.msra.mxu0 %v3516
        %3572 = vmatprep.subr.mxu0 0.0
        %3573 = vmatpush1.msra.mxu0 %v3517
        %3574 = vmatprep.subr.mxu0 0.0
        %3575 = vmatpush1.msra.mxu0 %v3518
        %3576 = vmatprep.subr.mxu0 0.0
        %3577 = vmatpush1.msra.mxu0 %v3519
        %3578 = vmatprep.subr.mxu0 0.0
        %3579 = vmatpush1.msra.mxu0 %v3520
        %3580 = vmatprep.subr.mxu0 0.0
        %3581 = vmatpush1.msra.mxu0 %v3521
        %3582 = vmatprep.subr.mxu0 0.0
        %3583 = vmatpush1.msra.mxu0 %v3522
        %3584 = vmatprep.subr.mxu0 0.0
        %3585 = vmatpush1.msra.mxu0 %v3523
        %3586 = vmatprep.subr.mxu0 0.0
        %3587 = vmatpush1.msra.mxu0 %v3524
        %3588 = vmatprep.subr.mxu0 0.0
        %3589 = vmatpush1.msra.mxu0 %v3525
        %3590 = vmatprep.subr.mxu0 0.0
        %3591 = vmatpush1.msra.mxu0 %v3526
        %3592 = vmatprep.subr.mxu0 0.0
        %3593 = vmatpush1.msra.mxu0 %v3527
        %3594 = vmatprep.subr.mxu0 0.0
        %3595 = vmatpush1.msra.mxu0 %v3528
        %3596 = vmatprep.subr.mxu0 0.0
        %3597 = vmatpush1.msra.mxu0 %v3529
        %3598 = vmatprep.subr.mxu0 0.0
        %3599 = vmatpush1.msra.mxu0 %v3530
        %3600 = vmatprep.subr.mxu0 0.0
        %3601 = vmatpush1.msra.mxu0 %v3531
        %3602 = vmatprep.subr.mxu0 0.0
        %3603 = vmatpush1.msra.mxu0 %v3532
        %3604 = vmatprep.subr.mxu0 0.0
        %3605 = vmatpush1.msra.mxu0 %v3533
        %3606 = vmatprep.subr.mxu0 0.0
        %3607 = vmatpush1.msra.mxu0 %v3534
        %3608 = vmatprep.subr.mxu0 0.0
        %3609 = vmatpush1.msra.mxu0 %v3535
        %3610 = vmatprep.subr.mxu0 0.0
        %3611 = vmatpush1.msra.mxu0 %v3536
        %3612 = vmatprep.subr.mxu0 0.0
        %3613 = vmatpush1.msra.mxu0 %v3537
        %3614 = vmatprep.subr.mxu0 0.0
        %3615 = vmatpush1.msra.mxu0 %v3538
        %3616 = vmatprep.subr.mxu0 0.0
        %3617 = vmatpush1.msra.mxu0 %v3539
        %3618 = vmatprep.subr.mxu0 0.0
        %3619 = vmatpush1.msra.mxu0 %v3540
        %3620 = vmatprep.subr.mxu0 0.0
        %3621 = vmatpush1.msra.mxu0 %v3541
        %3622 = vmatprep.mubr.f32.mxu0 %v2446
        %3623 = vmatmul.mubr.f32.gmra.mrb[0].mxu0 %v2410
        %v3624 = vpop.f32.mrb[0].mxu0
        %v3625 = vadd.f32 0.0, %v3624
        %v3626 = vpop.f32.mrb[0].mxu0
        %3627 = vmatprep.mubr.f32.mxu0 %v2447
        %3628 = vmatmul.mubr.f32.gmra.mrb[0].mxu0 %v2411
        %v3629 = vpop.f32.mrb[0].mxu0
        %v3630 = vadd.f32 0.0, %v3629
        %v3631 = vpop.f32.mrb[0].mxu0
        %3632 = vmatprep.mubr.f32.mxu0 %v2448
        %3633 = vmatmul.mubr.f32.gmra.mrb[0].mxu0 %v2412
        %v3634 = vpop.f32.mrb[0].mxu0
        %v3635 = vadd.f32 0.0, %v3634
        %v3636 = vpop.f32.mrb[0].mxu0
        %3637 = vmatprep.mubr.f32.mxu0 %v2449
        %3638 = vmatmul.mubr.f32.gmra.mrb[0].mxu0 %v2413
        %v3639 = vpop.f32.mrb[0].mxu0
        %v3640 = vadd.f32 0.0, %v3639
        %v3641 = vpop.f32.mrb[0].mxu0
        %3642 = vmatprep.mubr.f32.mxu0 %v2450
        %3643 = vmatmul.mubr.f32.gmra.mrb[0].mxu0 %v2414
        %v3644 = vpop.f32.mrb[0].mxu0
        %v3645 = vadd.f32 0.0, %v3644
        %v3646 = vpop.f32.mrb[0].mxu0
        %3647 = vmatprep.mubr.f32.mxu0 %v2451
        %3648 = vmatmul.mubr.f32.gmra.mrb[0].mxu0 %v2415
        %v3649 = vpop.f32.mrb[0].mxu0
        %v3650 = vadd.f32 0.0, %v3649
        %v3651 = vpop.f32.mrb[0].mxu0
        %3652 = vmatprep.mubr.f32.mxu0 %v2452
        %3653 = vmatmul.mubr.f32.gmra.mrb[0].mxu0 %v2416
        %v3654 = vpop.f32.mrb[0].mxu0
        %v3655 = vadd.f32 0.0, %v3654
        %v3656 = vpop.f32.mrb[0].mxu0
        %3657 = vmatprep.mubr.f32.mxu0 %v2453
        %3658 = vmatmul.mubr.f32.gmra.mrb[0].mxu0 %v2417
        %v3659 = vpop.f32.mrb[0].mxu0
        %v3660 = vadd.f32 0.0, %v3659
        %v3661 = vpop.f32.mrb[0].mxu0
        %3662 = vmatprep.mubr.f32.mxu0 %v2454
        %3663 = vmatmul.mubr.f32.gmra.mrb[0].mxu0 %v2418
        %v3664 = vpop.f32.mrb[0].mxu0
        %v3665 = vadd.f32 0.0, %v3664
        %v3666 = vpop.f32.mrb[0].mxu0
        %3667 = vmatprep.mubr.f32.mxu0 %v2455
        %3668 = vmatmul.mubr.f32.gmra.mrb[0].mxu0 %v2419
        %v3669 = vpop.f32.mrb[0].mxu0
        %v3670 = vadd.f32 0.0, %v3669
        %v3671 = vpop.f32.mrb[0].mxu0
        %3672 = vmatprep.mubr.f32.mxu0 %v2456
        %3673 = vmatmul.mubr.f32.gmra.mrb[0].mxu0 %v2420
        %v3674 = vpop.f32.mrb[0].mxu0
        %v3675 = vadd.f32 0.0, %v3674
        %v3676 = vpop.f32.mrb[0].mxu0
        %3677 = vmatprep.mubr.f32.mxu0 %v2457
        %3678 = vmatmul.mubr.f32.gmra.mrb[0].mxu0 %v2421
        %v3679 = vpop.f32.mrb[0].mxu0
        %v3680 = vadd.f32 0.0, %v3679
        %v3681 = vpop.f32.mrb[0].mxu0
        %3682 = vmatprep.mubr.f32.mxu0 %v2458
        %3683 = vmatmul.mubr.f32.gmra.mrb[0].mxu0 %v2422
        %v3684 = vpop.f32.mrb[0].mxu0
        %v3685 = vadd.f32 0.0, %v3684
        %v3686 = vpop.f32.mrb[0].mxu0
        %3687 = vmatprep.mubr.f32.mxu0 %v2459
        %3688 = vmatmul.mubr.f32.gmra.mrb[0].mxu0 %v2423
        %v3689 = vpop.f32.mrb[0].mxu0
        %v3690 = vadd.f32 0.0, %v3689
        %v3691 = vpop.f32.mrb[0].mxu0
        %3692 = vmatprep.mubr.f32.mxu0 %v2460
        %3693 = vmatmul.mubr.f32.gmra.mrb[0].mxu0 %v2424
        %v3694 = vpop.f32.mrb[0].mxu0
        %v3695 = vadd.f32 0.0, %v3694
        %v3696 = vpop.f32.mrb[0].mxu0
        %3697 = vmatprep.mubr.f32.mxu0 %v2461
        %3698 = vmatmul.mubr.f32.gmra.mrb[0].mxu0 %v2425
        %v3699 = vpop.f32.mrb[0].mxu0
        %v3700 = vadd.f32 0.0, %v3699
        %v3701 = vpop.f32.mrb[0].mxu0
        %3702 = vmatprep.mubr.f32.mxu0 %v2462
        %3703 = vmatmul.mubr.f32.gmra.mrb[0].mxu0 %v2426
        %v3704 = vpop.f32.mrb[0].mxu0
        %v3705 = vadd.f32 0.0, %v3704
        %v3706 = vpop.f32.mrb[0].mxu0
        %3707 = vmatprep.mubr.f32.mxu0 %v2463
        %3708 = vmatmul.mubr.f32.gmra.mrb[0].mxu0 %v2427
        %v3709 = vpop.f32.mrb[0].mxu0
        %v3710 = vadd.f32 0.0, %v3709
        %v3711 = vpop.f32.mrb[0].mxu0
        %3712 = vmatprep.mubr.f32.mxu0 %v2464
        %3713 = vmatmul.mubr.f32.gmra.mrb[0].mxu0 %v2428
        %v3714 = vpop.f32.mrb[0].mxu0
        %v3715 = vadd.f32 0.0, %v3714
        %v3716 = vpop.f32.mrb[0].mxu0
        %3717 = vmatprep.mubr.f32.mxu0 %v2465
        %3718 = vmatmul.mubr.f32.gmra.mrb[0].mxu0 %v2429
        %v3719 = vpop.f32.mrb[0].mxu0
        %v3720 = vadd.f32 0.0, %v3719
        %v3721 = vpop.f32.mrb[0].mxu0
        %3722 = vmatprep.mubr.f32.mxu0 %v2466
        %3723 = vmatmul.mubr.f32.gmra.mrb[0].mxu0 %v2430
        %v3724 = vpop.f32.mrb[0].mxu0
        %v3725 = vadd.f32 0.0, %v3724
        %v3726 = vpop.f32.mrb[0].mxu0
        %3727 = vmatprep.mubr.f32.mxu0 %v2467
        %3728 = vmatmul.mubr.f32.gmra.mrb[0].mxu0 %v2431
        %v3729 = vpop.f32.mrb[0].mxu0
        %v3730 = vadd.f32 0.0, %v3729
        %v3731 = vpop.f32.mrb[0].mxu0
        %3732 = vmatprep.mubr.f32.mxu0 %v2468
        %3733 = vmatmul.mubr.f32.gmra.mrb[0].mxu0 %v2432
        %v3734 = vpop.f32.mrb[0].mxu0
        %v3735 = vadd.f32 0.0, %v3734
        %v3736 = vpop.f32.mrb[0].mxu0
        %3737 = vmatprep.mubr.f32.mxu0 %v2469
        %3738 = vmatmul.mubr.f32.gmra.mrb[0].mxu0 %v2433
        %v3739 = vpop.f32.mrb[0].mxu0
        %v3740 = vadd.f32 0.0, %v3739
        %v3741 = vpop.f32.mrb[0].mxu0
        %3742 = vmatprep.mubr.f32.mxu0 %v2470
        %3743 = vmatmul.mubr.f32.gmra.mrb[0].mxu0 %v2434
        %v3744 = vpop.f32.mrb[0].mxu0
        %v3745 = vadd.f32 0.0, %v3744
        %v3746 = vpop.f32.mrb[0].mxu0
        %3747 = vmatprep.mubr.f32.mxu0 %v2471
        %3748 = vmatmul.mubr.f32.gmra.mrb[0].mxu0 %v2435
        %v3749 = vpop.f32.mrb[0].mxu0
        %v3750 = vadd.f32 0.0, %v3749
        %v3751 = vpop.f32.mrb[0].mxu0
        %3752 = vmatprep.mubr.f32.mxu0 %v2472
        %3753 = vmatmul.mubr.f32.gmra.mrb[0].mxu0 %v2436
        %v3754 = vpop.f32.mrb[0].mxu0
        %v3755 = vadd.f32 0.0, %v3754
        %v3756 = vpop.f32.mrb[0].mxu0
        %3757 = vmatprep.mubr.f32.mxu0 %v2473
        %3758 = vmatmul.mubr.f32.gmra.mrb[0].mxu0 %v2437
        %v3759 = vpop.f32.mrb[0].mxu0
        %v3760 = vadd.f32 0.0, %v3759
        %v3761 = vpop.f32.mrb[0].mxu0
        %3762 = vmatprep.mubr.f32.mxu0 %v2474
        %3763 = vmatmul.mubr.f32.gmra.mrb[0].mxu0 %v2438
        %v3764 = vpop.f32.mrb[0].mxu0
        %v3765 = vadd.f32 0.0, %v3764
        %v3766 = vpop.f32.mrb[0].mxu0
        %3767 = vmatprep.mubr.f32.mxu0 %v2475
        %3768 = vmatmul.mubr.f32.gmra.mrb[0].mxu0 %v2439
        %v3769 = vpop.f32.mrb[0].mxu0
        %v3770 = vadd.f32 0.0, %v3769
        %v3771 = vpop.f32.mrb[0].mxu0
        %3772 = vmatprep.mubr.f32.mxu0 %v2476
        %3773 = vmatmul.mubr.f32.gmra.mrb[0].mxu0 %v2440
        %v3774 = vpop.f32.mrb[0].mxu0
        %v3775 = vadd.f32 0.0, %v3774
        %v3776 = vpop.f32.mrb[0].mxu0
        %3777 = vmatprep.mubr.f32.mxu0 %v2477
        %3778 = vmatmul.mubr.f32.gmra.mrb[0].mxu0 %v2441
        %v3779 = vpop.f32.mrb[0].mxu0
        %v3780 = vadd.f32 0.0, %v3779
        %v3781 = vpop.f32.mrb[0].mxu0
        %3782 = vdwg.mxu0
        %3783 = vmatprep.subr.mxu0 0.0
        %3784 = vmatpush1.msra.mxu0 %v3542
        %3785 = vmatprep.subr.mxu0 0.0
        %3786 = vmatpush1.msra.mxu0 %v3543
        %3787 = vmatprep.subr.mxu0 0.0
        %3788 = vmatpush1.msra.mxu0 %v3544
        %3789 = vmatprep.subr.mxu0 0.0
        %3790 = vmatpush1.msra.mxu0 %v3545
        %3791 = vmatprep.subr.mxu0 0.0
        %3792 = vmatpush1.msra.mxu0 %v3546
        %3793 = vmatprep.subr.mxu0 0.0
        %3794 = vmatpush1.msra.mxu0 %v3547
        %3795 = vmatprep.subr.mxu0 0.0
        %3796 = vmatpush1.msra.mxu0 %v3548
        %3797 = vmatprep.subr.mxu0 0.0
        %3798 = vmatpush1.msra.mxu0 %v3549
        %3799 = vmatprep.subr.mxu0 0.0
        %3800 = vmatpush1.msra.mxu0 %v3550
        %3801 = vmatprep.subr.mxu0 0.0
        %3802 = vmatpush1.msra.mxu0 %v3551
        %3803 = vmatprep.subr.mxu0 0.0
        %3804 = vmatpush1.msra.mxu0 %v3552
        %3805 = vmatprep.subr.mxu0 0.0
        %3806 = vmatpush1.msra.mxu0 %v3553
        %3807 = vmatprep.subr.mxu0 0.0
        %3808 = vmatpush1.msra.mxu0 %v3554
        %3809 = vmatprep.subr.mxu0 0.0
        %3810 = vmatpush1.msra.mxu0 %v3555
        %3811 = vmatprep.subr.mxu0 0.0
        %3812 = vmatpush1.msra.mxu0 %v3556
        %3813 = vmatprep.subr.mxu0 0.0
        %3814 = vmatpush1.msra.mxu0 %v3557
        %3815 = vmatprep.subr.mxu0 0.0
        %3816 = vmatpush1.msra.mxu0 0.0
        %3817 = vmatprep.subr.mxu0 0.0
        %3818 = vmatpush1.msra.mxu0 0.0
        %3819 = vmatprep.subr.mxu0 0.0
        %3820 = vmatpush1.msra.mxu0 0.0
        %3821 = vmatprep.subr.mxu0 0.0
        %3822 = vmatpush1.msra.mxu0 0.0
        %3823 = vmatprep.subr.mxu0 0.0
        %3824 = vmatpush1.msra.mxu0 0.0
        %3825 = vmatprep.subr.mxu0 0.0
        %3826 = vmatpush1.msra.mxu0 0.0
        %3827 = vmatprep.subr.mxu0 0.0
        %3828 = vmatpush1.msra.mxu0 0.0
        %3829 = vmatprep.subr.mxu0 0.0
        %3830 = vmatpush1.msra.mxu0 0.0
        %3831 = vmatprep.subr.mxu0 0.0
        %3832 = vmatpush1.msra.mxu0 0.0
        %3833 = vmatprep.subr.mxu0 0.0
        %3834 = vmatpush1.msra.mxu0 0.0
        %3835 = vmatprep.subr.mxu0 0.0
        %3836 = vmatpush1.msra.mxu0 0.0
        %3837 = vmatprep.subr.mxu0 0.0
        %3838 = vmatpush1.msra.mxu0 0.0
        %3839 = vmatprep.subr.mxu0 0.0
        %3840 = vmatpush1.msra.mxu0 0.0
        %3841 = vmatprep.subr.mxu0 0.0
        %3842 = vmatpush1.msra.mxu0 0.0
        %3843 = vmatprep.subr.mxu0 0.0
        %3844 = vmatpush1.msra.mxu0 0.0
        %3845 = vmatprep.subr.mxu0 0.0
        %3846 = vmatpush1.msra.mxu0 0.0
        %3847 = vmatprep.mubr.f32.mxu0 0.0
        %3848 = vmatmul.mubr.f32.gmra.mrb[0].mxu0 %v2482
        %v3849 = vpop.f32.mrb[0].mxu0
        %v3850 = vadd.f32 %v3625, %v3849
        %v3851 = vpop.f32.mrb[0].mxu0
        %3852 = vmatprep.mubr.f32.mxu0 0.0
        %3853 = vmatmul.mubr.f32.gmra.mrb[0].mxu0 %v2483
        %v3854 = vpop.f32.mrb[0].mxu0
        %v3855 = vadd.f32 %v3630, %v3854
        %v3856 = vpop.f32.mrb[0].mxu0
        %3857 = vmatprep.mubr.f32.mxu0 0.0
        %3858 = vmatmul.mubr.f32.gmra.mrb[0].mxu0 %v2484
        %v3859 = vpop.f32.mrb[0].mxu0
        %v3860 = vadd.f32 %v3635, %v3859
        %v3861 = vpop.f32.mrb[0].mxu0
        %3862 = vmatprep.mubr.f32.mxu0 0.0
        %3863 = vmatmul.mubr.f32.gmra.mrb[0].mxu0 %v2485
        %v3864 = vpop.f32.mrb[0].mxu0
        %v3865 = vadd.f32 %v3640, %v3864
        %v3866 = vpop.f32.mrb[0].mxu0
        %3867 = vmatprep.mubr.f32.mxu0 0.0
        %3868 = vmatmul.mubr.f32.gmra.mrb[0].mxu0 %v2486
        %v3869 = vpop.f32.mrb[0].mxu0
        %v3870 = vadd.f32 %v3645, %v3869
        %v3871 = vpop.f32.mrb[0].mxu0
        %3872 = vmatprep.mubr.f32.mxu0 0.0
        %3873 = vmatmul.mubr.f32.gmra.mrb[0].mxu0 %v2487
        %v3874 = vpop.f32.mrb[0].mxu0
        %v3875 = vadd.f32 %v3650, %v3874
        %v3876 = vpop.f32.mrb[0].mxu0
        %3877 = vmatprep.mubr.f32.mxu0 0.0
        %3878 = vmatmul.mubr.f32.gmra.mrb[0].mxu0 %v2488
        %v3879 = vpop.f32.mrb[0].mxu0
        %v3880 = vadd.f32 %v3655, %v3879
        %v3881 = vpop.f32.mrb[0].mxu0
        %3882 = vmatprep.mubr.f32.mxu0 0.0
        %3883 = vmatmul.mubr.f32.gmra.mrb[0].mxu0 %v2489
        %v3884 = vpop.f32.mrb[0].mxu0
        %v3885 = vadd.f32 %v3660, %v3884
        %v3886 = vpop.f32.mrb[0].mxu0
        %3887 = vmatprep.mubr.f32.mxu0 0.0
        %3888 = vmatmul.mubr.f32.gmra.mrb[0].mxu0 %v2490
        %v3889 = vpop.f32.mrb[0].mxu0
        %v3890 = vadd.f32 %v3665, %v3889
        %v3891 = vpop.f32.mrb[0].mxu0
        %3892 = vmatprep.mubr.f32.mxu0 0.0
        %3893 = vmatmul.mubr.f32.gmra.mrb[0].mxu0 %v2491
        %v3894 = vpop.f32.mrb[0].mxu0
        %v3895 = vadd.f32 %v3670, %v3894
        %v3896 = vpop.f32.mrb[0].mxu0
        %3897 = vmatprep.mubr.f32.mxu0 0.0
        %3898 = vmatmul.mubr.f32.gmra.mrb[0].mxu0 %v2492
        %v3899 = vpop.f32.mrb[0].mxu0
        %v3900 = vadd.f32 %v3675, %v3899
        %v3901 = vpop.f32.mrb[0].mxu0
        %3902 = vmatprep.mubr.f32.mxu0 0.0
        %3903 = vmatmul.mubr.f32.gmra.mrb[0].mxu0 %v2493
        %v3904 = vpop.f32.mrb[0].mxu0
        %v3905 = vadd.f32 %v3680, %v3904
        %v3906 = vpop.f32.mrb[0].mxu0
        %3907 = vmatprep.mubr.f32.mxu0 0.0
        %3908 = vmatmul.mubr.f32.gmra.mrb[0].mxu0 %v2494
        %v3909 = vpop.f32.mrb[0].mxu0
        %v3910 = vadd.f32 %v3685, %v3909
        %v3911 = vpop.f32.mrb[0].mxu0
        %3912 = vmatprep.mubr.f32.mxu0 0.0
        %3913 = vmatmul.mubr.f32.gmra.mrb[0].mxu0 %v2495
        %v3914 = vpop.f32.mrb[0].mxu0
        %v3915 = vadd.f32 %v3690, %v3914
        %v3916 = vpop.f32.mrb[0].mxu0
        %3917 = vmatprep.mubr.f32.mxu0 0.0
        %3918 = vmatmul.mubr.f32.gmra.mrb[0].mxu0 %v2496
        %v3919 = vpop.f32.mrb[0].mxu0
        %v3920 = vadd.f32 %v3695, %v3919
        %v3921 = vpop.f32.mrb[0].mxu0
        %3922 = vmatprep.mubr.f32.mxu0 0.0
        %3923 = vmatmul.mubr.f32.gmra.mrb[0].mxu0 %v2497
        %v3924 = vpop.f32.mrb[0].mxu0
        %v3925 = vadd.f32 %v3700, %v3924
        %v3926 = vpop.f32.mrb[0].mxu0
        %3927 = vmatprep.mubr.f32.mxu0 0.0
        %3928 = vmatmul.mubr.f32.gmra.mrb[0].mxu0 %v2498
        %v3929 = vpop.f32.mrb[0].mxu0
        %v3930 = vadd.f32 %v3705, %v3929
        %v3931 = vpop.f32.mrb[0].mxu0
        %3932 = vmatprep.mubr.f32.mxu0 0.0
        %3933 = vmatmul.mubr.f32.gmra.mrb[0].mxu0 %v2499
        %v3934 = vpop.f32.mrb[0].mxu0
        %v3935 = vadd.f32 %v3710, %v3934
        %v3936 = vpop.f32.mrb[0].mxu0
        %3937 = vmatprep.mubr.f32.mxu0 0.0
        %3938 = vmatmul.mubr.f32.gmra.mrb[0].mxu0 %v2500
        %v3939 = vpop.f32.mrb[0].mxu0
        %v3940 = vadd.f32 %v3715, %v3939
        %v3941 = vpop.f32.mrb[0].mxu0
        %3942 = vmatprep.mubr.f32.mxu0 0.0
        %3943 = vmatmul.mubr.f32.gmra.mrb[0].mxu0 %v2501
        %v3944 = vpop.f32.mrb[0].mxu0
        %v3945 = vadd.f32 %v3720, %v3944
        %v3946 = vpop.f32.mrb[0].mxu0
        %3947 = vmatprep.mubr.f32.mxu0 0.0
        %3948 = vmatmul.mubr.f32.gmra.mrb[0].mxu0 %v2502
        %v3949 = vpop.f32.mrb[0].mxu0
        %v3950 = vadd.f32 %v3725, %v3949
        %v3951 = vpop.f32.mrb[0].mxu0
        %3952 = vmatprep.mubr.f32.mxu0 0.0
        %3953 = vmatmul.mubr.f32.gmra.mrb[0].mxu0 %v2503
        %v3954 = vpop.f32.mrb[0].mxu0
        %v3955 = vadd.f32 %v3730, %v3954
        %v3956 = vpop.f32.mrb[0].mxu0
        %3957 = vmatprep.mubr.f32.mxu0 0.0
        %3958 = vmatmul.mubr.f32.gmra.mrb[0].mxu0 %v2504
        %v3959 = vpop.f32.mrb[0].mxu0
        %v3960 = vadd.f32 %v3735, %v3959
        %v3961 = vpop.f32.mrb[0].mxu0
        %3962 = vmatprep.mubr.f32.mxu0 0.0
        %3963 = vmatmul.mubr.f32.gmra.mrb[0].mxu0 %v2505
        %v3964 = vpop.f32.mrb[0].mxu0
        %v3965 = vadd.f32 %v3740, %v3964
        %v3966 = vpop.f32.mrb[0].mxu0
        %3967 = vmatprep.mubr.f32.mxu0 0.0
        %3968 = vmatmul.mubr.f32.gmra.mrb[0].mxu0 %v2506
        %v3969 = vpop.f32.mrb[0].mxu0
        %v3970 = vadd.f32 %v3745, %v3969
        %v3971 = vpop.f32.mrb[0].mxu0
        %3972 = vmatprep.mubr.f32.mxu0 0.0
        %3973 = vmatmul.mubr.f32.gmra.mrb[0].mxu0 %v2507
        %v3974 = vpop.f32.mrb[0].mxu0
        %v3975 = vadd.f32 %v3750, %v3974
        %v3976 = vpop.f32.mrb[0].mxu0
        %3977 = vmatprep.mubr.f32.mxu0 0.0
        %3978 = vmatmul.mubr.f32.gmra.mrb[0].mxu0 %v2508
        %v3979 = vpop.f32.mrb[0].mxu0
        %v3980 = vadd.f32 %v3755, %v3979
        %v3981 = vpop.f32.mrb[0].mxu0
        %3982 = vmatprep.mubr.f32.mxu0 0.0
        %3983 = vmatmul.mubr.f32.gmra.mrb[0].mxu0 %v2509
        %v3984 = vpop.f32.mrb[0].mxu0
        %v3985 = vadd.f32 %v3760, %v3984
        %v3986 = vpop.f32.mrb[0].mxu0
        %3987 = vmatprep.mubr.f32.mxu0 0.0
        %3988 = vmatmul.mubr.f32.gmra.mrb[0].mxu0 %v2510
        %v3989 = vpop.f32.mrb[0].mxu0
        %v3990 = vadd.f32 %v3765, %v3989
        %v3991 = vpop.f32.mrb[0].mxu0
        %3992 = vmatprep.mubr.f32.mxu0 0.0
        %3993 = vmatmul.mubr.f32.gmra.mrb[0].mxu0 %v2511
        %v3994 = vpop.f32.mrb[0].mxu0
        %v3995 = vadd.f32 %v3770, %v3994
        %v3996 = vpop.f32.mrb[0].mxu0
        %3997 = vmatprep.mubr.f32.mxu0 0.0
        %3998 = vmatmul.mubr.f32.gmra.mrb[0].mxu0 %v2512
        %v3999 = vpop.f32.mrb[0].mxu0
        %v4000 = vadd.f32 %v3775, %v3999
        %v4001 = vpop.f32.mrb[0].mxu0
        %4002 = vmatprep.mubr.f32.mxu0 0.0
        %4003 = vmatmul.mubr.f32.gmra.mrb[0].mxu0 %v2513
        %v4004 = vpop.f32.mrb[0].mxu0
        %v4005 = vadd.f32 %v3780, %v4004
        %v4006 = vpop.f32.mrb[0].mxu0
        %4007 = vdwg.mxu0
        %v4008 = vadd.f32 %v3352, %v3850
        %v4009 = vadd.f32 %v3357, %v3855
        %v4010 = vadd.f32 %v3362, %v3860
        %v4011 = vadd.f32 %v3367, %v3865
        %v4012 = vadd.f32 %v3372, %v3870
        %v4013 = vadd.f32 %v3377, %v3875
        %v4014 = vadd.f32 %v3382, %v3880
        %v4015 = vadd.f32 %v3387, %v3885
        %v4016 = vadd.f32 %v3392, %v3890
        %v4017 = vadd.f32 %v3397, %v3895
        %v4018 = vadd.f32 %v3402, %v3900
        %v4019 = vadd.f32 %v3407, %v3905
        %v4020 = vadd.f32 %v3412, %v3910
        %v4021 = vadd.f32 %v3417, %v3915
        %v4022 = vadd.f32 %v3422, %v3920
        %v4023 = vadd.f32 %v3427, %v3925
        %v4024 = vadd.f32 %v3432, %v3930
        %v4025 = vadd.f32 %v3437, %v3935
        %v4026 = vadd.f32 %v3442, %v3940
        %v4027 = vadd.f32 %v3447, %v3945
        %v4028 = vadd.f32 %v3452, %v3950
        %v4029 = vadd.f32 %v3457, %v3955
        %v4030 = vadd.f32 %v3462, %v3960
        %v4031 = vadd.f32 %v3467, %v3965
        %v4032 = vadd.f32 %v3472, %v3970
        %v4033 = vadd.f32 %v3477, %v3975
        %v4034 = vadd.f32 %v3482, %v3980
        %v4035 = vadd.f32 %v3487, %v3985
        %v4036 = vadd.f32 %v3492, %v3990
        %v4037 = vadd.f32 %v3497, %v3995
        %v4038 = vadd.f32 %v3502, %v4000
        %v4039 = vadd.f32 %v3507, %v4005
        %v4040 = vld [vmem:[#allocation15] sm:$0x1]
        %v4042 = vlaneseq
        %v4043 = vshrl.u32 %v4042, 7
        %v4044 = vsub.s32 0, %v4043
        %v4045 = vrot.slane %v4040, %v4044
        %v4047 = vadd.f32 %v4008, %v4045
        %v4048 = vadd.f32 %v4009, %v4045
        %v4049 = vadd.f32 %v4010, %v4045
        %v4050 = vadd.f32 %v4011, %v4045
        %v4051 = vadd.f32 %v4012, %v4045
        %v4052 = vadd.f32 %v4013, %v4045
        %v4053 = vadd.f32 %v4014, %v4045
        %v4054 = vadd.f32 %v4015, %v4045
        %v4055 = vadd.f32 %v4016, %v4045
        %v4056 = vadd.f32 %v4017, %v4045
        %v4057 = vadd.f32 %v4018, %v4045
        %v4058 = vadd.f32 %v4019, %v4045
        %v4059 = vadd.f32 %v4020, %v4045
        %v4060 = vadd.f32 %v4021, %v4045
        %v4061 = vadd.f32 %v4022, %v4045
        %v4062 = vadd.f32 %v4023, %v4045
        %v4063 = vadd.f32 %v4024, %v4045
        %v4064 = vadd.f32 %v4025, %v4045
        %v4065 = vadd.f32 %v4026, %v4045
        %v4066 = vadd.f32 %v4027, %v4045
        %v4067 = vadd.f32 %v4028, %v4045
        %v4068 = vadd.f32 %v4029, %v4045
        %v4069 = vadd.f32 %v4030, %v4045
        %v4070 = vadd.f32 %v4031, %v4045
        %v4071 = vadd.f32 %v4032, %v4045
        %v4072 = vadd.f32 %v4033, %v4045
        %v4073 = vadd.f32 %v4034, %v4045
        %v4074 = vadd.f32 %v4035, %v4045
        %v4075 = vadd.f32 %v4036, %v4045
        %v4076 = vadd.f32 %v4037, %v4045
        %v4077 = vadd.f32 %v4038, %v4045
        %v4078 = vadd.f32 %v4039, %v4045
        %v4079 = vld [vmem:[%s355] sm:$0xff]
        %v4080 = vld [vmem:[%s355 + $0x8] sm:$0xff]
        %v4081 = vld [vmem:[%s355 + $0x10] sm:$0xff]
        %v4082 = vld [vmem:[%s355 + $0x18] sm:$0xff]
        %v4083 = vld [vmem:[%s355 + $0x20] sm:$0xff]
        %v4084 = vld [vmem:[%s355 + $0x28] sm:$0xff]
        %v4085 = vld [vmem:[%s355 + $0x30] sm:$0xff]
        %v4086 = vld [vmem:[%s355 + $0x38] sm:$0xff]
        %v4087 = vld [vmem:[%s355 + $0x40] sm:$0xff]
        %v4088 = vld [vmem:[%s355 + $0x48] sm:$0xff]
        %v4089 = vld [vmem:[%s355 + $0x50] sm:$0xff]
        %v4090 = vld [vmem:[%s355 + $0x58] sm:$0xff]
        %v4091 = vld [vmem:[%s355 + $0x60] sm:$0xff]
        %v4092 = vld [vmem:[%s355 + $0x68] sm:$0xff]
        %v4093 = vld [vmem:[%s355 + $0x70] sm:$0xff]
        %v4094 = vld [vmem:[%s355 + $0x78] sm:$0xff]
        %v4095 = vld [vmem:[%s355 + $0x80] sm:$0xff]
        %v4096 = vld [vmem:[%s355 + $0x88] sm:$0xff]
        %v4097 = vld [vmem:[%s355 + $0x90] sm:$0xff]
        %v4098 = vld [vmem:[%s355 + $0x98] sm:$0xff]
        %v4099 = vld [vmem:[%s355 + $0xa0] sm:$0xff]
        %v4100 = vld [vmem:[%s355 + $0xa8] sm:$0xff]
        %v4101 = vld [vmem:[%s355 + $0xb0] sm:$0xff]
        %v4102 = vld [vmem:[%s355 + $0xb8] sm:$0xff]
        %v4103 = vld [vmem:[%s355 + $0xc0] sm:$0xff]
        %v4104 = vld [vmem:[%s355 + $0xc8] sm:$0xff]
        %v4105 = vld [vmem:[%s355 + $0xd0] sm:$0xff]
        %v4106 = vld [vmem:[%s355 + $0xd8] sm:$0xff]
        %v4107 = vld [vmem:[%s355 + $0xe0] sm:$0xff]
        %v4108 = vld [vmem:[%s355 + $0xe8] sm:$0xff]
        %v4109 = vld [vmem:[%s355 + $0xf0] sm:$0xff]
        %v4110 = vld [vmem:[%s355 + $0xf8] sm:$0xff]
        %v4111 = vadd.f32 %v4047, %v4079
        %v4112 = vadd.f32 %v4048, %v4080
        %v4113 = vadd.f32 %v4049, %v4081
        %v4114 = vadd.f32 %v4050, %v4082
        %v4115 = vadd.f32 %v4051, %v4083
        %v4116 = vadd.f32 %v4052, %v4084
        %v4117 = vadd.f32 %v4053, %v4085
        %v4118 = vadd.f32 %v4054, %v4086
        %v4119 = vadd.f32 %v4055, %v4087
        %v4120 = vadd.f32 %v4056, %v4088
        %v4121 = vadd.f32 %v4057, %v4089
        %v4122 = vadd.f32 %v4058, %v4090
        %v4123 = vadd.f32 %v4059, %v4091
        %v4124 = vadd.f32 %v4060, %v4092
        %v4125 = vadd.f32 %v4061, %v4093
        %v4126 = vadd.f32 %v4062, %v4094
        %v4127 = vadd.f32 %v4063, %v4095
        %v4128 = vadd.f32 %v4064, %v4096
        %v4129 = vadd.f32 %v4065, %v4097
        %v4130 = vadd.f32 %v4066, %v4098
        %v4131 = vadd.f32 %v4067, %v4099
        %v4132 = vadd.f32 %v4068, %v4100
        %v4133 = vadd.f32 %v4069, %v4101
        %v4134 = vadd.f32 %v4070, %v4102
        %v4135 = vadd.f32 %v4071, %v4103
        %v4136 = vadd.f32 %v4072, %v4104
        %v4137 = vadd.f32 %v4073, %v4105
        %v4138 = vadd.f32 %v4074, %v4106
        %v4139 = vadd.f32 %v4075, %v4107
        %v4140 = vadd.f32 %v4076, %v4108
        %v4141 = vadd.f32 %v4077, %v4109
        %v4142 = vadd.f32 %v4078, %v4110
        %4143 = vst [vmem:[%s415] sm:$0xff] %v4111
        %4144 = vst [vmem:[%s415 + $0x8] sm:$0xff] %v4112
        %4145 = vst [vmem:[%s415 + $0x10] sm:$0xff] %v4113
        %4146 = vst [vmem:[%s415 + $0x18] sm:$0xff] %v4114
        %4147 = vst [vmem:[%s415 + $0x20] sm:$0xff] %v4115
        %4148 = vst [vmem:[%s415 + $0x28] sm:$0xff] %v4116
        %4149 = vst [vmem:[%s415 + $0x30] sm:$0xff] %v4117
        %4150 = vst [vmem:[%s415 + $0x38] sm:$0xff] %v4118
        %4151 = vst [vmem:[%s415 + $0x40] sm:$0xff] %v4119
        %4152 = vst [vmem:[%s415 + $0x48] sm:$0xff] %v4120
        %4153 = vst [vmem:[%s415 + $0x50] sm:$0xff] %v4121
        %4154 = vst [vmem:[%s415 + $0x58] sm:$0xff] %v4122
        %4155 = vst [vmem:[%s415 + $0x60] sm:$0xff] %v4123
        %4156 = vst [vmem:[%s415 + $0x68] sm:$0xff] %v4124
        %4157 = vst [vmem:[%s415 + $0x70] sm:$0xff] %v4125
        %4158 = vst [vmem:[%s415 + $0x78] sm:$0xff] %v4126
        %4159 = vst [vmem:[%s415 + $0x80] sm:$0xff] %v4127
        %4160 = vst [vmem:[%s415 + $0x88] sm:$0xff] %v4128
        %4161 = vst [vmem:[%s415 + $0x90] sm:$0xff] %v4129
        %4162 = vst [vmem:[%s415 + $0x98] sm:$0xff] %v4130
        %4163 = vst [vmem:[%s415 + $0xa0] sm:$0xff] %v4131
        %4164 = vst [vmem:[%s415 + $0xa8] sm:$0xff] %v4132
        %4165 = vst [vmem:[%s415 + $0xb0] sm:$0xff] %v4133
        %4166 = vst [vmem:[%s415 + $0xb8] sm:$0xff] %v4134
        %4167 = vst [vmem:[%s415 + $0xc0] sm:$0xff] %v4135
        %4168 = vst [vmem:[%s415 + $0xc8] sm:$0xff] %v4136
        %4169 = vst [vmem:[%s415 + $0xd0] sm:$0xff] %v4137
        %4170 = vst [vmem:[%s415 + $0xd8] sm:$0xff] %v4138
        %4171 = vst [vmem:[%s415 + $0xe0] sm:$0xff] %v4139
        %4172 = vst [vmem:[%s415 + $0xe8] sm:$0xff] %v4140
        %4173 = vst [vmem:[%s415 + $0xf0] sm:$0xff] %v4141
        %4174 = vst [vmem:[%s415 + $0xf8] sm:$0xff] %v4142
        %s4175 = sand.u32 %s210, 1
        %s4176 = scalar_lea.sflag [#allocation5], %s4175
        %s4177 = sand.u32 %s210, 1
        %s4178 = smul.addr %s4177, 256
        %s4179 = scalar_lea.vmem [#allocation17], %s4178
        // Predicated region
        $region85: #{tpu_custom_call.1} parent=51 // pred_check
          %p4180 = pneg %p220
        $region86: #{tpu_custom_call.1} parent=51 // pred_check_branch
          %4182 = sbr.rel (%p4180) target = $region88
        $region87: #{tpu_custom_call.1} parent=51 // pred_region
          %s4184 = ssub.s32 4096, 4096
          %4185 = vsyncadd %s4176, %s4184
          %s4186 = smul.addr %s29, 32
          %s4187 = smul.addr %s4186, 128
          %s4188 = scalar_lea.hbm %s8, %s4187
          %s4189 = sshll.u32 %s4179, 4
          %s4190 = int_to_ptr.vmem [resolvable:$true] %s4189
          %4195 = dma.vmem_to_hbm [thread:$0]  %s4190, 4096, %s4188, %s4176, 128, 128, 8
        $region88: #{tpu_custom_call.1} parent=51 // pred_fallthru
          _
      $region52: #{tpu_custom_call.1} parent=5 // pred_fallthru
        _
      %p4196 = scmp.le.s32.totalorder 2, %s24
      // Predicated region
      $region89: #{tpu_custom_call.1} parent=5 // pred_check
        %p4197 = pneg %p4196
      $region90: #{tpu_custom_call.1} parent=5 // pred_check_branch
        %4199 = sbr.rel (%p4197) target = $region92
      $region91: #{tpu_custom_call.1} parent=5 // pred_region
        %s4200 = ssub.s32 %s24, 2
        // Predicated region
        $region93: #{tpu_custom_call.1} parent=91 // pred_check
          %p4201 = pneg %p226
        $region94: #{tpu_custom_call.1} parent=91 // pred_check_branch
          %4203 = sbr.rel (%p4201) target = $region96
        $region95: #{tpu_custom_call.1} parent=91 // pred_region
          %s4204 = sand.u32 %s211, 1
          %s4205 = scalar_lea.sflag [#allocation5], %s4204
          %s4206 = sand.u32 %s211, 1
          %s4207 = smul.addr %s4206, 256
          %s4208 = scalar_lea.vmem [#allocation17], %s4207
          %4209 = dma.done %s4205, 4096
        $region96: #{tpu_custom_call.1} parent=91 // pred_fallthru
          _
      $region92: #{tpu_custom_call.1} parent=5 // pred_fallthru
        _
    $region6: #{tpu_custom_call.1} parent=1 // loop_footer
      %s28 = sadd.s32 1, %s24
    $region7: #{tpu_custom_call.1} parent=1 // loop_footer_branch
      %23 = sbr.rel target = $region3
    $region8: #{tpu_custom_call.1} parent=1 // loop_exit
      _
    %4210 = vsyncpa [#allocation4], 1
    %s4211 = scalar_lea.sflag [#allocation4], 1
    %4212 = vsyncpa %s4211, 1
    %4213 = vsyncpa [#allocation7], 1
    %4214 = vsyncpa [#allocation10], 1
    %4215 = vsyncpa [#allocation13], 1
    %4216 = vsyncpa [#allocation16], 1
    %4217 = vsyncpa [#allocation5], 1
    %s4218 = scalar_lea.sflag [#allocation5], 1
    %4219 = vsyncpa %s4218, 1

</llo_original>
